<compile_context>
chip_gen: v7x
topology: tpu7x:2x2x1
jax: 0.10.0
libtpu: 0.0.40
codegen_flags: <defaults>
</compile_context>

<pallas_src>
import numpy as np
import jax
import jax.numpy as jnp
from jax.experimental import pallas as pl
from jax.experimental.pallas import tpu as pltpu

EPS = 1e-5      # nn.BatchNorm2d default
KSIZE = 4       # conv kernel size
STRIDE = 2      # conv stride
_ANY_THRESHOLD = 16 * 1024   # constants >= 16 KiB (layers 2+) go to HBM + manual DMA


# ---------------------------------------------------------------------------
# Init-time construction of the constant matrices that let the kernel express
# conv + zero-padding + im2col purely as 2-D matmuls.
# ---------------------------------------------------------------------------

def _w_tap_select(w_in_pad, w_out, pad_out):
    """sel[wp, wop, kw] = 1 iff padded-input col wp == 2*wo + kw, where wo is
    the real output col behind (possibly border-padded) output col wop."""
    wop_n = w_out + 2 if pad_out else w_out
    off = 1 if pad_out else 0
    sel = np.zeros((w_in_pad, wop_n, KSIZE), np.float32)
    for wo in range(w_out):
        for kw in range(KSIZE):
            sel[2 * wo + kw, wo + off, kw] = 1.0
    return sel


def _h_tap_select(batch, h_in_pad, h_out, pad_out, kh):
    """L_kh[(b,hop),(b,hp)] = 1 iff hp == 2*ho + kh (block-diag over batch).
    Border output rows (when pad_out) stay all-zero."""
    hop_n = h_out + 2 if pad_out else h_out
    off = 1 if pad_out else 0
    lh = np.zeros((hop_n, h_in_pad), np.float32)
    for ho in range(h_out):
        lh[ho + off, 2 * ho + kh] = 1.0
    return np.kron(np.eye(batch, dtype=np.float32), lh)


def _build_plan(params, batch, num_channels, hw):
    """Operand list (+ memory-space tags), per-layer metadata and a cost model."""
    operands = []          # [{"arr": array-or-None, "space": "vmem"|"any"}]

    def add(arr, space):
        operands.append({"arr": arr, "space": space})
        return len(operands) - 1

    a1_shape = (batch * (hw + 2), (hw + 2) * num_channels)
    add(None, "vmem")      # slot 0: runtime activation A1

    layers = []
    flops = 0
    ci, hin = num_channels, hw
    nconv = len(params["convs"])
    for idx, (w, _bias_unused, gamma, beta) in enumerate(params["convs"]):
        # _bias_unused: a per-channel bias before training-mode BatchNorm is
        # exactly cancelled by the mean subtraction -> intentionally dropped.
        co = int(w.shape[0])
        hout = hin // STRIDE
        pad_out = idx < nconv - 1                 # pre-pad for the next conv
        hp = hin + 2                               # padded input H (=W, square)
        hop = hout + 2 if pad_out else hout        # (padded) output H (=W)
        lanes_in, lanes_out = hp * ci, hop * co
        rows_in, rows_out = batch * hp, batch * hop
        rpad = ((rows_out + 7) // 8) * 8           # sublane-aligned block height
        force_vmem = (idx == 0)                    # layer-1 constants ride the prologue

        def _space(nbytes):
            return "vmem" if (force_vmem or nbytes < _ANY_THRESHOLD) else "any"

        # Lane-side: kw-tap selection + conv weights + output W-padding (per kh).
        sel_w = _w_tap_select(hp, hout, pad_out)                        # (Wp,Wop,4)
        r = jnp.einsum("pqk,oihk->hpiqo", jnp.asarray(sel_w), w)        # (4,Wp,Ci,Wop,Co)
        r = r.reshape(KSIZE, lanes_in, lanes_out)

        # Row-side: ALL four kh-tap selectors (+ output H-padding + batch
        # block-diag) stacked along rows -> ONE matmul in the kernel.
        l_vcat = np.zeros((KSIZE * rpad, rows_in), np.float32)
        for kh in range(KSIZE):
            l_vcat[kh * rpad: kh * rpad + rows_out, :] = \
                _h_tap_select(batch, hp, hout, pad_out, kh)

        # Same-channel grouping matrix (per-channel sums, broadcast back to lanes).
        g_mat = np.kron(np.ones((hop, hop), np.float32),
                        np.eye(co, dtype=np.float32))                   # (lanes,lanes)
        gamma_l = jnp.tile(gamma.reshape(1, co), (1, hop))              # (1, lanes)
        beta_l = jnp.tile(beta.reshape(1, co), (1, hop))

        lay = {
            "rows_out": rows_out, "rpad": rpad,
            "count": float(batch * hout * hout), "masked": pad_out,
            "r": add(r, _space(int(r.size) * 4)),
            "l": add(jnp.asarray(l_vcat), _space(l_vcat.size * 4)),
            "g": add(jnp.asarray(g_mat), _space(g_mat.size * 4)),
            "gamma": add(gamma_l, "vmem"),
            "beta": add(beta_l, "vmem"),
        }
        if pad_out:
            # Border mask: conv zero-padding must stay exactly 0 after BN+ReLU.
            row_ok = np.zeros((rows_out, 1), np.float32)
            for b in range(batch):
                row_ok[b * hop + 1: b * hop + 1 + hout, 0] = 1.0
            col_ok = np.zeros((1, lanes_out), np.float32)
            col_ok[0, co: co + hout * co] = 1.0
            mask = row_ok * col_ok
            lay["mask"] = add(jnp.asarray(mask), _space(mask.size * 4))
        layers.append(lay)

        flops += 2 * (KSIZE * rpad) * rows_in * lanes_in            # L_vcat @ A
        flops += KSIZE * 2 * rows_out * lanes_in * lanes_out        # S_kh @ R_kh
        flops += 2 * 2 * lanes_out * lanes_out                      # BN stat matmuls
        ci, hin = co, hout

    # fc head: fold the PyTorch (C,H,W) flatten order into ONE lane-blocked
    # weight matrix + a constant block-diagonal lane mask; no in-kernel
    # reshape/transpose is needed.
    c4, s4 = ci, hin                                   # 32, 4
    w1, b1 = params["fc1_w"], params["fc1_b"]          # (256, 512), (256,)
    n1 = int(w1.shape[0])
    w1r = w1.reshape(n1, c4, s4, s4)                   # [n, c, h, w]
    blocks = [jnp.transpose(w1r[:, :, h, :], (2, 1, 0)).reshape(s4 * c4, n1)
              for h in range(s4)]                      # each (W4*C4, 256), rows=(w,c)
    w1cat = jnp.concatenate(blocks, axis=1)            # (W4*C4, H4*256) = (128, 1024)
    dsel = np.zeros((batch * s4, s4 * n1), np.float32)  # keep only the own-h block
    for b in range(batch):
        for h in range(s4):
            dsel[b * s4 + h, h * n1:(h + 1) * n1] = 1.0
    selb = np.zeros((batch, batch * s4), np.float32)    # sum rows of the same batch
    for b in range(batch):
        selb[b, b * s4:(b + 1) * s4] = 1.0
    w2t = params["fc2_w"].T                             # (256, 128), pre-transposed
    n2 = int(w2t.shape[1])

    fc = {
        "s4": s4, "n1": n1,
        "w1cat": add(w1cat, "any"),
        "dsel": add(jnp.asarray(dsel), "any"),
        "selb": add(jnp.asarray(selb), "vmem"),
        "b1": add(b1.reshape(1, n1), "vmem"),
        "w2t": add(w2t, "any"),
        "b2": add(params["fc2_b"].reshape(1, n2), "vmem"),
    }
    flops += 2 * (batch * s4) * (s4 * c4) * (s4 * n1)   # act @ W1cat
    flops += 2 * batch * (batch * s4) * (s4 * n1)        # selb @ (H*Dsel)
    flops += 2 * batch * n1 * n2                         # fc2

    any_ids = [i for i, op in enumerate(operands) if op["space"] == "any"]
    transcendentals = sum(int(op["arr"].shape[1]) for i, op in enumerate(operands)
                          if any(lay["gamma"] == i for lay in layers))  # rsqrt lanes
    nbytes = sum(int(np.prod(op["arr"].shape)) * 4
                 for op in operands if op["arr"] is not None)
    nbytes += int(np.prod(a1_shape)) * 4 + batch * n2 * 4

    return {"operands": operands, "layers": layers, "fc": fc,
            "a1_shape": a1_shape, "any_ids": any_ids, "n_out": n2,
            "flops": int(flops), "transcendentals": int(transcendentals),
            "bytes": int(nbytes)}


# ---------------------------------------------------------------------------
# The single fused Pallas kernel.
# ---------------------------------------------------------------------------

def _make_kernel(plan):
    layers, fc = plan["layers"], plan["fc"]
    spaces = [op["space"] for op in plan["operands"]]
    any_ids = plan["any_ids"]
    n_ops, n_any = len(spaces), len(any_ids)
    slot_of = {opid: s for s, opid in enumerate(any_ids)}

    def kernel(*refs):
        in_refs = refs[:n_ops]
        out_ref = refs[n_ops]
        dma_bufs = refs[n_ops + 1: n_ops + 1 + n_any]
        sem = refs[n_ops + 1 + n_any]

        def _copy(opid):
            s = slot_of[opid]
            return pltpu.make_async_copy(in_refs[opid], dma_bufs[s], sem.at[s])

        # Kick off ALL constant HBM->VMEM prefetches up front (layer order);
        # they overlap with layer-1 compute, whose constants arrived with the
        # regular Pallas prologue.
        for opid in any_ids:
            _copy(opid).start()

        def use(opid):
            if spaces[opid] == "any":
                _copy(opid).wait()                   # first (and only) use
                return dma_bufs[slot_of[opid]]
            return in_refs[opid]

        act = in_refs[0][...]                        # A1: (B*(H+2), (W+2)*Cin)

        for lay in layers:                           # 4x conv -> BN -> ReLU
            r_ref = use(lay["r"])                    # (4, lanes_in, lanes_out)
            l_ref = use(lay["l"])                    # (4*rpad, rows_in)
            g_ref = use(lay["g"])                    # (lanes_out, lanes_out)
            gamma_l = in_refs[lay["gamma"]][...]     # (1, lanes_out)
            beta_l = in_refs[lay["beta"]][...]
            rpad, rows_out = lay["rpad"], lay["rows_out"]

            # Conv2d(k=4, s=2, p=1):  S = L_vcat @ A  (one MXU pass), then
            # Y = sum_kh  S[kh-block] @ R_kh  on sublane-aligned row slices.
            s_all = jnp.dot(l_ref[...], act, preferred_element_type=jnp.float32)
            y = None
            for kh in range(KSIZE):
                s_kh = s_all[kh * rpad: kh * rpad + rows_out, :]
                u = jnp.dot(s_kh, r_ref[kh], preferred_element_type=jnp.float32)
                y = u if y is None else y + u

            # BatchNorm2d training forward, one-pass batch stats (biased var).
            # Linearity: reduce over rows FIRST (XLU), then tiny M=1 grouping
            # matmuls — replaces the former full-size (rows x lanes x lanes)
            # grouping matmuls.
            inv_n = 1.0 / lay["count"]
            g = g_ref[...]
            mean_l = jnp.dot(jnp.sum(y, axis=0, keepdims=True), g,
                             preferred_element_type=jnp.float32) * inv_n
            ex2_l = jnp.dot(jnp.sum(y * y, axis=0, keepdims=True), g,
                            preferred_element_type=jnp.float32) * inv_n
            var_l = ex2_l - mean_l * mean_l
            scale_l = gamma_l * jax.lax.rsqrt(var_l + EPS)
            shift_l = beta_l - mean_l * scale_l
            act = jnp.maximum(y * scale_l + shift_l, 0.0)       # ReLU
            if lay["masked"]:
                act = act * use(lay["mask"])[...]   # keep conv zero-padding exactly 0

        # fc1 (PyTorch (C,H,W) flatten folded into W1cat/Dsel) -> ReLU -> fc2.
        w1cat = use(fc["w1cat"])[...]               # (W4*C4, H4*256)
        dsel = use(fc["dsel"])[...]                 # (B*H4, H4*256)
        w2t = use(fc["w2t"])[...]                   # (256, 128)
        selb = in_refs[fc["selb"]][...]             # (B, B*H4)
        b1 = in_refs[fc["b1"]][...]                 # (1, 256)
        b2 = in_refs[fc["b2"]][...]                 # (1, 128)
        n1, s4 = fc["n1"], fc["s4"]

        h_all = jnp.dot(act, w1cat, preferred_element_type=jnp.float32)   # (B*H4, H4*256)
        srow = jnp.dot(selb, h_all * dsel, preferred_element_type=jnp.float32)  # (B, H4*256)
        hpre = srow[:, 0:n1]
        for h in range(1, s4):                      # 256-aligned lane-block fold (VPU)
            hpre = hpre + srow[:, h * n1:(h + 1) * n1]
        hidden = jnp.maximum(hpre + b1, 0.0)
        out_ref[...] = jnp.dot(hidden, w2t, preferred_element_type=jnp.float32) + b2

    return kernel


def build_encoder_forward(params, batch, num_channels=3, hw=64):
    """Returns a jitted forward(x) that runs the whole Encoder in ONE pallas_call."""
    plan = _build_plan(params, batch, num_channels, hw)
    kernel = _make_kernel(plan)

    in_specs = []
    for op in plan["operands"]:
        if op["space"] == "any":
            in_specs.append(pl.BlockSpec(memory_space=pl.ANY))
        else:
            in_specs.append(pl.BlockSpec(memory_space=pltpu.MemorySpace.VMEM))

    scratch_shapes = [pltpu.VMEM(plan["operands"][i]["arr"].shape, jnp.float32)
                      for i in plan["any_ids"]]
    scratch_shapes.append(pltpu.SemaphoreType.DMA((len(plan["any_ids"]),)))

    call = pl.pallas_call(
        kernel,
        out_shape=jax.ShapeDtypeStruct((batch, plan["n_out"]), jnp.float32),
        in_specs=in_specs,
        out_specs=pl.BlockSpec(memory_space=pltpu.MemorySpace.VMEM),
        scratch_shapes=scratch_shapes,
        cost_estimate=pl.CostEstimate(flops=plan["flops"],
                                      transcendentals=plan["transcendentals"],
                                      bytes_accessed=plan["bytes"]),
    )

    consts = [op["arr"] for op in plan["operands"][1:]]

    def forward(x):
        # Only XLA glue left: NCHW -> padded NHWC -> 2-D A1[(b,h), (w,c)].
        xp = jnp.pad(jnp.transpose(x, (0, 2, 3, 1)),
                     ((0, 0), (1, 1), (1, 1), (0, 0)))
        a1 = xp.reshape(batch * (hw + 2), (hw + 2) * num_channels)
        return call(a1, *consts)

    return jax.jit(forward)


# ---------------------------------------------------------------------------
# Pure-JAX reference (for validation) and parameter init (normal_init).
# ---------------------------------------------------------------------------

def ref_forward(x, params):
    out = x
    for (w, b, g, bt) in params["convs"]:
        out = jax.lax.conv_general_dilated(
            out, w, window_strides=(2, 2), padding=((1, 1), (1, 1)),
            dimension_numbers=("NCHW", "OIHW", "NCHW"))
        out = out + b.reshape(1, -1, 1, 1)
        mean = out.mean(axis=(0, 2, 3), keepdims=True)
        var = ((out - mean) ** 2).mean(axis=(0, 2, 3), keepdims=True)
        out = (out - mean) * jax.lax.rsqrt(var + EPS)
        out = jnp.maximum(out * g.reshape(1, -1, 1, 1) + bt.reshape(1, -1, 1, 1), 0.0)
    flat = out.reshape(out.shape[0], -1)
    h = jnp.maximum(flat @ params["fc1_w"].T + params["fc1_b"], 0.0)
    return h @ params["fc2_w"].T + params["fc2_b"]


def init_params(key, num_channels=3):
    # normal_init semantics: weights ~ N(0, 0.1), conv/linear biases = 0,
    # BatchNorm gamma = 1, beta = 0.
    chans = [(num_channels, 4), (4, 8), (8, 16), (16, 32)]
    keys = jax.random.split(key, len(chans) + 2)
    convs = []
    for i, (cin, cout) in enumerate(chans):
        w = 0.1 * jax.random.normal(keys[i], (cout, cin, 4, 4), jnp.float32)
        b = jnp.zeros((cout,), jnp.float32)
        gamma = jnp.ones((cout,), jnp.float32)
        beta = jnp.zeros((cout,), jnp.float32)
        convs.append((w, b, gamma, beta))
    fc1_w = 0.1 * jax.random.normal(keys[-2], (256, 4 * 4 * 32), jnp.float32)
    fc1_b = jnp.zeros((256,), jnp.float32)
    fc2_w = 0.1 * jax.random.normal(keys[-1], (128, 256), jnp.float32)
    fc2_b = jnp.zeros((128,), jnp.float32)
    return {"convs": convs, "fc1_w": fc1_w, "fc1_b": fc1_b,
            "fc2_w": fc2_w, "fc2_b": fc2_b}


# ---------------------------------------------------------------------------

if __name__ == "__main__":
    key = jax.random.PRNGKey(0)
    pkey, xkey = jax.random.split(key)
    params = init_params(pkey, num_channels=3)

    # Input must be 64x64 so four stride-2 convs produce the 4*4*32 flatten.
    x = jax.random.normal(xkey, (2, 3, 64, 64), jnp.float32)

    fwd = build_encoder_forward(params, batch=2, num_channels=3, hw=64)
    out = jax.block_until_ready(fwd(x))
    ref = jax.block_until_ready(ref_forward(x, params))

    assert out.shape == (2, 128), out.shape
    max_err = float(jnp.max(jnp.abs(out - ref)))
    assert jnp.allclose(out, ref, atol=2e-3, rtol=2e-3), max_err
    print("KERNEL_OK")
</pallas_src>

<mosaic_0001>
module attributes {stable_mosaic.version = 11 : i64} {
  func.func @kernel(%arg0: memref<132x198xf32, #tpu.memory_space<vmem>>, %arg1: memref<4x198x136xf32, #tpu.memory_space<vmem>>, %arg2: memref<288x132xf32, #tpu.memory_space<vmem>>, %arg3: memref<136x136xf32, #tpu.memory_space<vmem>>, %arg4: memref<1x136xf32, #tpu.memory_space<vmem>>, %arg5: memref<1x136xf32, #tpu.memory_space<vmem>>, %arg6: memref<68x136xf32, #tpu.memory_space<vmem>>, %arg7: memref<4x136x144xf32, #tpu.memory_space<any>>, %arg8: memref<160x68xf32, #tpu.memory_space<any>>, %arg9: memref<144x144xf32, #tpu.memory_space<any>>, %arg10: memref<1x144xf32, #tpu.memory_space<vmem>>, %arg11: memref<1x144xf32, #tpu.memory_space<vmem>>, %arg12: memref<36x144xf32, #tpu.memory_space<any>>, %arg13: memref<4x144x160xf32, #tpu.memory_space<any>>, %arg14: memref<96x36xf32, #tpu.memory_space<vmem>>, %arg15: memref<160x160xf32, #tpu.memory_space<any>>, %arg16: memref<1x160xf32, #tpu.memory_space<vmem>>, %arg17: memref<1x160xf32, #tpu.memory_space<vmem>>, %arg18: memref<20x160xf32, #tpu.memory_space<vmem>>, %arg19: memref<4x160x128xf32, #tpu.memory_space<any>>, %arg20: memref<32x20xf32, #tpu.memory_space<vmem>>, %arg21: memref<128x128xf32, #tpu.memory_space<any>>, %arg22: memref<1x128xf32, #tpu.memory_space<vmem>>, %arg23: memref<1x128xf32, #tpu.memory_space<vmem>>, %arg24: memref<128x1024xf32, #tpu.memory_space<any>>, %arg25: memref<8x1024xf32, #tpu.memory_space<any>>, %arg26: memref<2x8xf32, #tpu.memory_space<vmem>>, %arg27: memref<1x256xf32, #tpu.memory_space<vmem>>, %arg28: memref<256x128xf32, #tpu.memory_space<any>>, %arg29: memref<1x128xf32, #tpu.memory_space<vmem>>, %arg30: memref<2x128xf32, #tpu.memory_space<vmem>>, %arg31: memref<4x136x144xf32, #tpu.memory_space<vmem>>, %arg32: memref<160x68xf32, #tpu.memory_space<vmem>>, %arg33: memref<144x144xf32, #tpu.memory_space<vmem>>, %arg34: memref<36x144xf32, #tpu.memory_space<vmem>>, %arg35: memref<4x144x160xf32, #tpu.memory_space<vmem>>, %arg36: memref<160x160xf32, #tpu.memory_space<vmem>>, %arg37: memref<4x160x128xf32, #tpu.memory_space<vmem>>, %arg38: memref<128x128xf32, #tpu.memory_space<vmem>>, %arg39: memref<128x1024xf32, #tpu.memory_space<vmem>>, %arg40: memref<8x1024xf32, #tpu.memory_space<vmem>>, %arg41: memref<256x128xf32, #tpu.memory_space<vmem>>, %arg42: memref<11x!tpu.dma_semaphore, #tpu.memory_space<semaphore_mem>>) attributes {dimension_semantics = [], scalar_prefetch = 0 : i64, scratch_operands = 12 : i64, tpu.core_type = #tpu.core_type<tc>} {
    %c0_i32 = arith.constant 0 : i32
    %0 = tpu.memref_slice %arg42[%c0_i32] : memref<11x!tpu.dma_semaphore, #tpu.memory_space<semaphore_mem>> -> memref<1x!tpu.dma_semaphore, #tpu.memory_space<semaphore_mem>>
    %1 = tpu.memref_squeeze %0 : memref<1x!tpu.dma_semaphore, #tpu.memory_space<semaphore_mem>> -> memref<!tpu.dma_semaphore, #tpu.memory_space<semaphore_mem>>
    tpu.enqueue_dma source(%arg7 : memref<4x136x144xf32, #tpu.memory_space<any>>) target(%arg31 : memref<4x136x144xf32, #tpu.memory_space<vmem>>) target_semaphore(%1 : memref<!tpu.dma_semaphore, #tpu.memory_space<semaphore_mem>>)
    %c1_i32 = arith.constant 1 : i32
    %2 = tpu.memref_slice %arg42[%c1_i32] : memref<11x!tpu.dma_semaphore, #tpu.memory_space<semaphore_mem>> -> memref<1x!tpu.dma_semaphore, #tpu.memory_space<semaphore_mem>>
    %3 = tpu.memref_squeeze %2 : memref<1x!tpu.dma_semaphore, #tpu.memory_space<semaphore_mem>> -> memref<!tpu.dma_semaphore, #tpu.memory_space<semaphore_mem>>
    tpu.enqueue_dma source(%arg8 : memref<160x68xf32, #tpu.memory_space<any>>) target(%arg32 : memref<160x68xf32, #tpu.memory_space<vmem>>) target_semaphore(%3 : memref<!tpu.dma_semaphore, #tpu.memory_space<semaphore_mem>>)
    %c2_i32 = arith.constant 2 : i32
    %4 = tpu.memref_slice %arg42[%c2_i32] : memref<11x!tpu.dma_semaphore, #tpu.memory_space<semaphore_mem>> -> memref<1x!tpu.dma_semaphore, #tpu.memory_space<semaphore_mem>>
    %5 = tpu.memref_squeeze %4 : memref<1x!tpu.dma_semaphore, #tpu.memory_space<semaphore_mem>> -> memref<!tpu.dma_semaphore, #tpu.memory_space<semaphore_mem>>
    tpu.enqueue_dma source(%arg9 : memref<144x144xf32, #tpu.memory_space<any>>) target(%arg33 : memref<144x144xf32, #tpu.memory_space<vmem>>) target_semaphore(%5 : memref<!tpu.dma_semaphore, #tpu.memory_space<semaphore_mem>>)
    %c3_i32 = arith.constant 3 : i32
    %6 = tpu.memref_slice %arg42[%c3_i32] : memref<11x!tpu.dma_semaphore, #tpu.memory_space<semaphore_mem>> -> memref<1x!tpu.dma_semaphore, #tpu.memory_space<semaphore_mem>>
    %7 = tpu.memref_squeeze %6 : memref<1x!tpu.dma_semaphore, #tpu.memory_space<semaphore_mem>> -> memref<!tpu.dma_semaphore, #tpu.memory_space<semaphore_mem>>
    tpu.enqueue_dma source(%arg12 : memref<36x144xf32, #tpu.memory_space<any>>) target(%arg34 : memref<36x144xf32, #tpu.memory_space<vmem>>) target_semaphore(%7 : memref<!tpu.dma_semaphore, #tpu.memory_space<semaphore_mem>>)
    %c4_i32 = arith.constant 4 : i32
    %8 = tpu.memref_slice %arg42[%c4_i32] : memref<11x!tpu.dma_semaphore, #tpu.memory_space<semaphore_mem>> -> memref<1x!tpu.dma_semaphore, #tpu.memory_space<semaphore_mem>>
    %9 = tpu.memref_squeeze %8 : memref<1x!tpu.dma_semaphore, #tpu.memory_space<semaphore_mem>> -> memref<!tpu.dma_semaphore, #tpu.memory_space<semaphore_mem>>
    tpu.enqueue_dma source(%arg13 : memref<4x144x160xf32, #tpu.memory_space<any>>) target(%arg35 : memref<4x144x160xf32, #tpu.memory_space<vmem>>) target_semaphore(%9 : memref<!tpu.dma_semaphore, #tpu.memory_space<semaphore_mem>>)
    %c5_i32 = arith.constant 5 : i32
    %10 = tpu.memref_slice %arg42[%c5_i32] : memref<11x!tpu.dma_semaphore, #tpu.memory_space<semaphore_mem>> -> memref<1x!tpu.dma_semaphore, #tpu.memory_space<semaphore_mem>>
    %11 = tpu.memref_squeeze %10 : memref<1x!tpu.dma_semaphore, #tpu.memory_space<semaphore_mem>> -> memref<!tpu.dma_semaphore, #tpu.memory_space<semaphore_mem>>
    tpu.enqueue_dma source(%arg15 : memref<160x160xf32, #tpu.memory_space<any>>) target(%arg36 : memref<160x160xf32, #tpu.memory_space<vmem>>) target_semaphore(%11 : memref<!tpu.dma_semaphore, #tpu.memory_space<semaphore_mem>>)
    %c6_i32 = arith.constant 6 : i32
    %12 = tpu.memref_slice %arg42[%c6_i32] : memref<11x!tpu.dma_semaphore, #tpu.memory_space<semaphore_mem>> -> memref<1x!tpu.dma_semaphore, #tpu.memory_space<semaphore_mem>>
    %13 = tpu.memref_squeeze %12 : memref<1x!tpu.dma_semaphore, #tpu.memory_space<semaphore_mem>> -> memref<!tpu.dma_semaphore, #tpu.memory_space<semaphore_mem>>
    tpu.enqueue_dma source(%arg19 : memref<4x160x128xf32, #tpu.memory_space<any>>) target(%arg37 : memref<4x160x128xf32, #tpu.memory_space<vmem>>) target_semaphore(%13 : memref<!tpu.dma_semaphore, #tpu.memory_space<semaphore_mem>>)
    %c7_i32 = arith.constant 7 : i32
    %14 = tpu.memref_slice %arg42[%c7_i32] : memref<11x!tpu.dma_semaphore, #tpu.memory_space<semaphore_mem>> -> memref<1x!tpu.dma_semaphore, #tpu.memory_space<semaphore_mem>>
    %15 = tpu.memref_squeeze %14 : memref<1x!tpu.dma_semaphore, #tpu.memory_space<semaphore_mem>> -> memref<!tpu.dma_semaphore, #tpu.memory_space<semaphore_mem>>
    tpu.enqueue_dma source(%arg21 : memref<128x128xf32, #tpu.memory_space<any>>) target(%arg38 : memref<128x128xf32, #tpu.memory_space<vmem>>) target_semaphore(%15 : memref<!tpu.dma_semaphore, #tpu.memory_space<semaphore_mem>>)
    %c8_i32 = arith.constant 8 : i32
    %16 = tpu.memref_slice %arg42[%c8_i32] : memref<11x!tpu.dma_semaphore, #tpu.memory_space<semaphore_mem>> -> memref<1x!tpu.dma_semaphore, #tpu.memory_space<semaphore_mem>>
    %17 = tpu.memref_squeeze %16 : memref<1x!tpu.dma_semaphore, #tpu.memory_space<semaphore_mem>> -> memref<!tpu.dma_semaphore, #tpu.memory_space<semaphore_mem>>
    tpu.enqueue_dma source(%arg24 : memref<128x1024xf32, #tpu.memory_space<any>>) target(%arg39 : memref<128x1024xf32, #tpu.memory_space<vmem>>) target_semaphore(%17 : memref<!tpu.dma_semaphore, #tpu.memory_space<semaphore_mem>>)
    %c9_i32 = arith.constant 9 : i32
    %18 = tpu.memref_slice %arg42[%c9_i32] : memref<11x!tpu.dma_semaphore, #tpu.memory_space<semaphore_mem>> -> memref<1x!tpu.dma_semaphore, #tpu.memory_space<semaphore_mem>>
    %19 = tpu.memref_squeeze %18 : memref<1x!tpu.dma_semaphore, #tpu.memory_space<semaphore_mem>> -> memref<!tpu.dma_semaphore, #tpu.memory_space<semaphore_mem>>
    tpu.enqueue_dma source(%arg25 : memref<8x1024xf32, #tpu.memory_space<any>>) target(%arg40 : memref<8x1024xf32, #tpu.memory_space<vmem>>) target_semaphore(%19 : memref<!tpu.dma_semaphore, #tpu.memory_space<semaphore_mem>>)
    %c10_i32 = arith.constant 10 : i32
    %20 = tpu.memref_slice %arg42[%c10_i32] : memref<11x!tpu.dma_semaphore, #tpu.memory_space<semaphore_mem>> -> memref<1x!tpu.dma_semaphore, #tpu.memory_space<semaphore_mem>>
    %21 = tpu.memref_squeeze %20 : memref<1x!tpu.dma_semaphore, #tpu.memory_space<semaphore_mem>> -> memref<!tpu.dma_semaphore, #tpu.memory_space<semaphore_mem>>
    tpu.enqueue_dma source(%arg28 : memref<256x128xf32, #tpu.memory_space<any>>) target(%arg41 : memref<256x128xf32, #tpu.memory_space<vmem>>) target_semaphore(%21 : memref<!tpu.dma_semaphore, #tpu.memory_space<semaphore_mem>>)
    %c0 = arith.constant 0 : index
    %c0_0 = arith.constant 0 : index
    %22 = vector.load %arg0[%c0, %c0_0] : memref<132x198xf32, #tpu.memory_space<vmem>>, vector<132x198xf32>
    %c0_1 = arith.constant 0 : index
    %c0_2 = arith.constant 0 : index
    %23 = vector.load %arg4[%c0_1, %c0_2] : memref<1x136xf32, #tpu.memory_space<vmem>>, vector<1x136xf32>
    %c0_3 = arith.constant 0 : index
    %c0_4 = arith.constant 0 : index
    %24 = vector.load %arg5[%c0_3, %c0_4] : memref<1x136xf32, #tpu.memory_space<vmem>>, vector<1x136xf32>
    %c0_5 = arith.constant 0 : index
    %c0_6 = arith.constant 0 : index
    %25 = vector.load %arg2[%c0_5, %c0_6] : memref<288x132xf32, #tpu.memory_space<vmem>>, vector<288x132xf32>
    %cst = arith.constant dense<0.000000e+00> : vector<288x198xf32>
    %26 = tpu.matmul %25, %22, %cst {dimension_numbers = #tpu.dot_dimension_numbers<[1], [0], [0], [1], [0, 0, 1, 1], [], []>} : vector<288x132xf32>, vector<132x198xf32>, vector<288x198xf32> -> vector<288x198xf32>
    %27 = vector.extract_strided_slice %26 {offsets = [0, 0], sizes = [68, 198], strides = [1, 1]} : vector<288x198xf32> to vector<68x198xf32>
    %c0_7 = arith.constant 0 : index
    %c0_8 = arith.constant 0 : index
    %c0_9 = arith.constant 0 : index
    %28 = vector.load %arg1[%c0_7, %c0_8, %c0_9] : memref<4x198x136xf32, #tpu.memory_space<vmem>>, vector<1x198x136xf32>
    %29 = vector.shape_cast %28 : vector<1x198x136xf32> to vector<198x136xf32>
    %cst_10 = arith.constant dense<0.000000e+00> : vector<68x136xf32>
    %30 = tpu.matmul %27, %29, %cst_10 {dimension_numbers = #tpu.dot_dimension_numbers<[1], [0], [0], [1], [0, 0, 1, 1], [], []>} : vector<68x198xf32>, vector<198x136xf32>, vector<68x136xf32> -> vector<68x136xf32>
    %31 = vector.extract_strided_slice %26 {offsets = [72, 0], sizes = [68, 198], strides = [1, 1]} : vector<288x198xf32> to vector<68x198xf32>
    %c1 = arith.constant 1 : index
    %c0_11 = arith.constant 0 : index
    %c0_12 = arith.constant 0 : index
    %32 = vector.load %arg1[%c1, %c0_11, %c0_12] : memref<4x198x136xf32, #tpu.memory_space<vmem>>, vector<1x198x136xf32>
    %33 = vector.shape_cast %32 : vector<1x198x136xf32> to vector<198x136xf32>
    %cst_13 = arith.constant dense<0.000000e+00> : vector<68x136xf32>
    %34 = tpu.matmul %31, %33, %cst_13 {dimension_numbers = #tpu.dot_dimension_numbers<[1], [0], [0], [1], [0, 0, 1, 1], [], []>} : vector<68x198xf32>, vector<198x136xf32>, vector<68x136xf32> -> vector<68x136xf32>
    %35 = arith.addf %30, %34 : vector<68x136xf32>
    %36 = vector.extract_strided_slice %26 {offsets = [144, 0], sizes = [68, 198], strides = [1, 1]} : vector<288x198xf32> to vector<68x198xf32>
    %c2 = arith.constant 2 : index
    %c0_14 = arith.constant 0 : index
    %c0_15 = arith.constant 0 : index
    %37 = vector.load %arg1[%c2, %c0_14, %c0_15] : memref<4x198x136xf32, #tpu.memory_space<vmem>>, vector<1x198x136xf32>
    %38 = vector.shape_cast %37 : vector<1x198x136xf32> to vector<198x136xf32>
    %cst_16 = arith.constant dense<0.000000e+00> : vector<68x136xf32>
    %39 = tpu.matmul %36, %38, %cst_16 {dimension_numbers = #tpu.dot_dimension_numbers<[1], [0], [0], [1], [0, 0, 1, 1], [], []>} : vector<68x198xf32>, vector<198x136xf32>, vector<68x136xf32> -> vector<68x136xf32>
    %40 = arith.addf %35, %39 : vector<68x136xf32>
    %41 = vector.extract_strided_slice %26 {offsets = [216, 0], sizes = [68, 198], strides = [1, 1]} : vector<288x198xf32> to vector<68x198xf32>
    %c3 = arith.constant 3 : index
    %c0_17 = arith.constant 0 : index
    %c0_18 = arith.constant 0 : index
    %42 = vector.load %arg1[%c3, %c0_17, %c0_18] : memref<4x198x136xf32, #tpu.memory_space<vmem>>, vector<1x198x136xf32>
    %43 = vector.shape_cast %42 : vector<1x198x136xf32> to vector<198x136xf32>
    %cst_19 = arith.constant dense<0.000000e+00> : vector<68x136xf32>
    %44 = tpu.matmul %41, %43, %cst_19 {dimension_numbers = #tpu.dot_dimension_numbers<[1], [0], [0], [1], [0, 0, 1, 1], [], []>} : vector<68x198xf32>, vector<198x136xf32>, vector<68x136xf32> -> vector<68x136xf32>
    %45 = arith.addf %40, %44 : vector<68x136xf32>
    %c0_20 = arith.constant 0 : index
    %c0_21 = arith.constant 0 : index
    %46 = vector.load %arg3[%c0_20, %c0_21] : memref<136x136xf32, #tpu.memory_space<vmem>>, vector<136x136xf32>
    %cst_22 = arith.constant dense<0.000000e+00> : vector<136xf32>
    %47 = vector.multi_reduction <add>, %45, %cst_22 [0] : vector<68x136xf32> to vector<136xf32>
    %48 = vector.shape_cast %47 : vector<136xf32> to vector<1x136xf32>
    %cst_23 = arith.constant dense<0.000000e+00> : vector<1x136xf32>
    %49 = tpu.matmul %48, %46, %cst_23 {dimension_numbers = #tpu.dot_dimension_numbers<[1], [0], [0], [1], [0, 0, 1, 1], [], []>} : vector<1x136xf32>, vector<136x136xf32>, vector<1x136xf32> -> vector<1x136xf32>
    %cst_24 = arith.constant 4.8828125E-4 : f32
    %50 = vector.broadcast %cst_24 : f32 to vector<1x136xf32>
    %51 = arith.mulf %49, %50 : vector<1x136xf32>
    %52 = arith.mulf %45, %45 : vector<68x136xf32>
    %cst_25 = arith.constant dense<0.000000e+00> : vector<136xf32>
    %53 = vector.multi_reduction <add>, %52, %cst_25 [0] : vector<68x136xf32> to vector<136xf32>
    %54 = vector.shape_cast %53 : vector<136xf32> to vector<1x136xf32>
    %cst_26 = arith.constant dense<0.000000e+00> : vector<1x136xf32>
    %55 = tpu.matmul %54, %46, %cst_26 {dimension_numbers = #tpu.dot_dimension_numbers<[1], [0], [0], [1], [0, 0, 1, 1], [], []>} : vector<1x136xf32>, vector<136x136xf32>, vector<1x136xf32> -> vector<1x136xf32>
    %cst_27 = arith.constant 4.8828125E-4 : f32
    %56 = vector.broadcast %cst_27 : f32 to vector<1x136xf32>
    %57 = arith.mulf %55, %56 : vector<1x136xf32>
    %58 = arith.mulf %51, %51 : vector<1x136xf32>
    %59 = arith.subf %57, %58 : vector<1x136xf32>
    %cst_28 = arith.constant 9.99999974E-6 : f32
    %60 = vector.broadcast %cst_28 : f32 to vector<1x136xf32>
    %61 = arith.addf %59, %60 : vector<1x136xf32>
    %62 = math.rsqrt %61 : vector<1x136xf32>
    %63 = arith.mulf %23, %62 : vector<1x136xf32>
    %64 = arith.mulf %51, %63 : vector<1x136xf32>
    %65 = arith.subf %24, %64 : vector<1x136xf32>
    %66 = vector.broadcast %63 : vector<1x136xf32> to vector<68x136xf32>
    %67 = arith.mulf %45, %66 : vector<68x136xf32>
    %68 = vector.broadcast %65 : vector<1x136xf32> to vector<68x136xf32>
    %69 = arith.addf %67, %68 : vector<68x136xf32>
    %cst_29 = arith.constant 0.000000e+00 : f32
    %70 = vector.broadcast %cst_29 : f32 to vector<68x136xf32>
    %71 = arith.maximumf %69, %70 : vector<68x136xf32>
    %c0_30 = arith.constant 0 : index
    %c0_31 = arith.constant 0 : index
    %72 = vector.load %arg6[%c0_30, %c0_31] : memref<68x136xf32, #tpu.memory_space<vmem>>, vector<68x136xf32>
    %73 = arith.mulf %71, %72 : vector<68x136xf32>
    %c0_i32_32 = arith.constant 0 : i32
    %74 = tpu.memref_slice %arg42[%c0_i32_32] : memref<11x!tpu.dma_semaphore, #tpu.memory_space<semaphore_mem>> -> memref<1x!tpu.dma_semaphore, #tpu.memory_space<semaphore_mem>>
    %75 = tpu.memref_squeeze %74 : memref<1x!tpu.dma_semaphore, #tpu.memory_space<semaphore_mem>> -> memref<!tpu.dma_semaphore, #tpu.memory_space<semaphore_mem>>
    tpu.wait_dma2 semaphore(%75 : memref<!tpu.dma_semaphore, #tpu.memory_space<semaphore_mem>>) src(%arg7 : memref<4x136x144xf32, #tpu.memory_space<any>>) dst(%arg31 : memref<4x136x144xf32, #tpu.memory_space<vmem>>)
    %c1_i32_33 = arith.constant 1 : i32
    %76 = tpu.memref_slice %arg42[%c1_i32_33] : memref<11x!tpu.dma_semaphore, #tpu.memory_space<semaphore_mem>> -> memref<1x!tpu.dma_semaphore, #tpu.memory_space<semaphore_mem>>
    %77 = tpu.memref_squeeze %76 : memref<1x!tpu.dma_semaphore, #tpu.memory_space<semaphore_mem>> -> memref<!tpu.dma_semaphore, #tpu.memory_space<semaphore_mem>>
    tpu.wait_dma2 semaphore(%77 : memref<!tpu.dma_semaphore, #tpu.memory_space<semaphore_mem>>) src(%arg8 : memref<160x68xf32, #tpu.memory_space<any>>) dst(%arg32 : memref<160x68xf32, #tpu.memory_space<vmem>>)
    %c2_i32_34 = arith.constant 2 : i32
    %78 = tpu.memref_slice %arg42[%c2_i32_34] : memref<11x!tpu.dma_semaphore, #tpu.memory_space<semaphore_mem>> -> memref<1x!tpu.dma_semaphore, #tpu.memory_space<semaphore_mem>>
    %79 = tpu.memref_squeeze %78 : memref<1x!tpu.dma_semaphore, #tpu.memory_space<semaphore_mem>> -> memref<!tpu.dma_semaphore, #tpu.memory_space<semaphore_mem>>
    tpu.wait_dma2 semaphore(%79 : memref<!tpu.dma_semaphore, #tpu.memory_space<semaphore_mem>>) src(%arg9 : memref<144x144xf32, #tpu.memory_space<any>>) dst(%arg33 : memref<144x144xf32, #tpu.memory_space<vmem>>)
    %c0_35 = arith.constant 0 : index
    %c0_36 = arith.constant 0 : index
    %80 = vector.load %arg10[%c0_35, %c0_36] : memref<1x144xf32, #tpu.memory_space<vmem>>, vector<1x144xf32>
    %c0_37 = arith.constant 0 : index
    %c0_38 = arith.constant 0 : index
    %81 = vector.load %arg11[%c0_37, %c0_38] : memref<1x144xf32, #tpu.memory_space<vmem>>, vector<1x144xf32>
    %c0_39 = arith.constant 0 : index
    %c0_40 = arith.constant 0 : index
    %82 = vector.load %arg32[%c0_39, %c0_40] : memref<160x68xf32, #tpu.memory_space<vmem>>, vector<160x68xf32>
    %cst_41 = arith.constant dense<0.000000e+00> : vector<160x136xf32>
    %83 = tpu.matmul %82, %73, %cst_41 {dimension_numbers = #tpu.dot_dimension_numbers<[1], [0], [0], [1], [0, 0, 1, 1], [], []>} : vector<160x68xf32>, vector<68x136xf32>, vector<160x136xf32> -> vector<160x136xf32>
    %84 = vector.extract_strided_slice %83 {offsets = [0, 0], sizes = [36, 136], strides = [1, 1]} : vector<160x136xf32> to vector<36x136xf32>
    %c0_42 = arith.constant 0 : index
    %c0_43 = arith.constant 0 : index
    %c0_44 = arith.constant 0 : index
    %85 = vector.load %arg31[%c0_42, %c0_43, %c0_44] : memref<4x136x144xf32, #tpu.memory_space<vmem>>, vector<1x136x144xf32>
    %86 = vector.shape_cast %85 : vector<1x136x144xf32> to vector<136x144xf32>
    %cst_45 = arith.constant dense<0.000000e+00> : vector<36x144xf32>
    %87 = tpu.matmul %84, %86, %cst_45 {dimension_numbers = #tpu.dot_dimension_numbers<[1], [0], [0], [1], [0, 0, 1, 1], [], []>} : vector<36x136xf32>, vector<136x144xf32>, vector<36x144xf32> -> vector<36x144xf32>
    %88 = vector.extract_strided_slice %83 {offsets = [40, 0], sizes = [36, 136], strides = [1, 1]} : vector<160x136xf32> to vector<36x136xf32>
    %c1_46 = arith.constant 1 : index
    %c0_47 = arith.constant 0 : index
    %c0_48 = arith.constant 0 : index
    %89 = vector.load %arg31[%c1_46, %c0_47, %c0_48] : memref<4x136x144xf32, #tpu.memory_space<vmem>>, vector<1x136x144xf32>
    %90 = vector.shape_cast %89 : vector<1x136x144xf32> to vector<136x144xf32>
    %cst_49 = arith.constant dense<0.000000e+00> : vector<36x144xf32>
    %91 = tpu.matmul %88, %90, %cst_49 {dimension_numbers = #tpu.dot_dimension_numbers<[1], [0], [0], [1], [0, 0, 1, 1], [], []>} : vector<36x136xf32>, vector<136x144xf32>, vector<36x144xf32> -> vector<36x144xf32>
    %92 = arith.addf %87, %91 : vector<36x144xf32>
    %93 = vector.extract_strided_slice %83 {offsets = [80, 0], sizes = [36, 136], strides = [1, 1]} : vector<160x136xf32> to vector<36x136xf32>
    %c2_50 = arith.constant 2 : index
    %c0_51 = arith.constant 0 : index
    %c0_52 = arith.constant 0 : index
    %94 = vector.load %arg31[%c2_50, %c0_51, %c0_52] : memref<4x136x144xf32, #tpu.memory_space<vmem>>, vector<1x136x144xf32>
    %95 = vector.shape_cast %94 : vector<1x136x144xf32> to vector<136x144xf32>
    %cst_53 = arith.constant dense<0.000000e+00> : vector<36x144xf32>
    %96 = tpu.matmul %93, %95, %cst_53 {dimension_numbers = #tpu.dot_dimension_numbers<[1], [0], [0], [1], [0, 0, 1, 1], [], []>} : vector<36x136xf32>, vector<136x144xf32>, vector<36x144xf32> -> vector<36x144xf32>
    %97 = arith.addf %92, %96 : vector<36x144xf32>
    %98 = vector.extract_strided_slice %83 {offsets = [120, 0], sizes = [36, 136], strides = [1, 1]} : vector<160x136xf32> to vector<36x136xf32>
    %c3_54 = arith.constant 3 : index
    %c0_55 = arith.constant 0 : index
    %c0_56 = arith.constant 0 : index
    %99 = vector.load %arg31[%c3_54, %c0_55, %c0_56] : memref<4x136x144xf32, #tpu.memory_space<vmem>>, vector<1x136x144xf32>
    %100 = vector.shape_cast %99 : vector<1x136x144xf32> to vector<136x144xf32>
    %cst_57 = arith.constant dense<0.000000e+00> : vector<36x144xf32>
    %101 = tpu.matmul %98, %100, %cst_57 {dimension_numbers = #tpu.dot_dimension_numbers<[1], [0], [0], [1], [0, 0, 1, 1], [], []>} : vector<36x136xf32>, vector<136x144xf32>, vector<36x144xf32> -> vector<36x144xf32>
    %102 = arith.addf %97, %101 : vector<36x144xf32>
    %c0_58 = arith.constant 0 : index
    %c0_59 = arith.constant 0 : index
    %103 = vector.load %arg33[%c0_58, %c0_59] : memref<144x144xf32, #tpu.memory_space<vmem>>, vector<144x144xf32>
    %cst_60 = arith.constant dense<0.000000e+00> : vector<144xf32>
    %104 = vector.multi_reduction <add>, %102, %cst_60 [0] : vector<36x144xf32> to vector<144xf32>
    %105 = vector.shape_cast %104 : vector<144xf32> to vector<1x144xf32>
    %cst_61 = arith.constant dense<0.000000e+00> : vector<1x144xf32>
    %106 = tpu.matmul %105, %103, %cst_61 {dimension_numbers = #tpu.dot_dimension_numbers<[1], [0], [0], [1], [0, 0, 1, 1], [], []>} : vector<1x144xf32>, vector<144x144xf32>, vector<1x144xf32> -> vector<1x144xf32>
    %cst_62 = arith.constant 0.001953125 : f32
    %107 = vector.broadcast %cst_62 : f32 to vector<1x144xf32>
    %108 = arith.mulf %106, %107 : vector<1x144xf32>
    %109 = arith.mulf %102, %102 : vector<36x144xf32>
    %cst_63 = arith.constant dense<0.000000e+00> : vector<144xf32>
    %110 = vector.multi_reduction <add>, %109, %cst_63 [0] : vector<36x144xf32> to vector<144xf32>
    %111 = vector.shape_cast %110 : vector<144xf32> to vector<1x144xf32>
    %cst_64 = arith.constant dense<0.000000e+00> : vector<1x144xf32>
    %112 = tpu.matmul %111, %103, %cst_64 {dimension_numbers = #tpu.dot_dimension_numbers<[1], [0], [0], [1], [0, 0, 1, 1], [], []>} : vector<1x144xf32>, vector<144x144xf32>, vector<1x144xf32> -> vector<1x144xf32>
    %cst_65 = arith.constant 0.001953125 : f32
    %113 = vector.broadcast %cst_65 : f32 to vector<1x144xf32>
    %114 = arith.mulf %112, %113 : vector<1x144xf32>
    %115 = arith.mulf %108, %108 : vector<1x144xf32>
    %116 = arith.subf %114, %115 : vector<1x144xf32>
    %cst_66 = arith.constant 9.99999974E-6 : f32
    %117 = vector.broadcast %cst_66 : f32 to vector<1x144xf32>
    %118 = arith.addf %116, %117 : vector<1x144xf32>
    %119 = math.rsqrt %118 : vector<1x144xf32>
    %120 = arith.mulf %80, %119 : vector<1x144xf32>
    %121 = arith.mulf %108, %120 : vector<1x144xf32>
    %122 = arith.subf %81, %121 : vector<1x144xf32>
    %123 = vector.broadcast %120 : vector<1x144xf32> to vector<36x144xf32>
    %124 = arith.mulf %102, %123 : vector<36x144xf32>
    %125 = vector.broadcast %122 : vector<1x144xf32> to vector<36x144xf32>
    %126 = arith.addf %124, %125 : vector<36x144xf32>
    %cst_67 = arith.constant 0.000000e+00 : f32
    %127 = vector.broadcast %cst_67 : f32 to vector<36x144xf32>
    %128 = arith.maximumf %126, %127 : vector<36x144xf32>
    %c3_i32_68 = arith.constant 3 : i32
    %129 = tpu.memref_slice %arg42[%c3_i32_68] : memref<11x!tpu.dma_semaphore, #tpu.memory_space<semaphore_mem>> -> memref<1x!tpu.dma_semaphore, #tpu.memory_space<semaphore_mem>>
    %130 = tpu.memref_squeeze %129 : memref<1x!tpu.dma_semaphore, #tpu.memory_space<semaphore_mem>> -> memref<!tpu.dma_semaphore, #tpu.memory_space<semaphore_mem>>
    tpu.wait_dma2 semaphore(%130 : memref<!tpu.dma_semaphore, #tpu.memory_space<semaphore_mem>>) src(%arg12 : memref<36x144xf32, #tpu.memory_space<any>>) dst(%arg34 : memref<36x144xf32, #tpu.memory_space<vmem>>)
    %c0_69 = arith.constant 0 : index
    %c0_70 = arith.constant 0 : index
    %131 = vector.load %arg34[%c0_69, %c0_70] : memref<36x144xf32, #tpu.memory_space<vmem>>, vector<36x144xf32>
    %132 = arith.mulf %128, %131 : vector<36x144xf32>
    %c4_i32_71 = arith.constant 4 : i32
    %133 = tpu.memref_slice %arg42[%c4_i32_71] : memref<11x!tpu.dma_semaphore, #tpu.memory_space<semaphore_mem>> -> memref<1x!tpu.dma_semaphore, #tpu.memory_space<semaphore_mem>>
    %134 = tpu.memref_squeeze %133 : memref<1x!tpu.dma_semaphore, #tpu.memory_space<semaphore_mem>> -> memref<!tpu.dma_semaphore, #tpu.memory_space<semaphore_mem>>
    tpu.wait_dma2 semaphore(%134 : memref<!tpu.dma_semaphore, #tpu.memory_space<semaphore_mem>>) src(%arg13 : memref<4x144x160xf32, #tpu.memory_space<any>>) dst(%arg35 : memref<4x144x160xf32, #tpu.memory_space<vmem>>)
    %c5_i32_72 = arith.constant 5 : i32
    %135 = tpu.memref_slice %arg42[%c5_i32_72] : memref<11x!tpu.dma_semaphore, #tpu.memory_space<semaphore_mem>> -> memref<1x!tpu.dma_semaphore, #tpu.memory_space<semaphore_mem>>
    %136 = tpu.memref_squeeze %135 : memref<1x!tpu.dma_semaphore, #tpu.memory_space<semaphore_mem>> -> memref<!tpu.dma_semaphore, #tpu.memory_space<semaphore_mem>>
    tpu.wait_dma2 semaphore(%136 : memref<!tpu.dma_semaphore, #tpu.memory_space<semaphore_mem>>) src(%arg15 : memref<160x160xf32, #tpu.memory_space<any>>) dst(%arg36 : memref<160x160xf32, #tpu.memory_space<vmem>>)
    %c0_73 = arith.constant 0 : index
    %c0_74 = arith.constant 0 : index
    %137 = vector.load %arg16[%c0_73, %c0_74] : memref<1x160xf32, #tpu.memory_space<vmem>>, vector<1x160xf32>
    %c0_75 = arith.constant 0 : index
    %c0_76 = arith.constant 0 : index
    %138 = vector.load %arg17[%c0_75, %c0_76] : memref<1x160xf32, #tpu.memory_space<vmem>>, vector<1x160xf32>
    %c0_77 = arith.constant 0 : index
    %c0_78 = arith.constant 0 : index
    %139 = vector.load %arg14[%c0_77, %c0_78] : memref<96x36xf32, #tpu.memory_space<vmem>>, vector<96x36xf32>
    %cst_79 = arith.constant dense<0.000000e+00> : vector<96x144xf32>
    %140 = tpu.matmul %139, %132, %cst_79 {dimension_numbers = #tpu.dot_dimension_numbers<[1], [0], [0], [1], [0, 0, 1, 1], [], []>} : vector<96x36xf32>, vector<36x144xf32>, vector<96x144xf32> -> vector<96x144xf32>
    %141 = vector.extract_strided_slice %140 {offsets = [0, 0], sizes = [20, 144], strides = [1, 1]} : vector<96x144xf32> to vector<20x144xf32>
    %c0_80 = arith.constant 0 : index
    %c0_81 = arith.constant 0 : index
    %c0_82 = arith.constant 0 : index
    %142 = vector.load %arg35[%c0_80, %c0_81, %c0_82] : memref<4x144x160xf32, #tpu.memory_space<vmem>>, vector<1x144x160xf32>
    %143 = vector.shape_cast %142 : vector<1x144x160xf32> to vector<144x160xf32>
    %cst_83 = arith.constant dense<0.000000e+00> : vector<20x160xf32>
    %144 = tpu.matmul %141, %143, %cst_83 {dimension_numbers = #tpu.dot_dimension_numbers<[1], [0], [0], [1], [0, 0, 1, 1], [], []>} : vector<20x144xf32>, vector<144x160xf32>, vector<20x160xf32> -> vector<20x160xf32>
    %145 = vector.extract_strided_slice %140 {offsets = [24, 0], sizes = [20, 144], strides = [1, 1]} : vector<96x144xf32> to vector<20x144xf32>
    %c1_84 = arith.constant 1 : index
    %c0_85 = arith.constant 0 : index
    %c0_86 = arith.constant 0 : index
    %146 = vector.load %arg35[%c1_84, %c0_85, %c0_86] : memref<4x144x160xf32, #tpu.memory_space<vmem>>, vector<1x144x160xf32>
    %147 = vector.shape_cast %146 : vector<1x144x160xf32> to vector<144x160xf32>
    %cst_87 = arith.constant dense<0.000000e+00> : vector<20x160xf32>
    %148 = tpu.matmul %145, %147, %cst_87 {dimension_numbers = #tpu.dot_dimension_numbers<[1], [0], [0], [1], [0, 0, 1, 1], [], []>} : vector<20x144xf32>, vector<144x160xf32>, vector<20x160xf32> -> vector<20x160xf32>
    %149 = arith.addf %144, %148 : vector<20x160xf32>
    %150 = vector.extract_strided_slice %140 {offsets = [48, 0], sizes = [20, 144], strides = [1, 1]} : vector<96x144xf32> to vector<20x144xf32>
    %c2_88 = arith.constant 2 : index
    %c0_89 = arith.constant 0 : index
    %c0_90 = arith.constant 0 : index
    %151 = vector.load %arg35[%c2_88, %c0_89, %c0_90] : memref<4x144x160xf32, #tpu.memory_space<vmem>>, vector<1x144x160xf32>
    %152 = vector.shape_cast %151 : vector<1x144x160xf32> to vector<144x160xf32>
    %cst_91 = arith.constant dense<0.000000e+00> : vector<20x160xf32>
    %153 = tpu.matmul %150, %152, %cst_91 {dimension_numbers = #tpu.dot_dimension_numbers<[1], [0], [0], [1], [0, 0, 1, 1], [], []>} : vector<20x144xf32>, vector<144x160xf32>, vector<20x160xf32> -> vector<20x160xf32>
    %154 = arith.addf %149, %153 : vector<20x160xf32>
    %155 = vector.extract_strided_slice %140 {offsets = [72, 0], sizes = [20, 144], strides = [1, 1]} : vector<96x144xf32> to vector<20x144xf32>
    %c3_92 = arith.constant 3 : index
    %c0_93 = arith.constant 0 : index
    %c0_94 = arith.constant 0 : index
    %156 = vector.load %arg35[%c3_92, %c0_93, %c0_94] : memref<4x144x160xf32, #tpu.memory_space<vmem>>, vector<1x144x160xf32>
    %157 = vector.shape_cast %156 : vector<1x144x160xf32> to vector<144x160xf32>
    %cst_95 = arith.constant dense<0.000000e+00> : vector<20x160xf32>
    %158 = tpu.matmul %155, %157, %cst_95 {dimension_numbers = #tpu.dot_dimension_numbers<[1], [0], [0], [1], [0, 0, 1, 1], [], []>} : vector<20x144xf32>, vector<144x160xf32>, vector<20x160xf32> -> vector<20x160xf32>
    %159 = arith.addf %154, %158 : vector<20x160xf32>
    %c0_96 = arith.constant 0 : index
    %c0_97 = arith.constant 0 : index
    %160 = vector.load %arg36[%c0_96, %c0_97] : memref<160x160xf32, #tpu.memory_space<vmem>>, vector<160x160xf32>
    %cst_98 = arith.constant dense<0.000000e+00> : vector<160xf32>
    %161 = vector.multi_reduction <add>, %159, %cst_98 [0] : vector<20x160xf32> to vector<160xf32>
    %162 = vector.shape_cast %161 : vector<160xf32> to vector<1x160xf32>
    %cst_99 = arith.constant dense<0.000000e+00> : vector<1x160xf32>
    %163 = tpu.matmul %162, %160, %cst_99 {dimension_numbers = #tpu.dot_dimension_numbers<[1], [0], [0], [1], [0, 0, 1, 1], [], []>} : vector<1x160xf32>, vector<160x160xf32>, vector<1x160xf32> -> vector<1x160xf32>
    %cst_100 = arith.constant 7.812500e-03 : f32
    %164 = vector.broadcast %cst_100 : f32 to vector<1x160xf32>
    %165 = arith.mulf %163, %164 : vector<1x160xf32>
    %166 = arith.mulf %159, %159 : vector<20x160xf32>
    %cst_101 = arith.constant dense<0.000000e+00> : vector<160xf32>
    %167 = vector.multi_reduction <add>, %166, %cst_101 [0] : vector<20x160xf32> to vector<160xf32>
    %168 = vector.shape_cast %167 : vector<160xf32> to vector<1x160xf32>
    %cst_102 = arith.constant dense<0.000000e+00> : vector<1x160xf32>
    %169 = tpu.matmul %168, %160, %cst_102 {dimension_numbers = #tpu.dot_dimension_numbers<[1], [0], [0], [1], [0, 0, 1, 1], [], []>} : vector<1x160xf32>, vector<160x160xf32>, vector<1x160xf32> -> vector<1x160xf32>
    %cst_103 = arith.constant 7.812500e-03 : f32
    %170 = vector.broadcast %cst_103 : f32 to vector<1x160xf32>
    %171 = arith.mulf %169, %170 : vector<1x160xf32>
    %172 = arith.mulf %165, %165 : vector<1x160xf32>
    %173 = arith.subf %171, %172 : vector<1x160xf32>
    %cst_104 = arith.constant 9.99999974E-6 : f32
    %174 = vector.broadcast %cst_104 : f32 to vector<1x160xf32>
    %175 = arith.addf %173, %174 : vector<1x160xf32>
    %176 = math.rsqrt %175 : vector<1x160xf32>
    %177 = arith.mulf %137, %176 : vector<1x160xf32>
    %178 = arith.mulf %165, %177 : vector<1x160xf32>
    %179 = arith.subf %138, %178 : vector<1x160xf32>
    %180 = vector.broadcast %177 : vector<1x160xf32> to vector<20x160xf32>
    %181 = arith.mulf %159, %180 : vector<20x160xf32>
    %182 = vector.broadcast %179 : vector<1x160xf32> to vector<20x160xf32>
    %183 = arith.addf %181, %182 : vector<20x160xf32>
    %cst_105 = arith.constant 0.000000e+00 : f32
    %184 = vector.broadcast %cst_105 : f32 to vector<20x160xf32>
    %185 = arith.maximumf %183, %184 : vector<20x160xf32>
    %c0_106 = arith.constant 0 : index
    %c0_107 = arith.constant 0 : index
    %186 = vector.load %arg18[%c0_106, %c0_107] : memref<20x160xf32, #tpu.memory_space<vmem>>, vector<20x160xf32>
    %187 = arith.mulf %185, %186 : vector<20x160xf32>
    %c6_i32_108 = arith.constant 6 : i32
    %188 = tpu.memref_slice %arg42[%c6_i32_108] : memref<11x!tpu.dma_semaphore, #tpu.memory_space<semaphore_mem>> -> memref<1x!tpu.dma_semaphore, #tpu.memory_space<semaphore_mem>>
    %189 = tpu.memref_squeeze %188 : memref<1x!tpu.dma_semaphore, #tpu.memory_space<semaphore_mem>> -> memref<!tpu.dma_semaphore, #tpu.memory_space<semaphore_mem>>
    tpu.wait_dma2 semaphore(%189 : memref<!tpu.dma_semaphore, #tpu.memory_space<semaphore_mem>>) src(%arg19 : memref<4x160x128xf32, #tpu.memory_space<any>>) dst(%arg37 : memref<4x160x128xf32, #tpu.memory_space<vmem>>)
    %c7_i32_109 = arith.constant 7 : i32
    %190 = tpu.memref_slice %arg42[%c7_i32_109] : memref<11x!tpu.dma_semaphore, #tpu.memory_space<semaphore_mem>> -> memref<1x!tpu.dma_semaphore, #tpu.memory_space<semaphore_mem>>
    %191 = tpu.memref_squeeze %190 : memref<1x!tpu.dma_semaphore, #tpu.memory_space<semaphore_mem>> -> memref<!tpu.dma_semaphore, #tpu.memory_space<semaphore_mem>>
    tpu.wait_dma2 semaphore(%191 : memref<!tpu.dma_semaphore, #tpu.memory_space<semaphore_mem>>) src(%arg21 : memref<128x128xf32, #tpu.memory_space<any>>) dst(%arg38 : memref<128x128xf32, #tpu.memory_space<vmem>>)
    %c0_110 = arith.constant 0 : index
    %c0_111 = arith.constant 0 : index
    %192 = vector.load %arg22[%c0_110, %c0_111] : memref<1x128xf32, #tpu.memory_space<vmem>>, vector<1x128xf32>
    %c0_112 = arith.constant 0 : index
    %c0_113 = arith.constant 0 : index
    %193 = vector.load %arg23[%c0_112, %c0_113] : memref<1x128xf32, #tpu.memory_space<vmem>>, vector<1x128xf32>
    %c0_114 = arith.constant 0 : index
    %c0_115 = arith.constant 0 : index
    %194 = vector.load %arg20[%c0_114, %c0_115] : memref<32x20xf32, #tpu.memory_space<vmem>>, vector<32x20xf32>
    %cst_116 = arith.constant dense<0.000000e+00> : vector<32x160xf32>
    %195 = tpu.matmul %194, %187, %cst_116 {dimension_numbers = #tpu.dot_dimension_numbers<[1], [0], [0], [1], [0, 0, 1, 1], [], []>} : vector<32x20xf32>, vector<20x160xf32>, vector<32x160xf32> -> vector<32x160xf32>
    %196 = vector.extract_strided_slice %195 {offsets = [0, 0], sizes = [8, 160], strides = [1, 1]} : vector<32x160xf32> to vector<8x160xf32>
    %c0_117 = arith.constant 0 : index
    %c0_118 = arith.constant 0 : index
    %c0_119 = arith.constant 0 : index
    %197 = vector.load %arg37[%c0_117, %c0_118, %c0_119] : memref<4x160x128xf32, #tpu.memory_space<vmem>>, vector<1x160x128xf32>
    %198 = vector.shape_cast %197 : vector<1x160x128xf32> to vector<160x128xf32>
    %cst_120 = arith.constant dense<0.000000e+00> : vector<8x128xf32>
    %199 = tpu.matmul %196, %198, %cst_120 {dimension_numbers = #tpu.dot_dimension_numbers<[1], [0], [0], [1], [0, 0, 1, 1], [], []>} : vector<8x160xf32>, vector<160x128xf32>, vector<8x128xf32> -> vector<8x128xf32>
    %200 = vector.extract_strided_slice %195 {offsets = [8, 0], sizes = [8, 160], strides = [1, 1]} : vector<32x160xf32> to vector<8x160xf32>
    %c1_121 = arith.constant 1 : index
    %c0_122 = arith.constant 0 : index
    %c0_123 = arith.constant 0 : index
    %201 = vector.load %arg37[%c1_121, %c0_122, %c0_123] : memref<4x160x128xf32, #tpu.memory_space<vmem>>, vector<1x160x128xf32>
    %202 = vector.shape_cast %201 : vector<1x160x128xf32> to vector<160x128xf32>
    %cst_124 = arith.constant dense<0.000000e+00> : vector<8x128xf32>
    %203 = tpu.matmul %200, %202, %cst_124 {dimension_numbers = #tpu.dot_dimension_numbers<[1], [0], [0], [1], [0, 0, 1, 1], [], []>} : vector<8x160xf32>, vector<160x128xf32>, vector<8x128xf32> -> vector<8x128xf32>
    %204 = arith.addf %199, %203 : vector<8x128xf32>
    %205 = vector.extract_strided_slice %195 {offsets = [16, 0], sizes = [8, 160], strides = [1, 1]} : vector<32x160xf32> to vector<8x160xf32>
    %c2_125 = arith.constant 2 : index
    %c0_126 = arith.constant 0 : index
    %c0_127 = arith.constant 0 : index
    %206 = vector.load %arg37[%c2_125, %c0_126, %c0_127] : memref<4x160x128xf32, #tpu.memory_space<vmem>>, vector<1x160x128xf32>
    %207 = vector.shape_cast %206 : vector<1x160x128xf32> to vector<160x128xf32>
    %cst_128 = arith.constant dense<0.000000e+00> : vector<8x128xf32>
    %208 = tpu.matmul %205, %207, %cst_128 {dimension_numbers = #tpu.dot_dimension_numbers<[1], [0], [0], [1], [0, 0, 1, 1], [], []>} : vector<8x160xf32>, vector<160x128xf32>, vector<8x128xf32> -> vector<8x128xf32>
    %209 = arith.addf %204, %208 : vector<8x128xf32>
    %210 = vector.extract_strided_slice %195 {offsets = [24, 0], sizes = [8, 160], strides = [1, 1]} : vector<32x160xf32> to vector<8x160xf32>
    %c3_129 = arith.constant 3 : index
    %c0_130 = arith.constant 0 : index
    %c0_131 = arith.constant 0 : index
    %211 = vector.load %arg37[%c3_129, %c0_130, %c0_131] : memref<4x160x128xf32, #tpu.memory_space<vmem>>, vector<1x160x128xf32>
    %212 = vector.shape_cast %211 : vector<1x160x128xf32> to vector<160x128xf32>
    %cst_132 = arith.constant dense<0.000000e+00> : vector<8x128xf32>
    %213 = tpu.matmul %210, %212, %cst_132 {dimension_numbers = #tpu.dot_dimension_numbers<[1], [0], [0], [1], [0, 0, 1, 1], [], []>} : vector<8x160xf32>, vector<160x128xf32>, vector<8x128xf32> -> vector<8x128xf32>
    %214 = arith.addf %209, %213 : vector<8x128xf32>
    %c0_133 = arith.constant 0 : index
    %c0_134 = arith.constant 0 : index
    %215 = vector.load %arg38[%c0_133, %c0_134] : memref<128x128xf32, #tpu.memory_space<vmem>>, vector<128x128xf32>
    %cst_135 = arith.constant dense<0.000000e+00> : vector<128xf32>
    %216 = vector.multi_reduction <add>, %214, %cst_135 [0] : vector<8x128xf32> to vector<128xf32>
    %217 = vector.shape_cast %216 : vector<128xf32> to vector<1x128xf32>
    %cst_136 = arith.constant dense<0.000000e+00> : vector<1x128xf32>
    %218 = tpu.matmul %217, %215, %cst_136 {dimension_numbers = #tpu.dot_dimension_numbers<[1], [0], [0], [1], [0, 0, 1, 1], [], []>} : vector<1x128xf32>, vector<128x128xf32>, vector<1x128xf32> -> vector<1x128xf32>
    %cst_137 = arith.constant 3.125000e-02 : f32
    %219 = vector.broadcast %cst_137 : f32 to vector<1x128xf32>
    %220 = arith.mulf %218, %219 : vector<1x128xf32>
    %221 = arith.mulf %214, %214 : vector<8x128xf32>
    %cst_138 = arith.constant dense<0.000000e+00> : vector<128xf32>
    %222 = vector.multi_reduction <add>, %221, %cst_138 [0] : vector<8x128xf32> to vector<128xf32>
    %223 = vector.shape_cast %222 : vector<128xf32> to vector<1x128xf32>
    %cst_139 = arith.constant dense<0.000000e+00> : vector<1x128xf32>
    %224 = tpu.matmul %223, %215, %cst_139 {dimension_numbers = #tpu.dot_dimension_numbers<[1], [0], [0], [1], [0, 0, 1, 1], [], []>} : vector<1x128xf32>, vector<128x128xf32>, vector<1x128xf32> -> vector<1x128xf32>
    %cst_140 = arith.constant 3.125000e-02 : f32
    %225 = vector.broadcast %cst_140 : f32 to vector<1x128xf32>
    %226 = arith.mulf %224, %225 : vector<1x128xf32>
    %227 = arith.mulf %220, %220 : vector<1x128xf32>
    %228 = arith.subf %226, %227 : vector<1x128xf32>
    %cst_141 = arith.constant 9.99999974E-6 : f32
    %229 = vector.broadcast %cst_141 : f32 to vector<1x128xf32>
    %230 = arith.addf %228, %229 : vector<1x128xf32>
    %231 = math.rsqrt %230 : vector<1x128xf32>
    %232 = arith.mulf %192, %231 : vector<1x128xf32>
    %233 = arith.mulf %220, %232 : vector<1x128xf32>
    %234 = arith.subf %193, %233 : vector<1x128xf32>
    %235 = vector.broadcast %232 : vector<1x128xf32> to vector<8x128xf32>
    %236 = arith.mulf %214, %235 : vector<8x128xf32>
    %237 = vector.broadcast %234 : vector<1x128xf32> to vector<8x128xf32>
    %238 = arith.addf %236, %237 : vector<8x128xf32>
    %cst_142 = arith.constant 0.000000e+00 : f32
    %239 = vector.broadcast %cst_142 : f32 to vector<8x128xf32>
    %240 = arith.maximumf %238, %239 : vector<8x128xf32>
    %c8_i32_143 = arith.constant 8 : i32
    %241 = tpu.memref_slice %arg42[%c8_i32_143] : memref<11x!tpu.dma_semaphore, #tpu.memory_space<semaphore_mem>> -> memref<1x!tpu.dma_semaphore, #tpu.memory_space<semaphore_mem>>
    %242 = tpu.memref_squeeze %241 : memref<1x!tpu.dma_semaphore, #tpu.memory_space<semaphore_mem>> -> memref<!tpu.dma_semaphore, #tpu.memory_space<semaphore_mem>>
    tpu.wait_dma2 semaphore(%242 : memref<!tpu.dma_semaphore, #tpu.memory_space<semaphore_mem>>) src(%arg24 : memref<128x1024xf32, #tpu.memory_space<any>>) dst(%arg39 : memref<128x1024xf32, #tpu.memory_space<vmem>>)
    %c0_144 = arith.constant 0 : index
    %c0_145 = arith.constant 0 : index
    %243 = vector.load %arg39[%c0_144, %c0_145] : memref<128x1024xf32, #tpu.memory_space<vmem>>, vector<128x1024xf32>
    %c9_i32_146 = arith.constant 9 : i32
    %244 = tpu.memref_slice %arg42[%c9_i32_146] : memref<11x!tpu.dma_semaphore, #tpu.memory_space<semaphore_mem>> -> memref<1x!tpu.dma_semaphore, #tpu.memory_space<semaphore_mem>>
    %245 = tpu.memref_squeeze %244 : memref<1x!tpu.dma_semaphore, #tpu.memory_space<semaphore_mem>> -> memref<!tpu.dma_semaphore, #tpu.memory_space<semaphore_mem>>
    tpu.wait_dma2 semaphore(%245 : memref<!tpu.dma_semaphore, #tpu.memory_space<semaphore_mem>>) src(%arg25 : memref<8x1024xf32, #tpu.memory_space<any>>) dst(%arg40 : memref<8x1024xf32, #tpu.memory_space<vmem>>)
    %c0_147 = arith.constant 0 : index
    %c0_148 = arith.constant 0 : index
    %246 = vector.load %arg40[%c0_147, %c0_148] : memref<8x1024xf32, #tpu.memory_space<vmem>>, vector<8x1024xf32>
    %c10_i32_149 = arith.constant 10 : i32
    %247 = tpu.memref_slice %arg42[%c10_i32_149] : memref<11x!tpu.dma_semaphore, #tpu.memory_space<semaphore_mem>> -> memref<1x!tpu.dma_semaphore, #tpu.memory_space<semaphore_mem>>
    %248 = tpu.memref_squeeze %247 : memref<1x!tpu.dma_semaphore, #tpu.memory_space<semaphore_mem>> -> memref<!tpu.dma_semaphore, #tpu.memory_space<semaphore_mem>>
    tpu.wait_dma2 semaphore(%248 : memref<!tpu.dma_semaphore, #tpu.memory_space<semaphore_mem>>) src(%arg28 : memref<256x128xf32, #tpu.memory_space<any>>) dst(%arg41 : memref<256x128xf32, #tpu.memory_space<vmem>>)
    %c0_150 = arith.constant 0 : index
    %c0_151 = arith.constant 0 : index
    %249 = vector.load %arg41[%c0_150, %c0_151] : memref<256x128xf32, #tpu.memory_space<vmem>>, vector<256x128xf32>
    %c0_152 = arith.constant 0 : index
    %c0_153 = arith.constant 0 : index
    %250 = vector.load %arg26[%c0_152, %c0_153] : memref<2x8xf32, #tpu.memory_space<vmem>>, vector<2x8xf32>
    %c0_154 = arith.constant 0 : index
    %c0_155 = arith.constant 0 : index
    %251 = vector.load %arg27[%c0_154, %c0_155] : memref<1x256xf32, #tpu.memory_space<vmem>>, vector<1x256xf32>
    %c0_156 = arith.constant 0 : index
    %c0_157 = arith.constant 0 : index
    %252 = vector.load %arg29[%c0_156, %c0_157] : memref<1x128xf32, #tpu.memory_space<vmem>>, vector<1x128xf32>
    %cst_158 = arith.constant dense<0.000000e+00> : vector<8x1024xf32>
    %253 = tpu.matmul %240, %243, %cst_158 {dimension_numbers = #tpu.dot_dimension_numbers<[1], [0], [0], [1], [0, 0, 1, 1], [], []>} : vector<8x128xf32>, vector<128x1024xf32>, vector<8x1024xf32> -> vector<8x1024xf32>
    %254 = arith.mulf %253, %246 : vector<8x1024xf32>
    %cst_159 = arith.constant dense<0.000000e+00> : vector<2x1024xf32>
    %255 = tpu.matmul %250, %254, %cst_159 {dimension_numbers = #tpu.dot_dimension_numbers<[1], [0], [0], [1], [0, 0, 1, 1], [], []>} : vector<2x8xf32>, vector<8x1024xf32>, vector<2x1024xf32> -> vector<2x1024xf32>
    %256 = vector.extract_strided_slice %255 {offsets = [0, 0], sizes = [2, 256], strides = [1, 1]} : vector<2x1024xf32> to vector<2x256xf32>
    %257 = vector.extract_strided_slice %255 {offsets = [0, 256], sizes = [2, 256], strides = [1, 1]} : vector<2x1024xf32> to vector<2x256xf32>
    %258 = arith.addf %256, %257 : vector<2x256xf32>
    %259 = vector.extract_strided_slice %255 {offsets = [0, 512], sizes = [2, 256], strides = [1, 1]} : vector<2x1024xf32> to vector<2x256xf32>
    %260 = arith.addf %258, %259 : vector<2x256xf32>
    %261 = vector.extract_strided_slice %255 {offsets = [0, 768], sizes = [2, 256], strides = [1, 1]} : vector<2x1024xf32> to vector<2x256xf32>
    %262 = arith.addf %260, %261 : vector<2x256xf32>
    %263 = vector.broadcast %251 : vector<1x256xf32> to vector<2x256xf32>
    %264 = arith.addf %262, %263 : vector<2x256xf32>
    %cst_160 = arith.constant 0.000000e+00 : f32
    %265 = vector.broadcast %cst_160 : f32 to vector<2x256xf32>
    %266 = arith.maximumf %264, %265 : vector<2x256xf32>
    %cst_161 = arith.constant dense<0.000000e+00> : vector<2x128xf32>
    %267 = tpu.matmul %266, %249, %cst_161 {dimension_numbers = #tpu.dot_dimension_numbers<[1], [0], [0], [1], [0, 0, 1, 1], [], []>} : vector<2x256xf32>, vector<256x128xf32>, vector<2x128xf32> -> vector<2x128xf32>
    %268 = vector.broadcast %252 : vector<1x128xf32> to vector<2x128xf32>
    %269 = arith.addf %267, %268 : vector<2x128xf32>
    %c0_162 = arith.constant 0 : index
    %c0_163 = arith.constant 0 : index
    %270 = vector.load %arg30[%c0_162, %c0_163] : memref<2x128xf32, #tpu.memory_space<vmem>>, vector<2x128xf32>
    tpu.vector_store %arg30[%c0_162, %c0_163], %269 {strides = array<i32>} : memref<2x128xf32, #tpu.memory_space<vmem>>, vector<2x128xf32>,
    return
  }
}

</mosaic_0001>

<llo_original>
// kernel: forward.1
$region0: #{forward.1}
  #allocation0 [shape = 'u32[]', space=smem, size = 0x4, offset = 0x4, fixed_abs, tag = 'smem constant byte address 0x4 - core index']
  #allocation1 [shape = 'u32[144,128]{1,0:T(1,128)}', space=vmem, size = 0x12000, scoped, tag = 'internal scratch']
  #allocation2 [shape = 'f32[4,136,144]{2,1,0:T(8,128)}', space=vmem, size = 0x88000, scoped, tag = 'scratch operand']
  #allocation3 [shape = 'f32[160,68]{1,0:T(8,128)}', space=vmem, size = 0x14000, scoped, tag = 'scratch operand']
  #allocation4 [shape = 'f32[144,144]{1,0:T(8,128)}', space=vmem, size = 0x24000, scoped, tag = 'scratch operand']
  #allocation5 [shape = 'f32[36,144]{1,0:T(8,128)}', space=vmem, size = 0xa000, scoped, tag = 'scratch operand']
  #allocation6 [shape = 'f32[4,144,160]{2,1,0:T(8,128)}', space=vmem, size = 0x90000, scoped, tag = 'scratch operand']
  #allocation7 [shape = 'f32[160,160]{1,0:T(8,128)}', space=vmem, size = 0x28000, scoped, tag = 'scratch operand']
  #allocation8 [shape = 'f32[4,160,128]{2,1,0:T(8,128)}', space=vmem, size = 0x50000, scoped, tag = 'scratch operand']
  #allocation9 [shape = 'f32[128,128]{1,0:T(8,128)}', space=vmem, size = 0x10000, scoped, tag = 'scratch operand']
  #allocation10 [shape = 'f32[128,1024]{1,0:T(8,128)}', space=vmem, size = 0x80000, scoped, tag = 'scratch operand']
  #allocation11 [shape = 'f32[8,1024]{1,0:T(8,128)}', space=vmem, size = 0x8000, scoped, tag = 'scratch operand']
  #allocation12 [shape = 'f32[256,128]{1,0:T(8,128)}', space=vmem, size = 0x20000, scoped, tag = 'scratch operand']
  #allocation13 [shape = 's32[11]{0}', space=sflag, size = 0x2c, scoped, tag = 'scratch operand']
  #allocation24 [shape = 's32[]', space=sflag, size = 0x4, offset = 0, fixed_abs, tag = 'sflag constant byte address 0x0 - dummy sync flag']
  #allocation25 [shape = 's32[]', space=sflag, size = 0x4, offset = 0, fixed_abs, tag = 'sflag constant byte address 0x0 - dummy sync flag']
  #allocation26 [shape = 'u32[]', space=smem, size = 0x4, offset = 0x44, fixed_abs, tag = 'smem constant byte address 0x44 - assertion arg 0']
  #allocation27 [shape = 'u32[]', space=smem, size = 0x4, offset = 0x48, fixed_abs, tag = 'smem constant byte address 0x48 - assertion arg 1']
  #allocation28 [shape = 's32[]', space=sflag, size = 0x4, offset = 0, fixed_abs, tag = 'sflag constant byte address 0x0 - dummy sync flag']
  #allocation29 [shape = 's32[]', space=sflag, size = 0x4, offset = 0, fixed_abs, tag = 'sflag constant byte address 0x0 - dummy sync flag']
  #allocation30 [shape = 's32[]', space=sflag, size = 0x4, offset = 0, fixed_abs, tag = 'sflag constant byte address 0x0 - dummy sync flag']
  #allocation31 [shape = 's32[]', space=sflag, size = 0x4, offset = 0, fixed_abs, tag = 'sflag constant byte address 0x0 - dummy sync flag']
  #allocation32 [shape = 's32[]', space=sflag, size = 0x4, offset = 0, fixed_abs, tag = 'sflag constant byte address 0x0 - dummy sync flag']
  #allocation33 [shape = 's32[]', space=sflag, size = 0x4, offset = 0, fixed_abs, tag = 'sflag constant byte address 0x0 - dummy sync flag']
  #allocation34 [shape = 's32[]', space=sflag, size = 0x4, offset = 0, fixed_abs, tag = 'sflag constant byte address 0x0 - dummy sync flag']
  #allocation35 [shape = 's32[]', space=sflag, size = 0x4, offset = 0, fixed_abs, tag = 'sflag constant byte address 0x0 - dummy sync flag']
  #allocation36 [shape = 's32[]', space=sflag, size = 0x4, offset = 0, fixed_abs, tag = 'sflag constant byte address 0x0 - dummy sync flag']
  #allocation37 [shape = 's32[]', space=sflag, size = 0x4, offset = 0, fixed_abs, tag = 'sflag constant byte address 0x0 - dummy sync flag']
  #allocation38 [shape = 's32[]', space=sflag, size = 0x4, offset = 0, fixed_abs, tag = 'sflag constant byte address 0x0 - dummy sync flag']
  #allocation39 [shape = 's32[]', space=sflag, size = 0x4, offset = 0, fixed_abs, tag = 'sflag constant byte address 0x0 - dummy sync flag']
  #allocation40 [shape = 's32[]', space=sflag, size = 0x4, offset = 0, fixed_abs, tag = 'sflag constant byte address 0x0 - dummy sync flag']
  #allocation41 [shape = 's32[]', space=sflag, size = 0x4, offset = 0, fixed_abs, tag = 'sflag constant byte address 0x0 - dummy sync flag']
  #allocation42 [shape = 's32[]', space=sflag, size = 0x4, offset = 0, fixed_abs, tag = 'sflag constant byte address 0x0 - dummy sync flag']
  #allocation43 [shape = 's32[]', space=sflag, size = 0x4, offset = 0, fixed_abs, tag = 'sflag constant byte address 0x0 - dummy sync flag']
  #allocation44 [shape = 's32[]', space=sflag, size = 0x4, offset = 0, fixed_abs, tag = 'sflag constant byte address 0x0 - dummy sync flag']
  #allocation45 [shape = 's32[]', space=sflag, size = 0x4, offset = 0, fixed_abs, tag = 'sflag constant byte address 0x0 - dummy sync flag']
  %s0 = inlined_call_operand.smem [shape: u32[31], index: -1, kind: input, shape index: {}]
  %s1 = sld [smem:[%s0]]
  %s2 = scalar_lea.smem %s0, 1
  %s3 = sld [smem:[%s2]]
  %s4 = scalar_lea.smem %s0, 2
  %s5 = sld [smem:[%s4]]
  %s6 = scalar_lea.smem %s0, 3
  %s7 = sld [smem:[%s6]]
  %s8 = scalar_lea.smem %s0, 4
  %s9 = sld [smem:[%s8]]
  %s10 = scalar_lea.smem %s0, 5
  %s11 = sld [smem:[%s10]]
  %s12 = scalar_lea.smem %s0, 6
  %s13 = sld [smem:[%s12]]
  %s14 = scalar_lea.smem %s0, 7
  %s15 = sld [smem:[%s14]]
  %s16 = scalar_lea.smem %s0, 8
  %s17 = sld [smem:[%s16]]
  %s18 = scalar_lea.smem %s0, 9
  %s19 = sld [smem:[%s18]]
  %s20 = scalar_lea.smem %s0, 10
  %s21 = sld [smem:[%s20]]
  %s22 = scalar_lea.smem %s0, 11
  %s23 = sld [smem:[%s22]]
  %s24 = scalar_lea.smem %s0, 12
  %s25 = sld [smem:[%s24]]
  %s26 = scalar_lea.smem %s0, 13
  %s27 = sld [smem:[%s26]]
  %s28 = scalar_lea.smem %s0, 14
  %s29 = sld [smem:[%s28]]
  %s30 = scalar_lea.smem %s0, 15
  %s31 = sld [smem:[%s30]]
  %s32 = scalar_lea.smem %s0, 16
  %s33 = sld [smem:[%s32]]
  %s34 = scalar_lea.smem %s0, 17
  %s35 = sld [smem:[%s34]]
  %s36 = scalar_lea.smem %s0, 18
  %s37 = sld [smem:[%s36]]
  %s38 = scalar_lea.smem %s0, 19
  %s39 = sld [smem:[%s38]]
  %s40 = scalar_lea.smem %s0, 20
  %s41 = sld [smem:[%s40]]
  %s42 = scalar_lea.smem %s0, 21
  %s43 = sld [smem:[%s42]]
  %s44 = scalar_lea.smem %s0, 22
  %s45 = sld [smem:[%s44]]
  %s46 = scalar_lea.smem %s0, 23
  %s47 = sld [smem:[%s46]]
  %s48 = scalar_lea.smem %s0, 24
  %s49 = sld [smem:[%s48]]
  %s50 = scalar_lea.smem %s0, 25
  %s51 = sld [smem:[%s50]]
  %s52 = scalar_lea.smem %s0, 26
  %s53 = sld [smem:[%s52]]
  %s54 = scalar_lea.smem %s0, 27
  %s55 = sld [smem:[%s54]]
  %s56 = scalar_lea.smem %s0, 28
  %s57 = sld [smem:[%s56]]
  %s58 = scalar_lea.smem %s0, 29
  %s59 = sld [smem:[%s58]]
  %s60 = scalar_lea.smem %s0, 30
  %s61 = sld [smem:[%s60]]
  %s62 = sld [smem:[#allocation0]]
  $region210: #{forward.1} parent=0
    _
  %s64 = ssub.s32 1, %s62
  %s65 = scalar_select 0, %s64, %s62
  $region1: #{forward.1} parent=0
    #allocation14 [shape = 'u8[294912]{0}', space=vmem, size = 0x48000, scoped, tag = 'input window, operand 2, single buffered']
    #allocation15 [shape = 's32[1]{0}', space=sflag, size = 0x4, scoped, tag = 'scoped memory for forward.1']
    #allocation16 [shape = 's32[1]{0}', space=sflag, size = 0x4, scoped, tag = 'scoped memory for forward.1']
    #allocation17 [shape = 'u8[139264]{0}', space=vmem, size = 0x22000, scoped, tag = 'input window, operand 3, single buffered']
    #allocation18 [shape = 's32[1]{0}', space=sflag, size = 0x4, scoped, tag = 'scoped memory for forward.1']
    #allocation19 [shape = 'u8[73728]{0}', space=vmem, size = 0x12000, scoped, tag = 'input window, operand 6, single buffered']
    #allocation20 [shape = 'u8[49152]{0}', space=vmem, size = 0xc000, scoped, tag = 'input window, operand 14, single buffered']
    #allocation21 [shape = 's32[1]{0}', space=sflag, size = 0x4, scoped, tag = 'scoped memory for forward.1']
    #allocation22 [shape = 'u8[16384]{0}', space=vmem, size = 0x4000, scoped, tag = 'input window, operand 20, single buffered']
    #allocation23 [shape = 'u8[1024]{0}', space=vmem, size = 0x400, scoped, tag = 'output window, operand 0, single buffered']
    %66 = vsyncpa [#allocation15], 0
    %67 = vsyncpa [#allocation18], 0
    %68 = vsyncpa [#allocation21], 0
    %69 = vsyncpa [#allocation16], 0
    // Predicated region
    $region2: #{forward.1} parent=1 // pred_check
      _
    $region3: #{forward.1} parent=1 // pred_check_branch
      %71 = sbr.rel (0) target = $region5
    $region4: #{forward.1} parent=1 // pred_region
      _
    $region5: #{forward.1} parent=1 // pred_fallthru
      _
    // Predicated region
    $region6: #{forward.1} parent=1 // pred_check
      _
    $region7: #{forward.1} parent=1 // pred_check_branch
      %73 = sbr.rel (0) target = $region9
    $region8: #{forward.1} parent=1 // pred_region
      _
    $region9: #{forward.1} parent=1 // pred_fallthru
      _
    // Predicated region
    $region10: #{forward.1} parent=1 // pred_check
      _
    $region11: #{forward.1} parent=1 // pred_check_branch
      %75 = sbr.rel (0) target = $region13
    $region12: #{forward.1} parent=1 // pred_region
      %s77 = ssub.s32 9216, 9216
      %78 = vsyncadd [#allocation15], %s77
      %s79 = sshll.u32 [#allocation14], 4
      %s80 = int_to_ptr.vmem [resolvable:$true] %s79
      %85 = dma.hbm_to_vmem [thread:$0]  %s5, 9216, %s80, [#allocation15], 256, 256, 16
    $region13: #{forward.1} parent=1 // pred_fallthru
      _
    // Predicated region
    $region14: #{forward.1} parent=1 // pred_check
      _
    $region15: #{forward.1} parent=1 // pred_check_branch
      %87 = sbr.rel (0) target = $region17
    $region16: #{forward.1} parent=1 // pred_region
      %s89 = ssub.s32 4352, 4352
      %90 = vsyncadd [#allocation18], %s89
      %s91 = sshll.u32 [#allocation17], 4
      %s92 = int_to_ptr.vmem [resolvable:$true] %s91
      %97 = dma.hbm_to_vmem [thread:$0]  %s7, 4352, %s92, [#allocation18], 256, 256, 16
    $region17: #{forward.1} parent=1 // pred_fallthru
      _
    // Predicated region
    $region18: #{forward.1} parent=1 // pred_check
      _
    $region19: #{forward.1} parent=1 // pred_check_branch
      %99 = sbr.rel (0) target = $region21
    $region20: #{forward.1} parent=1 // pred_region
      _
    $region21: #{forward.1} parent=1 // pred_fallthru
      _
    // Predicated region
    $region22: #{forward.1} parent=1 // pred_check
      _
    $region23: #{forward.1} parent=1 // pred_check_branch
      %101 = sbr.rel (0) target = $region25
    $region24: #{forward.1} parent=1 // pred_region
      _
    $region25: #{forward.1} parent=1 // pred_fallthru
      _
    // Predicated region
    $region26: #{forward.1} parent=1 // pred_check
      _
    $region27: #{forward.1} parent=1 // pred_check_branch
      %103 = sbr.rel (0) target = $region29
    $region28: #{forward.1} parent=1 // pred_region
      %s105 = ssub.s32 2304, 2304
      %106 = vsyncadd [#allocation18], %s105
      %s107 = sshll.u32 [#allocation19], 4
      %s108 = int_to_ptr.vmem [resolvable:$true] %s107
      %113 = dma.hbm_to_vmem [thread:$0]  %s13, 2304, %s108, [#allocation18], 256, 256, 16
    $region29: #{forward.1} parent=1 // pred_fallthru
      _
    // Predicated region
    $region30: #{forward.1} parent=1 // pred_check
      _
    $region31: #{forward.1} parent=1 // pred_check_branch
      %115 = sbr.rel (0) target = $region33
    $region32: #{forward.1} parent=1 // pred_region
      _
    $region33: #{forward.1} parent=1 // pred_fallthru
      _
    // Predicated region
    $region34: #{forward.1} parent=1 // pred_check
      _
    $region35: #{forward.1} parent=1 // pred_check_branch
      %117 = sbr.rel (0) target = $region37
    $region36: #{forward.1} parent=1 // pred_region
      _
    $region37: #{forward.1} parent=1 // pred_fallthru
      _
    // Predicated region
    $region38: #{forward.1} parent=1 // pred_check
      _
    $region39: #{forward.1} parent=1 // pred_check_branch
      %119 = sbr.rel (0) target = $region41
    $region40: #{forward.1} parent=1 // pred_region
      %s121 = ssub.s32 1536, 1536
      %122 = vsyncadd [#allocation21], %s121
      %s123 = sshll.u32 [#allocation20], 4
      %s124 = int_to_ptr.vmem [resolvable:$true] %s123
      %129 = dma.hbm_to_vmem [thread:$0]  %s29, 1536, %s124, [#allocation21], 128, 128, 8
    $region41: #{forward.1} parent=1 // pred_fallthru
      _
    // Predicated region
    $region42: #{forward.1} parent=1 // pred_check
      _
    $region43: #{forward.1} parent=1 // pred_check_branch
      %131 = sbr.rel (0) target = $region45
    $region44: #{forward.1} parent=1 // pred_region
      _
    $region45: #{forward.1} parent=1 // pred_fallthru
      _
    // Predicated region
    $region46: #{forward.1} parent=1 // pred_check
      _
    $region47: #{forward.1} parent=1 // pred_check_branch
      %133 = sbr.rel (0) target = $region49
    $region48: #{forward.1} parent=1 // pred_region
      _
    $region49: #{forward.1} parent=1 // pred_fallthru
      _
    // Predicated region
    $region50: #{forward.1} parent=1 // pred_check
      _
    $region51: #{forward.1} parent=1 // pred_check_branch
      %135 = sbr.rel (0) target = $region53
    $region52: #{forward.1} parent=1 // pred_region
      _
    $region53: #{forward.1} parent=1 // pred_fallthru
      _
    // Predicated region
    $region54: #{forward.1} parent=1 // pred_check
      _
    $region55: #{forward.1} parent=1 // pred_check_branch
      %137 = sbr.rel (0) target = $region57
    $region56: #{forward.1} parent=1 // pred_region
      %s139 = ssub.s32 512, 512
      %140 = vsyncadd [#allocation21], %s139
      %s141 = sshll.u32 [#allocation22], 4
      %s142 = int_to_ptr.vmem [resolvable:$true] %s141
      %147 = dma.hbm_to_vmem [thread:$0]  %s41, 512, %s142, [#allocation21], 128, 128, 8
    $region57: #{forward.1} parent=1 // pred_fallthru
      _
    // Predicated region
    $region58: #{forward.1} parent=1 // pred_check
      _
    $region59: #{forward.1} parent=1 // pred_check_branch
      %149 = sbr.rel (0) target = $region61
    $region60: #{forward.1} parent=1 // pred_region
      _
    $region61: #{forward.1} parent=1 // pred_fallthru
      _
    // Predicated region
    $region62: #{forward.1} parent=1 // pred_check
      _
    $region63: #{forward.1} parent=1 // pred_check_branch
      %151 = sbr.rel (0) target = $region65
    $region64: #{forward.1} parent=1 // pred_region
      _
    $region65: #{forward.1} parent=1 // pred_fallthru
      _
    // Predicated region
    $region66: #{forward.1} parent=1 // pred_check
      _
    $region67: #{forward.1} parent=1 // pred_check_branch
      %153 = sbr.rel (0) target = $region69
    $region68: #{forward.1} parent=1 // pred_region
      _
    $region69: #{forward.1} parent=1 // pred_fallthru
      _
    // Predicated region
    $region70: #{forward.1} parent=1 // pred_check
      _
    $region71: #{forward.1} parent=1 // pred_check_branch
      %155 = sbr.rel (0) target = $region73
    $region72: #{forward.1} parent=1 // pred_region
      _
    $region73: #{forward.1} parent=1 // pred_fallthru
      _
    // Predicated region
    $region74: #{forward.1} parent=1 // pred_check
      _
    $region75: #{forward.1} parent=1 // pred_check_branch
      %157 = sbr.rel (0) target = $region77
    $region76: #{forward.1} parent=1 // pred_region
      _
    $region77: #{forward.1} parent=1 // pred_fallthru
      _
    // Predicated region
    $region78: #{forward.1} parent=1 // pred_check
      _
    $region79: #{forward.1} parent=1 // pred_check_branch
      %159 = sbr.rel (0) target = $region81
    $region80: #{forward.1} parent=1 // pred_region
      %160 = dma.done [#allocation15], 9216
    $region81: #{forward.1} parent=1 // pred_fallthru
      _
    // Predicated region
    $region82: #{forward.1} parent=1 // pred_check
      _
    $region83: #{forward.1} parent=1 // pred_check_branch
      %162 = sbr.rel (0) target = $region85
    $region84: #{forward.1} parent=1 // pred_region
      %163 = dma.done [#allocation18], 4352
    $region85: #{forward.1} parent=1 // pred_fallthru
      _
    // Predicated region
    $region86: #{forward.1} parent=1 // pred_check
      _
    $region87: #{forward.1} parent=1 // pred_check_branch
      %165 = sbr.rel (0) target = $region89
    $region88: #{forward.1} parent=1 // pred_region
      %166 = dma.done [#allocation18], 2304
    $region89: #{forward.1} parent=1 // pred_fallthru
      _
    // Predicated region
    $region90: #{forward.1} parent=1 // pred_check
      _
    $region91: #{forward.1} parent=1 // pred_check_branch
      %168 = sbr.rel (0) target = $region93
    $region92: #{forward.1} parent=1 // pred_region
      %169 = dma.done [#allocation21], 1536
    $region93: #{forward.1} parent=1 // pred_fallthru
      _
    // Predicated region
    $region94: #{forward.1} parent=1 // pred_check
      _
    $region95: #{forward.1} parent=1 // pred_check_branch
      %171 = sbr.rel (0) target = $region97
    $region96: #{forward.1} parent=1 // pred_region
      %172 = dma.done [#allocation21], 512
    $region97: #{forward.1} parent=1 // pred_fallthru
      _
    // Predicated region
    $region98: #{forward.1} parent=1 // pred_check
      _
    $region99: #{forward.1} parent=1 // pred_check_branch
      %174 = sbr.rel target = $region101
    $region100: #{forward.1} parent=1 // pred_region
      %175 = sst [smem:[#allocation26]] [#allocation25]
      %176 = sst [smem:[#allocation27]] [#allocation24]
    $region101: #{forward.1} parent=1 // pred_fallthru
      _
    %178 = shalt.err (0)
    %s180 = sshll.u32 [#allocation2], 4
    %s181 = int_to_ptr.vmem [resolvable:$true] %s180
    %183 = dma.hbm_to_vmem [thread:$0]  %s15, 17408, %s181, [#allocation13]
    %s184 = scalar_lea.sflag [#allocation13], 1
    // Predicated region
    $region102: #{forward.1} parent=1 // pred_check
      _
    $region103: #{forward.1} parent=1 // pred_check_branch
      %186 = sbr.rel target = $region105
    $region104: #{forward.1} parent=1 // pred_region
      %187 = sst [smem:[#allocation26]] [#allocation29]
      %188 = sst [smem:[#allocation27]] [#allocation28]
    $region105: #{forward.1} parent=1 // pred_fallthru
      _
    %190 = shalt.err (0)
    %s192 = sshll.u32 [#allocation3], 4
    %s193 = int_to_ptr.vmem [resolvable:$true] %s192
    %195 = dma.hbm_to_vmem [thread:$0]  %s17, 2560, %s193, %s184
    %s196 = scalar_lea.sflag [#allocation13], 2
    // Predicated region
    $region106: #{forward.1} parent=1 // pred_check
      _
    $region107: #{forward.1} parent=1 // pred_check_branch
      %198 = sbr.rel target = $region109
    $region108: #{forward.1} parent=1 // pred_region
      %199 = sst [smem:[#allocation26]] [#allocation31]
      %200 = sst [smem:[#allocation27]] [#allocation30]
    $region109: #{forward.1} parent=1 // pred_fallthru
      _
    %202 = shalt.err (0)
    %s204 = sshll.u32 [#allocation4], 4
    %s205 = int_to_ptr.vmem [resolvable:$true] %s204
    %207 = dma.hbm_to_vmem [thread:$0]  %s19, 4608, %s205, %s196
    %s208 = scalar_lea.sflag [#allocation13], 3
    // Predicated region
    $region110: #{forward.1} parent=1 // pred_check
      _
    $region111: #{forward.1} parent=1 // pred_check_branch
      %210 = sbr.rel target = $region113
    $region112: #{forward.1} parent=1 // pred_region
      %211 = sst [smem:[#allocation26]] [#allocation33]
      %212 = sst [smem:[#allocation27]] [#allocation32]
    $region113: #{forward.1} parent=1 // pred_fallthru
      _
    %214 = shalt.err (0)
    %s216 = sshll.u32 [#allocation5], 4
    %s217 = int_to_ptr.vmem [resolvable:$true] %s216
    %219 = dma.hbm_to_vmem [thread:$0]  %s25, 1280, %s217, %s208
    %s220 = scalar_lea.sflag [#allocation13], 4
    %p222 = scmp.lt.u32.totalorder 1152, 8
    %p223 = pneg %p222
    // Predicated region
    $region114: #{forward.1} parent=1 // pred_check
      _
    $region115: #{forward.1} parent=1 // pred_check_branch
      %225 = sbr.rel (%p222) target = $region117
    $region116: #{forward.1} parent=1 // pred_region
      %s240 = sand.u32 1152, 7
      %p241 = scmp.eq.s32.totalorder %s240, 0
      // Predicated region
      $region129: #{forward.1} parent=116 // pred_check
        %p242 = pneg %p241
      $region130: #{forward.1} parent=116 // pred_check_branch
        %244 = sbr.rel (%p242) target = $region132
      $region131: #{forward.1} parent=116 // pred_region
        loop: start=0, step=1, limit=1
        $region133: #{forward.1} parent=131 // loop_pre_header
          _
        $region134: #{forward.1} parent=131 // loop_header
          %s246 = sphi 0, %s250
          %p247 = scmp.ge.s32.totalorder %s246, 1
          %s251 = sphi %s27, %s27
          %s252 = sphi [#allocation6], [#allocation6]
        $region135: #{forward.1} parent=131 // loop_header_branch
          %249 = sbr.rel (%p247) target = $region139
        $region136: #{forward.1} parent=131 // loop_body
          %v253 = vld [vmem:[%s251] sm:$0xff]
          %254 = vst [vmem:[%s252] sm:$0xff] %v253
          %v255 = vld [vmem:[%s251 + $0x8] sm:$0xff]
          %256 = vst [vmem:[%s252 + $0x8] sm:$0xff] %v255
          %v257 = vld [vmem:[%s251 + $0x10] sm:$0xff]
          %258 = vst [vmem:[%s252 + $0x10] sm:$0xff] %v257
          %v259 = vld [vmem:[%s251 + $0x18] sm:$0xff]
          %260 = vst [vmem:[%s252 + $0x18] sm:$0xff] %v259
          %v261 = vld [vmem:[%s251 + $0x20] sm:$0xff]
          %262 = vst [vmem:[%s252 + $0x20] sm:$0xff] %v261
          %v263 = vld [vmem:[%s251 + $0x28] sm:$0xff]
          %264 = vst [vmem:[%s252 + $0x28] sm:$0xff] %v263
          %v265 = vld [vmem:[%s251 + $0x30] sm:$0xff]
          %266 = vst [vmem:[%s252 + $0x30] sm:$0xff] %v265
          %v267 = vld [vmem:[%s251 + $0x38] sm:$0xff]
          %268 = vst [vmem:[%s252 + $0x38] sm:$0xff] %v267
          %v269 = vld [vmem:[%s251 + $0x40] sm:$0xff]
          %270 = vst [vmem:[%s252 + $0x40] sm:$0xff] %v269
          %v271 = vld [vmem:[%s251 + $0x48] sm:$0xff]
          %272 = vst [vmem:[%s252 + $0x48] sm:$0xff] %v271
          %v273 = vld [vmem:[%s251 + $0x50] sm:$0xff]
          %274 = vst [vmem:[%s252 + $0x50] sm:$0xff] %v273
          %v275 = vld [vmem:[%s251 + $0x58] sm:$0xff]
          %276 = vst [vmem:[%s252 + $0x58] sm:$0xff] %v275
          %v277 = vld [vmem:[%s251 + $0x60] sm:$0xff]
          %278 = vst [vmem:[%s252 + $0x60] sm:$0xff] %v277
          %v279 = vld [vmem:[%s251 + $0x68] sm:$0xff]
          %280 = vst [vmem:[%s252 + $0x68] sm:$0xff] %v279
          %v281 = vld [vmem:[%s251 + $0x70] sm:$0xff]
          %282 = vst [vmem:[%s252 + $0x70] sm:$0xff] %v281
          %v283 = vld [vmem:[%s251 + $0x78] sm:$0xff]
          %284 = vst [vmem:[%s252 + $0x78] sm:$0xff] %v283
          %v285 = vld [vmem:[%s251 + $0x80] sm:$0xff]
          %286 = vst [vmem:[%s252 + $0x80] sm:$0xff] %v285
          %v287 = vld [vmem:[%s251 + $0x88] sm:$0xff]
          %288 = vst [vmem:[%s252 + $0x88] sm:$0xff] %v287
          %v289 = vld [vmem:[%s251 + $0x90] sm:$0xff]
          %290 = vst [vmem:[%s252 + $0x90] sm:$0xff] %v289
          %v291 = vld [vmem:[%s251 + $0x98] sm:$0xff]
          %292 = vst [vmem:[%s252 + $0x98] sm:$0xff] %v291
          %v293 = vld [vmem:[%s251 + $0xa0] sm:$0xff]
          %294 = vst [vmem:[%s252 + $0xa0] sm:$0xff] %v293
          %v295 = vld [vmem:[%s251 + $0xa8] sm:$0xff]
          %296 = vst [vmem:[%s252 + $0xa8] sm:$0xff] %v295
          %v297 = vld [vmem:[%s251 + $0xb0] sm:$0xff]
          %298 = vst [vmem:[%s252 + $0xb0] sm:$0xff] %v297
          %v299 = vld [vmem:[%s251 + $0xb8] sm:$0xff]
          %300 = vst [vmem:[%s252 + $0xb8] sm:$0xff] %v299
          %v301 = vld [vmem:[%s251 + $0xc0] sm:$0xff]
          %302 = vst [vmem:[%s252 + $0xc0] sm:$0xff] %v301
          %v303 = vld [vmem:[%s251 + $0xc8] sm:$0xff]
          %304 = vst [vmem:[%s252 + $0xc8] sm:$0xff] %v303
          %v305 = vld [vmem:[%s251 + $0xd0] sm:$0xff]
          %306 = vst [vmem:[%s252 + $0xd0] sm:$0xff] %v305
          %v307 = vld [vmem:[%s251 + $0xd8] sm:$0xff]
          %308 = vst [vmem:[%s252 + $0xd8] sm:$0xff] %v307
          %v309 = vld [vmem:[%s251 + $0xe0] sm:$0xff]
          %310 = vst [vmem:[%s252 + $0xe0] sm:$0xff] %v309
          %v311 = vld [vmem:[%s251 + $0xe8] sm:$0xff]
          %312 = vst [vmem:[%s252 + $0xe8] sm:$0xff] %v311
          %v313 = vld [vmem:[%s251 + $0xf0] sm:$0xff]
          %314 = vst [vmem:[%s252 + $0xf0] sm:$0xff] %v313
          %v315 = vld [vmem:[%s251 + $0xf8] sm:$0xff]
          %316 = vst [vmem:[%s252 + $0xf8] sm:$0xff] %v315
          %v317 = vld [vmem:[%s251 + $0x100] sm:$0xff]
          %318 = vst [vmem:[%s252 + $0x100] sm:$0xff] %v317
          %v319 = vld [vmem:[%s251 + $0x108] sm:$0xff]
          %320 = vst [vmem:[%s252 + $0x108] sm:$0xff] %v319
          %v321 = vld [vmem:[%s251 + $0x110] sm:$0xff]
          %322 = vst [vmem:[%s252 + $0x110] sm:$0xff] %v321
          %v323 = vld [vmem:[%s251 + $0x118] sm:$0xff]
          %324 = vst [vmem:[%s252 + $0x118] sm:$0xff] %v323
          %v325 = vld [vmem:[%s251 + $0x120] sm:$0xff]
          %326 = vst [vmem:[%s252 + $0x120] sm:$0xff] %v325
          %v327 = vld [vmem:[%s251 + $0x128] sm:$0xff]
          %328 = vst [vmem:[%s252 + $0x128] sm:$0xff] %v327
          %v329 = vld [vmem:[%s251 + $0x130] sm:$0xff]
          %330 = vst [vmem:[%s252 + $0x130] sm:$0xff] %v329
          %v331 = vld [vmem:[%s251 + $0x138] sm:$0xff]
          %332 = vst [vmem:[%s252 + $0x138] sm:$0xff] %v331
          %v333 = vld [vmem:[%s251 + $0x140] sm:$0xff]
          %334 = vst [vmem:[%s252 + $0x140] sm:$0xff] %v333
          %v335 = vld [vmem:[%s251 + $0x148] sm:$0xff]
          %336 = vst [vmem:[%s252 + $0x148] sm:$0xff] %v335
          %v337 = vld [vmem:[%s251 + $0x150] sm:$0xff]
          %338 = vst [vmem:[%s252 + $0x150] sm:$0xff] %v337
          %v339 = vld [vmem:[%s251 + $0x158] sm:$0xff]
          %340 = vst [vmem:[%s252 + $0x158] sm:$0xff] %v339
          %v341 = vld [vmem:[%s251 + $0x160] sm:$0xff]
          %342 = vst [vmem:[%s252 + $0x160] sm:$0xff] %v341
          %v343 = vld [vmem:[%s251 + $0x168] sm:$0xff]
          %344 = vst [vmem:[%s252 + $0x168] sm:$0xff] %v343
          %v345 = vld [vmem:[%s251 + $0x170] sm:$0xff]
          %346 = vst [vmem:[%s252 + $0x170] sm:$0xff] %v345
          %v347 = vld [vmem:[%s251 + $0x178] sm:$0xff]
          %348 = vst [vmem:[%s252 + $0x178] sm:$0xff] %v347
          %v349 = vld [vmem:[%s251 + $0x180] sm:$0xff]
          %350 = vst [vmem:[%s252 + $0x180] sm:$0xff] %v349
          %v351 = vld [vmem:[%s251 + $0x188] sm:$0xff]
          %352 = vst [vmem:[%s252 + $0x188] sm:$0xff] %v351
          %v353 = vld [vmem:[%s251 + $0x190] sm:$0xff]
          %354 = vst [vmem:[%s252 + $0x190] sm:$0xff] %v353
          %v355 = vld [vmem:[%s251 + $0x198] sm:$0xff]
          %356 = vst [vmem:[%s252 + $0x198] sm:$0xff] %v355
          %v357 = vld [vmem:[%s251 + $0x1a0] sm:$0xff]
          %358 = vst [vmem:[%s252 + $0x1a0] sm:$0xff] %v357
          %v359 = vld [vmem:[%s251 + $0x1a8] sm:$0xff]
          %360 = vst [vmem:[%s252 + $0x1a8] sm:$0xff] %v359
          %v361 = vld [vmem:[%s251 + $0x1b0] sm:$0xff]
          %362 = vst [vmem:[%s252 + $0x1b0] sm:$0xff] %v361
          %v363 = vld [vmem:[%s251 + $0x1b8] sm:$0xff]
          %364 = vst [vmem:[%s252 + $0x1b8] sm:$0xff] %v363
          %v365 = vld [vmem:[%s251 + $0x1c0] sm:$0xff]
          %366 = vst [vmem:[%s252 + $0x1c0] sm:$0xff] %v365
          %v367 = vld [vmem:[%s251 + $0x1c8] sm:$0xff]
          %368 = vst [vmem:[%s252 + $0x1c8] sm:$0xff] %v367
          %v369 = vld [vmem:[%s251 + $0x1d0] sm:$0xff]
          %370 = vst [vmem:[%s252 + $0x1d0] sm:$0xff] %v369
          %v371 = vld [vmem:[%s251 + $0x1d8] sm:$0xff]
          %372 = vst [vmem:[%s252 + $0x1d8] sm:$0xff] %v371
          %v373 = vld [vmem:[%s251 + $0x1e0] sm:$0xff]
          %374 = vst [vmem:[%s252 + $0x1e0] sm:$0xff] %v373
          %v375 = vld [vmem:[%s251 + $0x1e8] sm:$0xff]
          %376 = vst [vmem:[%s252 + $0x1e8] sm:$0xff] %v375
          %v377 = vld [vmem:[%s251 + $0x1f0] sm:$0xff]
          %378 = vst [vmem:[%s252 + $0x1f0] sm:$0xff] %v377
          %v379 = vld [vmem:[%s251 + $0x1f8] sm:$0xff]
          %380 = vst [vmem:[%s252 + $0x1f8] sm:$0xff] %v379
          %v381 = vld [vmem:[%s251 + $0x200] sm:$0xff]
          %382 = vst [vmem:[%s252 + $0x200] sm:$0xff] %v381
          %v383 = vld [vmem:[%s251 + $0x208] sm:$0xff]
          %384 = vst [vmem:[%s252 + $0x208] sm:$0xff] %v383
          %v385 = vld [vmem:[%s251 + $0x210] sm:$0xff]
          %386 = vst [vmem:[%s252 + $0x210] sm:$0xff] %v385
          %v387 = vld [vmem:[%s251 + $0x218] sm:$0xff]
          %388 = vst [vmem:[%s252 + $0x218] sm:$0xff] %v387
          %v389 = vld [vmem:[%s251 + $0x220] sm:$0xff]
          %390 = vst [vmem:[%s252 + $0x220] sm:$0xff] %v389
          %v391 = vld [vmem:[%s251 + $0x228] sm:$0xff]
          %392 = vst [vmem:[%s252 + $0x228] sm:$0xff] %v391
          %v393 = vld [vmem:[%s251 + $0x230] sm:$0xff]
          %394 = vst [vmem:[%s252 + $0x230] sm:$0xff] %v393
          %v395 = vld [vmem:[%s251 + $0x238] sm:$0xff]
          %396 = vst [vmem:[%s252 + $0x238] sm:$0xff] %v395
          %v397 = vld [vmem:[%s251 + $0x240] sm:$0xff]
          %398 = vst [vmem:[%s252 + $0x240] sm:$0xff] %v397
          %v399 = vld [vmem:[%s251 + $0x248] sm:$0xff]
          %400 = vst [vmem:[%s252 + $0x248] sm:$0xff] %v399
          %v401 = vld [vmem:[%s251 + $0x250] sm:$0xff]
          %402 = vst [vmem:[%s252 + $0x250] sm:$0xff] %v401
          %v403 = vld [vmem:[%s251 + $0x258] sm:$0xff]
          %404 = vst [vmem:[%s252 + $0x258] sm:$0xff] %v403
          %v405 = vld [vmem:[%s251 + $0x260] sm:$0xff]
          %406 = vst [vmem:[%s252 + $0x260] sm:$0xff] %v405
          %v407 = vld [vmem:[%s251 + $0x268] sm:$0xff]
          %408 = vst [vmem:[%s252 + $0x268] sm:$0xff] %v407
          %v409 = vld [vmem:[%s251 + $0x270] sm:$0xff]
          %410 = vst [vmem:[%s252 + $0x270] sm:$0xff] %v409
          %v411 = vld [vmem:[%s251 + $0x278] sm:$0xff]
          %412 = vst [vmem:[%s252 + $0x278] sm:$0xff] %v411
          %v413 = vld [vmem:[%s251 + $0x280] sm:$0xff]
          %414 = vst [vmem:[%s252 + $0x280] sm:$0xff] %v413
          %v415 = vld [vmem:[%s251 + $0x288] sm:$0xff]
          %416 = vst [vmem:[%s252 + $0x288] sm:$0xff] %v415
          %v417 = vld [vmem:[%s251 + $0x290] sm:$0xff]
          %418 = vst [vmem:[%s252 + $0x290] sm:$0xff] %v417
          %v419 = vld [vmem:[%s251 + $0x298] sm:$0xff]
          %420 = vst [vmem:[%s252 + $0x298] sm:$0xff] %v419
          %v421 = vld [vmem:[%s251 + $0x2a0] sm:$0xff]
          %422 = vst [vmem:[%s252 + $0x2a0] sm:$0xff] %v421
          %v423 = vld [vmem:[%s251 + $0x2a8] sm:$0xff]
          %424 = vst [vmem:[%s252 + $0x2a8] sm:$0xff] %v423
          %v425 = vld [vmem:[%s251 + $0x2b0] sm:$0xff]
          %426 = vst [vmem:[%s252 + $0x2b0] sm:$0xff] %v425
          %v427 = vld [vmem:[%s251 + $0x2b8] sm:$0xff]
          %428 = vst [vmem:[%s252 + $0x2b8] sm:$0xff] %v427
          %v429 = vld [vmem:[%s251 + $0x2c0] sm:$0xff]
          %430 = vst [vmem:[%s252 + $0x2c0] sm:$0xff] %v429
          %v431 = vld [vmem:[%s251 + $0x2c8] sm:$0xff]
          %432 = vst [vmem:[%s252 + $0x2c8] sm:$0xff] %v431
          %v433 = vld [vmem:[%s251 + $0x2d0] sm:$0xff]
          %434 = vst [vmem:[%s252 + $0x2d0] sm:$0xff] %v433
          %v435 = vld [vmem:[%s251 + $0x2d8] sm:$0xff]
          %436 = vst [vmem:[%s252 + $0x2d8] sm:$0xff] %v435
          %v437 = vld [vmem:[%s251 + $0x2e0] sm:$0xff]
          %438 = vst [vmem:[%s252 + $0x2e0] sm:$0xff] %v437
          %v439 = vld [vmem:[%s251 + $0x2e8] sm:$0xff]
          %440 = vst [vmem:[%s252 + $0x2e8] sm:$0xff] %v439
          %v441 = vld [vmem:[%s251 + $0x2f0] sm:$0xff]
          %442 = vst [vmem:[%s252 + $0x2f0] sm:$0xff] %v441
          %v443 = vld [vmem:[%s251 + $0x2f8] sm:$0xff]
          %444 = vst [vmem:[%s252 + $0x2f8] sm:$0xff] %v443
          %v445 = vld [vmem:[%s251 + $0x300] sm:$0xff]
          %446 = vst [vmem:[%s252 + $0x300] sm:$0xff] %v445
          %v447 = vld [vmem:[%s251 + $0x308] sm:$0xff]
          %448 = vst [vmem:[%s252 + $0x308] sm:$0xff] %v447
          %v449 = vld [vmem:[%s251 + $0x310] sm:$0xff]
          %450 = vst [vmem:[%s252 + $0x310] sm:$0xff] %v449
          %v451 = vld [vmem:[%s251 + $0x318] sm:$0xff]
          %452 = vst [vmem:[%s252 + $0x318] sm:$0xff] %v451
          %v453 = vld [vmem:[%s251 + $0x320] sm:$0xff]
          %454 = vst [vmem:[%s252 + $0x320] sm:$0xff] %v453
          %v455 = vld [vmem:[%s251 + $0x328] sm:$0xff]
          %456 = vst [vmem:[%s252 + $0x328] sm:$0xff] %v455
          %v457 = vld [vmem:[%s251 + $0x330] sm:$0xff]
          %458 = vst [vmem:[%s252 + $0x330] sm:$0xff] %v457
          %v459 = vld [vmem:[%s251 + $0x338] sm:$0xff]
          %460 = vst [vmem:[%s252 + $0x338] sm:$0xff] %v459
          %v461 = vld [vmem:[%s251 + $0x340] sm:$0xff]
          %462 = vst [vmem:[%s252 + $0x340] sm:$0xff] %v461
          %v463 = vld [vmem:[%s251 + $0x348] sm:$0xff]
          %464 = vst [vmem:[%s252 + $0x348] sm:$0xff] %v463
          %v465 = vld [vmem:[%s251 + $0x350] sm:$0xff]
          %466 = vst [vmem:[%s252 + $0x350] sm:$0xff] %v465
          %v467 = vld [vmem:[%s251 + $0x358] sm:$0xff]
          %468 = vst [vmem:[%s252 + $0x358] sm:$0xff] %v467
          %v469 = vld [vmem:[%s251 + $0x360] sm:$0xff]
          %470 = vst [vmem:[%s252 + $0x360] sm:$0xff] %v469
          %v471 = vld [vmem:[%s251 + $0x368] sm:$0xff]
          %472 = vst [vmem:[%s252 + $0x368] sm:$0xff] %v471
          %v473 = vld [vmem:[%s251 + $0x370] sm:$0xff]
          %474 = vst [vmem:[%s252 + $0x370] sm:$0xff] %v473
          %v475 = vld [vmem:[%s251 + $0x378] sm:$0xff]
          %476 = vst [vmem:[%s252 + $0x378] sm:$0xff] %v475
          %v477 = vld [vmem:[%s251 + $0x380] sm:$0xff]
          %478 = vst [vmem:[%s252 + $0x380] sm:$0xff] %v477
          %v479 = vld [vmem:[%s251 + $0x388] sm:$0xff]
          %480 = vst [vmem:[%s252 + $0x388] sm:$0xff] %v479
          %v481 = vld [vmem:[%s251 + $0x390] sm:$0xff]
          %482 = vst [vmem:[%s252 + $0x390] sm:$0xff] %v481
          %v483 = vld [vmem:[%s251 + $0x398] sm:$0xff]
          %484 = vst [vmem:[%s252 + $0x398] sm:$0xff] %v483
          %v485 = vld [vmem:[%s251 + $0x3a0] sm:$0xff]
          %486 = vst [vmem:[%s252 + $0x3a0] sm:$0xff] %v485
          %v487 = vld [vmem:[%s251 + $0x3a8] sm:$0xff]
          %488 = vst [vmem:[%s252 + $0x3a8] sm:$0xff] %v487
          %v489 = vld [vmem:[%s251 + $0x3b0] sm:$0xff]
          %490 = vst [vmem:[%s252 + $0x3b0] sm:$0xff] %v489
          %v491 = vld [vmem:[%s251 + $0x3b8] sm:$0xff]
          %492 = vst [vmem:[%s252 + $0x3b8] sm:$0xff] %v491
          %v493 = vld [vmem:[%s251 + $0x3c0] sm:$0xff]
          %494 = vst [vmem:[%s252 + $0x3c0] sm:$0xff] %v493
          %v495 = vld [vmem:[%s251 + $0x3c8] sm:$0xff]
          %496 = vst [vmem:[%s252 + $0x3c8] sm:$0xff] %v495
          %v497 = vld [vmem:[%s251 + $0x3d0] sm:$0xff]
          %498 = vst [vmem:[%s252 + $0x3d0] sm:$0xff] %v497
          %v499 = vld [vmem:[%s251 + $0x3d8] sm:$0xff]
          %500 = vst [vmem:[%s252 + $0x3d8] sm:$0xff] %v499
          %v501 = vld [vmem:[%s251 + $0x3e0] sm:$0xff]
          %502 = vst [vmem:[%s252 + $0x3e0] sm:$0xff] %v501
          %v503 = vld [vmem:[%s251 + $0x3e8] sm:$0xff]
          %504 = vst [vmem:[%s252 + $0x3e8] sm:$0xff] %v503
          %v505 = vld [vmem:[%s251 + $0x3f0] sm:$0xff]
          %506 = vst [vmem:[%s252 + $0x3f0] sm:$0xff] %v505
          %v507 = vld [vmem:[%s251 + $0x3f8] sm:$0xff]
          %508 = vst [vmem:[%s252 + $0x3f8] sm:$0xff] %v507
          %v509 = vld [vmem:[%s251 + $0x400] sm:$0xff]
          %510 = vst [vmem:[%s252 + $0x400] sm:$0xff] %v509
          %v511 = vld [vmem:[%s251 + $0x408] sm:$0xff]
          %512 = vst [vmem:[%s252 + $0x408] sm:$0xff] %v511
          %v513 = vld [vmem:[%s251 + $0x410] sm:$0xff]
          %514 = vst [vmem:[%s252 + $0x410] sm:$0xff] %v513
          %v515 = vld [vmem:[%s251 + $0x418] sm:$0xff]
          %516 = vst [vmem:[%s252 + $0x418] sm:$0xff] %v515
          %v517 = vld [vmem:[%s251 + $0x420] sm:$0xff]
          %518 = vst [vmem:[%s252 + $0x420] sm:$0xff] %v517
          %v519 = vld [vmem:[%s251 + $0x428] sm:$0xff]
          %520 = vst [vmem:[%s252 + $0x428] sm:$0xff] %v519
          %v521 = vld [vmem:[%s251 + $0x430] sm:$0xff]
          %522 = vst [vmem:[%s252 + $0x430] sm:$0xff] %v521
          %v523 = vld [vmem:[%s251 + $0x438] sm:$0xff]
          %524 = vst [vmem:[%s252 + $0x438] sm:$0xff] %v523
          %v525 = vld [vmem:[%s251 + $0x440] sm:$0xff]
          %526 = vst [vmem:[%s252 + $0x440] sm:$0xff] %v525
          %v527 = vld [vmem:[%s251 + $0x448] sm:$0xff]
          %528 = vst [vmem:[%s252 + $0x448] sm:$0xff] %v527
          %v529 = vld [vmem:[%s251 + $0x450] sm:$0xff]
          %530 = vst [vmem:[%s252 + $0x450] sm:$0xff] %v529
          %v531 = vld [vmem:[%s251 + $0x458] sm:$0xff]
          %532 = vst [vmem:[%s252 + $0x458] sm:$0xff] %v531
          %v533 = vld [vmem:[%s251 + $0x460] sm:$0xff]
          %534 = vst [vmem:[%s252 + $0x460] sm:$0xff] %v533
          %v535 = vld [vmem:[%s251 + $0x468] sm:$0xff]
          %536 = vst [vmem:[%s252 + $0x468] sm:$0xff] %v535
          %v537 = vld [vmem:[%s251 + $0x470] sm:$0xff]
          %538 = vst [vmem:[%s252 + $0x470] sm:$0xff] %v537
          %v539 = vld [vmem:[%s251 + $0x478] sm:$0xff]
          %540 = vst [vmem:[%s252 + $0x478] sm:$0xff] %v539
        $region137: #{forward.1} parent=131 // loop_footer
          %s250 = sadd.s32 1, %s246
        $region138: #{forward.1} parent=131 // loop_footer_branch
          %245 = sbr.rel target = $region134
        $region139: #{forward.1} parent=131 // loop_exit
          _
      $region132: #{forward.1} parent=116 // pred_fallthru
        _
      %p541 = pneg %p241
      // Predicated region
      $region140: #{forward.1} parent=116 // pred_check
        _
      $region141: #{forward.1} parent=116 // pred_check_branch
        %543 = sbr.rel (%p241) target = $region143
      $region142: #{forward.1} parent=116 // pred_region
        %s544 = sand.u32 1152, 7
      $region143: #{forward.1} parent=116 // pred_fallthru
        _
    $region117: #{forward.1} parent=1 // pred_fallthru
      _
    // Predicated region
    $region118: #{forward.1} parent=1 // pred_check
      %p226 = pneg %p222
    $region119: #{forward.1} parent=1 // pred_check_branch
      %228 = sbr.rel (%p226) target = $region121
    $region120: #{forward.1} parent=1 // pred_region
      %s229 = sshllo.u32 0, 1152
      loop: start=0, step=1, limit=1
      $region122: #{forward.1} parent=120 // loop_pre_header
        _
      $region123: #{forward.1} parent=120 // loop_header
        %s231 = sphi 0, %s235
        %p232 = scmp.ge.s32.totalorder %s231, 1
        %s236 = sphi %s27, %s27
        %s237 = sphi [#allocation6], [#allocation6]
      $region124: #{forward.1} parent=120 // loop_header_branch
        %234 = sbr.rel (%p232) target = $region128
      $region125: #{forward.1} parent=120 // loop_body
        %v238 = vld [vmem:[%s236] sm:%s229]
        %239 = vst [vmem:[%s237] sm:%s229] %v238
      $region126: #{forward.1} parent=120 // loop_footer
        %s235 = sadd.s32 1, %s231
      $region127: #{forward.1} parent=120 // loop_footer_branch
        %230 = sbr.rel target = $region123
      $region128: #{forward.1} parent=120 // loop_exit
        _
    $region121: #{forward.1} parent=1 // pred_fallthru
      _
    // Predicated region
    $region144: #{forward.1} parent=1 // pred_check
      _
    $region145: #{forward.1} parent=1 // pred_check_branch
      %547 = sbr.rel (0) target = $region147
    $region146: #{forward.1} parent=1 // pred_region
      %548 = vsyncadd %s220, 18432
    $region147: #{forward.1} parent=1 // pred_fallthru
      _
    %s549 = scalar_lea.sflag [#allocation13], 5
    %p551 = scmp.lt.u32.totalorder 320, 8
    %p552 = pneg %p551
    // Predicated region
    $region148: #{forward.1} parent=1 // pred_check
      _
    $region149: #{forward.1} parent=1 // pred_check_branch
      %554 = sbr.rel (%p551) target = $region151
    $region150: #{forward.1} parent=1 // pred_region
      %s569 = sand.u32 320, 7
      %p570 = scmp.eq.s32.totalorder %s569, 0
      // Predicated region
      $region163: #{forward.1} parent=150 // pred_check
        %p571 = pneg %p570
      $region164: #{forward.1} parent=150 // pred_check_branch
        %573 = sbr.rel (%p571) target = $region166
      $region165: #{forward.1} parent=150 // pred_region
        loop: start=0, step=1, limit=1
        $region167: #{forward.1} parent=165 // loop_pre_header
          _
        $region168: #{forward.1} parent=165 // loop_header
          %s575 = sphi 0, %s579
          %p576 = scmp.ge.s32.totalorder %s575, 1
          %s580 = sphi %s31, %s31
          %s581 = sphi [#allocation7], [#allocation7]
        $region169: #{forward.1} parent=165 // loop_header_branch
          %578 = sbr.rel (%p576) target = $region173
        $region170: #{forward.1} parent=165 // loop_body
          %v582 = vld [vmem:[%s580] sm:$0xff]
          %583 = vst [vmem:[%s581] sm:$0xff] %v582
          %v584 = vld [vmem:[%s580 + $0x8] sm:$0xff]
          %585 = vst [vmem:[%s581 + $0x8] sm:$0xff] %v584
          %v586 = vld [vmem:[%s580 + $0x10] sm:$0xff]
          %587 = vst [vmem:[%s581 + $0x10] sm:$0xff] %v586
          %v588 = vld [vmem:[%s580 + $0x18] sm:$0xff]
          %589 = vst [vmem:[%s581 + $0x18] sm:$0xff] %v588
          %v590 = vld [vmem:[%s580 + $0x20] sm:$0xff]
          %591 = vst [vmem:[%s581 + $0x20] sm:$0xff] %v590
          %v592 = vld [vmem:[%s580 + $0x28] sm:$0xff]
          %593 = vst [vmem:[%s581 + $0x28] sm:$0xff] %v592
          %v594 = vld [vmem:[%s580 + $0x30] sm:$0xff]
          %595 = vst [vmem:[%s581 + $0x30] sm:$0xff] %v594
          %v596 = vld [vmem:[%s580 + $0x38] sm:$0xff]
          %597 = vst [vmem:[%s581 + $0x38] sm:$0xff] %v596
          %v598 = vld [vmem:[%s580 + $0x40] sm:$0xff]
          %599 = vst [vmem:[%s581 + $0x40] sm:$0xff] %v598
          %v600 = vld [vmem:[%s580 + $0x48] sm:$0xff]
          %601 = vst [vmem:[%s581 + $0x48] sm:$0xff] %v600
          %v602 = vld [vmem:[%s580 + $0x50] sm:$0xff]
          %603 = vst [vmem:[%s581 + $0x50] sm:$0xff] %v602
          %v604 = vld [vmem:[%s580 + $0x58] sm:$0xff]
          %605 = vst [vmem:[%s581 + $0x58] sm:$0xff] %v604
          %v606 = vld [vmem:[%s580 + $0x60] sm:$0xff]
          %607 = vst [vmem:[%s581 + $0x60] sm:$0xff] %v606
          %v608 = vld [vmem:[%s580 + $0x68] sm:$0xff]
          %609 = vst [vmem:[%s581 + $0x68] sm:$0xff] %v608
          %v610 = vld [vmem:[%s580 + $0x70] sm:$0xff]
          %611 = vst [vmem:[%s581 + $0x70] sm:$0xff] %v610
          %v612 = vld [vmem:[%s580 + $0x78] sm:$0xff]
          %613 = vst [vmem:[%s581 + $0x78] sm:$0xff] %v612
          %v614 = vld [vmem:[%s580 + $0x80] sm:$0xff]
          %615 = vst [vmem:[%s581 + $0x80] sm:$0xff] %v614
          %v616 = vld [vmem:[%s580 + $0x88] sm:$0xff]
          %617 = vst [vmem:[%s581 + $0x88] sm:$0xff] %v616
          %v618 = vld [vmem:[%s580 + $0x90] sm:$0xff]
          %619 = vst [vmem:[%s581 + $0x90] sm:$0xff] %v618
          %v620 = vld [vmem:[%s580 + $0x98] sm:$0xff]
          %621 = vst [vmem:[%s581 + $0x98] sm:$0xff] %v620
          %v622 = vld [vmem:[%s580 + $0xa0] sm:$0xff]
          %623 = vst [vmem:[%s581 + $0xa0] sm:$0xff] %v622
          %v624 = vld [vmem:[%s580 + $0xa8] sm:$0xff]
          %625 = vst [vmem:[%s581 + $0xa8] sm:$0xff] %v624
          %v626 = vld [vmem:[%s580 + $0xb0] sm:$0xff]
          %627 = vst [vmem:[%s581 + $0xb0] sm:$0xff] %v626
          %v628 = vld [vmem:[%s580 + $0xb8] sm:$0xff]
          %629 = vst [vmem:[%s581 + $0xb8] sm:$0xff] %v628
          %v630 = vld [vmem:[%s580 + $0xc0] sm:$0xff]
          %631 = vst [vmem:[%s581 + $0xc0] sm:$0xff] %v630
          %v632 = vld [vmem:[%s580 + $0xc8] sm:$0xff]
          %633 = vst [vmem:[%s581 + $0xc8] sm:$0xff] %v632
          %v634 = vld [vmem:[%s580 + $0xd0] sm:$0xff]
          %635 = vst [vmem:[%s581 + $0xd0] sm:$0xff] %v634
          %v636 = vld [vmem:[%s580 + $0xd8] sm:$0xff]
          %637 = vst [vmem:[%s581 + $0xd8] sm:$0xff] %v636
          %v638 = vld [vmem:[%s580 + $0xe0] sm:$0xff]
          %639 = vst [vmem:[%s581 + $0xe0] sm:$0xff] %v638
          %v640 = vld [vmem:[%s580 + $0xe8] sm:$0xff]
          %641 = vst [vmem:[%s581 + $0xe8] sm:$0xff] %v640
          %v642 = vld [vmem:[%s580 + $0xf0] sm:$0xff]
          %643 = vst [vmem:[%s581 + $0xf0] sm:$0xff] %v642
          %v644 = vld [vmem:[%s580 + $0xf8] sm:$0xff]
          %645 = vst [vmem:[%s581 + $0xf8] sm:$0xff] %v644
          %v646 = vld [vmem:[%s580 + $0x100] sm:$0xff]
          %647 = vst [vmem:[%s581 + $0x100] sm:$0xff] %v646
          %v648 = vld [vmem:[%s580 + $0x108] sm:$0xff]
          %649 = vst [vmem:[%s581 + $0x108] sm:$0xff] %v648
          %v650 = vld [vmem:[%s580 + $0x110] sm:$0xff]
          %651 = vst [vmem:[%s581 + $0x110] sm:$0xff] %v650
          %v652 = vld [vmem:[%s580 + $0x118] sm:$0xff]
          %653 = vst [vmem:[%s581 + $0x118] sm:$0xff] %v652
          %v654 = vld [vmem:[%s580 + $0x120] sm:$0xff]
          %655 = vst [vmem:[%s581 + $0x120] sm:$0xff] %v654
          %v656 = vld [vmem:[%s580 + $0x128] sm:$0xff]
          %657 = vst [vmem:[%s581 + $0x128] sm:$0xff] %v656
          %v658 = vld [vmem:[%s580 + $0x130] sm:$0xff]
          %659 = vst [vmem:[%s581 + $0x130] sm:$0xff] %v658
          %v660 = vld [vmem:[%s580 + $0x138] sm:$0xff]
          %661 = vst [vmem:[%s581 + $0x138] sm:$0xff] %v660
        $region171: #{forward.1} parent=165 // loop_footer
          %s579 = sadd.s32 1, %s575
        $region172: #{forward.1} parent=165 // loop_footer_branch
          %574 = sbr.rel target = $region168
        $region173: #{forward.1} parent=165 // loop_exit
          _
      $region166: #{forward.1} parent=150 // pred_fallthru
        _
      %p662 = pneg %p570
      // Predicated region
      $region174: #{forward.1} parent=150 // pred_check
        _
      $region175: #{forward.1} parent=150 // pred_check_branch
        %664 = sbr.rel (%p570) target = $region177
      $region176: #{forward.1} parent=150 // pred_region
        %s665 = sand.u32 320, 7
      $region177: #{forward.1} parent=150 // pred_fallthru
        _
    $region151: #{forward.1} parent=1 // pred_fallthru
      _
    // Predicated region
    $region152: #{forward.1} parent=1 // pred_check
      %p555 = pneg %p551
    $region153: #{forward.1} parent=1 // pred_check_branch
      %557 = sbr.rel (%p555) target = $region155
    $region154: #{forward.1} parent=1 // pred_region
      %s558 = sshllo.u32 0, 320
      loop: start=0, step=1, limit=1
      $region156: #{forward.1} parent=154 // loop_pre_header
        _
      $region157: #{forward.1} parent=154 // loop_header
        %s560 = sphi 0, %s564
        %p561 = scmp.ge.s32.totalorder %s560, 1
        %s565 = sphi %s31, %s31
        %s566 = sphi [#allocation7], [#allocation7]
      $region158: #{forward.1} parent=154 // loop_header_branch
        %563 = sbr.rel (%p561) target = $region162
      $region159: #{forward.1} parent=154 // loop_body
        %v567 = vld [vmem:[%s565] sm:%s558]
        %568 = vst [vmem:[%s566] sm:%s558] %v567
      $region160: #{forward.1} parent=154 // loop_footer
        %s564 = sadd.s32 1, %s560
      $region161: #{forward.1} parent=154 // loop_footer_branch
        %559 = sbr.rel target = $region157
      $region162: #{forward.1} parent=154 // loop_exit
        _
    $region155: #{forward.1} parent=1 // pred_fallthru
      _
    // Predicated region
    $region178: #{forward.1} parent=1 // pred_check
      _
    $region179: #{forward.1} parent=1 // pred_check_branch
      %668 = sbr.rel (0) target = $region181
    $region180: #{forward.1} parent=1 // pred_region
      %669 = vsyncadd %s549, 5120
    $region181: #{forward.1} parent=1 // pred_fallthru
      _
    %s670 = scalar_lea.sflag [#allocation13], 6
    // Predicated region
    $region182: #{forward.1} parent=1 // pred_check
      _
    $region183: #{forward.1} parent=1 // pred_check_branch
      %672 = sbr.rel target = $region185
    $region184: #{forward.1} parent=1 // pred_region
      %673 = sst [smem:[#allocation26]] [#allocation37]
      %674 = sst [smem:[#allocation27]] [#allocation36]
    $region185: #{forward.1} parent=1 // pred_fallthru
      _
    %676 = shalt.err (0)
    %s678 = sshll.u32 [#allocation8], 4
    %s679 = int_to_ptr.vmem [resolvable:$true] %s678
    %681 = dma.hbm_to_vmem [thread:$0]  %s39, 10240, %s679, %s670
    %s682 = scalar_lea.sflag [#allocation13], 7
    // Predicated region
    $region186: #{forward.1} parent=1 // pred_check
      _
    $region187: #{forward.1} parent=1 // pred_check_branch
      %684 = sbr.rel target = $region189
    $region188: #{forward.1} parent=1 // pred_region
      %685 = sst [smem:[#allocation26]] [#allocation39]
      %686 = sst [smem:[#allocation27]] [#allocation38]
    $region189: #{forward.1} parent=1 // pred_fallthru
      _
    %688 = shalt.err (0)
    %s690 = sshll.u32 [#allocation9], 4
    %s691 = int_to_ptr.vmem [resolvable:$true] %s690
    %693 = dma.hbm_to_vmem [thread:$0]  %s43, 2048, %s691, %s682
    %s694 = scalar_lea.sflag [#allocation13], 8
    // Predicated region
    $region190: #{forward.1} parent=1 // pred_check
      _
    $region191: #{forward.1} parent=1 // pred_check_branch
      %696 = sbr.rel target = $region193
    $region192: #{forward.1} parent=1 // pred_region
      %697 = sst [smem:[#allocation26]] [#allocation41]
      %698 = sst [smem:[#allocation27]] [#allocation40]
    $region193: #{forward.1} parent=1 // pred_fallthru
      _
    %700 = shalt.err (0)
    %s702 = sshll.u32 [#allocation10], 4
    %s703 = int_to_ptr.vmem [resolvable:$true] %s702
    %705 = dma.hbm_to_vmem [thread:$0]  %s49, 16384, %s703, %s694
    %s706 = scalar_lea.sflag [#allocation13], 9
    // Predicated region
    $region194: #{forward.1} parent=1 // pred_check
      _
    $region195: #{forward.1} parent=1 // pred_check_branch
      %708 = sbr.rel target = $region197
    $region196: #{forward.1} parent=1 // pred_region
      %709 = sst [smem:[#allocation26]] [#allocation43]
      %710 = sst [smem:[#allocation27]] [#allocation42]
    $region197: #{forward.1} parent=1 // pred_fallthru
      _
    %712 = shalt.err (0)
    %s714 = sshll.u32 [#allocation11], 4
    %s715 = int_to_ptr.vmem [resolvable:$true] %s714
    %717 = dma.hbm_to_vmem [thread:$0]  %s51, 1024, %s715, %s706
    %s718 = scalar_lea.sflag [#allocation13], 10
    // Predicated region
    $region198: #{forward.1} parent=1 // pred_check
      _
    $region199: #{forward.1} parent=1 // pred_check_branch
      %720 = sbr.rel target = $region201
    $region200: #{forward.1} parent=1 // pred_region
      %721 = sst [smem:[#allocation26]] [#allocation45]
      %722 = sst [smem:[#allocation27]] [#allocation44]
    $region201: #{forward.1} parent=1 // pred_fallthru
      _
    %724 = shalt.err (0)
    %s726 = sshll.u32 [#allocation12], 4
    %s727 = int_to_ptr.vmem [resolvable:$true] %s726
    %729 = dma.hbm_to_vmem [thread:$0]  %s57, 4096, %s727, %s718
    %v730 = vld [vmem:[%s1] sm:$0xff]
    %v731 = vld [vmem:[%s1 + $0x8] sm:$0xff]
    %v732 = vld [vmem:[%s1 + $0x10] sm:$0xff]
    %v733 = vld [vmem:[%s1 + $0x18] sm:$0xff]
    %v734 = vld [vmem:[%s1 + $0x20] sm:$0xff]
    %v735 = vld [vmem:[%s1 + $0x28] sm:$0xff]
    %v736 = vld [vmem:[%s1 + $0x30] sm:$0xff]
    %v737 = vld [vmem:[%s1 + $0x38] sm:$0xff]
    %v738 = vld [vmem:[%s1 + $0x40] sm:$0xff]
    %v739 = vld [vmem:[%s1 + $0x48] sm:$0xff]
    %v740 = vld [vmem:[%s1 + $0x50] sm:$0xff]
    %v741 = vld [vmem:[%s1 + $0x58] sm:$0xff]
    %v742 = vld [vmem:[%s1 + $0x60] sm:$0xff]
    %v743 = vld [vmem:[%s1 + $0x68] sm:$0xff]
    %v744 = vld [vmem:[%s1 + $0x70] sm:$0xff]
    %v745 = vld [vmem:[%s1 + $0x78] sm:$0xff]
    %v746 = vld [vmem:[%s1 + $0x80] sm:$0xff]
    %v747 = vld [vmem:[%s1 + $0x88] sm:$0xff]
    %v748 = vld [vmem:[%s1 + $0x90] sm:$0xff]
    %v749 = vld [vmem:[%s1 + $0x98] sm:$0xff]
    %v750 = vld [vmem:[%s1 + $0xa0] sm:$0xff]
    %v751 = vld [vmem:[%s1 + $0xa8] sm:$0xff]
    %v752 = vld [vmem:[%s1 + $0xb0] sm:$0xff]
    %v753 = vld [vmem:[%s1 + $0xb8] sm:$0xff]
    %v754 = vld [vmem:[%s1 + $0xc0] sm:$0xff]
    %v755 = vld [vmem:[%s1 + $0xc8] sm:$0xff]
    %v756 = vld [vmem:[%s1 + $0xd0] sm:$0xff]
    %v757 = vld [vmem:[%s1 + $0xd8] sm:$0xff]
    %v758 = vld [vmem:[%s1 + $0xe0] sm:$0xff]
    %v759 = vld [vmem:[%s1 + $0xe8] sm:$0xff]
    %v760 = vld [vmem:[%s1 + $0xf0] sm:$0xff]
    %v761 = vld [vmem:[%s1 + $0xf8] sm:$0xff]
    %v762 = vld [vmem:[%s1 + $0x100] sm:$0xf]
    %v763 = vld [vmem:[%s1 + $0x108] sm:$0xf]
    %v764 = vld [vmem:[%s9] sm:$0x3]
    %v765 = vld [vmem:[%s11] sm:$0x3]
    %v766 = vld [vmem:[#allocation14] sm:$0xff]
    %v767 = vld [vmem:[#allocation14 + $0x8] sm:$0xff]
    %v768 = vld [vmem:[#allocation14 + $0x10] sm:$0xff]
    %v769 = vld [vmem:[#allocation14 + $0x18] sm:$0xff]
    %v770 = vld [vmem:[#allocation14 + $0x20] sm:$0xff]
    %v771 = vld [vmem:[#allocation14 + $0x28] sm:$0xff]
    %v772 = vld [vmem:[#allocation14 + $0x30] sm:$0xff]
    %v773 = vld [vmem:[#allocation14 + $0x38] sm:$0xff]
    %v774 = vld [vmem:[#allocation14 + $0x40] sm:$0xff]
    %v775 = vld [vmem:[#allocation14 + $0x48] sm:$0xff]
    %v776 = vld [vmem:[#allocation14 + $0x50] sm:$0xff]
    %v777 = vld [vmem:[#allocation14 + $0x58] sm:$0xff]
    %v778 = vld [vmem:[#allocation14 + $0x60] sm:$0xff]
    %v779 = vld [vmem:[#allocation14 + $0x68] sm:$0xff]
    %v780 = vld [vmem:[#allocation14 + $0x70] sm:$0xff]
    %v781 = vld [vmem:[#allocation14 + $0x78] sm:$0xff]
    %v782 = vld [vmem:[#allocation14 + $0x80] sm:$0xff]
    %v783 = vld [vmem:[#allocation14 + $0x88] sm:$0xff]
    %v784 = vld [vmem:[#allocation14 + $0x90] sm:$0xff]
    %v785 = vld [vmem:[#allocation14 + $0x98] sm:$0xff]
    %v786 = vld [vmem:[#allocation14 + $0xa0] sm:$0xff]
    %v787 = vld [vmem:[#allocation14 + $0xa8] sm:$0xff]
    %v788 = vld [vmem:[#allocation14 + $0xb0] sm:$0xff]
    %v789 = vld [vmem:[#allocation14 + $0xb8] sm:$0xff]
    %v790 = vld [vmem:[#allocation14 + $0xc0] sm:$0xff]
    %v791 = vld [vmem:[#allocation14 + $0xc8] sm:$0xff]
    %v792 = vld [vmem:[#allocation14 + $0xd0] sm:$0xff]
    %v793 = vld [vmem:[#allocation14 + $0xd8] sm:$0xff]
    %v794 = vld [vmem:[#allocation14 + $0xe0] sm:$0xff]
    %v795 = vld [vmem:[#allocation14 + $0xe8] sm:$0xff]
    %v796 = vld [vmem:[#allocation14 + $0xf0] sm:$0xff]
    %v797 = vld [vmem:[#allocation14 + $0xf8] sm:$0xff]
    %v798 = vld [vmem:[#allocation14 + $0x100] sm:$0xff]
    %v799 = vld [vmem:[#allocation14 + $0x108] sm:$0xff]
    %v800 = vld [vmem:[#allocation14 + $0x110] sm:$0xff]
    %v801 = vld [vmem:[#allocation14 + $0x118] sm:$0xff]
    %v802 = vld [vmem:[#allocation14 + $0x120] sm:$0xff]
    %v803 = vld [vmem:[#allocation14 + $0x128] sm:$0xff]
    %v804 = vld [vmem:[#allocation14 + $0x130] sm:$0xff]
    %v805 = vld [vmem:[#allocation14 + $0x138] sm:$0xff]
    %v806 = vld [vmem:[#allocation14 + $0x140] sm:$0xff]
    %v807 = vld [vmem:[#allocation14 + $0x148] sm:$0xff]
    %v808 = vld [vmem:[#allocation14 + $0x150] sm:$0xff]
    %v809 = vld [vmem:[#allocation14 + $0x158] sm:$0xff]
    %v810 = vld [vmem:[#allocation14 + $0x160] sm:$0xff]
    %v811 = vld [vmem:[#allocation14 + $0x168] sm:$0xff]
    %v812 = vld [vmem:[#allocation14 + $0x170] sm:$0xff]
    %v813 = vld [vmem:[#allocation14 + $0x178] sm:$0xff]
    %v814 = vld [vmem:[#allocation14 + $0x180] sm:$0xff]
    %v815 = vld [vmem:[#allocation14 + $0x188] sm:$0xff]
    %v816 = vld [vmem:[#allocation14 + $0x190] sm:$0xff]
    %v817 = vld [vmem:[#allocation14 + $0x198] sm:$0xff]
    %v818 = vld [vmem:[#allocation14 + $0x1a0] sm:$0xff]
    %v819 = vld [vmem:[#allocation14 + $0x1a8] sm:$0xff]
    %v820 = vld [vmem:[#allocation14 + $0x1b0] sm:$0xff]
    %v821 = vld [vmem:[#allocation14 + $0x1b8] sm:$0xff]
    %v822 = vld [vmem:[#allocation14 + $0x1c0] sm:$0xff]
    %v823 = vld [vmem:[#allocation14 + $0x1c8] sm:$0xff]
    %v824 = vld [vmem:[#allocation14 + $0x1d0] sm:$0xff]
    %v825 = vld [vmem:[#allocation14 + $0x1d8] sm:$0xff]
    %v826 = vld [vmem:[#allocation14 + $0x1e0] sm:$0xff]
    %v827 = vld [vmem:[#allocation14 + $0x1e8] sm:$0xff]
    %v828 = vld [vmem:[#allocation14 + $0x1f0] sm:$0xff]
    %v829 = vld [vmem:[#allocation14 + $0x1f8] sm:$0xff]
    %v830 = vld [vmem:[#allocation14 + $0x200] sm:$0xff]
    %v831 = vld [vmem:[#allocation14 + $0x208] sm:$0xff]
    %v832 = vld [vmem:[#allocation14 + $0x210] sm:$0xff]
    %v833 = vld [vmem:[#allocation14 + $0x218] sm:$0xff]
    %v834 = vld [vmem:[#allocation14 + $0x220] sm:$0xff]
    %v835 = vld [vmem:[#allocation14 + $0x228] sm:$0xff]
    %v836 = vld [vmem:[#allocation14 + $0x230] sm:$0xff]
    %v837 = vld [vmem:[#allocation14 + $0x238] sm:$0xff]
    %vm838 = vcmask 31744
    %v840 = vsel %vm838, %v767, 0
    %v843 = vsel %vm838, %v769, 0
    %v846 = vsel %vm838, %v771, 0
    %v849 = vsel %vm838, %v773, 0
    %v852 = vsel %vm838, %v775, 0
    %v855 = vsel %vm838, %v777, 0
    %v858 = vsel %vm838, %v779, 0
    %v861 = vsel %vm838, %v781, 0
    %v864 = vsel %vm838, %v783, 0
    %v867 = vsel %vm838, %v785, 0
    %v870 = vsel %vm838, %v787, 0
    %v873 = vsel %vm838, %v789, 0
    %v876 = vsel %vm838, %v791, 0
    %v879 = vsel %vm838, %v793, 0
    %v882 = vsel %vm838, %v795, 0
    %v885 = vsel %vm838, %v797, 0
    %v888 = vsel %vm838, %v799, 0
    %v891 = vsel %vm838, %v801, 0
    %v894 = vsel %vm838, %v803, 0
    %v897 = vsel %vm838, %v805, 0
    %v900 = vsel %vm838, %v807, 0
    %v903 = vsel %vm838, %v809, 0
    %v906 = vsel %vm838, %v811, 0
    %v909 = vsel %vm838, %v813, 0
    %v912 = vsel %vm838, %v815, 0
    %v915 = vsel %vm838, %v817, 0
    %v918 = vsel %vm838, %v819, 0
    %v921 = vsel %vm838, %v821, 0
    %v924 = vsel %vm838, %v823, 0
    %v927 = vsel %vm838, %v825, 0
    %v930 = vsel %vm838, %v827, 0
    %v933 = vsel %vm838, %v829, 0
    %v936 = vsel %vm838, %v831, 0
    %v939 = vsel %vm838, %v833, 0
    %v942 = vsel %vm838, %v835, 0
    %v945 = vsel %vm838, %v837, 0
    %vm947 = vcmask 1043456
    %v949 = vsel %vm947, %v762, 0
    %v952 = vsel %vm947, %v763, 0
    %954 = vmatprep.subr.mxu0 %v731
    %955 = vmatpush1.msra.mxu0 %v730
    %956 = vmatprep.subr.mxu0 %v733
    %957 = vmatpush1.msra.mxu0 %v732
    %958 = vmatprep.subr.mxu0 %v735
    %959 = vmatpush1.msra.mxu0 %v734
    %960 = vmatprep.subr.mxu0 %v737
    %961 = vmatpush1.msra.mxu0 %v736
    %962 = vmatprep.subr.mxu0 %v739
    %963 = vmatpush1.msra.mxu0 %v738
    %964 = vmatprep.subr.mxu0 %v741
    %965 = vmatpush1.msra.mxu0 %v740
    %966 = vmatprep.subr.mxu0 %v743
    %967 = vmatpush1.msra.mxu0 %v742
    %968 = vmatprep.subr.mxu0 %v745
    %969 = vmatpush1.msra.mxu0 %v744
    %970 = vmatprep.subr.mxu0 %v747
    %971 = vmatpush1.msra.mxu0 %v746
    %972 = vmatprep.subr.mxu0 %v749
    %973 = vmatpush1.msra.mxu0 %v748
    %974 = vmatprep.subr.mxu0 %v751
    %975 = vmatpush1.msra.mxu0 %v750
    %976 = vmatprep.subr.mxu0 %v753
    %977 = vmatpush1.msra.mxu0 %v752
    %978 = vmatprep.subr.mxu0 %v755
    %979 = vmatpush1.msra.mxu0 %v754
    %980 = vmatprep.subr.mxu0 %v757
    %981 = vmatpush1.msra.mxu0 %v756
    %982 = vmatprep.subr.mxu0 %v759
    %983 = vmatpush1.msra.mxu0 %v758
    %984 = vmatprep.subr.mxu0 %v761
    %985 = vmatpush1.msra.mxu0 %v760
    %986 = vmatprep.subr.mxu0 %v952
    %987 = vmatpush1.msra.mxu0 %v949
    %988 = vmatprep.subr.mxu0 0.0
    %989 = vmatpush1.msra.mxu0 0.0
    %990 = vmatprep.subr.mxu0 0.0
    %991 = vmatpush1.msra.mxu0 0.0
    %992 = vmatprep.subr.mxu0 0.0
    %993 = vmatpush1.msra.mxu0 0.0
    %994 = vmatprep.subr.mxu0 0.0
    %995 = vmatpush1.msra.mxu0 0.0
    %996 = vmatprep.subr.mxu0 0.0
    %997 = vmatpush1.msra.mxu0 0.0
    %998 = vmatprep.subr.mxu0 0.0
    %999 = vmatpush1.msra.mxu0 0.0
    %1000 = vmatprep.subr.mxu0 0.0
    %1001 = vmatpush1.msra.mxu0 0.0
    %1002 = vmatprep.subr.mxu0 0.0
    %1003 = vmatpush1.msra.mxu0 0.0
    %1004 = vmatprep.subr.mxu0 0.0
    %1005 = vmatpush1.msra.mxu0 0.0
    %1006 = vmatprep.subr.mxu0 0.0
    %1007 = vmatpush1.msra.mxu0 0.0
    %1008 = vmatprep.subr.mxu0 0.0
    %1009 = vmatpush1.msra.mxu0 0.0
    %1010 = vmatprep.subr.mxu0 0.0
    %1011 = vmatpush1.msra.mxu0 0.0
    %1012 = vmatprep.subr.mxu0 0.0
    %1013 = vmatpush1.msra.mxu0 0.0
    %1014 = vmatprep.subr.mxu0 0.0
    %1015 = vmatpush1.msra.mxu0 0.0
    %1016 = vmatprep.subr.mxu0 0.0
    %1017 = vmatpush1.msra.mxu0 0.0
    %1018 = vmatprep.mubr.f32.mxu0 %v840
    %1019 = vmatmul.mubr.f32.gmra.mrb[0].mxu0 %v766
    %v1020 = vpop.f32.mrb[0].mxu0
    %v1021 = vadd.f32 0.0, %v1020
    %v1022 = vpop.f32.mrb[0].mxu0
    %v1023 = vadd.f32 0.0, %v1022
    %1024 = vmatprep.mubr.f32.mxu0 %v843
    %1025 = vmatmul.mubr.f32.gmra.mrb[0].mxu0 %v768
    %v1026 = vpop.f32.mrb[0].mxu0
    %v1027 = vadd.f32 0.0, %v1026
    %v1028 = vpop.f32.mrb[0].mxu0
    %v1029 = vadd.f32 0.0, %v1028
    %1030 = vmatprep.mubr.f32.mxu0 %v846
    %1031 = vmatmul.mubr.f32.gmra.mrb[0].mxu0 %v770
    %v1032 = vpop.f32.mrb[0].mxu0
    %v1033 = vadd.f32 0.0, %v1032
    %v1034 = vpop.f32.mrb[0].mxu0
    %v1035 = vadd.f32 0.0, %v1034
    %1036 = vmatprep.mubr.f32.mxu0 %v849
    %1037 = vmatmul.mubr.f32.gmra.mrb[0].mxu0 %v772
    %v1038 = vpop.f32.mrb[0].mxu0
    %v1039 = vadd.f32 0.0, %v1038
    %v1040 = vpop.f32.mrb[0].mxu0
    %v1041 = vadd.f32 0.0, %v1040
    %1042 = vmatprep.mubr.f32.mxu0 %v852
    %1043 = vmatmul.mubr.f32.gmra.mrb[0].mxu0 %v774
    %v1044 = vpop.f32.mrb[0].mxu0
    %v1045 = vadd.f32 0.0, %v1044
    %v1046 = vpop.f32.mrb[0].mxu0
    %v1047 = vadd.f32 0.0, %v1046
    %1048 = vmatprep.mubr.f32.mxu0 %v855
    %1049 = vmatmul.mubr.f32.gmra.mrb[0].mxu0 %v776
    %v1050 = vpop.f32.mrb[0].mxu0
    %v1051 = vadd.f32 0.0, %v1050
    %v1052 = vpop.f32.mrb[0].mxu0
    %v1053 = vadd.f32 0.0, %v1052
    %1054 = vmatprep.mubr.f32.mxu0 %v858
    %1055 = vmatmul.mubr.f32.gmra.mrb[0].mxu0 %v778
    %v1056 = vpop.f32.mrb[0].mxu0
    %v1057 = vadd.f32 0.0, %v1056
    %v1058 = vpop.f32.mrb[0].mxu0
    %v1059 = vadd.f32 0.0, %v1058
    %1060 = vmatprep.mubr.f32.mxu0 %v861
    %1061 = vmatmul.mubr.f32.gmra.mrb[0].mxu0 %v780
    %v1062 = vpop.f32.mrb[0].mxu0
    %v1063 = vadd.f32 0.0, %v1062
    %v1064 = vpop.f32.mrb[0].mxu0
    %v1065 = vadd.f32 0.0, %v1064
    %1066 = vmatprep.mubr.f32.mxu0 %v864
    %1067 = vmatmul.mubr.f32.gmra.mrb[0].mxu0 %v782
    %v1068 = vpop.f32.mrb[0].mxu0
    %v1069 = vadd.f32 0.0, %v1068
    %v1070 = vpop.f32.mrb[0].mxu0
    %v1071 = vadd.f32 0.0, %v1070
    %1072 = vmatprep.mubr.f32.mxu0 %v867
    %1073 = vmatmul.mubr.f32.gmra.mrb[0].mxu0 %v784
    %v1074 = vpop.f32.mrb[0].mxu0
    %v1075 = vadd.f32 0.0, %v1074
    %v1076 = vpop.f32.mrb[0].mxu0
    %v1077 = vadd.f32 0.0, %v1076
    %1078 = vmatprep.mubr.f32.mxu0 %v870
    %1079 = vmatmul.mubr.f32.gmra.mrb[0].mxu0 %v786
    %v1080 = vpop.f32.mrb[0].mxu0
    %v1081 = vadd.f32 0.0, %v1080
    %v1082 = vpop.f32.mrb[0].mxu0
    %v1083 = vadd.f32 0.0, %v1082
    %1084 = vmatprep.mubr.f32.mxu0 %v873
    %1085 = vmatmul.mubr.f32.gmra.mrb[0].mxu0 %v788
    %v1086 = vpop.f32.mrb[0].mxu0
    %v1087 = vadd.f32 0.0, %v1086
    %v1088 = vpop.f32.mrb[0].mxu0
    %v1089 = vadd.f32 0.0, %v1088
    %1090 = vmatprep.mubr.f32.mxu0 %v876
    %1091 = vmatmul.mubr.f32.gmra.mrb[0].mxu0 %v790
    %v1092 = vpop.f32.mrb[0].mxu0
    %v1093 = vadd.f32 0.0, %v1092
    %v1094 = vpop.f32.mrb[0].mxu0
    %v1095 = vadd.f32 0.0, %v1094
    %1096 = vmatprep.mubr.f32.mxu0 %v879
    %1097 = vmatmul.mubr.f32.gmra.mrb[0].mxu0 %v792
    %v1098 = vpop.f32.mrb[0].mxu0
    %v1099 = vadd.f32 0.0, %v1098
    %v1100 = vpop.f32.mrb[0].mxu0
    %v1101 = vadd.f32 0.0, %v1100
    %1102 = vmatprep.mubr.f32.mxu0 %v882
    %1103 = vmatmul.mubr.f32.gmra.mrb[0].mxu0 %v794
    %v1104 = vpop.f32.mrb[0].mxu0
    %v1105 = vadd.f32 0.0, %v1104
    %v1106 = vpop.f32.mrb[0].mxu0
    %v1107 = vadd.f32 0.0, %v1106
    %1108 = vmatprep.mubr.f32.mxu0 %v885
    %1109 = vmatmul.mubr.f32.gmra.mrb[0].mxu0 %v796
    %v1110 = vpop.f32.mrb[0].mxu0
    %v1111 = vadd.f32 0.0, %v1110
    %v1112 = vpop.f32.mrb[0].mxu0
    %v1113 = vadd.f32 0.0, %v1112
    %1114 = vmatprep.mubr.f32.mxu0 %v888
    %1115 = vmatmul.mubr.f32.gmra.mrb[0].mxu0 %v798
    %v1116 = vpop.f32.mrb[0].mxu0
    %v1117 = vadd.f32 0.0, %v1116
    %v1118 = vpop.f32.mrb[0].mxu0
    %v1119 = vadd.f32 0.0, %v1118
    %1120 = vmatprep.mubr.f32.mxu0 %v891
    %1121 = vmatmul.mubr.f32.gmra.mrb[0].mxu0 %v800
    %v1122 = vpop.f32.mrb[0].mxu0
    %v1123 = vadd.f32 0.0, %v1122
    %v1124 = vpop.f32.mrb[0].mxu0
    %v1125 = vadd.f32 0.0, %v1124
    %1126 = vmatprep.mubr.f32.mxu0 %v894
    %1127 = vmatmul.mubr.f32.gmra.mrb[0].mxu0 %v802
    %v1128 = vpop.f32.mrb[0].mxu0
    %v1129 = vadd.f32 0.0, %v1128
    %v1130 = vpop.f32.mrb[0].mxu0
    %v1131 = vadd.f32 0.0, %v1130
    %1132 = vmatprep.mubr.f32.mxu0 %v897
    %1133 = vmatmul.mubr.f32.gmra.mrb[0].mxu0 %v804
    %v1134 = vpop.f32.mrb[0].mxu0
    %v1135 = vadd.f32 0.0, %v1134
    %v1136 = vpop.f32.mrb[0].mxu0
    %v1137 = vadd.f32 0.0, %v1136
    %1138 = vmatprep.mubr.f32.mxu0 %v900
    %1139 = vmatmul.mubr.f32.gmra.mrb[0].mxu0 %v806
    %v1140 = vpop.f32.mrb[0].mxu0
    %v1141 = vadd.f32 0.0, %v1140
    %v1142 = vpop.f32.mrb[0].mxu0
    %v1143 = vadd.f32 0.0, %v1142
    %1144 = vmatprep.mubr.f32.mxu0 %v903
    %1145 = vmatmul.mubr.f32.gmra.mrb[0].mxu0 %v808
    %v1146 = vpop.f32.mrb[0].mxu0
    %v1147 = vadd.f32 0.0, %v1146
    %v1148 = vpop.f32.mrb[0].mxu0
    %v1149 = vadd.f32 0.0, %v1148
    %1150 = vmatprep.mubr.f32.mxu0 %v906
    %1151 = vmatmul.mubr.f32.gmra.mrb[0].mxu0 %v810
    %v1152 = vpop.f32.mrb[0].mxu0
    %v1153 = vadd.f32 0.0, %v1152
    %v1154 = vpop.f32.mrb[0].mxu0
    %v1155 = vadd.f32 0.0, %v1154
    %1156 = vmatprep.mubr.f32.mxu0 %v909
    %1157 = vmatmul.mubr.f32.gmra.mrb[0].mxu0 %v812
    %v1158 = vpop.f32.mrb[0].mxu0
    %v1159 = vadd.f32 0.0, %v1158
    %v1160 = vpop.f32.mrb[0].mxu0
    %v1161 = vadd.f32 0.0, %v1160
    %1162 = vmatprep.mubr.f32.mxu0 %v912
    %1163 = vmatmul.mubr.f32.gmra.mrb[0].mxu0 %v814
    %v1164 = vpop.f32.mrb[0].mxu0
    %v1165 = vadd.f32 0.0, %v1164
    %v1166 = vpop.f32.mrb[0].mxu0
    %v1167 = vadd.f32 0.0, %v1166
    %1168 = vmatprep.mubr.f32.mxu0 %v915
    %1169 = vmatmul.mubr.f32.gmra.mrb[0].mxu0 %v816
    %v1170 = vpop.f32.mrb[0].mxu0
    %v1171 = vadd.f32 0.0, %v1170
    %v1172 = vpop.f32.mrb[0].mxu0
    %v1173 = vadd.f32 0.0, %v1172
    %1174 = vmatprep.mubr.f32.mxu0 %v918
    %1175 = vmatmul.mubr.f32.gmra.mrb[0].mxu0 %v818
    %v1176 = vpop.f32.mrb[0].mxu0
    %v1177 = vadd.f32 0.0, %v1176
    %v1178 = vpop.f32.mrb[0].mxu0
    %v1179 = vadd.f32 0.0, %v1178
    %1180 = vmatprep.mubr.f32.mxu0 %v921
    %1181 = vmatmul.mubr.f32.gmra.mrb[0].mxu0 %v820
    %v1182 = vpop.f32.mrb[0].mxu0
    %v1183 = vadd.f32 0.0, %v1182
    %v1184 = vpop.f32.mrb[0].mxu0
    %v1185 = vadd.f32 0.0, %v1184
    %1186 = vmatprep.mubr.f32.mxu0 %v924
    %1187 = vmatmul.mubr.f32.gmra.mrb[0].mxu0 %v822
    %v1188 = vpop.f32.mrb[0].mxu0
    %v1189 = vadd.f32 0.0, %v1188
    %v1190 = vpop.f32.mrb[0].mxu0
    %v1191 = vadd.f32 0.0, %v1190
    %1192 = vmatprep.mubr.f32.mxu0 %v927
    %1193 = vmatmul.mubr.f32.gmra.mrb[0].mxu0 %v824
    %v1194 = vpop.f32.mrb[0].mxu0
    %v1195 = vadd.f32 0.0, %v1194
    %v1196 = vpop.f32.mrb[0].mxu0
    %v1197 = vadd.f32 0.0, %v1196
    %1198 = vmatprep.mubr.f32.mxu0 %v930
    %1199 = vmatmul.mubr.f32.gmra.mrb[0].mxu0 %v826
    %v1200 = vpop.f32.mrb[0].mxu0
    %v1201 = vadd.f32 0.0, %v1200
    %v1202 = vpop.f32.mrb[0].mxu0
    %v1203 = vadd.f32 0.0, %v1202
    %1204 = vmatprep.mubr.f32.mxu0 %v933
    %1205 = vmatmul.mubr.f32.gmra.mrb[0].mxu0 %v828
    %v1206 = vpop.f32.mrb[0].mxu0
    %v1207 = vadd.f32 0.0, %v1206
    %v1208 = vpop.f32.mrb[0].mxu0
    %v1209 = vadd.f32 0.0, %v1208
    %1210 = vmatprep.mubr.f32.mxu0 %v936
    %1211 = vmatmul.mubr.f32.gmra.mrb[0].mxu0 %v830
    %v1212 = vpop.f32.mrb[0].mxu0
    %v1213 = vadd.f32 0.0, %v1212
    %v1214 = vpop.f32.mrb[0].mxu0
    %v1215 = vadd.f32 0.0, %v1214
    %1216 = vmatprep.mubr.f32.mxu0 %v939
    %1217 = vmatmul.mubr.f32.gmra.mrb[0].mxu0 %v832
    %v1218 = vpop.f32.mrb[0].mxu0
    %v1219 = vadd.f32 0.0, %v1218
    %v1220 = vpop.f32.mrb[0].mxu0
    %v1221 = vadd.f32 0.0, %v1220
    %1222 = vmatprep.mubr.f32.mxu0 %v942
    %1223 = vmatmul.mubr.f32.gmra.mrb[0].mxu0 %v834
    %v1224 = vpop.f32.mrb[0].mxu0
    %v1225 = vadd.f32 0.0, %v1224
    %v1226 = vpop.f32.mrb[0].mxu0
    %v1227 = vadd.f32 0.0, %v1226
    %1228 = vmatprep.mubr.f32.mxu0 %v945
    %1229 = vmatmul.mubr.f32.gmra.mrb[0].mxu0 %v836
    %v1230 = vpop.f32.mrb[0].mxu0
    %v1231 = vadd.f32 0.0, %v1230
    %v1232 = vpop.f32.mrb[0].mxu0
    %v1233 = vadd.f32 0.0, %v1232
    %1234 = vdwg.mxu0
    %v1235 = vld [vmem:[%s3] sm:$0xff]
    %v1236 = vld [vmem:[%s3 + $0x8] sm:$0xff]
    %v1237 = vld [vmem:[%s3 + $0x10] sm:$0xff]
    %v1238 = vld [vmem:[%s3 + $0x18] sm:$0xff]
    %v1239 = vld [vmem:[%s3 + $0x20] sm:$0xff]
    %v1240 = vld [vmem:[%s3 + $0x28] sm:$0xff]
    %v1241 = vld [vmem:[%s3 + $0x30] sm:$0xff]
    %v1242 = vld [vmem:[%s3 + $0x38] sm:$0xff]
    %v1243 = vld [vmem:[%s3 + $0x40] sm:$0xff]
    %v1244 = vld [vmem:[%s3 + $0x48] sm:$0xff]
    %v1245 = vld [vmem:[%s3 + $0x50] sm:$0xff]
    %v1246 = vld [vmem:[%s3 + $0x58] sm:$0xff]
    %v1247 = vld [vmem:[%s3 + $0x60] sm:$0xff]
    %v1248 = vld [vmem:[%s3 + $0x68] sm:$0xff]
    %v1249 = vld [vmem:[%s3 + $0x70] sm:$0xff]
    %v1250 = vld [vmem:[%s3 + $0x78] sm:$0xff]
    %v1251 = vld [vmem:[%s3 + $0x80] sm:$0xff]
    %v1252 = vld [vmem:[%s3 + $0x88] sm:$0xff]
    %v1253 = vld [vmem:[%s3 + $0x90] sm:$0xff]
    %v1254 = vld [vmem:[%s3 + $0x98] sm:$0xff]
    %v1255 = vld [vmem:[%s3 + $0xa0] sm:$0xff]
    %v1256 = vld [vmem:[%s3 + $0xa8] sm:$0xff]
    %v1257 = vld [vmem:[%s3 + $0xb0] sm:$0xff]
    %v1258 = vld [vmem:[%s3 + $0xb8] sm:$0xff]
    %v1259 = vld [vmem:[%s3 + $0xc0] sm:$0xff]
    %v1260 = vld [vmem:[%s3 + $0xc8] sm:$0xff]
    %v1261 = vld [vmem:[%s3 + $0xd0] sm:$0xff]
    %v1262 = vld [vmem:[%s3 + $0xd8] sm:$0xff]
    %v1263 = vld [vmem:[%s3 + $0xe0] sm:$0xff]
    %v1264 = vld [vmem:[%s3 + $0xe8] sm:$0xff]
    %v1265 = vld [vmem:[%s3 + $0xf0] sm:$0xff]
    %v1266 = vld [vmem:[%s3 + $0xf8] sm:$0xff]
    %v1267 = vld [vmem:[%s3 + $0x100] sm:$0xff]
    %v1268 = vld [vmem:[%s3 + $0x108] sm:$0xff]
    %v1269 = vld [vmem:[%s3 + $0x110] sm:$0xff]
    %v1270 = vld [vmem:[%s3 + $0x118] sm:$0xff]
    %v1271 = vld [vmem:[%s3 + $0x120] sm:$0xff]
    %v1272 = vld [vmem:[%s3 + $0x128] sm:$0xff]
    %v1273 = vld [vmem:[%s3 + $0x130] sm:$0xff]
    %v1274 = vld [vmem:[%s3 + $0x138] sm:$0xff]
    %v1275 = vld [vmem:[%s3 + $0x140] sm:$0xff]
    %v1276 = vld [vmem:[%s3 + $0x148] sm:$0xff]
    %v1277 = vld [vmem:[%s3 + $0x150] sm:$0xff]
    %v1278 = vld [vmem:[%s3 + $0x158] sm:$0xff]
    %v1279 = vld [vmem:[%s3 + $0x160] sm:$0xff]
    %v1280 = vld [vmem:[%s3 + $0x168] sm:$0xff]
    %v1281 = vld [vmem:[%s3 + $0x170] sm:$0xff]
    %v1282 = vld [vmem:[%s3 + $0x178] sm:$0xff]
    %v1283 = vld [vmem:[%s3 + $0x180] sm:$0x3f]
    %v1284 = vld [vmem:[%s3 + $0x188] sm:$0x3f]
    %s1285 = scalar_lea.vmem %s3, 400
    %v1286 = vld [vmem:[%s1285] sm:$0xff]
    %v1287 = vld [vmem:[%s1285 + $0x8] sm:$0xff]
    %v1288 = vld [vmem:[%s1285 + $0x10] sm:$0xff]
    %v1289 = vld [vmem:[%s1285 + $0x18] sm:$0xff]
    %v1290 = vld [vmem:[%s1285 + $0x20] sm:$0xff]
    %v1291 = vld [vmem:[%s1285 + $0x28] sm:$0xff]
    %v1292 = vld [vmem:[%s1285 + $0x30] sm:$0xff]
    %v1293 = vld [vmem:[%s1285 + $0x38] sm:$0xff]
    %v1294 = vld [vmem:[%s1285 + $0x40] sm:$0xff]
    %v1295 = vld [vmem:[%s1285 + $0x48] sm:$0xff]
    %v1296 = vld [vmem:[%s1285 + $0x50] sm:$0xff]
    %v1297 = vld [vmem:[%s1285 + $0x58] sm:$0xff]
    %v1298 = vld [vmem:[%s1285 + $0x60] sm:$0xff]
    %v1299 = vld [vmem:[%s1285 + $0x68] sm:$0xff]
    %v1300 = vld [vmem:[%s1285 + $0x70] sm:$0xff]
    %v1301 = vld [vmem:[%s1285 + $0x78] sm:$0xff]
    %v1302 = vld [vmem:[%s1285 + $0x80] sm:$0xff]
    %v1303 = vld [vmem:[%s1285 + $0x88] sm:$0xff]
    %v1304 = vld [vmem:[%s1285 + $0x90] sm:$0xff]
    %v1305 = vld [vmem:[%s1285 + $0x98] sm:$0xff]
    %v1306 = vld [vmem:[%s1285 + $0xa0] sm:$0xff]
    %v1307 = vld [vmem:[%s1285 + $0xa8] sm:$0xff]
    %v1308 = vld [vmem:[%s1285 + $0xb0] sm:$0xff]
    %v1309 = vld [vmem:[%s1285 + $0xb8] sm:$0xff]
    %v1310 = vld [vmem:[%s1285 + $0xc0] sm:$0xff]
    %v1311 = vld [vmem:[%s1285 + $0xc8] sm:$0xff]
    %v1312 = vld [vmem:[%s1285 + $0xd0] sm:$0xff]
    %v1313 = vld [vmem:[%s1285 + $0xd8] sm:$0xff]
    %v1314 = vld [vmem:[%s1285 + $0xe0] sm:$0xff]
    %v1315 = vld [vmem:[%s1285 + $0xe8] sm:$0xff]
    %v1316 = vld [vmem:[%s1285 + $0xf0] sm:$0xff]
    %v1317 = vld [vmem:[%s1285 + $0xf8] sm:$0xff]
    %v1318 = vld [vmem:[%s1285 + $0x100] sm:$0xff]
    %v1319 = vld [vmem:[%s1285 + $0x108] sm:$0xff]
    %v1320 = vld [vmem:[%s1285 + $0x110] sm:$0xff]
    %v1321 = vld [vmem:[%s1285 + $0x118] sm:$0xff]
    %v1322 = vld [vmem:[%s1285 + $0x120] sm:$0xff]
    %v1323 = vld [vmem:[%s1285 + $0x128] sm:$0xff]
    %v1324 = vld [vmem:[%s1285 + $0x130] sm:$0xff]
    %v1325 = vld [vmem:[%s1285 + $0x138] sm:$0xff]
    %v1326 = vld [vmem:[%s1285 + $0x140] sm:$0xff]
    %v1327 = vld [vmem:[%s1285 + $0x148] sm:$0xff]
    %v1328 = vld [vmem:[%s1285 + $0x150] sm:$0xff]
    %v1329 = vld [vmem:[%s1285 + $0x158] sm:$0xff]
    %v1330 = vld [vmem:[%s1285 + $0x160] sm:$0xff]
    %v1331 = vld [vmem:[%s1285 + $0x168] sm:$0xff]
    %v1332 = vld [vmem:[%s1285 + $0x170] sm:$0xff]
    %v1333 = vld [vmem:[%s1285 + $0x178] sm:$0xff]
    %v1334 = vld [vmem:[%s1285 + $0x180] sm:$0x3f]
    %v1335 = vld [vmem:[%s1285 + $0x188] sm:$0x3f]
    %vm1336 = vcmask 572416
    %v1338 = vsel %vm1336, %v1077, 0
    %v1341 = vsel %vm1336, %v1083, 0
    %v1344 = vsel %vm1336, %v1089, 0
    %v1347 = vsel %vm1336, %v1095, 0
    %v1350 = vsel %vm1336, %v1101, 0
    %v1353 = vsel %vm1336, %v1107, 0
    %v1356 = vsel %vm1336, %v1113, 0
    %v1359 = vsel %vm1336, %v1119, 0
    %v1362 = vsel %vm1336, %v1125, 0
    %vm1364 = vcmask 1045504
    %v1366 = vsel %vm1364, %v1334, 0
    %v1369 = vsel %vm1364, %v1335, 0
    %1371 = vmatprep.subr.mxu0 %v1287
    %1372 = vmatpush1.msra.mxu0 %v1286
    %1373 = vmatprep.subr.mxu0 %v1289
    %1374 = vmatpush1.msra.mxu0 %v1288
    %1375 = vmatprep.subr.mxu0 %v1291
    %1376 = vmatpush1.msra.mxu0 %v1290
    %1377 = vmatprep.subr.mxu0 %v1293
    %1378 = vmatpush1.msra.mxu0 %v1292
    %1379 = vmatprep.subr.mxu0 %v1295
    %1380 = vmatpush1.msra.mxu0 %v1294
    %1381 = vmatprep.subr.mxu0 %v1297
    %1382 = vmatpush1.msra.mxu0 %v1296
    %1383 = vmatprep.subr.mxu0 %v1299
    %1384 = vmatpush1.msra.mxu0 %v1298
    %1385 = vmatprep.subr.mxu0 %v1301
    %1386 = vmatpush1.msra.mxu0 %v1300
    %1387 = vmatprep.subr.mxu0 %v1303
    %1388 = vmatpush1.msra.mxu0 %v1302
    %1389 = vmatprep.subr.mxu0 %v1305
    %1390 = vmatpush1.msra.mxu0 %v1304
    %1391 = vmatprep.subr.mxu0 %v1307
    %1392 = vmatpush1.msra.mxu0 %v1306
    %1393 = vmatprep.subr.mxu0 %v1309
    %1394 = vmatpush1.msra.mxu0 %v1308
    %1395 = vmatprep.subr.mxu0 %v1311
    %1396 = vmatpush1.msra.mxu0 %v1310
    %1397 = vmatprep.subr.mxu0 %v1313
    %1398 = vmatpush1.msra.mxu0 %v1312
    %1399 = vmatprep.subr.mxu0 %v1315
    %1400 = vmatpush1.msra.mxu0 %v1314
    %1401 = vmatprep.subr.mxu0 %v1317
    %1402 = vmatpush1.msra.mxu0 %v1316
    %1403 = vmatprep.subr.mxu0 %v1319
    %1404 = vmatpush1.msra.mxu0 %v1318
    %1405 = vmatprep.subr.mxu0 %v1321
    %1406 = vmatpush1.msra.mxu0 %v1320
    %1407 = vmatprep.subr.mxu0 %v1323
    %1408 = vmatpush1.msra.mxu0 %v1322
    %1409 = vmatprep.subr.mxu0 %v1325
    %1410 = vmatpush1.msra.mxu0 %v1324
    %1411 = vmatprep.subr.mxu0 %v1327
    %1412 = vmatpush1.msra.mxu0 %v1326
    %1413 = vmatprep.subr.mxu0 %v1329
    %1414 = vmatpush1.msra.mxu0 %v1328
    %1415 = vmatprep.subr.mxu0 %v1331
    %1416 = vmatpush1.msra.mxu0 %v1330
    %1417 = vmatprep.subr.mxu0 %v1333
    %1418 = vmatpush1.msra.mxu0 %v1332
    %1419 = vmatprep.subr.mxu0 %v1369
    %1420 = vmatpush1.msra.mxu0 %v1366
    %1421 = vmatprep.subr.mxu0 0.0
    %1422 = vmatpush1.msra.mxu0 0.0
    %1423 = vmatprep.subr.mxu0 0.0
    %1424 = vmatpush1.msra.mxu0 0.0
    %1425 = vmatprep.subr.mxu0 0.0
    %1426 = vmatpush1.msra.mxu0 0.0
    %1427 = vmatprep.subr.mxu0 0.0
    %1428 = vmatpush1.msra.mxu0 0.0
    %1429 = vmatprep.subr.mxu0 0.0
    %1430 = vmatpush1.msra.mxu0 0.0
    %1431 = vmatprep.subr.mxu0 0.0
    %1432 = vmatpush1.msra.mxu0 0.0
    %1433 = vmatprep.subr.mxu0 0.0
    %1434 = vmatpush1.msra.mxu0 0.0
    %1435 = vmatprep.mubr.f32.mxu0 %v1338
    %1436 = vmatmul.mubr.f32.gmra.mrb[0].mxu0 %v1075
    %v1437 = vpop.f32.mrb[0].mxu0
    %v1438 = vadd.f32 0.0, %v1437
    %v1439 = vpop.f32.mrb[0].mxu0
    %v1440 = vadd.f32 0.0, %v1439
    %1441 = vmatprep.mubr.f32.mxu0 %v1341
    %1442 = vmatmul.mubr.f32.gmra.mrb[0].mxu0 %v1081
    %v1443 = vpop.f32.mrb[0].mxu0
    %v1444 = vadd.f32 0.0, %v1443
    %v1445 = vpop.f32.mrb[0].mxu0
    %v1446 = vadd.f32 0.0, %v1445
    %1447 = vmatprep.mubr.f32.mxu0 %v1344
    %1448 = vmatmul.mubr.f32.gmra.mrb[0].mxu0 %v1087
    %v1449 = vpop.f32.mrb[0].mxu0
    %v1450 = vadd.f32 0.0, %v1449
    %v1451 = vpop.f32.mrb[0].mxu0
    %v1452 = vadd.f32 0.0, %v1451
    %1453 = vmatprep.mubr.f32.mxu0 %v1347
    %1454 = vmatmul.mubr.f32.gmra.mrb[0].mxu0 %v1093
    %v1455 = vpop.f32.mrb[0].mxu0
    %v1456 = vadd.f32 0.0, %v1455
    %v1457 = vpop.f32.mrb[0].mxu0
    %v1458 = vadd.f32 0.0, %v1457
    %1459 = vmatprep.mubr.f32.mxu0 %v1350
    %1460 = vmatmul.mubr.f32.gmra.mrb[0].mxu0 %v1099
    %v1461 = vpop.f32.mrb[0].mxu0
    %v1462 = vadd.f32 0.0, %v1461
    %v1463 = vpop.f32.mrb[0].mxu0
    %v1464 = vadd.f32 0.0, %v1463
    %1465 = vmatprep.mubr.f32.mxu0 %v1353
    %1466 = vmatmul.mubr.f32.gmra.mrb[0].mxu0 %v1105
    %v1467 = vpop.f32.mrb[0].mxu0
    %v1468 = vadd.f32 0.0, %v1467
    %v1469 = vpop.f32.mrb[0].mxu0
    %v1470 = vadd.f32 0.0, %v1469
    %1471 = vmatprep.mubr.f32.mxu0 %v1356
    %1472 = vmatmul.mubr.f32.gmra.mrb[0].mxu0 %v1111
    %v1473 = vpop.f32.mrb[0].mxu0
    %v1474 = vadd.f32 0.0, %v1473
    %v1475 = vpop.f32.mrb[0].mxu0
    %v1476 = vadd.f32 0.0, %v1475
    %1477 = vmatprep.mubr.f32.mxu0 %v1359
    %1478 = vmatmul.mubr.f32.gmra.mrb[0].mxu0 %v1117
    %v1479 = vpop.f32.mrb[0].mxu0
    %v1480 = vadd.f32 0.0, %v1479
    %v1481 = vpop.f32.mrb[0].mxu0
    %v1482 = vadd.f32 0.0, %v1481
    %1483 = vmatprep.mubr.f32.mxu0 %v1362
    %1484 = vmatmul.mubr.f32.gmra.mrb[0].mxu0 %v1123
    %v1485 = vpop.f32.mrb[0].mxu0
    %v1486 = vadd.f32 0.0, %v1485
    %v1487 = vpop.f32.mrb[0].mxu0
    %v1488 = vadd.f32 0.0, %v1487
    %1489 = vdwg.mxu0
    %v1491 = vsel %vm1336, %v1023, 0
    %v1494 = vsel %vm1336, %v1029, 0
    %v1497 = vsel %vm1336, %v1035, 0
    %v1500 = vsel %vm1336, %v1041, 0
    %v1503 = vsel %vm1336, %v1047, 0
    %v1506 = vsel %vm1336, %v1053, 0
    %v1509 = vsel %vm1336, %v1059, 0
    %v1512 = vsel %vm1336, %v1065, 0
    %v1515 = vsel %vm1336, %v1071, 0
    %v1518 = vsel %vm1364, %v1283, 0
    %v1521 = vsel %vm1364, %v1284, 0
    %1523 = vmatprep.subr.mxu0 %v1236
    %1524 = vmatpush1.msra.mxu0 %v1235
    %1525 = vmatprep.subr.mxu0 %v1238
    %1526 = vmatpush1.msra.mxu0 %v1237
    %1527 = vmatprep.subr.mxu0 %v1240
    %1528 = vmatpush1.msra.mxu0 %v1239
    %1529 = vmatprep.subr.mxu0 %v1242
    %1530 = vmatpush1.msra.mxu0 %v1241
    %1531 = vmatprep.subr.mxu0 %v1244
    %1532 = vmatpush1.msra.mxu0 %v1243
    %1533 = vmatprep.subr.mxu0 %v1246
    %1534 = vmatpush1.msra.mxu0 %v1245
    %1535 = vmatprep.subr.mxu0 %v1248
    %1536 = vmatpush1.msra.mxu0 %v1247
    %1537 = vmatprep.subr.mxu0 %v1250
    %1538 = vmatpush1.msra.mxu0 %v1249
    %1539 = vmatprep.subr.mxu0 %v1252
    %1540 = vmatpush1.msra.mxu0 %v1251
    %1541 = vmatprep.subr.mxu0 %v1254
    %1542 = vmatpush1.msra.mxu0 %v1253
    %1543 = vmatprep.subr.mxu0 %v1256
    %1544 = vmatpush1.msra.mxu0 %v1255
    %1545 = vmatprep.subr.mxu0 %v1258
    %1546 = vmatpush1.msra.mxu0 %v1257
    %1547 = vmatprep.subr.mxu0 %v1260
    %1548 = vmatpush1.msra.mxu0 %v1259
    %1549 = vmatprep.subr.mxu0 %v1262
    %1550 = vmatpush1.msra.mxu0 %v1261
    %1551 = vmatprep.subr.mxu0 %v1264
    %1552 = vmatpush1.msra.mxu0 %v1263
    %1553 = vmatprep.subr.mxu0 %v1266
    %1554 = vmatpush1.msra.mxu0 %v1265
    %1555 = vmatprep.subr.mxu0 %v1268
    %1556 = vmatpush1.msra.mxu0 %v1267
    %1557 = vmatprep.subr.mxu0 %v1270
    %1558 = vmatpush1.msra.mxu0 %v1269
    %1559 = vmatprep.subr.mxu0 %v1272
    %1560 = vmatpush1.msra.mxu0 %v1271
    %1561 = vmatprep.subr.mxu0 %v1274
    %1562 = vmatpush1.msra.mxu0 %v1273
    %1563 = vmatprep.subr.mxu0 %v1276
    %1564 = vmatpush1.msra.mxu0 %v1275
    %1565 = vmatprep.subr.mxu0 %v1278
    %1566 = vmatpush1.msra.mxu0 %v1277
    %1567 = vmatprep.subr.mxu0 %v1280
    %1568 = vmatpush1.msra.mxu0 %v1279
    %1569 = vmatprep.subr.mxu0 %v1282
    %1570 = vmatpush1.msra.mxu0 %v1281
    %1571 = vmatprep.subr.mxu0 %v1521
    %1572 = vmatpush1.msra.mxu0 %v1518
    %1573 = vmatprep.subr.mxu0 0.0
    %1574 = vmatpush1.msra.mxu0 0.0
    %1575 = vmatprep.subr.mxu0 0.0
    %1576 = vmatpush1.msra.mxu0 0.0
    %1577 = vmatprep.subr.mxu0 0.0
    %1578 = vmatpush1.msra.mxu0 0.0
    %1579 = vmatprep.subr.mxu0 0.0
    %1580 = vmatpush1.msra.mxu0 0.0
    %1581 = vmatprep.subr.mxu0 0.0
    %1582 = vmatpush1.msra.mxu0 0.0
    %1583 = vmatprep.subr.mxu0 0.0
    %1584 = vmatpush1.msra.mxu0 0.0
    %1585 = vmatprep.subr.mxu0 0.0
    %1586 = vmatpush1.msra.mxu0 0.0
    %1587 = vmatprep.mubr.f32.mxu0 %v1491
    %1588 = vmatmul.mubr.f32.gmra.mrb[0].mxu0 %v1021
    %v1589 = vpop.f32.mrb[0].mxu0
    %v1590 = vadd.f32 %v1438, %v1589
    %v1591 = vpop.f32.mrb[0].mxu0
    %v1592 = vadd.f32 %v1440, %v1591
    %1593 = vmatprep.mubr.f32.mxu0 %v1494
    %1594 = vmatmul.mubr.f32.gmra.mrb[0].mxu0 %v1027
    %v1595 = vpop.f32.mrb[0].mxu0
    %v1596 = vadd.f32 %v1444, %v1595
    %v1597 = vpop.f32.mrb[0].mxu0
    %v1598 = vadd.f32 %v1446, %v1597
    %1599 = vmatprep.mubr.f32.mxu0 %v1497
    %1600 = vmatmul.mubr.f32.gmra.mrb[0].mxu0 %v1033
    %v1601 = vpop.f32.mrb[0].mxu0
    %v1602 = vadd.f32 %v1450, %v1601
    %v1603 = vpop.f32.mrb[0].mxu0
    %v1604 = vadd.f32 %v1452, %v1603
    %1605 = vmatprep.mubr.f32.mxu0 %v1500
    %1606 = vmatmul.mubr.f32.gmra.mrb[0].mxu0 %v1039
    %v1607 = vpop.f32.mrb[0].mxu0
    %v1608 = vadd.f32 %v1456, %v1607
    %v1609 = vpop.f32.mrb[0].mxu0
    %v1610 = vadd.f32 %v1458, %v1609
    %1611 = vmatprep.mubr.f32.mxu0 %v1503
    %1612 = vmatmul.mubr.f32.gmra.mrb[0].mxu0 %v1045
    %v1613 = vpop.f32.mrb[0].mxu0
    %v1614 = vadd.f32 %v1462, %v1613
    %v1615 = vpop.f32.mrb[0].mxu0
    %v1616 = vadd.f32 %v1464, %v1615
    %1617 = vmatprep.mubr.f32.mxu0 %v1506
    %1618 = vmatmul.mubr.f32.gmra.mrb[0].mxu0 %v1051
    %v1619 = vpop.f32.mrb[0].mxu0
    %v1620 = vadd.f32 %v1468, %v1619
    %v1621 = vpop.f32.mrb[0].mxu0
    %v1622 = vadd.f32 %v1470, %v1621
    %1623 = vmatprep.mubr.f32.mxu0 %v1509
    %1624 = vmatmul.mubr.f32.gmra.mrb[0].mxu0 %v1057
    %v1625 = vpop.f32.mrb[0].mxu0
    %v1626 = vadd.f32 %v1474, %v1625
    %v1627 = vpop.f32.mrb[0].mxu0
    %v1628 = vadd.f32 %v1476, %v1627
    %1629 = vmatprep.mubr.f32.mxu0 %v1512
    %1630 = vmatmul.mubr.f32.gmra.mrb[0].mxu0 %v1063
    %v1631 = vpop.f32.mrb[0].mxu0
    %v1632 = vadd.f32 %v1480, %v1631
    %v1633 = vpop.f32.mrb[0].mxu0
    %v1634 = vadd.f32 %v1482, %v1633
    %1635 = vmatprep.mubr.f32.mxu0 %v1515
    %1636 = vmatmul.mubr.f32.gmra.mrb[0].mxu0 %v1069
    %v1637 = vpop.f32.mrb[0].mxu0
    %v1638 = vadd.f32 %v1486, %v1637
    %v1639 = vpop.f32.mrb[0].mxu0
    %v1640 = vadd.f32 %v1488, %v1639
    %1641 = vdwg.mxu0
    %s1642 = scalar_lea.vmem %s3, 800
    %v1643 = vld [vmem:[%s1642] sm:$0xff]
    %v1644 = vld [vmem:[%s1642 + $0x8] sm:$0xff]
    %v1645 = vld [vmem:[%s1642 + $0x10] sm:$0xff]
    %v1646 = vld [vmem:[%s1642 + $0x18] sm:$0xff]
    %v1647 = vld [vmem:[%s1642 + $0x20] sm:$0xff]
    %v1648 = vld [vmem:[%s1642 + $0x28] sm:$0xff]
    %v1649 = vld [vmem:[%s1642 + $0x30] sm:$0xff]
    %v1650 = vld [vmem:[%s1642 + $0x38] sm:$0xff]
    %v1651 = vld [vmem:[%s1642 + $0x40] sm:$0xff]
    %v1652 = vld [vmem:[%s1642 + $0x48] sm:$0xff]
    %v1653 = vld [vmem:[%s1642 + $0x50] sm:$0xff]
    %v1654 = vld [vmem:[%s1642 + $0x58] sm:$0xff]
    %v1655 = vld [vmem:[%s1642 + $0x60] sm:$0xff]
    %v1656 = vld [vmem:[%s1642 + $0x68] sm:$0xff]
    %v1657 = vld [vmem:[%s1642 + $0x70] sm:$0xff]
    %v1658 = vld [vmem:[%s1642 + $0x78] sm:$0xff]
    %v1659 = vld [vmem:[%s1642 + $0x80] sm:$0xff]
    %v1660 = vld [vmem:[%s1642 + $0x88] sm:$0xff]
    %v1661 = vld [vmem:[%s1642 + $0x90] sm:$0xff]
    %v1662 = vld [vmem:[%s1642 + $0x98] sm:$0xff]
    %v1663 = vld [vmem:[%s1642 + $0xa0] sm:$0xff]
    %v1664 = vld [vmem:[%s1642 + $0xa8] sm:$0xff]
    %v1665 = vld [vmem:[%s1642 + $0xb0] sm:$0xff]
    %v1666 = vld [vmem:[%s1642 + $0xb8] sm:$0xff]
    %v1667 = vld [vmem:[%s1642 + $0xc0] sm:$0xff]
    %v1668 = vld [vmem:[%s1642 + $0xc8] sm:$0xff]
    %v1669 = vld [vmem:[%s1642 + $0xd0] sm:$0xff]
    %v1670 = vld [vmem:[%s1642 + $0xd8] sm:$0xff]
    %v1671 = vld [vmem:[%s1642 + $0xe0] sm:$0xff]
    %v1672 = vld [vmem:[%s1642 + $0xe8] sm:$0xff]
    %v1673 = vld [vmem:[%s1642 + $0xf0] sm:$0xff]
    %v1674 = vld [vmem:[%s1642 + $0xf8] sm:$0xff]
    %v1675 = vld [vmem:[%s1642 + $0x100] sm:$0xff]
    %v1676 = vld [vmem:[%s1642 + $0x108] sm:$0xff]
    %v1677 = vld [vmem:[%s1642 + $0x110] sm:$0xff]
    %v1678 = vld [vmem:[%s1642 + $0x118] sm:$0xff]
    %v1679 = vld [vmem:[%s1642 + $0x120] sm:$0xff]
    %v1680 = vld [vmem:[%s1642 + $0x128] sm:$0xff]
    %v1681 = vld [vmem:[%s1642 + $0x130] sm:$0xff]
    %v1682 = vld [vmem:[%s1642 + $0x138] sm:$0xff]
    %v1683 = vld [vmem:[%s1642 + $0x140] sm:$0xff]
    %v1684 = vld [vmem:[%s1642 + $0x148] sm:$0xff]
    %v1685 = vld [vmem:[%s1642 + $0x150] sm:$0xff]
    %v1686 = vld [vmem:[%s1642 + $0x158] sm:$0xff]
    %v1687 = vld [vmem:[%s1642 + $0x160] sm:$0xff]
    %v1688 = vld [vmem:[%s1642 + $0x168] sm:$0xff]
    %v1689 = vld [vmem:[%s1642 + $0x170] sm:$0xff]
    %v1690 = vld [vmem:[%s1642 + $0x178] sm:$0xff]
    %v1691 = vld [vmem:[%s1642 + $0x180] sm:$0x3f]
    %v1692 = vld [vmem:[%s1642 + $0x188] sm:$0x3f]
    %v1694 = vsel %vm1336, %v1131, 0
    %v1697 = vsel %vm1336, %v1137, 0
    %v1700 = vsel %vm1336, %v1143, 0
    %v1703 = vsel %vm1336, %v1149, 0
    %v1706 = vsel %vm1336, %v1155, 0
    %v1709 = vsel %vm1336, %v1161, 0
    %v1712 = vsel %vm1336, %v1167, 0
    %v1715 = vsel %vm1336, %v1173, 0
    %v1718 = vsel %vm1336, %v1179, 0
    %v1721 = vsel %vm1364, %v1691, 0
    %v1724 = vsel %vm1364, %v1692, 0
    %1726 = vmatprep.subr.mxu0 %v1644
    %1727 = vmatpush1.msra.mxu0 %v1643
    %1728 = vmatprep.subr.mxu0 %v1646
    %1729 = vmatpush1.msra.mxu0 %v1645
    %1730 = vmatprep.subr.mxu0 %v1648
    %1731 = vmatpush1.msra.mxu0 %v1647
    %1732 = vmatprep.subr.mxu0 %v1650
    %1733 = vmatpush1.msra.mxu0 %v1649
    %1734 = vmatprep.subr.mxu0 %v1652
    %1735 = vmatpush1.msra.mxu0 %v1651
    %1736 = vmatprep.subr.mxu0 %v1654
    %1737 = vmatpush1.msra.mxu0 %v1653
    %1738 = vmatprep.subr.mxu0 %v1656
    %1739 = vmatpush1.msra.mxu0 %v1655
    %1740 = vmatprep.subr.mxu0 %v1658
    %1741 = vmatpush1.msra.mxu0 %v1657
    %1742 = vmatprep.subr.mxu0 %v1660
    %1743 = vmatpush1.msra.mxu0 %v1659
    %1744 = vmatprep.subr.mxu0 %v1662
    %1745 = vmatpush1.msra.mxu0 %v1661
    %1746 = vmatprep.subr.mxu0 %v1664
    %1747 = vmatpush1.msra.mxu0 %v1663
    %1748 = vmatprep.subr.mxu0 %v1666
    %1749 = vmatpush1.msra.mxu0 %v1665
    %1750 = vmatprep.subr.mxu0 %v1668
    %1751 = vmatpush1.msra.mxu0 %v1667
    %1752 = vmatprep.subr.mxu0 %v1670
    %1753 = vmatpush1.msra.mxu0 %v1669
    %1754 = vmatprep.subr.mxu0 %v1672
    %1755 = vmatpush1.msra.mxu0 %v1671
    %1756 = vmatprep.subr.mxu0 %v1674
    %1757 = vmatpush1.msra.mxu0 %v1673
    %1758 = vmatprep.subr.mxu0 %v1676
    %1759 = vmatpush1.msra.mxu0 %v1675
    %1760 = vmatprep.subr.mxu0 %v1678
    %1761 = vmatpush1.msra.mxu0 %v1677
    %1762 = vmatprep.subr.mxu0 %v1680
    %1763 = vmatpush1.msra.mxu0 %v1679
    %1764 = vmatprep.subr.mxu0 %v1682
    %1765 = vmatpush1.msra.mxu0 %v1681
    %1766 = vmatprep.subr.mxu0 %v1684
    %1767 = vmatpush1.msra.mxu0 %v1683
    %1768 = vmatprep.subr.mxu0 %v1686
    %1769 = vmatpush1.msra.mxu0 %v1685
    %1770 = vmatprep.subr.mxu0 %v1688
    %1771 = vmatpush1.msra.mxu0 %v1687
    %1772 = vmatprep.subr.mxu0 %v1690
    %1773 = vmatpush1.msra.mxu0 %v1689
    %1774 = vmatprep.subr.mxu0 %v1724
    %1775 = vmatpush1.msra.mxu0 %v1721
    %1776 = vmatprep.subr.mxu0 0.0
    %1777 = vmatpush1.msra.mxu0 0.0
    %1778 = vmatprep.subr.mxu0 0.0
    %1779 = vmatpush1.msra.mxu0 0.0
    %1780 = vmatprep.subr.mxu0 0.0
    %1781 = vmatpush1.msra.mxu0 0.0
    %1782 = vmatprep.subr.mxu0 0.0
    %1783 = vmatpush1.msra.mxu0 0.0
    %1784 = vmatprep.subr.mxu0 0.0
    %1785 = vmatpush1.msra.mxu0 0.0
    %1786 = vmatprep.subr.mxu0 0.0
    %1787 = vmatpush1.msra.mxu0 0.0
    %1788 = vmatprep.subr.mxu0 0.0
    %1789 = vmatpush1.msra.mxu0 0.0
    %1790 = vmatprep.mubr.f32.mxu0 %v1694
    %1791 = vmatmul.mubr.f32.gmra.mrb[0].mxu0 %v1129
    %v1792 = vpop.f32.mrb[0].mxu0
    %v1793 = vadd.f32 0.0, %v1792
    %v1794 = vpop.f32.mrb[0].mxu0
    %v1795 = vadd.f32 0.0, %v1794
    %1796 = vmatprep.mubr.f32.mxu0 %v1697
    %1797 = vmatmul.mubr.f32.gmra.mrb[0].mxu0 %v1135
    %v1798 = vpop.f32.mrb[0].mxu0
    %v1799 = vadd.f32 0.0, %v1798
    %v1800 = vpop.f32.mrb[0].mxu0
    %v1801 = vadd.f32 0.0, %v1800
    %1802 = vmatprep.mubr.f32.mxu0 %v1700
    %1803 = vmatmul.mubr.f32.gmra.mrb[0].mxu0 %v1141
    %v1804 = vpop.f32.mrb[0].mxu0
    %v1805 = vadd.f32 0.0, %v1804
    %v1806 = vpop.f32.mrb[0].mxu0
    %v1807 = vadd.f32 0.0, %v1806
    %1808 = vmatprep.mubr.f32.mxu0 %v1703
    %1809 = vmatmul.mubr.f32.gmra.mrb[0].mxu0 %v1147
    %v1810 = vpop.f32.mrb[0].mxu0
    %v1811 = vadd.f32 0.0, %v1810
    %v1812 = vpop.f32.mrb[0].mxu0
    %v1813 = vadd.f32 0.0, %v1812
    %1814 = vmatprep.mubr.f32.mxu0 %v1706
    %1815 = vmatmul.mubr.f32.gmra.mrb[0].mxu0 %v1153
    %v1816 = vpop.f32.mrb[0].mxu0
    %v1817 = vadd.f32 0.0, %v1816
    %v1818 = vpop.f32.mrb[0].mxu0
    %v1819 = vadd.f32 0.0, %v1818
    %1820 = vmatprep.mubr.f32.mxu0 %v1709
    %1821 = vmatmul.mubr.f32.gmra.mrb[0].mxu0 %v1159
    %v1822 = vpop.f32.mrb[0].mxu0
    %v1823 = vadd.f32 0.0, %v1822
    %v1824 = vpop.f32.mrb[0].mxu0
    %v1825 = vadd.f32 0.0, %v1824
    %1826 = vmatprep.mubr.f32.mxu0 %v1712
    %1827 = vmatmul.mubr.f32.gmra.mrb[0].mxu0 %v1165
    %v1828 = vpop.f32.mrb[0].mxu0
    %v1829 = vadd.f32 0.0, %v1828
    %v1830 = vpop.f32.mrb[0].mxu0
    %v1831 = vadd.f32 0.0, %v1830
    %1832 = vmatprep.mubr.f32.mxu0 %v1715
    %1833 = vmatmul.mubr.f32.gmra.mrb[0].mxu0 %v1171
    %v1834 = vpop.f32.mrb[0].mxu0
    %v1835 = vadd.f32 0.0, %v1834
    %v1836 = vpop.f32.mrb[0].mxu0
    %v1837 = vadd.f32 0.0, %v1836
    %1838 = vmatprep.mubr.f32.mxu0 %v1718
    %1839 = vmatmul.mubr.f32.gmra.mrb[0].mxu0 %v1177
    %v1840 = vpop.f32.mrb[0].mxu0
    %v1841 = vadd.f32 0.0, %v1840
    %v1842 = vpop.f32.mrb[0].mxu0
    %v1843 = vadd.f32 0.0, %v1842
    %1844 = vdwg.mxu0
    %v1845 = vadd.f32 %v1590, %v1793
    %v1846 = vadd.f32 %v1592, %v1795
    %v1847 = vadd.f32 %v1596, %v1799
    %v1848 = vadd.f32 %v1598, %v1801
    %v1849 = vadd.f32 %v1602, %v1805
    %v1850 = vadd.f32 %v1604, %v1807
    %v1851 = vadd.f32 %v1608, %v1811
    %v1852 = vadd.f32 %v1610, %v1813
    %v1853 = vadd.f32 %v1614, %v1817
    %v1854 = vadd.f32 %v1616, %v1819
    %v1855 = vadd.f32 %v1620, %v1823
    %v1856 = vadd.f32 %v1622, %v1825
    %v1857 = vadd.f32 %v1626, %v1829
    %v1858 = vadd.f32 %v1628, %v1831
    %v1859 = vadd.f32 %v1632, %v1835
    %v1860 = vadd.f32 %v1634, %v1837
    %v1861 = vadd.f32 %v1638, %v1841
    %v1862 = vadd.f32 %v1640, %v1843
    %s1863 = scalar_lea.vmem %s3, 1200
    %v1864 = vld [vmem:[%s1863] sm:$0xff]
    %v1865 = vld [vmem:[%s1863 + $0x8] sm:$0xff]
    %v1866 = vld [vmem:[%s1863 + $0x10] sm:$0xff]
    %v1867 = vld [vmem:[%s1863 + $0x18] sm:$0xff]
    %v1868 = vld [vmem:[%s1863 + $0x20] sm:$0xff]
    %v1869 = vld [vmem:[%s1863 + $0x28] sm:$0xff]
    %v1870 = vld [vmem:[%s1863 + $0x30] sm:$0xff]
    %v1871 = vld [vmem:[%s1863 + $0x38] sm:$0xff]
    %v1872 = vld [vmem:[%s1863 + $0x40] sm:$0xff]
    %v1873 = vld [vmem:[%s1863 + $0x48] sm:$0xff]
    %v1874 = vld [vmem:[%s1863 + $0x50] sm:$0xff]
    %v1875 = vld [vmem:[%s1863 + $0x58] sm:$0xff]
    %v1876 = vld [vmem:[%s1863 + $0x60] sm:$0xff]
    %v1877 = vld [vmem:[%s1863 + $0x68] sm:$0xff]
    %v1878 = vld [vmem:[%s1863 + $0x70] sm:$0xff]
    %v1879 = vld [vmem:[%s1863 + $0x78] sm:$0xff]
    %v1880 = vld [vmem:[%s1863 + $0x80] sm:$0xff]
    %v1881 = vld [vmem:[%s1863 + $0x88] sm:$0xff]
    %v1882 = vld [vmem:[%s1863 + $0x90] sm:$0xff]
    %v1883 = vld [vmem:[%s1863 + $0x98] sm:$0xff]
    %v1884 = vld [vmem:[%s1863 + $0xa0] sm:$0xff]
    %v1885 = vld [vmem:[%s1863 + $0xa8] sm:$0xff]
    %v1886 = vld [vmem:[%s1863 + $0xb0] sm:$0xff]
    %v1887 = vld [vmem:[%s1863 + $0xb8] sm:$0xff]
    %v1888 = vld [vmem:[%s1863 + $0xc0] sm:$0xff]
    %v1889 = vld [vmem:[%s1863 + $0xc8] sm:$0xff]
    %v1890 = vld [vmem:[%s1863 + $0xd0] sm:$0xff]
    %v1891 = vld [vmem:[%s1863 + $0xd8] sm:$0xff]
    %v1892 = vld [vmem:[%s1863 + $0xe0] sm:$0xff]
    %v1893 = vld [vmem:[%s1863 + $0xe8] sm:$0xff]
    %v1894 = vld [vmem:[%s1863 + $0xf0] sm:$0xff]
    %v1895 = vld [vmem:[%s1863 + $0xf8] sm:$0xff]
    %v1896 = vld [vmem:[%s1863 + $0x100] sm:$0xff]
    %v1897 = vld [vmem:[%s1863 + $0x108] sm:$0xff]
    %v1898 = vld [vmem:[%s1863 + $0x110] sm:$0xff]
    %v1899 = vld [vmem:[%s1863 + $0x118] sm:$0xff]
    %v1900 = vld [vmem:[%s1863 + $0x120] sm:$0xff]
    %v1901 = vld [vmem:[%s1863 + $0x128] sm:$0xff]
    %v1902 = vld [vmem:[%s1863 + $0x130] sm:$0xff]
    %v1903 = vld [vmem:[%s1863 + $0x138] sm:$0xff]
    %v1904 = vld [vmem:[%s1863 + $0x140] sm:$0xff]
    %v1905 = vld [vmem:[%s1863 + $0x148] sm:$0xff]
    %v1906 = vld [vmem:[%s1863 + $0x150] sm:$0xff]
    %v1907 = vld [vmem:[%s1863 + $0x158] sm:$0xff]
    %v1908 = vld [vmem:[%s1863 + $0x160] sm:$0xff]
    %v1909 = vld [vmem:[%s1863 + $0x168] sm:$0xff]
    %v1910 = vld [vmem:[%s1863 + $0x170] sm:$0xff]
    %v1911 = vld [vmem:[%s1863 + $0x178] sm:$0xff]
    %v1912 = vld [vmem:[%s1863 + $0x180] sm:$0x3f]
    %v1913 = vld [vmem:[%s1863 + $0x188] sm:$0x3f]
    %v1915 = vsel %vm1336, %v1185, 0
    %v1918 = vsel %vm1336, %v1191, 0
    %v1921 = vsel %vm1336, %v1197, 0
    %v1924 = vsel %vm1336, %v1203, 0
    %v1927 = vsel %vm1336, %v1209, 0
    %v1930 = vsel %vm1336, %v1215, 0
    %v1933 = vsel %vm1336, %v1221, 0
    %v1936 = vsel %vm1336, %v1227, 0
    %v1939 = vsel %vm1336, %v1233, 0
    %v1942 = vsel %vm1364, %v1912, 0
    %v1945 = vsel %vm1364, %v1913, 0
    %1947 = vmatprep.subr.mxu0 %v1865
    %1948 = vmatpush1.msra.mxu0 %v1864
    %1949 = vmatprep.subr.mxu0 %v1867
    %1950 = vmatpush1.msra.mxu0 %v1866
    %1951 = vmatprep.subr.mxu0 %v1869
    %1952 = vmatpush1.msra.mxu0 %v1868
    %1953 = vmatprep.subr.mxu0 %v1871
    %1954 = vmatpush1.msra.mxu0 %v1870
    %1955 = vmatprep.subr.mxu0 %v1873
    %1956 = vmatpush1.msra.mxu0 %v1872
    %1957 = vmatprep.subr.mxu0 %v1875
    %1958 = vmatpush1.msra.mxu0 %v1874
    %1959 = vmatprep.subr.mxu0 %v1877
    %1960 = vmatpush1.msra.mxu0 %v1876
    %1961 = vmatprep.subr.mxu0 %v1879
    %1962 = vmatpush1.msra.mxu0 %v1878
    %1963 = vmatprep.subr.mxu0 %v1881
    %1964 = vmatpush1.msra.mxu0 %v1880
    %1965 = vmatprep.subr.mxu0 %v1883
    %1966 = vmatpush1.msra.mxu0 %v1882
    %1967 = vmatprep.subr.mxu0 %v1885
    %1968 = vmatpush1.msra.mxu0 %v1884
    %1969 = vmatprep.subr.mxu0 %v1887
    %1970 = vmatpush1.msra.mxu0 %v1886
    %1971 = vmatprep.subr.mxu0 %v1889
    %1972 = vmatpush1.msra.mxu0 %v1888
    %1973 = vmatprep.subr.mxu0 %v1891
    %1974 = vmatpush1.msra.mxu0 %v1890
    %1975 = vmatprep.subr.mxu0 %v1893
    %1976 = vmatpush1.msra.mxu0 %v1892
    %1977 = vmatprep.subr.mxu0 %v1895
    %1978 = vmatpush1.msra.mxu0 %v1894
    %1979 = vmatprep.subr.mxu0 %v1897
    %1980 = vmatpush1.msra.mxu0 %v1896
    %1981 = vmatprep.subr.mxu0 %v1899
    %1982 = vmatpush1.msra.mxu0 %v1898
    %1983 = vmatprep.subr.mxu0 %v1901
    %1984 = vmatpush1.msra.mxu0 %v1900
    %1985 = vmatprep.subr.mxu0 %v1903
    %1986 = vmatpush1.msra.mxu0 %v1902
    %1987 = vmatprep.subr.mxu0 %v1905
    %1988 = vmatpush1.msra.mxu0 %v1904
    %1989 = vmatprep.subr.mxu0 %v1907
    %1990 = vmatpush1.msra.mxu0 %v1906
    %1991 = vmatprep.subr.mxu0 %v1909
    %1992 = vmatpush1.msra.mxu0 %v1908
    %1993 = vmatprep.subr.mxu0 %v1911
    %1994 = vmatpush1.msra.mxu0 %v1910
    %1995 = vmatprep.subr.mxu0 %v1945
    %1996 = vmatpush1.msra.mxu0 %v1942
    %1997 = vmatprep.subr.mxu0 0.0
    %1998 = vmatpush1.msra.mxu0 0.0
    %1999 = vmatprep.subr.mxu0 0.0
    %2000 = vmatpush1.msra.mxu0 0.0
    %2001 = vmatprep.subr.mxu0 0.0
    %2002 = vmatpush1.msra.mxu0 0.0
    %2003 = vmatprep.subr.mxu0 0.0
    %2004 = vmatpush1.msra.mxu0 0.0
    %2005 = vmatprep.subr.mxu0 0.0
    %2006 = vmatpush1.msra.mxu0 0.0
    %2007 = vmatprep.subr.mxu0 0.0
    %2008 = vmatpush1.msra.mxu0 0.0
    %2009 = vmatprep.subr.mxu0 0.0
    %2010 = vmatpush1.msra.mxu0 0.0
    %2011 = vmatprep.mubr.f32.mxu0 %v1915
    %2012 = vmatmul.mubr.f32.gmra.mrb[0].mxu0 %v1183
    %v2013 = vpop.f32.mrb[0].mxu0
    %v2014 = vadd.f32 0.0, %v2013
    %v2015 = vpop.f32.mrb[0].mxu0
    %v2016 = vadd.f32 0.0, %v2015
    %2017 = vmatprep.mubr.f32.mxu0 %v1918
    %2018 = vmatmul.mubr.f32.gmra.mrb[0].mxu0 %v1189
    %v2019 = vpop.f32.mrb[0].mxu0
    %v2020 = vadd.f32 0.0, %v2019
    %v2021 = vpop.f32.mrb[0].mxu0
    %v2022 = vadd.f32 0.0, %v2021
    %2023 = vmatprep.mubr.f32.mxu0 %v1921
    %2024 = vmatmul.mubr.f32.gmra.mrb[0].mxu0 %v1195
    %v2025 = vpop.f32.mrb[0].mxu0
    %v2026 = vadd.f32 0.0, %v2025
    %v2027 = vpop.f32.mrb[0].mxu0
    %v2028 = vadd.f32 0.0, %v2027
    %2029 = vmatprep.mubr.f32.mxu0 %v1924
    %2030 = vmatmul.mubr.f32.gmra.mrb[0].mxu0 %v1201
    %v2031 = vpop.f32.mrb[0].mxu0
    %v2032 = vadd.f32 0.0, %v2031
    %v2033 = vpop.f32.mrb[0].mxu0
    %v2034 = vadd.f32 0.0, %v2033
    %2035 = vmatprep.mubr.f32.mxu0 %v1927
    %2036 = vmatmul.mubr.f32.gmra.mrb[0].mxu0 %v1207
    %v2037 = vpop.f32.mrb[0].mxu0
    %v2038 = vadd.f32 0.0, %v2037
    %v2039 = vpop.f32.mrb[0].mxu0
    %v2040 = vadd.f32 0.0, %v2039
    %2041 = vmatprep.mubr.f32.mxu0 %v1930
    %2042 = vmatmul.mubr.f32.gmra.mrb[0].mxu0 %v1213
    %v2043 = vpop.f32.mrb[0].mxu0
    %v2044 = vadd.f32 0.0, %v2043
    %v2045 = vpop.f32.mrb[0].mxu0
    %v2046 = vadd.f32 0.0, %v2045
    %2047 = vmatprep.mubr.f32.mxu0 %v1933
    %2048 = vmatmul.mubr.f32.gmra.mrb[0].mxu0 %v1219
    %v2049 = vpop.f32.mrb[0].mxu0
    %v2050 = vadd.f32 0.0, %v2049
    %v2051 = vpop.f32.mrb[0].mxu0
    %v2052 = vadd.f32 0.0, %v2051
    %2053 = vmatprep.mubr.f32.mxu0 %v1936
    %2054 = vmatmul.mubr.f32.gmra.mrb[0].mxu0 %v1225
    %v2055 = vpop.f32.mrb[0].mxu0
    %v2056 = vadd.f32 0.0, %v2055
    %v2057 = vpop.f32.mrb[0].mxu0
    %v2058 = vadd.f32 0.0, %v2057
    %2059 = vmatprep.mubr.f32.mxu0 %v1939
    %2060 = vmatmul.mubr.f32.gmra.mrb[0].mxu0 %v1231
    %v2061 = vpop.f32.mrb[0].mxu0
    %v2062 = vadd.f32 0.0, %v2061
    %v2063 = vpop.f32.mrb[0].mxu0
    %v2064 = vadd.f32 0.0, %v2063
    %2065 = vdwg.mxu0
    %v2066 = vadd.f32 %v1845, %v2014
    %v2067 = vadd.f32 %v1846, %v2016
    %v2068 = vadd.f32 %v1847, %v2020
    %v2069 = vadd.f32 %v1848, %v2022
    %v2070 = vadd.f32 %v1849, %v2026
    %v2071 = vadd.f32 %v1850, %v2028
    %v2072 = vadd.f32 %v1851, %v2032
    %v2073 = vadd.f32 %v1852, %v2034
    %v2074 = vadd.f32 %v1853, %v2038
    %v2075 = vadd.f32 %v1854, %v2040
    %v2076 = vadd.f32 %v1855, %v2044
    %v2077 = vadd.f32 %v1856, %v2046
    %v2078 = vadd.f32 %v1857, %v2050
    %v2079 = vadd.f32 %v1858, %v2052
    %v2080 = vadd.f32 %v1859, %v2056
    %v2081 = vadd.f32 %v1860, %v2058
    %v2082 = vadd.f32 %v1861, %v2062
    %v2083 = vadd.f32 %v1862, %v2064
    %v2084 = vld [vmem:[#allocation17] sm:$0xff]
    %v2085 = vld [vmem:[#allocation17 + $0x8] sm:$0xff]
    %v2086 = vld [vmem:[#allocation17 + $0x10] sm:$0xff]
    %v2087 = vld [vmem:[#allocation17 + $0x18] sm:$0xff]
    %v2088 = vld [vmem:[#allocation17 + $0x20] sm:$0xff]
    %v2089 = vld [vmem:[#allocation17 + $0x28] sm:$0xff]
    %v2090 = vld [vmem:[#allocation17 + $0x30] sm:$0xff]
    %v2091 = vld [vmem:[#allocation17 + $0x38] sm:$0xff]
    %v2092 = vld [vmem:[#allocation17 + $0x40] sm:$0xff]
    %v2093 = vld [vmem:[#allocation17 + $0x48] sm:$0xff]
    %v2094 = vld [vmem:[#allocation17 + $0x50] sm:$0xff]
    %v2095 = vld [vmem:[#allocation17 + $0x58] sm:$0xff]
    %v2096 = vld [vmem:[#allocation17 + $0x60] sm:$0xff]
    %v2097 = vld [vmem:[#allocation17 + $0x68] sm:$0xff]
    %v2098 = vld [vmem:[#allocation17 + $0x70] sm:$0xff]
    %v2099 = vld [vmem:[#allocation17 + $0x78] sm:$0xff]
    %v2100 = vld [vmem:[#allocation17 + $0x80] sm:$0xff]
    %v2101 = vld [vmem:[#allocation17 + $0x88] sm:$0xff]
    %v2102 = vld [vmem:[#allocation17 + $0x90] sm:$0xff]
    %v2103 = vld [vmem:[#allocation17 + $0x98] sm:$0xff]
    %v2104 = vld [vmem:[#allocation17 + $0xa0] sm:$0xff]
    %v2105 = vld [vmem:[#allocation17 + $0xa8] sm:$0xff]
    %v2106 = vld [vmem:[#allocation17 + $0xb0] sm:$0xff]
    %v2107 = vld [vmem:[#allocation17 + $0xb8] sm:$0xff]
    %v2108 = vld [vmem:[#allocation17 + $0xc0] sm:$0xff]
    %v2109 = vld [vmem:[#allocation17 + $0xc8] sm:$0xff]
    %v2110 = vld [vmem:[#allocation17 + $0xd0] sm:$0xff]
    %v2111 = vld [vmem:[#allocation17 + $0xd8] sm:$0xff]
    %v2112 = vld [vmem:[#allocation17 + $0xe0] sm:$0xff]
    %v2113 = vld [vmem:[#allocation17 + $0xe8] sm:$0xff]
    %v2114 = vld [vmem:[#allocation17 + $0xf0] sm:$0xff]
    %v2115 = vld [vmem:[#allocation17 + $0xf8] sm:$0xff]
    %v2116 = vld [vmem:[#allocation17 + $0x100] sm:$0xff]
    %v2117 = vld [vmem:[#allocation17 + $0x108] sm:$0xff]
    %v2118 = vadd.f32 %v2066, %v2068
    %v2119 = vadd.f32 %v2118, %v2070
    %v2120 = vadd.f32 %v2119, %v2072
    %v2121 = vadd.f32 %v2120, %v2074
    %v2122 = vadd.f32 %v2121, %v2076
    %v2123 = vadd.f32 %v2122, %v2078
    %v2124 = vadd.f32 %v2123, %v2080
    %v2125 = vsel %vm947, %v2082, 0.0
    %v2126 = vadd.f32 %v2124, %v2125
    %v2127 = vrot.slane %v2126, 4
    %v2128 = vadd.f32 %v2126, %v2127
    %v2129 = vrot.slane %v2128, 2
    %v2130 = vadd.f32 %v2128, %v2129
    %v2131 = vrot.slane %v2130, 1
    %v2132 = vadd.f32 %v2130, %v2131
    %vm2133 = vcmask 64512
    %v2134 = vsel %vm2133, %v2067, 0.0
    %v2135 = vsel %vm2133, %v2069, 0.0
    %v2136 = vadd.f32 %v2134, %v2135
    %v2137 = vsel %vm2133, %v2071, 0.0
    %v2138 = vadd.f32 %v2136, %v2137
    %v2139 = vsel %vm2133, %v2073, 0.0
    %v2140 = vadd.f32 %v2138, %v2139
    %v2141 = vsel %vm2133, %v2075, 0.0
    %v2142 = vadd.f32 %v2140, %v2141
    %v2143 = vsel %vm2133, %v2077, 0.0
    %v2144 = vadd.f32 %v2142, %v2143
    %v2145 = vsel %vm2133, %v2079, 0.0
    %v2146 = vadd.f32 %v2144, %v2145
    %v2147 = vsel %vm2133, %v2081, 0.0
    %v2148 = vadd.f32 %v2146, %v2147
    %vm2149 = vcmask 60416
    %v2150 = vsel %vm2149, %v2083, 0.0
    %v2151 = vadd.f32 %v2148, %v2150
    %v2152 = vrot.slane %v2151, 4
    %v2153 = vadd.f32 %v2151, %v2152
    %v2154 = vrot.slane %v2153, 2
    %v2155 = vadd.f32 %v2153, %v2154
    %v2156 = vrot.slane %v2155, 1
    %v2157 = vadd.f32 %v2155, %v2156
    %v2159 = vsel %vm2133, %v2157, 0
    %2161 = vmatprep.subr.mxu0 %v2085
    %2162 = vmatpush1.msra.mxu0 %v2084
    %2163 = vmatprep.subr.mxu0 %v2087
    %2164 = vmatpush1.msra.mxu0 %v2086
    %2165 = vmatprep.subr.mxu0 %v2089
    %2166 = vmatpush1.msra.mxu0 %v2088
    %2167 = vmatprep.subr.mxu0 %v2091
    %2168 = vmatpush1.msra.mxu0 %v2090
    %2169 = vmatprep.subr.mxu0 %v2093
    %2170 = vmatpush1.msra.mxu0 %v2092
    %2171 = vmatprep.subr.mxu0 %v2095
    %2172 = vmatpush1.msra.mxu0 %v2094
    %2173 = vmatprep.subr.mxu0 %v2097
    %2174 = vmatpush1.msra.mxu0 %v2096
    %2175 = vmatprep.subr.mxu0 %v2099
    %2176 = vmatpush1.msra.mxu0 %v2098
    %2177 = vmatprep.subr.mxu0 %v2101
    %2178 = vmatpush1.msra.mxu0 %v2100
    %2179 = vmatprep.subr.mxu0 %v2103
    %2180 = vmatpush1.msra.mxu0 %v2102
    %2181 = vmatprep.subr.mxu0 %v2105
    %2182 = vmatpush1.msra.mxu0 %v2104
    %2183 = vmatprep.subr.mxu0 %v2107
    %2184 = vmatpush1.msra.mxu0 %v2106
    %2185 = vmatprep.subr.mxu0 %v2109
    %2186 = vmatpush1.msra.mxu0 %v2108
    %2187 = vmatprep.subr.mxu0 %v2111
    %2188 = vmatpush1.msra.mxu0 %v2110
    %2189 = vmatprep.subr.mxu0 %v2113
    %2190 = vmatpush1.msra.mxu0 %v2112
    %2191 = vmatprep.subr.mxu0 %v2115
    %2192 = vmatpush1.msra.mxu0 %v2114
    %2193 = vmatprep.subr.mxu0 %v2117
    %2194 = vmatpush1.msra.mxu0 %v2116
    %2195 = vmatprep.subr.mxu0 0.0
    %2196 = vmatpush1.msra.mxu0 0.0
    %2197 = vmatprep.subr.mxu0 0.0
    %2198 = vmatpush1.msra.mxu0 0.0
    %2199 = vmatprep.subr.mxu0 0.0
    %2200 = vmatpush1.msra.mxu0 0.0
    %2201 = vmatprep.subr.mxu0 0.0
    %2202 = vmatpush1.msra.mxu0 0.0
    %2203 = vmatprep.subr.mxu0 0.0
    %2204 = vmatpush1.msra.mxu0 0.0
    %2205 = vmatprep.subr.mxu0 0.0
    %2206 = vmatpush1.msra.mxu0 0.0
    %2207 = vmatprep.subr.mxu0 0.0
    %2208 = vmatpush1.msra.mxu0 0.0
    %2209 = vmatprep.subr.mxu0 0.0
    %2210 = vmatpush1.msra.mxu0 0.0
    %2211 = vmatprep.subr.mxu0 0.0
    %2212 = vmatpush1.msra.mxu0 0.0
    %2213 = vmatprep.subr.mxu0 0.0
    %2214 = vmatpush1.msra.mxu0 0.0
    %2215 = vmatprep.subr.mxu0 0.0
    %2216 = vmatpush1.msra.mxu0 0.0
    %2217 = vmatprep.subr.mxu0 0.0
    %2218 = vmatpush1.msra.mxu0 0.0
    %2219 = vmatprep.subr.mxu0 0.0
    %2220 = vmatpush1.msra.mxu0 0.0
    %2221 = vmatprep.subr.mxu0 0.0
    %2222 = vmatpush1.msra.mxu0 0.0
    %2223 = vmatprep.subr.mxu0 0.0
    %2224 = vmatpush1.msra.mxu0 0.0
    %2225 = vmatprep.mubr.f32.mxu0 %v2159
    %2226 = vmatmul.mubr.f32.gmra.mrb[0].mxu0 %v2132
    %v2227 = vpop.f32.mrb[0].mxu0
    %v2228 = vadd.f32 0.0, %v2227
    %v2229 = vpop.f32.mrb[0].mxu0
    %v2230 = vadd.f32 0.0, %v2229
    %2231 = vdwg.mxu0
    %v2232 = vmul.f32 %v2228, 0.00048828125
    %v2233 = vmul.f32 %v2230, 0.00048828125
    %v2234 = vmul.f32 %v2066, %v2066
    %v2235 = vmul.f32 %v2067, %v2067
    %v2236 = vmul.f32 %v2068, %v2068
    %v2237 = vmul.f32 %v2069, %v2069
    %v2238 = vmul.f32 %v2070, %v2070
    %v2239 = vmul.f32 %v2071, %v2071
    %v2240 = vmul.f32 %v2072, %v2072
    %v2241 = vmul.f32 %v2073, %v2073
    %v2242 = vmul.f32 %v2074, %v2074
    %v2243 = vmul.f32 %v2075, %v2075
    %v2244 = vmul.f32 %v2076, %v2076
    %v2245 = vmul.f32 %v2077, %v2077
    %v2246 = vmul.f32 %v2078, %v2078
    %v2247 = vmul.f32 %v2079, %v2079
    %v2248 = vmul.f32 %v2080, %v2080
    %v2249 = vmul.f32 %v2081, %v2081
    %v2250 = vmul.f32 %v2082, %v2082
    %v2251 = vmul.f32 %v2083, %v2083
    %v2252 = vadd.f32 %v2234, %v2236
    %v2253 = vadd.f32 %v2252, %v2238
    %v2254 = vadd.f32 %v2253, %v2240
    %v2255 = vadd.f32 %v2254, %v2242
    %v2256 = vadd.f32 %v2255, %v2244
    %v2257 = vadd.f32 %v2256, %v2246
    %v2258 = vadd.f32 %v2257, %v2248
    %v2259 = vsel %vm947, %v2250, 0.0
    %v2260 = vadd.f32 %v2258, %v2259
    %v2261 = vrot.slane %v2260, 4
    %v2262 = vadd.f32 %v2260, %v2261
    %v2263 = vrot.slane %v2262, 2
    %v2264 = vadd.f32 %v2262, %v2263
    %v2265 = vrot.slane %v2264, 1
    %v2266 = vadd.f32 %v2264, %v2265
    %v2267 = vsel %vm2133, %v2235, 0.0
    %v2268 = vsel %vm2133, %v2237, 0.0
    %v2269 = vadd.f32 %v2267, %v2268
    %v2270 = vsel %vm2133, %v2239, 0.0
    %v2271 = vadd.f32 %v2269, %v2270
    %v2272 = vsel %vm2133, %v2241, 0.0
    %v2273 = vadd.f32 %v2271, %v2272
    %v2274 = vsel %vm2133, %v2243, 0.0
    %v2275 = vadd.f32 %v2273, %v2274
    %v2276 = vsel %vm2133, %v2245, 0.0
    %v2277 = vadd.f32 %v2275, %v2276
    %v2278 = vsel %vm2133, %v2247, 0.0
    %v2279 = vadd.f32 %v2277, %v2278
    %v2280 = vsel %vm2133, %v2249, 0.0
    %v2281 = vadd.f32 %v2279, %v2280
    %v2282 = vsel %vm2149, %v2251, 0.0
    %v2283 = vadd.f32 %v2281, %v2282
    %v2284 = vrot.slane %v2283, 4
    %v2285 = vadd.f32 %v2283, %v2284
    %v2286 = vrot.slane %v2285, 2
    %v2287 = vadd.f32 %v2285, %v2286
    %v2288 = vrot.slane %v2287, 1
    %v2289 = vadd.f32 %v2287, %v2288
    %v2291 = vsel %vm2133, %v2289, 0
    %2293 = vmatprep.subr.mxu0 %v2085
    %2294 = vmatpush1.msra.mxu0 %v2084
    %2295 = vmatprep.subr.mxu0 %v2087
    %2296 = vmatpush1.msra.mxu0 %v2086
    %2297 = vmatprep.subr.mxu0 %v2089
    %2298 = vmatpush1.msra.mxu0 %v2088
    %2299 = vmatprep.subr.mxu0 %v2091
    %2300 = vmatpush1.msra.mxu0 %v2090
    %2301 = vmatprep.subr.mxu0 %v2093
    %2302 = vmatpush1.msra.mxu0 %v2092
    %2303 = vmatprep.subr.mxu0 %v2095
    %2304 = vmatpush1.msra.mxu0 %v2094
    %2305 = vmatprep.subr.mxu0 %v2097
    %2306 = vmatpush1.msra.mxu0 %v2096
    %2307 = vmatprep.subr.mxu0 %v2099
    %2308 = vmatpush1.msra.mxu0 %v2098
    %2309 = vmatprep.subr.mxu0 %v2101
    %2310 = vmatpush1.msra.mxu0 %v2100
    %2311 = vmatprep.subr.mxu0 %v2103
    %2312 = vmatpush1.msra.mxu0 %v2102
    %2313 = vmatprep.subr.mxu0 %v2105
    %2314 = vmatpush1.msra.mxu0 %v2104
    %2315 = vmatprep.subr.mxu0 %v2107
    %2316 = vmatpush1.msra.mxu0 %v2106
    %2317 = vmatprep.subr.mxu0 %v2109
    %2318 = vmatpush1.msra.mxu0 %v2108
    %2319 = vmatprep.subr.mxu0 %v2111
    %2320 = vmatpush1.msra.mxu0 %v2110
    %2321 = vmatprep.subr.mxu0 %v2113
    %2322 = vmatpush1.msra.mxu0 %v2112
    %2323 = vmatprep.subr.mxu0 %v2115
    %2324 = vmatpush1.msra.mxu0 %v2114
    %2325 = vmatprep.subr.mxu0 %v2117
    %2326 = vmatpush1.msra.mxu0 %v2116
    %2327 = vmatprep.subr.mxu0 0.0
    %2328 = vmatpush1.msra.mxu0 0.0
    %2329 = vmatprep.subr.mxu0 0.0
    %2330 = vmatpush1.msra.mxu0 0.0
    %2331 = vmatprep.subr.mxu0 0.0
    %2332 = vmatpush1.msra.mxu0 0.0
    %2333 = vmatprep.subr.mxu0 0.0
    %2334 = vmatpush1.msra.mxu0 0.0
    %2335 = vmatprep.subr.mxu0 0.0
    %2336 = vmatpush1.msra.mxu0 0.0
    %2337 = vmatprep.subr.mxu0 0.0
    %2338 = vmatpush1.msra.mxu0 0.0
    %2339 = vmatprep.subr.mxu0 0.0
    %2340 = vmatpush1.msra.mxu0 0.0
    %2341 = vmatprep.subr.mxu0 0.0
    %2342 = vmatpush1.msra.mxu0 0.0
    %2343 = vmatprep.subr.mxu0 0.0
    %2344 = vmatpush1.msra.mxu0 0.0
    %2345 = vmatprep.subr.mxu0 0.0
    %2346 = vmatpush1.msra.mxu0 0.0
    %2347 = vmatprep.subr.mxu0 0.0
    %2348 = vmatpush1.msra.mxu0 0.0
    %2349 = vmatprep.subr.mxu0 0.0
    %2350 = vmatpush1.msra.mxu0 0.0
    %2351 = vmatprep.subr.mxu0 0.0
    %2352 = vmatpush1.msra.mxu0 0.0
    %2353 = vmatprep.subr.mxu0 0.0
    %2354 = vmatpush1.msra.mxu0 0.0
    %2355 = vmatprep.subr.mxu0 0.0
    %2356 = vmatpush1.msra.mxu0 0.0
    %2357 = vmatprep.mubr.f32.mxu0 %v2291
    %2358 = vmatmul.mubr.f32.gmra.mrb[0].mxu0 %v2266
    %v2359 = vpop.f32.mrb[0].mxu0
    %v2360 = vadd.f32 0.0, %v2359
    %v2361 = vpop.f32.mrb[0].mxu0
    %v2362 = vadd.f32 0.0, %v2361
    %2363 = vdwg.mxu0
    %v2364 = vmul.f32 %v2360, 0.00048828125
    %v2365 = vmul.f32 %v2362, 0.00048828125
    %v2366 = vmul.f32 %v2232, %v2232
    %v2367 = vmul.f32 %v2233, %v2233
    %v2368 = vsub.f32 %v2364, %v2366
    %v2369 = vsub.f32 %v2365, %v2367
    %v2370 = vadd.f32 %v2368, 1e-05
    %v2371 = vadd.f32 %v2369, 1e-05
    %v2372 = vrsqrt.pop %v2370
    %v2373 = vrsqrt.pop %v2371
    %v2376 = vcombine.low %v2372, %v2373
    %v2378 = vunpack.c.l.s4 1966171168
    %v2379 = vunpack.c.0.s8 %v2378
    %v2380 = vlaneseq
    %v2381 = vshrl.u32 %v2380, 7
    %v2382 = vsub.s32 %v2379, %v2381
    %v2383 = vrot.slane %v2376, %v2382
    %v2385 = vunpack.c.l.s4 1966171168
    %v2386 = vunpack.c.0.s8 %v2385
    %v2387 = vlaneseq
    %v2388 = vshrl.u32 %v2387, 7
    %v2389 = vsub.s32 %v2386, %v2388
    %v2390 = vrot.slane %v2383, %v2389
    %v2392 = vmul.f32 %v764, %v2390
    %v2394 = vlaneseq
    %v2395 = vshrl.u32 %v2394, 7
    %v2396 = vsub.s32 0, %v2395
    %v2397 = vrot.slane %v2392, %v2396
    %v2398 = vlaneseq
    %v2399 = vshrl.u32 %v2398, 7
    %v2400 = vsub.s32 1, %v2399
    %v2401 = vrot.slane %v2392, %v2400
    %v2404 = vmul.f32 %v2232, %v2397
    %v2405 = vmul.f32 %v2233, %v2401
    %v2408 = vcombine.low %v2404, %v2405
    %v2410 = vunpack.c.l.s4 1966171168
    %v2411 = vunpack.c.0.s8 %v2410
    %v2412 = vlaneseq
    %v2413 = vshrl.u32 %v2412, 7
    %v2414 = vsub.s32 %v2411, %v2413
    %v2415 = vrot.slane %v2408, %v2414
    %v2417 = vunpack.c.l.s4 1966171168
    %v2418 = vunpack.c.0.s8 %v2417
    %v2419 = vlaneseq
    %v2420 = vshrl.u32 %v2419, 7
    %v2421 = vsub.s32 %v2418, %v2420
    %v2422 = vrot.slane %v2415, %v2421
    %v2424 = vsub.f32 %v765, %v2422
    %v2425 = vmul.f32 %v2066, %v2397
    %v2426 = vmul.f32 %v2067, %v2401
    %v2427 = vmul.f32 %v2068, %v2397
    %v2428 = vmul.f32 %v2069, %v2401
    %v2429 = vmul.f32 %v2070, %v2397
    %v2430 = vmul.f32 %v2071, %v2401
    %v2431 = vmul.f32 %v2072, %v2397
    %v2432 = vmul.f32 %v2073, %v2401
    %v2433 = vmul.f32 %v2074, %v2397
    %v2434 = vmul.f32 %v2075, %v2401
    %v2435 = vmul.f32 %v2076, %v2397
    %v2436 = vmul.f32 %v2077, %v2401
    %v2437 = vmul.f32 %v2078, %v2397
    %v2438 = vmul.f32 %v2079, %v2401
    %v2439 = vmul.f32 %v2080, %v2397
    %v2440 = vmul.f32 %v2081, %v2401
    %v2441 = vmul.f32 %v2082, %v2397
    %v2442 = vmul.f32 %v2083, %v2401
    %v2444 = vlaneseq
    %v2445 = vshrl.u32 %v2444, 7
    %v2446 = vsub.s32 0, %v2445
    %v2447 = vrot.slane %v2424, %v2446
    %v2448 = vlaneseq
    %v2449 = vshrl.u32 %v2448, 7
    %v2450 = vsub.s32 1, %v2449
    %v2451 = vrot.slane %v2424, %v2450
    %v2454 = vadd.f32 %v2425, %v2447
    %v2455 = vadd.f32 %v2426, %v2451
    %v2456 = vadd.f32 %v2427, %v2447
    %v2457 = vadd.f32 %v2428, %v2451
    %v2458 = vadd.f32 %v2429, %v2447
    %v2459 = vadd.f32 %v2430, %v2451
    %v2460 = vadd.f32 %v2431, %v2447
    %v2461 = vadd.f32 %v2432, %v2451
    %v2462 = vadd.f32 %v2433, %v2447
    %v2463 = vadd.f32 %v2434, %v2451
    %v2464 = vadd.f32 %v2435, %v2447
    %v2465 = vadd.f32 %v2436, %v2451
    %v2466 = vadd.f32 %v2437, %v2447
    %v2467 = vadd.f32 %v2438, %v2451
    %v2468 = vadd.f32 %v2439, %v2447
    %v2469 = vadd.f32 %v2440, %v2451
    %v2470 = vadd.f32 %v2441, %v2447
    %v2471 = vadd.f32 %v2442, %v2451
    %v2472 = vmax.f32 %v2454, 0.0
    %v2473 = vmax.f32 %v2455, 0.0
    %v2474 = vmax.f32 %v2456, 0.0
    %v2475 = vmax.f32 %v2457, 0.0
    %v2476 = vmax.f32 %v2458, 0.0
    %v2477 = vmax.f32 %v2459, 0.0
    %v2478 = vmax.f32 %v2460, 0.0
    %v2479 = vmax.f32 %v2461, 0.0
    %v2480 = vmax.f32 %v2462, 0.0
    %v2481 = vmax.f32 %v2463, 0.0
    %v2482 = vmax.f32 %v2464, 0.0
    %v2483 = vmax.f32 %v2465, 0.0
    %v2484 = vmax.f32 %v2466, 0.0
    %v2485 = vmax.f32 %v2467, 0.0
    %v2486 = vmax.f32 %v2468, 0.0
    %v2487 = vmax.f32 %v2469, 0.0
    %v2488 = vmax.f32 %v2470, 0.0
    %v2489 = vmax.f32 %v2471, 0.0
    %v2490 = vld [vmem:[#allocation19] sm:$0xff]
    %v2491 = vld [vmem:[#allocation19 + $0x8] sm:$0xff]
    %v2492 = vld [vmem:[#allocation19 + $0x10] sm:$0xff]
    %v2493 = vld [vmem:[#allocation19 + $0x18] sm:$0xff]
    %v2494 = vld [vmem:[#allocation19 + $0x20] sm:$0xff]
    %v2495 = vld [vmem:[#allocation19 + $0x28] sm:$0xff]
    %v2496 = vld [vmem:[#allocation19 + $0x30] sm:$0xff]
    %v2497 = vld [vmem:[#allocation19 + $0x38] sm:$0xff]
    %v2498 = vld [vmem:[#allocation19 + $0x40] sm:$0xff]
    %v2499 = vld [vmem:[#allocation19 + $0x48] sm:$0xff]
    %v2500 = vld [vmem:[#allocation19 + $0x50] sm:$0xff]
    %v2501 = vld [vmem:[#allocation19 + $0x58] sm:$0xff]
    %v2502 = vld [vmem:[#allocation19 + $0x60] sm:$0xff]
    %v2503 = vld [vmem:[#allocation19 + $0x68] sm:$0xff]
    %v2504 = vld [vmem:[#allocation19 + $0x70] sm:$0xff]
    %v2505 = vld [vmem:[#allocation19 + $0x78] sm:$0xff]
    %v2506 = vld [vmem:[#allocation19 + $0x80] sm:$0xf]
    %v2507 = vld [vmem:[#allocation19 + $0x88] sm:$0xf]
    %v2508 = vmul.f32 %v2472, %v2490
    %v2509 = vmul.f32 %v2473, %v2491
    %v2510 = vmul.f32 %v2474, %v2492
    %v2511 = vmul.f32 %v2475, %v2493
    %v2512 = vmul.f32 %v2476, %v2494
    %v2513 = vmul.f32 %v2477, %v2495
    %v2514 = vmul.f32 %v2478, %v2496
    %v2515 = vmul.f32 %v2479, %v2497
    %v2516 = vmul.f32 %v2480, %v2498
    %v2517 = vmul.f32 %v2481, %v2499
    %v2518 = vmul.f32 %v2482, %v2500
    %v2519 = vmul.f32 %v2483, %v2501
    %v2520 = vmul.f32 %v2484, %v2502
    %v2521 = vmul.f32 %v2485, %v2503
    %v2522 = vmul.f32 %v2486, %v2504
    %v2523 = vmul.f32 %v2487, %v2505
    %v2524 = vmul.f32 %v2488, %v2506
    %v2525 = vmul.f32 %v2489, %v2507
    %s2526 = smul.u32 8, 4
    %s2527 = smul.u32 %s2526, 17
    %s2528 = smul.u32 %s2527, 2
    %s2529 = sshll.u32 %s2528, 4
    %2530 = dma.done [#allocation13], %s2529
    %s2531 = smul.u32 160, 1
    %s2532 = sshll.u32 %s2531, 4
    %2533 = dma.done %s184, %s2532
    %s2534 = smul.u32 8, 18
    %s2535 = smul.u32 %s2534, 2
    %s2536 = sshll.u32 %s2535, 4
    %2537 = dma.done %s196, %s2536
    %v2538 = vld [vmem:[%s21] sm:$0x3]
    %v2539 = vld [vmem:[%s23] sm:$0x3]
    %v2540 = vld [vmem:[#allocation3] sm:$0xff]
    %v2541 = vld [vmem:[#allocation3 + $0x8] sm:$0xff]
    %v2542 = vld [vmem:[#allocation3 + $0x10] sm:$0xff]
    %v2543 = vld [vmem:[#allocation3 + $0x18] sm:$0xff]
    %v2544 = vld [vmem:[#allocation3 + $0x20] sm:$0xff]
    %v2545 = vld [vmem:[#allocation3 + $0x28] sm:$0xff]
    %v2546 = vld [vmem:[#allocation3 + $0x30] sm:$0xff]
    %v2547 = vld [vmem:[#allocation3 + $0x38] sm:$0xff]
    %v2548 = vld [vmem:[#allocation3 + $0x40] sm:$0xff]
    %v2549 = vld [vmem:[#allocation3 + $0x48] sm:$0xff]
    %v2550 = vld [vmem:[#allocation3 + $0x50] sm:$0xff]
    %v2551 = vld [vmem:[#allocation3 + $0x58] sm:$0xff]
    %v2552 = vld [vmem:[#allocation3 + $0x60] sm:$0xff]
    %v2553 = vld [vmem:[#allocation3 + $0x68] sm:$0xff]
    %v2554 = vld [vmem:[#allocation3 + $0x70] sm:$0xff]
    %v2555 = vld [vmem:[#allocation3 + $0x78] sm:$0xff]
    %v2556 = vld [vmem:[#allocation3 + $0x80] sm:$0xff]
    %v2557 = vld [vmem:[#allocation3 + $0x88] sm:$0xff]
    %v2558 = vld [vmem:[#allocation3 + $0x90] sm:$0xff]
    %v2559 = vld [vmem:[#allocation3 + $0x98] sm:$0xff]
    %vm2560 = vcmask 556032
    %v2562 = vsel %vm2560, %v2540, 0
    %v2565 = vsel %vm2560, %v2541, 0
    %v2568 = vsel %vm2560, %v2542, 0
    %v2571 = vsel %vm2560, %v2543, 0
    %v2574 = vsel %vm2560, %v2544, 0
    %v2577 = vsel %vm2560, %v2545, 0
    %v2580 = vsel %vm2560, %v2546, 0
    %v2583 = vsel %vm2560, %v2547, 0
    %v2586 = vsel %vm2560, %v2548, 0
    %v2589 = vsel %vm2560, %v2549, 0
    %v2592 = vsel %vm2560, %v2550, 0
    %v2595 = vsel %vm2560, %v2551, 0
    %v2598 = vsel %vm2560, %v2552, 0
    %v2601 = vsel %vm2560, %v2553, 0
    %v2604 = vsel %vm2560, %v2554, 0
    %v2607 = vsel %vm2560, %v2555, 0
    %v2610 = vsel %vm2560, %v2556, 0
    %v2613 = vsel %vm2560, %v2557, 0
    %v2616 = vsel %vm2560, %v2558, 0
    %v2619 = vsel %vm2560, %v2559, 0
    %v2622 = vsel %vm947, %v2524, 0
    %v2625 = vsel %vm947, %v2525, 0
    %2627 = vmatprep.subr.mxu0 %v2509
    %2628 = vmatpush1.msra.mxu0 %v2508
    %2629 = vmatprep.subr.mxu0 %v2511
    %2630 = vmatpush1.msra.mxu0 %v2510
    %2631 = vmatprep.subr.mxu0 %v2513
    %2632 = vmatpush1.msra.mxu0 %v2512
    %2633 = vmatprep.subr.mxu0 %v2515
    %2634 = vmatpush1.msra.mxu0 %v2514
    %2635 = vmatprep.subr.mxu0 %v2517
    %2636 = vmatpush1.msra.mxu0 %v2516
    %2637 = vmatprep.subr.mxu0 %v2519
    %2638 = vmatpush1.msra.mxu0 %v2518
    %2639 = vmatprep.subr.mxu0 %v2521
    %2640 = vmatpush1.msra.mxu0 %v2520
    %2641 = vmatprep.subr.mxu0 %v2523
    %2642 = vmatpush1.msra.mxu0 %v2522
    %2643 = vmatprep.subr.mxu0 %v2625
    %2644 = vmatpush1.msra.mxu0 %v2622
    %2645 = vmatprep.subr.mxu0 0.0
    %2646 = vmatpush1.msra.mxu0 0.0
    %2647 = vmatprep.subr.mxu0 0.0
    %2648 = vmatpush1.msra.mxu0 0.0
    %2649 = vmatprep.subr.mxu0 0.0
    %2650 = vmatpush1.msra.mxu0 0.0
    %2651 = vmatprep.subr.mxu0 0.0
    %2652 = vmatpush1.msra.mxu0 0.0
    %2653 = vmatprep.subr.mxu0 0.0
    %2654 = vmatpush1.msra.mxu0 0.0
    %2655 = vmatprep.subr.mxu0 0.0
    %2656 = vmatpush1.msra.mxu0 0.0
    %2657 = vmatprep.subr.mxu0 0.0
    %2658 = vmatpush1.msra.mxu0 0.0
    %2659 = vmatprep.subr.mxu0 0.0
    %2660 = vmatpush1.msra.mxu0 0.0
    %2661 = vmatprep.subr.mxu0 0.0
    %2662 = vmatpush1.msra.mxu0 0.0
    %2663 = vmatprep.subr.mxu0 0.0
    %2664 = vmatpush1.msra.mxu0 0.0
    %2665 = vmatprep.subr.mxu0 0.0
    %2666 = vmatpush1.msra.mxu0 0.0
    %2667 = vmatprep.subr.mxu0 0.0
    %2668 = vmatpush1.msra.mxu0 0.0
    %2669 = vmatprep.subr.mxu0 0.0
    %2670 = vmatpush1.msra.mxu0 0.0
    %2671 = vmatprep.subr.mxu0 0.0
    %2672 = vmatpush1.msra.mxu0 0.0
    %2673 = vmatprep.subr.mxu0 0.0
    %2674 = vmatpush1.msra.mxu0 0.0
    %2675 = vmatprep.subr.mxu0 0.0
    %2676 = vmatpush1.msra.mxu0 0.0
    %2677 = vmatprep.subr.mxu0 0.0
    %2678 = vmatpush1.msra.mxu0 0.0
    %2679 = vmatprep.subr.mxu0 0.0
    %2680 = vmatpush1.msra.mxu0 0.0
    %2681 = vmatprep.subr.mxu0 0.0
    %2682 = vmatpush1.msra.mxu0 0.0
    %2683 = vmatprep.subr.mxu0 0.0
    %2684 = vmatpush1.msra.mxu0 0.0
    %2685 = vmatprep.subr.mxu0 0.0
    %2686 = vmatpush1.msra.mxu0 0.0
    %2687 = vmatprep.subr.mxu0 0.0
    %2688 = vmatpush1.msra.mxu0 0.0
    %2689 = vmatprep.subr.mxu0 0.0
    %2690 = vmatpush1.msra.mxu0 0.0
    %2691 = vmatprep.mubr.f32.mxu0 0.0
    %2692 = vmatmul.mubr.f32.gmra.mrb[0].mxu0 %v2562
    %v2693 = vpop.f32.mrb[0].mxu0
    %v2694 = vadd.f32 0.0, %v2693
    %v2695 = vpop.f32.mrb[0].mxu0
    %v2696 = vadd.f32 0.0, %v2695
    %2697 = vmatprep.mubr.f32.mxu0 0.0
    %2698 = vmatmul.mubr.f32.gmra.mrb[0].mxu0 %v2565
    %v2699 = vpop.f32.mrb[0].mxu0
    %v2700 = vadd.f32 0.0, %v2699
    %v2701 = vpop.f32.mrb[0].mxu0
    %v2702 = vadd.f32 0.0, %v2701
    %2703 = vmatprep.mubr.f32.mxu0 0.0
    %2704 = vmatmul.mubr.f32.gmra.mrb[0].mxu0 %v2568
    %v2705 = vpop.f32.mrb[0].mxu0
    %v2706 = vadd.f32 0.0, %v2705
    %v2707 = vpop.f32.mrb[0].mxu0
    %v2708 = vadd.f32 0.0, %v2707
    %2709 = vmatprep.mubr.f32.mxu0 0.0
    %2710 = vmatmul.mubr.f32.gmra.mrb[0].mxu0 %v2571
    %v2711 = vpop.f32.mrb[0].mxu0
    %v2712 = vadd.f32 0.0, %v2711
    %v2713 = vpop.f32.mrb[0].mxu0
    %v2714 = vadd.f32 0.0, %v2713
    %2715 = vmatprep.mubr.f32.mxu0 0.0
    %2716 = vmatmul.mubr.f32.gmra.mrb[0].mxu0 %v2574
    %v2717 = vpop.f32.mrb[0].mxu0
    %v2718 = vadd.f32 0.0, %v2717
    %v2719 = vpop.f32.mrb[0].mxu0
    %v2720 = vadd.f32 0.0, %v2719
    %2721 = vmatprep.mubr.f32.mxu0 0.0
    %2722 = vmatmul.mubr.f32.gmra.mrb[0].mxu0 %v2577
    %v2723 = vpop.f32.mrb[0].mxu0
    %v2724 = vadd.f32 0.0, %v2723
    %v2725 = vpop.f32.mrb[0].mxu0
    %v2726 = vadd.f32 0.0, %v2725
    %2727 = vmatprep.mubr.f32.mxu0 0.0
    %2728 = vmatmul.mubr.f32.gmra.mrb[0].mxu0 %v2580
    %v2729 = vpop.f32.mrb[0].mxu0
    %v2730 = vadd.f32 0.0, %v2729
    %v2731 = vpop.f32.mrb[0].mxu0
    %v2732 = vadd.f32 0.0, %v2731
    %2733 = vmatprep.mubr.f32.mxu0 0.0
    %2734 = vmatmul.mubr.f32.gmra.mrb[0].mxu0 %v2583
    %v2735 = vpop.f32.mrb[0].mxu0
    %v2736 = vadd.f32 0.0, %v2735
    %v2737 = vpop.f32.mrb[0].mxu0
    %v2738 = vadd.f32 0.0, %v2737
    %2739 = vmatprep.mubr.f32.mxu0 0.0
    %2740 = vmatmul.mubr.f32.gmra.mrb[0].mxu0 %v2586
    %v2741 = vpop.f32.mrb[0].mxu0
    %v2742 = vadd.f32 0.0, %v2741
    %v2743 = vpop.f32.mrb[0].mxu0
    %v2744 = vadd.f32 0.0, %v2743
    %2745 = vmatprep.mubr.f32.mxu0 0.0
    %2746 = vmatmul.mubr.f32.gmra.mrb[0].mxu0 %v2589
    %v2747 = vpop.f32.mrb[0].mxu0
    %v2748 = vadd.f32 0.0, %v2747
    %v2749 = vpop.f32.mrb[0].mxu0
    %v2750 = vadd.f32 0.0, %v2749
    %2751 = vmatprep.mubr.f32.mxu0 0.0
    %2752 = vmatmul.mubr.f32.gmra.mrb[0].mxu0 %v2592
    %v2753 = vpop.f32.mrb[0].mxu0
    %v2754 = vadd.f32 0.0, %v2753
    %v2755 = vpop.f32.mrb[0].mxu0
    %v2756 = vadd.f32 0.0, %v2755
    %2757 = vmatprep.mubr.f32.mxu0 0.0
    %2758 = vmatmul.mubr.f32.gmra.mrb[0].mxu0 %v2595
    %v2759 = vpop.f32.mrb[0].mxu0
    %v2760 = vadd.f32 0.0, %v2759
    %v2761 = vpop.f32.mrb[0].mxu0
    %v2762 = vadd.f32 0.0, %v2761
    %2763 = vmatprep.mubr.f32.mxu0 0.0
    %2764 = vmatmul.mubr.f32.gmra.mrb[0].mxu0 %v2598
    %v2765 = vpop.f32.mrb[0].mxu0
    %v2766 = vadd.f32 0.0, %v2765
    %v2767 = vpop.f32.mrb[0].mxu0
    %v2768 = vadd.f32 0.0, %v2767
    %2769 = vmatprep.mubr.f32.mxu0 0.0
    %2770 = vmatmul.mubr.f32.gmra.mrb[0].mxu0 %v2601
    %v2771 = vpop.f32.mrb[0].mxu0
    %v2772 = vadd.f32 0.0, %v2771
    %v2773 = vpop.f32.mrb[0].mxu0
    %v2774 = vadd.f32 0.0, %v2773
    %2775 = vmatprep.mubr.f32.mxu0 0.0
    %2776 = vmatmul.mubr.f32.gmra.mrb[0].mxu0 %v2604
    %v2777 = vpop.f32.mrb[0].mxu0
    %v2778 = vadd.f32 0.0, %v2777
    %v2779 = vpop.f32.mrb[0].mxu0
    %v2780 = vadd.f32 0.0, %v2779
    %2781 = vmatprep.mubr.f32.mxu0 0.0
    %2782 = vmatmul.mubr.f32.gmra.mrb[0].mxu0 %v2607
    %v2783 = vpop.f32.mrb[0].mxu0
    %v2784 = vadd.f32 0.0, %v2783
    %v2785 = vpop.f32.mrb[0].mxu0
    %v2786 = vadd.f32 0.0, %v2785
    %2787 = vmatprep.mubr.f32.mxu0 0.0
    %2788 = vmatmul.mubr.f32.gmra.mrb[0].mxu0 %v2610
    %v2789 = vpop.f32.mrb[0].mxu0
    %v2790 = vadd.f32 0.0, %v2789
    %v2791 = vpop.f32.mrb[0].mxu0
    %v2792 = vadd.f32 0.0, %v2791
    %2793 = vmatprep.mubr.f32.mxu0 0.0
    %2794 = vmatmul.mubr.f32.gmra.mrb[0].mxu0 %v2613
    %v2795 = vpop.f32.mrb[0].mxu0
    %v2796 = vadd.f32 0.0, %v2795
    %v2797 = vpop.f32.mrb[0].mxu0
    %v2798 = vadd.f32 0.0, %v2797
    %2799 = vmatprep.mubr.f32.mxu0 0.0
    %2800 = vmatmul.mubr.f32.gmra.mrb[0].mxu0 %v2616
    %v2801 = vpop.f32.mrb[0].mxu0
    %v2802 = vadd.f32 0.0, %v2801
    %v2803 = vpop.f32.mrb[0].mxu0
    %v2804 = vadd.f32 0.0, %v2803
    %2805 = vmatprep.mubr.f32.mxu0 0.0
    %2806 = vmatmul.mubr.f32.gmra.mrb[0].mxu0 %v2619
    %v2807 = vpop.f32.mrb[0].mxu0
    %v2808 = vadd.f32 0.0, %v2807
    %v2809 = vpop.f32.mrb[0].mxu0
    %v2810 = vadd.f32 0.0, %v2809
    %2811 = vdwg.mxu0
    %v2812 = vld [vmem:[#allocation2] sm:$0xff]
    %v2813 = vld [vmem:[#allocation2 + $0x8] sm:$0xff]
    %v2814 = vld [vmem:[#allocation2 + $0x10] sm:$0xff]
    %v2815 = vld [vmem:[#allocation2 + $0x18] sm:$0xff]
    %v2816 = vld [vmem:[#allocation2 + $0x20] sm:$0xff]
    %v2817 = vld [vmem:[#allocation2 + $0x28] sm:$0xff]
    %v2818 = vld [vmem:[#allocation2 + $0x30] sm:$0xff]
    %v2819 = vld [vmem:[#allocation2 + $0x38] sm:$0xff]
    %v2820 = vld [vmem:[#allocation2 + $0x40] sm:$0xff]
    %v2821 = vld [vmem:[#allocation2 + $0x48] sm:$0xff]
    %v2822 = vld [vmem:[#allocation2 + $0x50] sm:$0xff]
    %v2823 = vld [vmem:[#allocation2 + $0x58] sm:$0xff]
    %v2824 = vld [vmem:[#allocation2 + $0x60] sm:$0xff]
    %v2825 = vld [vmem:[#allocation2 + $0x68] sm:$0xff]
    %v2826 = vld [vmem:[#allocation2 + $0x70] sm:$0xff]
    %v2827 = vld [vmem:[#allocation2 + $0x78] sm:$0xff]
    %v2828 = vld [vmem:[#allocation2 + $0x80] sm:$0xff]
    %v2829 = vld [vmem:[#allocation2 + $0x88] sm:$0xff]
    %v2830 = vld [vmem:[#allocation2 + $0x90] sm:$0xff]
    %v2831 = vld [vmem:[#allocation2 + $0x98] sm:$0xff]
    %v2832 = vld [vmem:[#allocation2 + $0xa0] sm:$0xff]
    %v2833 = vld [vmem:[#allocation2 + $0xa8] sm:$0xff]
    %v2834 = vld [vmem:[#allocation2 + $0xb0] sm:$0xff]
    %v2835 = vld [vmem:[#allocation2 + $0xb8] sm:$0xff]
    %v2836 = vld [vmem:[#allocation2 + $0xc0] sm:$0xff]
    %v2837 = vld [vmem:[#allocation2 + $0xc8] sm:$0xff]
    %v2838 = vld [vmem:[#allocation2 + $0xd0] sm:$0xff]
    %v2839 = vld [vmem:[#allocation2 + $0xd8] sm:$0xff]
    %v2840 = vld [vmem:[#allocation2 + $0xe0] sm:$0xff]
    %v2841 = vld [vmem:[#allocation2 + $0xe8] sm:$0xff]
    %v2842 = vld [vmem:[#allocation2 + $0xf0] sm:$0xff]
    %v2843 = vld [vmem:[#allocation2 + $0xf8] sm:$0xff]
    %v2844 = vld [vmem:[#allocation2 + $0x100] sm:$0xff]
    %v2845 = vld [vmem:[#allocation2 + $0x108] sm:$0xff]
    %s2846 = scalar_lea.vmem [#allocation2], 272
    %v2847 = vld [vmem:[%s2846] sm:$0xff]
    %v2848 = vld [vmem:[%s2846 + $0x8] sm:$0xff]
    %v2849 = vld [vmem:[%s2846 + $0x10] sm:$0xff]
    %v2850 = vld [vmem:[%s2846 + $0x18] sm:$0xff]
    %v2851 = vld [vmem:[%s2846 + $0x20] sm:$0xff]
    %v2852 = vld [vmem:[%s2846 + $0x28] sm:$0xff]
    %v2853 = vld [vmem:[%s2846 + $0x30] sm:$0xff]
    %v2854 = vld [vmem:[%s2846 + $0x38] sm:$0xff]
    %v2855 = vld [vmem:[%s2846 + $0x40] sm:$0xff]
    %v2856 = vld [vmem:[%s2846 + $0x48] sm:$0xff]
    %v2857 = vld [vmem:[%s2846 + $0x50] sm:$0xff]
    %v2858 = vld [vmem:[%s2846 + $0x58] sm:$0xff]
    %v2859 = vld [vmem:[%s2846 + $0x60] sm:$0xff]
    %v2860 = vld [vmem:[%s2846 + $0x68] sm:$0xff]
    %v2861 = vld [vmem:[%s2846 + $0x70] sm:$0xff]
    %v2862 = vld [vmem:[%s2846 + $0x78] sm:$0xff]
    %v2863 = vld [vmem:[%s2846 + $0x80] sm:$0xff]
    %v2864 = vld [vmem:[%s2846 + $0x88] sm:$0xff]
    %v2865 = vld [vmem:[%s2846 + $0x90] sm:$0xff]
    %v2866 = vld [vmem:[%s2846 + $0x98] sm:$0xff]
    %v2867 = vld [vmem:[%s2846 + $0xa0] sm:$0xff]
    %v2868 = vld [vmem:[%s2846 + $0xa8] sm:$0xff]
    %v2869 = vld [vmem:[%s2846 + $0xb0] sm:$0xff]
    %v2870 = vld [vmem:[%s2846 + $0xb8] sm:$0xff]
    %v2871 = vld [vmem:[%s2846 + $0xc0] sm:$0xff]
    %v2872 = vld [vmem:[%s2846 + $0xc8] sm:$0xff]
    %v2873 = vld [vmem:[%s2846 + $0xd0] sm:$0xff]
    %v2874 = vld [vmem:[%s2846 + $0xd8] sm:$0xff]
    %v2875 = vld [vmem:[%s2846 + $0xe0] sm:$0xff]
    %v2876 = vld [vmem:[%s2846 + $0xe8] sm:$0xff]
    %v2877 = vld [vmem:[%s2846 + $0xf0] sm:$0xff]
    %v2878 = vld [vmem:[%s2846 + $0xf8] sm:$0xff]
    %v2879 = vld [vmem:[%s2846 + $0x100] sm:$0xff]
    %v2880 = vld [vmem:[%s2846 + $0x108] sm:$0xff]
    %v2882 = vsel %vm2133, %v2726, 0
    %v2885 = vsel %vm2133, %v2732, 0
    %v2888 = vsel %vm2133, %v2738, 0
    %v2891 = vsel %vm2133, %v2744, 0
    %v2894 = vsel %vm2133, %v2750, 0
    %2896 = vmatprep.subr.mxu0 %v2848
    %2897 = vmatpush1.msra.mxu0 %v2847
    %2898 = vmatprep.subr.mxu0 %v2850
    %2899 = vmatpush1.msra.mxu0 %v2849
    %2900 = vmatprep.subr.mxu0 %v2852
    %2901 = vmatpush1.msra.mxu0 %v2851
    %2902 = vmatprep.subr.mxu0 %v2854
    %2903 = vmatpush1.msra.mxu0 %v2853
    %2904 = vmatprep.subr.mxu0 %v2856
    %2905 = vmatpush1.msra.mxu0 %v2855
    %2906 = vmatprep.subr.mxu0 %v2858
    %2907 = vmatpush1.msra.mxu0 %v2857
    %2908 = vmatprep.subr.mxu0 %v2860
    %2909 = vmatpush1.msra.mxu0 %v2859
    %2910 = vmatprep.subr.mxu0 %v2862
    %2911 = vmatpush1.msra.mxu0 %v2861
    %2912 = vmatprep.subr.mxu0 %v2864
    %2913 = vmatpush1.msra.mxu0 %v2863
    %2914 = vmatprep.subr.mxu0 %v2866
    %2915 = vmatpush1.msra.mxu0 %v2865
    %2916 = vmatprep.subr.mxu0 %v2868
    %2917 = vmatpush1.msra.mxu0 %v2867
    %2918 = vmatprep.subr.mxu0 %v2870
    %2919 = vmatpush1.msra.mxu0 %v2869
    %2920 = vmatprep.subr.mxu0 %v2872
    %2921 = vmatpush1.msra.mxu0 %v2871
    %2922 = vmatprep.subr.mxu0 %v2874
    %2923 = vmatpush1.msra.mxu0 %v2873
    %2924 = vmatprep.subr.mxu0 %v2876
    %2925 = vmatpush1.msra.mxu0 %v2875
    %2926 = vmatprep.subr.mxu0 %v2878
    %2927 = vmatpush1.msra.mxu0 %v2877
    %2928 = vmatprep.subr.mxu0 %v2880
    %2929 = vmatpush1.msra.mxu0 %v2879
    %2930 = vmatprep.subr.mxu0 0.0
    %2931 = vmatpush1.msra.mxu0 0.0
    %2932 = vmatprep.subr.mxu0 0.0
    %2933 = vmatpush1.msra.mxu0 0.0
    %2934 = vmatprep.subr.mxu0 0.0
    %2935 = vmatpush1.msra.mxu0 0.0
    %2936 = vmatprep.subr.mxu0 0.0
    %2937 = vmatpush1.msra.mxu0 0.0
    %2938 = vmatprep.subr.mxu0 0.0
    %2939 = vmatpush1.msra.mxu0 0.0
    %2940 = vmatprep.subr.mxu0 0.0
    %2941 = vmatpush1.msra.mxu0 0.0
    %2942 = vmatprep.subr.mxu0 0.0
    %2943 = vmatpush1.msra.mxu0 0.0
    %2944 = vmatprep.subr.mxu0 0.0
    %2945 = vmatpush1.msra.mxu0 0.0
    %2946 = vmatprep.subr.mxu0 0.0
    %2947 = vmatpush1.msra.mxu0 0.0
    %2948 = vmatprep.subr.mxu0 0.0
    %2949 = vmatpush1.msra.mxu0 0.0
    %2950 = vmatprep.subr.mxu0 0.0
    %2951 = vmatpush1.msra.mxu0 0.0
    %2952 = vmatprep.subr.mxu0 0.0
    %2953 = vmatpush1.msra.mxu0 0.0
    %2954 = vmatprep.subr.mxu0 0.0
    %2955 = vmatpush1.msra.mxu0 0.0
    %2956 = vmatprep.subr.mxu0 0.0
    %2957 = vmatpush1.msra.mxu0 0.0
    %2958 = vmatprep.subr.mxu0 0.0
    %2959 = vmatpush1.msra.mxu0 0.0
    %2960 = vmatprep.mubr.f32.mxu0 %v2882
    %2961 = vmatmul.mubr.f32.gmra.mrb[0].mxu0 %v2724
    %v2962 = vpop.f32.mrb[0].mxu0
    %v2963 = vadd.f32 0.0, %v2962
    %v2964 = vpop.f32.mrb[0].mxu0
    %v2965 = vadd.f32 0.0, %v2964
    %2966 = vmatprep.mubr.f32.mxu0 %v2885
    %2967 = vmatmul.mubr.f32.gmra.mrb[0].mxu0 %v2730
    %v2968 = vpop.f32.mrb[0].mxu0
    %v2969 = vadd.f32 0.0, %v2968
    %v2970 = vpop.f32.mrb[0].mxu0
    %v2971 = vadd.f32 0.0, %v2970
    %2972 = vmatprep.mubr.f32.mxu0 %v2888
    %2973 = vmatmul.mubr.f32.gmra.mrb[0].mxu0 %v2736
    %v2974 = vpop.f32.mrb[0].mxu0
    %v2975 = vadd.f32 0.0, %v2974
    %v2976 = vpop.f32.mrb[0].mxu0
    %v2977 = vadd.f32 0.0, %v2976
    %2978 = vmatprep.mubr.f32.mxu0 %v2891
    %2979 = vmatmul.mubr.f32.gmra.mrb[0].mxu0 %v2742
    %v2980 = vpop.f32.mrb[0].mxu0
    %v2981 = vadd.f32 0.0, %v2980
    %v2982 = vpop.f32.mrb[0].mxu0
    %v2983 = vadd.f32 0.0, %v2982
    %2984 = vmatprep.mubr.f32.mxu0 %v2894
    %2985 = vmatmul.mubr.f32.gmra.mrb[0].mxu0 %v2748
    %v2986 = vpop.f32.mrb[0].mxu0
    %v2987 = vadd.f32 0.0, %v2986
    %v2988 = vpop.f32.mrb[0].mxu0
    %v2989 = vadd.f32 0.0, %v2988
    %2990 = vdwg.mxu0
    %v2992 = vsel %vm2133, %v2696, 0
    %v2995 = vsel %vm2133, %v2702, 0
    %v2998 = vsel %vm2133, %v2708, 0
    %v3001 = vsel %vm2133, %v2714, 0
    %v3004 = vsel %vm2133, %v2720, 0
    %3006 = vmatprep.subr.mxu0 %v2813
    %3007 = vmatpush1.msra.mxu0 %v2812
    %3008 = vmatprep.subr.mxu0 %v2815
    %3009 = vmatpush1.msra.mxu0 %v2814
    %3010 = vmatprep.subr.mxu0 %v2817
    %3011 = vmatpush1.msra.mxu0 %v2816
    %3012 = vmatprep.subr.mxu0 %v2819
    %3013 = vmatpush1.msra.mxu0 %v2818
    %3014 = vmatprep.subr.mxu0 %v2821
    %3015 = vmatpush1.msra.mxu0 %v2820
    %3016 = vmatprep.subr.mxu0 %v2823
    %3017 = vmatpush1.msra.mxu0 %v2822
    %3018 = vmatprep.subr.mxu0 %v2825
    %3019 = vmatpush1.msra.mxu0 %v2824
    %3020 = vmatprep.subr.mxu0 %v2827
    %3021 = vmatpush1.msra.mxu0 %v2826
    %3022 = vmatprep.subr.mxu0 %v2829
    %3023 = vmatpush1.msra.mxu0 %v2828
    %3024 = vmatprep.subr.mxu0 %v2831
    %3025 = vmatpush1.msra.mxu0 %v2830
    %3026 = vmatprep.subr.mxu0 %v2833
    %3027 = vmatpush1.msra.mxu0 %v2832
    %3028 = vmatprep.subr.mxu0 %v2835
    %3029 = vmatpush1.msra.mxu0 %v2834
    %3030 = vmatprep.subr.mxu0 %v2837
    %3031 = vmatpush1.msra.mxu0 %v2836
    %3032 = vmatprep.subr.mxu0 %v2839
    %3033 = vmatpush1.msra.mxu0 %v2838
    %3034 = vmatprep.subr.mxu0 %v2841
    %3035 = vmatpush1.msra.mxu0 %v2840
    %3036 = vmatprep.subr.mxu0 %v2843
    %3037 = vmatpush1.msra.mxu0 %v2842
    %3038 = vmatprep.subr.mxu0 %v2845
    %3039 = vmatpush1.msra.mxu0 %v2844
    %3040 = vmatprep.subr.mxu0 0.0
    %3041 = vmatpush1.msra.mxu0 0.0
    %3042 = vmatprep.subr.mxu0 0.0
    %3043 = vmatpush1.msra.mxu0 0.0
    %3044 = vmatprep.subr.mxu0 0.0
    %3045 = vmatpush1.msra.mxu0 0.0
    %3046 = vmatprep.subr.mxu0 0.0
    %3047 = vmatpush1.msra.mxu0 0.0
    %3048 = vmatprep.subr.mxu0 0.0
    %3049 = vmatpush1.msra.mxu0 0.0
    %3050 = vmatprep.subr.mxu0 0.0
    %3051 = vmatpush1.msra.mxu0 0.0
    %3052 = vmatprep.subr.mxu0 0.0
    %3053 = vmatpush1.msra.mxu0 0.0
    %3054 = vmatprep.subr.mxu0 0.0
    %3055 = vmatpush1.msra.mxu0 0.0
    %3056 = vmatprep.subr.mxu0 0.0
    %3057 = vmatpush1.msra.mxu0 0.0
    %3058 = vmatprep.subr.mxu0 0.0
    %3059 = vmatpush1.msra.mxu0 0.0
    %3060 = vmatprep.subr.mxu0 0.0
    %3061 = vmatpush1.msra.mxu0 0.0
    %3062 = vmatprep.subr.mxu0 0.0
    %3063 = vmatpush1.msra.mxu0 0.0
    %3064 = vmatprep.subr.mxu0 0.0
    %3065 = vmatpush1.msra.mxu0 0.0
    %3066 = vmatprep.subr.mxu0 0.0
    %3067 = vmatpush1.msra.mxu0 0.0
    %3068 = vmatprep.subr.mxu0 0.0
    %3069 = vmatpush1.msra.mxu0 0.0
    %3070 = vmatprep.mubr.f32.mxu0 %v2992
    %3071 = vmatmul.mubr.f32.gmra.mrb[0].mxu0 %v2694
    %v3072 = vpop.f32.mrb[0].mxu0
    %v3073 = vadd.f32 %v2963, %v3072
    %v3074 = vpop.f32.mrb[0].mxu0
    %v3075 = vadd.f32 %v2965, %v3074
    %3076 = vmatprep.mubr.f32.mxu0 %v2995
    %3077 = vmatmul.mubr.f32.gmra.mrb[0].mxu0 %v2700
    %v3078 = vpop.f32.mrb[0].mxu0
    %v3079 = vadd.f32 %v2969, %v3078
    %v3080 = vpop.f32.mrb[0].mxu0
    %v3081 = vadd.f32 %v2971, %v3080
    %3082 = vmatprep.mubr.f32.mxu0 %v2998
    %3083 = vmatmul.mubr.f32.gmra.mrb[0].mxu0 %v2706
    %v3084 = vpop.f32.mrb[0].mxu0
    %v3085 = vadd.f32 %v2975, %v3084
    %v3086 = vpop.f32.mrb[0].mxu0
    %v3087 = vadd.f32 %v2977, %v3086
    %3088 = vmatprep.mubr.f32.mxu0 %v3001
    %3089 = vmatmul.mubr.f32.gmra.mrb[0].mxu0 %v2712
    %v3090 = vpop.f32.mrb[0].mxu0
    %v3091 = vadd.f32 %v2981, %v3090
    %v3092 = vpop.f32.mrb[0].mxu0
    %v3093 = vadd.f32 %v2983, %v3092
    %3094 = vmatprep.mubr.f32.mxu0 %v3004
    %3095 = vmatmul.mubr.f32.gmra.mrb[0].mxu0 %v2718
    %v3096 = vpop.f32.mrb[0].mxu0
    %v3097 = vadd.f32 %v2987, %v3096
    %v3098 = vpop.f32.mrb[0].mxu0
    %v3099 = vadd.f32 %v2989, %v3098
    %3100 = vdwg.mxu0
    %s3101 = scalar_lea.vmem [#allocation2], 544
    %v3102 = vld [vmem:[%s3101] sm:$0xff]
    %v3103 = vld [vmem:[%s3101 + $0x8] sm:$0xff]
    %v3104 = vld [vmem:[%s3101 + $0x10] sm:$0xff]
    %v3105 = vld [vmem:[%s3101 + $0x18] sm:$0xff]
    %v3106 = vld [vmem:[%s3101 + $0x20] sm:$0xff]
    %v3107 = vld [vmem:[%s3101 + $0x28] sm:$0xff]
    %v3108 = vld [vmem:[%s3101 + $0x30] sm:$0xff]
    %v3109 = vld [vmem:[%s3101 + $0x38] sm:$0xff]
    %v3110 = vld [vmem:[%s3101 + $0x40] sm:$0xff]
    %v3111 = vld [vmem:[%s3101 + $0x48] sm:$0xff]
    %v3112 = vld [vmem:[%s3101 + $0x50] sm:$0xff]
    %v3113 = vld [vmem:[%s3101 + $0x58] sm:$0xff]
    %v3114 = vld [vmem:[%s3101 + $0x60] sm:$0xff]
    %v3115 = vld [vmem:[%s3101 + $0x68] sm:$0xff]
    %v3116 = vld [vmem:[%s3101 + $0x70] sm:$0xff]
    %v3117 = vld [vmem:[%s3101 + $0x78] sm:$0xff]
    %v3118 = vld [vmem:[%s3101 + $0x80] sm:$0xff]
    %v3119 = vld [vmem:[%s3101 + $0x88] sm:$0xff]
    %v3120 = vld [vmem:[%s3101 + $0x90] sm:$0xff]
    %v3121 = vld [vmem:[%s3101 + $0x98] sm:$0xff]
    %v3122 = vld [vmem:[%s3101 + $0xa0] sm:$0xff]
    %v3123 = vld [vmem:[%s3101 + $0xa8] sm:$0xff]
    %v3124 = vld [vmem:[%s3101 + $0xb0] sm:$0xff]
    %v3125 = vld [vmem:[%s3101 + $0xb8] sm:$0xff]
    %v3126 = vld [vmem:[%s3101 + $0xc0] sm:$0xff]
    %v3127 = vld [vmem:[%s3101 + $0xc8] sm:$0xff]
    %v3128 = vld [vmem:[%s3101 + $0xd0] sm:$0xff]
    %v3129 = vld [vmem:[%s3101 + $0xd8] sm:$0xff]
    %v3130 = vld [vmem:[%s3101 + $0xe0] sm:$0xff]
    %v3131 = vld [vmem:[%s3101 + $0xe8] sm:$0xff]
    %v3132 = vld [vmem:[%s3101 + $0xf0] sm:$0xff]
    %v3133 = vld [vmem:[%s3101 + $0xf8] sm:$0xff]
    %v3134 = vld [vmem:[%s3101 + $0x100] sm:$0xff]
    %v3135 = vld [vmem:[%s3101 + $0x108] sm:$0xff]
    %v3137 = vsel %vm2133, %v2756, 0
    %v3140 = vsel %vm2133, %v2762, 0
    %v3143 = vsel %vm2133, %v2768, 0
    %v3146 = vsel %vm2133, %v2774, 0
    %v3149 = vsel %vm2133, %v2780, 0
    %3151 = vmatprep.subr.mxu0 %v3103
    %3152 = vmatpush1.msra.mxu0 %v3102
    %3153 = vmatprep.subr.mxu0 %v3105
    %3154 = vmatpush1.msra.mxu0 %v3104
    %3155 = vmatprep.subr.mxu0 %v3107
    %3156 = vmatpush1.msra.mxu0 %v3106
    %3157 = vmatprep.subr.mxu0 %v3109
    %3158 = vmatpush1.msra.mxu0 %v3108
    %3159 = vmatprep.subr.mxu0 %v3111
    %3160 = vmatpush1.msra.mxu0 %v3110
    %3161 = vmatprep.subr.mxu0 %v3113
    %3162 = vmatpush1.msra.mxu0 %v3112
    %3163 = vmatprep.subr.mxu0 %v3115
    %3164 = vmatpush1.msra.mxu0 %v3114
    %3165 = vmatprep.subr.mxu0 %v3117
    %3166 = vmatpush1.msra.mxu0 %v3116
    %3167 = vmatprep.subr.mxu0 %v3119
    %3168 = vmatpush1.msra.mxu0 %v3118
    %3169 = vmatprep.subr.mxu0 %v3121
    %3170 = vmatpush1.msra.mxu0 %v3120
    %3171 = vmatprep.subr.mxu0 %v3123
    %3172 = vmatpush1.msra.mxu0 %v3122
    %3173 = vmatprep.subr.mxu0 %v3125
    %3174 = vmatpush1.msra.mxu0 %v3124
    %3175 = vmatprep.subr.mxu0 %v3127
    %3176 = vmatpush1.msra.mxu0 %v3126
    %3177 = vmatprep.subr.mxu0 %v3129
    %3178 = vmatpush1.msra.mxu0 %v3128
    %3179 = vmatprep.subr.mxu0 %v3131
    %3180 = vmatpush1.msra.mxu0 %v3130
    %3181 = vmatprep.subr.mxu0 %v3133
    %3182 = vmatpush1.msra.mxu0 %v3132
    %3183 = vmatprep.subr.mxu0 %v3135
    %3184 = vmatpush1.msra.mxu0 %v3134
    %3185 = vmatprep.subr.mxu0 0.0
    %3186 = vmatpush1.msra.mxu0 0.0
    %3187 = vmatprep.subr.mxu0 0.0
    %3188 = vmatpush1.msra.mxu0 0.0
    %3189 = vmatprep.subr.mxu0 0.0
    %3190 = vmatpush1.msra.mxu0 0.0
    %3191 = vmatprep.subr.mxu0 0.0
    %3192 = vmatpush1.msra.mxu0 0.0
    %3193 = vmatprep.subr.mxu0 0.0
    %3194 = vmatpush1.msra.mxu0 0.0
    %3195 = vmatprep.subr.mxu0 0.0
    %3196 = vmatpush1.msra.mxu0 0.0
    %3197 = vmatprep.subr.mxu0 0.0
    %3198 = vmatpush1.msra.mxu0 0.0
    %3199 = vmatprep.subr.mxu0 0.0
    %3200 = vmatpush1.msra.mxu0 0.0
    %3201 = vmatprep.subr.mxu0 0.0
    %3202 = vmatpush1.msra.mxu0 0.0
    %3203 = vmatprep.subr.mxu0 0.0
    %3204 = vmatpush1.msra.mxu0 0.0
    %3205 = vmatprep.subr.mxu0 0.0
    %3206 = vmatpush1.msra.mxu0 0.0
    %3207 = vmatprep.subr.mxu0 0.0
    %3208 = vmatpush1.msra.mxu0 0.0
    %3209 = vmatprep.subr.mxu0 0.0
    %3210 = vmatpush1.msra.mxu0 0.0
    %3211 = vmatprep.subr.mxu0 0.0
    %3212 = vmatpush1.msra.mxu0 0.0
    %3213 = vmatprep.subr.mxu0 0.0
    %3214 = vmatpush1.msra.mxu0 0.0
    %3215 = vmatprep.mubr.f32.mxu0 %v3137
    %3216 = vmatmul.mubr.f32.gmra.mrb[0].mxu0 %v2754
    %v3217 = vpop.f32.mrb[0].mxu0
    %v3218 = vadd.f32 0.0, %v3217
    %v3219 = vpop.f32.mrb[0].mxu0
    %v3220 = vadd.f32 0.0, %v3219
    %3221 = vmatprep.mubr.f32.mxu0 %v3140
    %3222 = vmatmul.mubr.f32.gmra.mrb[0].mxu0 %v2760
    %v3223 = vpop.f32.mrb[0].mxu0
    %v3224 = vadd.f32 0.0, %v3223
    %v3225 = vpop.f32.mrb[0].mxu0
    %v3226 = vadd.f32 0.0, %v3225
    %3227 = vmatprep.mubr.f32.mxu0 %v3143
    %3228 = vmatmul.mubr.f32.gmra.mrb[0].mxu0 %v2766
    %v3229 = vpop.f32.mrb[0].mxu0
    %v3230 = vadd.f32 0.0, %v3229
    %v3231 = vpop.f32.mrb[0].mxu0
    %v3232 = vadd.f32 0.0, %v3231
    %3233 = vmatprep.mubr.f32.mxu0 %v3146
    %3234 = vmatmul.mubr.f32.gmra.mrb[0].mxu0 %v2772
    %v3235 = vpop.f32.mrb[0].mxu0
    %v3236 = vadd.f32 0.0, %v3235
    %v3237 = vpop.f32.mrb[0].mxu0
    %v3238 = vadd.f32 0.0, %v3237
    %3239 = vmatprep.mubr.f32.mxu0 %v3149
    %3240 = vmatmul.mubr.f32.gmra.mrb[0].mxu0 %v2778
    %v3241 = vpop.f32.mrb[0].mxu0
    %v3242 = vadd.f32 0.0, %v3241
    %v3243 = vpop.f32.mrb[0].mxu0
    %v3244 = vadd.f32 0.0, %v3243
    %3245 = vdwg.mxu0
    %v3246 = vadd.f32 %v3073, %v3218
    %v3247 = vadd.f32 %v3075, %v3220
    %v3248 = vadd.f32 %v3079, %v3224
    %v3249 = vadd.f32 %v3081, %v3226
    %v3250 = vadd.f32 %v3085, %v3230
    %v3251 = vadd.f32 %v3087, %v3232
    %v3252 = vadd.f32 %v3091, %v3236
    %v3253 = vadd.f32 %v3093, %v3238
    %v3254 = vadd.f32 %v3097, %v3242
    %v3255 = vadd.f32 %v3099, %v3244
    %s3256 = scalar_lea.vmem [#allocation2], 816
    %v3257 = vld [vmem:[%s3256] sm:$0xff]
    %v3258 = vld [vmem:[%s3256 + $0x8] sm:$0xff]
    %v3259 = vld [vmem:[%s3256 + $0x10] sm:$0xff]
    %v3260 = vld [vmem:[%s3256 + $0x18] sm:$0xff]
    %v3261 = vld [vmem:[%s3256 + $0x20] sm:$0xff]
    %v3262 = vld [vmem:[%s3256 + $0x28] sm:$0xff]
    %v3263 = vld [vmem:[%s3256 + $0x30] sm:$0xff]
    %v3264 = vld [vmem:[%s3256 + $0x38] sm:$0xff]
    %v3265 = vld [vmem:[%s3256 + $0x40] sm:$0xff]
    %v3266 = vld [vmem:[%s3256 + $0x48] sm:$0xff]
    %v3267 = vld [vmem:[%s3256 + $0x50] sm:$0xff]
    %v3268 = vld [vmem:[%s3256 + $0x58] sm:$0xff]
    %v3269 = vld [vmem:[%s3256 + $0x60] sm:$0xff]
    %v3270 = vld [vmem:[%s3256 + $0x68] sm:$0xff]
    %v3271 = vld [vmem:[%s3256 + $0x70] sm:$0xff]
    %v3272 = vld [vmem:[%s3256 + $0x78] sm:$0xff]
    %v3273 = vld [vmem:[%s3256 + $0x80] sm:$0xff]
    %v3274 = vld [vmem:[%s3256 + $0x88] sm:$0xff]
    %v3275 = vld [vmem:[%s3256 + $0x90] sm:$0xff]
    %v3276 = vld [vmem:[%s3256 + $0x98] sm:$0xff]
    %v3277 = vld [vmem:[%s3256 + $0xa0] sm:$0xff]
    %v3278 = vld [vmem:[%s3256 + $0xa8] sm:$0xff]
    %v3279 = vld [vmem:[%s3256 + $0xb0] sm:$0xff]
    %v3280 = vld [vmem:[%s3256 + $0xb8] sm:$0xff]
    %v3281 = vld [vmem:[%s3256 + $0xc0] sm:$0xff]
    %v3282 = vld [vmem:[%s3256 + $0xc8] sm:$0xff]
    %v3283 = vld [vmem:[%s3256 + $0xd0] sm:$0xff]
    %v3284 = vld [vmem:[%s3256 + $0xd8] sm:$0xff]
    %v3285 = vld [vmem:[%s3256 + $0xe0] sm:$0xff]
    %v3286 = vld [vmem:[%s3256 + $0xe8] sm:$0xff]
    %v3287 = vld [vmem:[%s3256 + $0xf0] sm:$0xff]
    %v3288 = vld [vmem:[%s3256 + $0xf8] sm:$0xff]
    %v3289 = vld [vmem:[%s3256 + $0x100] sm:$0xff]
    %v3290 = vld [vmem:[%s3256 + $0x108] sm:$0xff]
    %v3292 = vsel %vm2133, %v2786, 0
    %v3295 = vsel %vm2133, %v2792, 0
    %v3298 = vsel %vm2133, %v2798, 0
    %v3301 = vsel %vm2133, %v2804, 0
    %v3304 = vsel %vm2133, %v2810, 0
    %3306 = vmatprep.subr.mxu0 %v3258
    %3307 = vmatpush1.msra.mxu0 %v3257
    %3308 = vmatprep.subr.mxu0 %v3260
    %3309 = vmatpush1.msra.mxu0 %v3259
    %3310 = vmatprep.subr.mxu0 %v3262
    %3311 = vmatpush1.msra.mxu0 %v3261
    %3312 = vmatprep.subr.mxu0 %v3264
    %3313 = vmatpush1.msra.mxu0 %v3263
    %3314 = vmatprep.subr.mxu0 %v3266
    %3315 = vmatpush1.msra.mxu0 %v3265
    %3316 = vmatprep.subr.mxu0 %v3268
    %3317 = vmatpush1.msra.mxu0 %v3267
    %3318 = vmatprep.subr.mxu0 %v3270
    %3319 = vmatpush1.msra.mxu0 %v3269
    %3320 = vmatprep.subr.mxu0 %v3272
    %3321 = vmatpush1.msra.mxu0 %v3271
    %3322 = vmatprep.subr.mxu0 %v3274
    %3323 = vmatpush1.msra.mxu0 %v3273
    %3324 = vmatprep.subr.mxu0 %v3276
    %3325 = vmatpush1.msra.mxu0 %v3275
    %3326 = vmatprep.subr.mxu0 %v3278
    %3327 = vmatpush1.msra.mxu0 %v3277
    %3328 = vmatprep.subr.mxu0 %v3280
    %3329 = vmatpush1.msra.mxu0 %v3279
    %3330 = vmatprep.subr.mxu0 %v3282
    %3331 = vmatpush1.msra.mxu0 %v3281
    %3332 = vmatprep.subr.mxu0 %v3284
    %3333 = vmatpush1.msra.mxu0 %v3283
    %3334 = vmatprep.subr.mxu0 %v3286
    %3335 = vmatpush1.msra.mxu0 %v3285
    %3336 = vmatprep.subr.mxu0 %v3288
    %3337 = vmatpush1.msra.mxu0 %v3287
    %3338 = vmatprep.subr.mxu0 %v3290
    %3339 = vmatpush1.msra.mxu0 %v3289
    %3340 = vmatprep.subr.mxu0 0.0
    %3341 = vmatpush1.msra.mxu0 0.0
    %3342 = vmatprep.subr.mxu0 0.0
    %3343 = vmatpush1.msra.mxu0 0.0
    %3344 = vmatprep.subr.mxu0 0.0
    %3345 = vmatpush1.msra.mxu0 0.0
    %3346 = vmatprep.subr.mxu0 0.0
    %3347 = vmatpush1.msra.mxu0 0.0
    %3348 = vmatprep.subr.mxu0 0.0
    %3349 = vmatpush1.msra.mxu0 0.0
    %3350 = vmatprep.subr.mxu0 0.0
    %3351 = vmatpush1.msra.mxu0 0.0
    %3352 = vmatprep.subr.mxu0 0.0
    %3353 = vmatpush1.msra.mxu0 0.0
    %3354 = vmatprep.subr.mxu0 0.0
    %3355 = vmatpush1.msra.mxu0 0.0
    %3356 = vmatprep.subr.mxu0 0.0
    %3357 = vmatpush1.msra.mxu0 0.0
    %3358 = vmatprep.subr.mxu0 0.0
    %3359 = vmatpush1.msra.mxu0 0.0
    %3360 = vmatprep.subr.mxu0 0.0
    %3361 = vmatpush1.msra.mxu0 0.0
    %3362 = vmatprep.subr.mxu0 0.0
    %3363 = vmatpush1.msra.mxu0 0.0
    %3364 = vmatprep.subr.mxu0 0.0
    %3365 = vmatpush1.msra.mxu0 0.0
    %3366 = vmatprep.subr.mxu0 0.0
    %3367 = vmatpush1.msra.mxu0 0.0
    %3368 = vmatprep.subr.mxu0 0.0
    %3369 = vmatpush1.msra.mxu0 0.0
    %3370 = vmatprep.mubr.f32.mxu0 %v3292
    %3371 = vmatmul.mubr.f32.gmra.mrb[0].mxu0 %v2784
    %v3372 = vpop.f32.mrb[0].mxu0
    %v3373 = vadd.f32 0.0, %v3372
    %v3374 = vpop.f32.mrb[0].mxu0
    %v3375 = vadd.f32 0.0, %v3374
    %3376 = vmatprep.mubr.f32.mxu0 %v3295
    %3377 = vmatmul.mubr.f32.gmra.mrb[0].mxu0 %v2790
    %v3378 = vpop.f32.mrb[0].mxu0
    %v3379 = vadd.f32 0.0, %v3378
    %v3380 = vpop.f32.mrb[0].mxu0
    %v3381 = vadd.f32 0.0, %v3380
    %3382 = vmatprep.mubr.f32.mxu0 %v3298
    %3383 = vmatmul.mubr.f32.gmra.mrb[0].mxu0 %v2796
    %v3384 = vpop.f32.mrb[0].mxu0
    %v3385 = vadd.f32 0.0, %v3384
    %v3386 = vpop.f32.mrb[0].mxu0
    %v3387 = vadd.f32 0.0, %v3386
    %3388 = vmatprep.mubr.f32.mxu0 %v3301
    %3389 = vmatmul.mubr.f32.gmra.mrb[0].mxu0 %v2802
    %v3390 = vpop.f32.mrb[0].mxu0
    %v3391 = vadd.f32 0.0, %v3390
    %v3392 = vpop.f32.mrb[0].mxu0
    %v3393 = vadd.f32 0.0, %v3392
    %3394 = vmatprep.mubr.f32.mxu0 %v3304
    %3395 = vmatmul.mubr.f32.gmra.mrb[0].mxu0 %v2808
    %v3396 = vpop.f32.mrb[0].mxu0
    %v3397 = vadd.f32 0.0, %v3396
    %v3398 = vpop.f32.mrb[0].mxu0
    %v3399 = vadd.f32 0.0, %v3398
    %3400 = vdwg.mxu0
    %v3401 = vadd.f32 %v3246, %v3373
    %v3402 = vadd.f32 %v3247, %v3375
    %v3403 = vadd.f32 %v3248, %v3379
    %v3404 = vadd.f32 %v3249, %v3381
    %v3405 = vadd.f32 %v3250, %v3385
    %v3406 = vadd.f32 %v3251, %v3387
    %v3407 = vadd.f32 %v3252, %v3391
    %v3408 = vadd.f32 %v3253, %v3393
    %v3409 = vadd.f32 %v3254, %v3397
    %v3410 = vadd.f32 %v3255, %v3399
    %v3411 = vld [vmem:[#allocation4] sm:$0xff]
    %v3412 = vld [vmem:[#allocation4 + $0x8] sm:$0xff]
    %v3413 = vld [vmem:[#allocation4 + $0x10] sm:$0xff]
    %v3414 = vld [vmem:[#allocation4 + $0x18] sm:$0xff]
    %v3415 = vld [vmem:[#allocation4 + $0x20] sm:$0xff]
    %v3416 = vld [vmem:[#allocation4 + $0x28] sm:$0xff]
    %v3417 = vld [vmem:[#allocation4 + $0x30] sm:$0xff]
    %v3418 = vld [vmem:[#allocation4 + $0x38] sm:$0xff]
    %v3419 = vld [vmem:[#allocation4 + $0x40] sm:$0xff]
    %v3420 = vld [vmem:[#allocation4 + $0x48] sm:$0xff]
    %v3421 = vld [vmem:[#allocation4 + $0x50] sm:$0xff]
    %v3422 = vld [vmem:[#allocation4 + $0x58] sm:$0xff]
    %v3423 = vld [vmem:[#allocation4 + $0x60] sm:$0xff]
    %v3424 = vld [vmem:[#allocation4 + $0x68] sm:$0xff]
    %v3425 = vld [vmem:[#allocation4 + $0x70] sm:$0xff]
    %v3426 = vld [vmem:[#allocation4 + $0x78] sm:$0xff]
    %v3427 = vld [vmem:[#allocation4 + $0x80] sm:$0xff]
    %v3428 = vld [vmem:[#allocation4 + $0x88] sm:$0xff]
    %v3429 = vld [vmem:[#allocation4 + $0x90] sm:$0xff]
    %v3430 = vld [vmem:[#allocation4 + $0x98] sm:$0xff]
    %v3431 = vld [vmem:[#allocation4 + $0xa0] sm:$0xff]
    %v3432 = vld [vmem:[#allocation4 + $0xa8] sm:$0xff]
    %v3433 = vld [vmem:[#allocation4 + $0xb0] sm:$0xff]
    %v3434 = vld [vmem:[#allocation4 + $0xb8] sm:$0xff]
    %v3435 = vld [vmem:[#allocation4 + $0xc0] sm:$0xff]
    %v3436 = vld [vmem:[#allocation4 + $0xc8] sm:$0xff]
    %v3437 = vld [vmem:[#allocation4 + $0xd0] sm:$0xff]
    %v3438 = vld [vmem:[#allocation4 + $0xd8] sm:$0xff]
    %v3439 = vld [vmem:[#allocation4 + $0xe0] sm:$0xff]
    %v3440 = vld [vmem:[#allocation4 + $0xe8] sm:$0xff]
    %v3441 = vld [vmem:[#allocation4 + $0xf0] sm:$0xff]
    %v3442 = vld [vmem:[#allocation4 + $0xf8] sm:$0xff]
    %v3443 = vld [vmem:[#allocation4 + $0x100] sm:$0xff]
    %v3444 = vld [vmem:[#allocation4 + $0x108] sm:$0xff]
    %v3445 = vld [vmem:[#allocation4 + $0x110] sm:$0xff]
    %v3446 = vld [vmem:[#allocation4 + $0x118] sm:$0xff]
    %v3447 = vadd.f32 %v3401, %v3403
    %v3448 = vadd.f32 %v3447, %v3405
    %v3449 = vadd.f32 %v3448, %v3407
    %v3450 = vsel %vm947, %v3409, 0.0
    %v3451 = vadd.f32 %v3449, %v3450
    %v3452 = vrot.slane %v3451, 4
    %v3453 = vadd.f32 %v3451, %v3452
    %v3454 = vrot.slane %v3453, 2
    %v3455 = vadd.f32 %v3453, %v3454
    %v3456 = vrot.slane %v3455, 1
    %v3457 = vadd.f32 %v3455, %v3456
    %vm3458 = vcmask 130048
    %v3459 = vsel %vm3458, %v3402, 0.0
    %v3460 = vsel %vm3458, %v3404, 0.0
    %v3461 = vadd.f32 %v3459, %v3460
    %v3462 = vsel %vm3458, %v3406, 0.0
    %v3463 = vadd.f32 %v3461, %v3462
    %v3464 = vsel %vm3458, %v3408, 0.0
    %v3465 = vadd.f32 %v3463, %v3464
    %vm3466 = vcmask 125952
    %v3467 = vsel %vm3466, %v3410, 0.0
    %v3468 = vadd.f32 %v3465, %v3467
    %v3469 = vrot.slane %v3468, 4
    %v3470 = vadd.f32 %v3468, %v3469
    %v3471 = vrot.slane %v3470, 2
    %v3472 = vadd.f32 %v3470, %v3471
    %v3473 = vrot.slane %v3472, 1
    %v3474 = vadd.f32 %v3472, %v3473
    %v3476 = vsel %vm3458, %v3474, 0
    %3478 = vmatprep.subr.mxu0 %v3412
    %3479 = vmatpush1.msra.mxu0 %v3411
    %3480 = vmatprep.subr.mxu0 %v3414
    %3481 = vmatpush1.msra.mxu0 %v3413
    %3482 = vmatprep.subr.mxu0 %v3416
    %3483 = vmatpush1.msra.mxu0 %v3415
    %3484 = vmatprep.subr.mxu0 %v3418
    %3485 = vmatpush1.msra.mxu0 %v3417
    %3486 = vmatprep.subr.mxu0 %v3420
    %3487 = vmatpush1.msra.mxu0 %v3419
    %3488 = vmatprep.subr.mxu0 %v3422
    %3489 = vmatpush1.msra.mxu0 %v3421
    %3490 = vmatprep.subr.mxu0 %v3424
    %3491 = vmatpush1.msra.mxu0 %v3423
    %3492 = vmatprep.subr.mxu0 %v3426
    %3493 = vmatpush1.msra.mxu0 %v3425
    %3494 = vmatprep.subr.mxu0 %v3428
    %3495 = vmatpush1.msra.mxu0 %v3427
    %3496 = vmatprep.subr.mxu0 %v3430
    %3497 = vmatpush1.msra.mxu0 %v3429
    %3498 = vmatprep.subr.mxu0 %v3432
    %3499 = vmatpush1.msra.mxu0 %v3431
    %3500 = vmatprep.subr.mxu0 %v3434
    %3501 = vmatpush1.msra.mxu0 %v3433
    %3502 = vmatprep.subr.mxu0 %v3436
    %3503 = vmatpush1.msra.mxu0 %v3435
    %3504 = vmatprep.subr.mxu0 %v3438
    %3505 = vmatpush1.msra.mxu0 %v3437
    %3506 = vmatprep.subr.mxu0 %v3440
    %3507 = vmatpush1.msra.mxu0 %v3439
    %3508 = vmatprep.subr.mxu0 %v3442
    %3509 = vmatpush1.msra.mxu0 %v3441
    %3510 = vmatprep.subr.mxu0 %v3444
    %3511 = vmatpush1.msra.mxu0 %v3443
    %3512 = vmatprep.subr.mxu0 %v3446
    %3513 = vmatpush1.msra.mxu0 %v3445
    %3514 = vmatprep.subr.mxu0 0.0
    %3515 = vmatpush1.msra.mxu0 0.0
    %3516 = vmatprep.subr.mxu0 0.0
    %3517 = vmatpush1.msra.mxu0 0.0
    %3518 = vmatprep.subr.mxu0 0.0
    %3519 = vmatpush1.msra.mxu0 0.0
    %3520 = vmatprep.subr.mxu0 0.0
    %3521 = vmatpush1.msra.mxu0 0.0
    %3522 = vmatprep.subr.mxu0 0.0
    %3523 = vmatpush1.msra.mxu0 0.0
    %3524 = vmatprep.subr.mxu0 0.0
    %3525 = vmatpush1.msra.mxu0 0.0
    %3526 = vmatprep.subr.mxu0 0.0
    %3527 = vmatpush1.msra.mxu0 0.0
    %3528 = vmatprep.subr.mxu0 0.0
    %3529 = vmatpush1.msra.mxu0 0.0
    %3530 = vmatprep.subr.mxu0 0.0
    %3531 = vmatpush1.msra.mxu0 0.0
    %3532 = vmatprep.subr.mxu0 0.0
    %3533 = vmatpush1.msra.mxu0 0.0
    %3534 = vmatprep.subr.mxu0 0.0
    %3535 = vmatpush1.msra.mxu0 0.0
    %3536 = vmatprep.subr.mxu0 0.0
    %3537 = vmatpush1.msra.mxu0 0.0
    %3538 = vmatprep.subr.mxu0 0.0
    %3539 = vmatpush1.msra.mxu0 0.0
    %3540 = vmatprep.subr.mxu0 0.0
    %3541 = vmatpush1.msra.mxu0 0.0
    %3542 = vmatprep.mubr.f32.mxu0 %v3476
    %3543 = vmatmul.mubr.f32.gmra.mrb[0].mxu0 %v3457
    %v3544 = vpop.f32.mrb[0].mxu0
    %v3545 = vadd.f32 0.0, %v3544
    %v3546 = vpop.f32.mrb[0].mxu0
    %v3547 = vadd.f32 0.0, %v3546
    %3548 = vdwg.mxu0
    %v3549 = vmul.f32 %v3545, 0.001953125
    %v3550 = vmul.f32 %v3547, 0.001953125
    %v3551 = vmul.f32 %v3401, %v3401
    %v3552 = vmul.f32 %v3402, %v3402
    %v3553 = vmul.f32 %v3403, %v3403
    %v3554 = vmul.f32 %v3404, %v3404
    %v3555 = vmul.f32 %v3405, %v3405
    %v3556 = vmul.f32 %v3406, %v3406
    %v3557 = vmul.f32 %v3407, %v3407
    %v3558 = vmul.f32 %v3408, %v3408
    %v3559 = vmul.f32 %v3409, %v3409
    %v3560 = vmul.f32 %v3410, %v3410
    %v3561 = vadd.f32 %v3551, %v3553
    %v3562 = vadd.f32 %v3561, %v3555
    %v3563 = vadd.f32 %v3562, %v3557
    %v3564 = vsel %vm947, %v3559, 0.0
    %v3565 = vadd.f32 %v3563, %v3564
    %v3566 = vrot.slane %v3565, 4
    %v3567 = vadd.f32 %v3565, %v3566
    %v3568 = vrot.slane %v3567, 2
    %v3569 = vadd.f32 %v3567, %v3568
    %v3570 = vrot.slane %v3569, 1
    %v3571 = vadd.f32 %v3569, %v3570
    %v3572 = vsel %vm3458, %v3552, 0.0
    %v3573 = vsel %vm3458, %v3554, 0.0
    %v3574 = vadd.f32 %v3572, %v3573
    %v3575 = vsel %vm3458, %v3556, 0.0
    %v3576 = vadd.f32 %v3574, %v3575
    %v3577 = vsel %vm3458, %v3558, 0.0
    %v3578 = vadd.f32 %v3576, %v3577
    %v3579 = vsel %vm3466, %v3560, 0.0
    %v3580 = vadd.f32 %v3578, %v3579
    %v3581 = vrot.slane %v3580, 4
    %v3582 = vadd.f32 %v3580, %v3581
    %v3583 = vrot.slane %v3582, 2
    %v3584 = vadd.f32 %v3582, %v3583
    %v3585 = vrot.slane %v3584, 1
    %v3586 = vadd.f32 %v3584, %v3585
    %v3588 = vsel %vm3458, %v3586, 0
    %3590 = vmatprep.subr.mxu0 %v3412
    %3591 = vmatpush1.msra.mxu0 %v3411
    %3592 = vmatprep.subr.mxu0 %v3414
    %3593 = vmatpush1.msra.mxu0 %v3413
    %3594 = vmatprep.subr.mxu0 %v3416
    %3595 = vmatpush1.msra.mxu0 %v3415
    %3596 = vmatprep.subr.mxu0 %v3418
    %3597 = vmatpush1.msra.mxu0 %v3417
    %3598 = vmatprep.subr.mxu0 %v3420
    %3599 = vmatpush1.msra.mxu0 %v3419
    %3600 = vmatprep.subr.mxu0 %v3422
    %3601 = vmatpush1.msra.mxu0 %v3421
    %3602 = vmatprep.subr.mxu0 %v3424
    %3603 = vmatpush1.msra.mxu0 %v3423
    %3604 = vmatprep.subr.mxu0 %v3426
    %3605 = vmatpush1.msra.mxu0 %v3425
    %3606 = vmatprep.subr.mxu0 %v3428
    %3607 = vmatpush1.msra.mxu0 %v3427
    %3608 = vmatprep.subr.mxu0 %v3430
    %3609 = vmatpush1.msra.mxu0 %v3429
    %3610 = vmatprep.subr.mxu0 %v3432
    %3611 = vmatpush1.msra.mxu0 %v3431
    %3612 = vmatprep.subr.mxu0 %v3434
    %3613 = vmatpush1.msra.mxu0 %v3433
    %3614 = vmatprep.subr.mxu0 %v3436
    %3615 = vmatpush1.msra.mxu0 %v3435
    %3616 = vmatprep.subr.mxu0 %v3438
    %3617 = vmatpush1.msra.mxu0 %v3437
    %3618 = vmatprep.subr.mxu0 %v3440
    %3619 = vmatpush1.msra.mxu0 %v3439
    %3620 = vmatprep.subr.mxu0 %v3442
    %3621 = vmatpush1.msra.mxu0 %v3441
    %3622 = vmatprep.subr.mxu0 %v3444
    %3623 = vmatpush1.msra.mxu0 %v3443
    %3624 = vmatprep.subr.mxu0 %v3446
    %3625 = vmatpush1.msra.mxu0 %v3445
    %3626 = vmatprep.subr.mxu0 0.0
    %3627 = vmatpush1.msra.mxu0 0.0
    %3628 = vmatprep.subr.mxu0 0.0
    %3629 = vmatpush1.msra.mxu0 0.0
    %3630 = vmatprep.subr.mxu0 0.0
    %3631 = vmatpush1.msra.mxu0 0.0
    %3632 = vmatprep.subr.mxu0 0.0
    %3633 = vmatpush1.msra.mxu0 0.0
    %3634 = vmatprep.subr.mxu0 0.0
    %3635 = vmatpush1.msra.mxu0 0.0
    %3636 = vmatprep.subr.mxu0 0.0
    %3637 = vmatpush1.msra.mxu0 0.0
    %3638 = vmatprep.subr.mxu0 0.0
    %3639 = vmatpush1.msra.mxu0 0.0
    %3640 = vmatprep.subr.mxu0 0.0
    %3641 = vmatpush1.msra.mxu0 0.0
    %3642 = vmatprep.subr.mxu0 0.0
    %3643 = vmatpush1.msra.mxu0 0.0
    %3644 = vmatprep.subr.mxu0 0.0
    %3645 = vmatpush1.msra.mxu0 0.0
    %3646 = vmatprep.subr.mxu0 0.0
    %3647 = vmatpush1.msra.mxu0 0.0
    %3648 = vmatprep.subr.mxu0 0.0
    %3649 = vmatpush1.msra.mxu0 0.0
    %3650 = vmatprep.subr.mxu0 0.0
    %3651 = vmatpush1.msra.mxu0 0.0
    %3652 = vmatprep.subr.mxu0 0.0
    %3653 = vmatpush1.msra.mxu0 0.0
    %3654 = vmatprep.mubr.f32.mxu0 %v3588
    %3655 = vmatmul.mubr.f32.gmra.mrb[0].mxu0 %v3571
    %v3656 = vpop.f32.mrb[0].mxu0
    %v3657 = vadd.f32 0.0, %v3656
    %v3658 = vpop.f32.mrb[0].mxu0
    %v3659 = vadd.f32 0.0, %v3658
    %3660 = vdwg.mxu0
    %v3661 = vmul.f32 %v3657, 0.001953125
    %v3662 = vmul.f32 %v3659, 0.001953125
    %v3663 = vmul.f32 %v3549, %v3549
    %v3664 = vmul.f32 %v3550, %v3550
    %v3665 = vsub.f32 %v3661, %v3663
    %v3666 = vsub.f32 %v3662, %v3664
    %v3667 = vadd.f32 %v3665, 1e-05
    %v3668 = vadd.f32 %v3666, 1e-05
    %v3669 = vrsqrt.pop %v3667
    %v3670 = vrsqrt.pop %v3668
    %v3673 = vcombine.low %v3669, %v3670
    %v3675 = vunpack.c.l.s4 1966171168
    %v3676 = vunpack.c.0.s8 %v3675
    %v3677 = vlaneseq
    %v3678 = vshrl.u32 %v3677, 7
    %v3679 = vsub.s32 %v3676, %v3678
    %v3680 = vrot.slane %v3673, %v3679
    %v3682 = vunpack.c.l.s4 1966171168
    %v3683 = vunpack.c.0.s8 %v3682
    %v3684 = vlaneseq
    %v3685 = vshrl.u32 %v3684, 7
    %v3686 = vsub.s32 %v3683, %v3685
    %v3687 = vrot.slane %v3680, %v3686
    %v3689 = vmul.f32 %v2538, %v3687
    %v3691 = vlaneseq
    %v3692 = vshrl.u32 %v3691, 7
    %v3693 = vsub.s32 0, %v3692
    %v3694 = vrot.slane %v3689, %v3693
    %v3695 = vlaneseq
    %v3696 = vshrl.u32 %v3695, 7
    %v3697 = vsub.s32 1, %v3696
    %v3698 = vrot.slane %v3689, %v3697
    %v3701 = vmul.f32 %v3549, %v3694
    %v3702 = vmul.f32 %v3550, %v3698
    %v3705 = vcombine.low %v3701, %v3702
    %v3707 = vunpack.c.l.s4 1966171168
    %v3708 = vunpack.c.0.s8 %v3707
    %v3709 = vlaneseq
    %v3710 = vshrl.u32 %v3709, 7
    %v3711 = vsub.s32 %v3708, %v3710
    %v3712 = vrot.slane %v3705, %v3711
    %v3714 = vunpack.c.l.s4 1966171168
    %v3715 = vunpack.c.0.s8 %v3714
    %v3716 = vlaneseq
    %v3717 = vshrl.u32 %v3716, 7
    %v3718 = vsub.s32 %v3715, %v3717
    %v3719 = vrot.slane %v3712, %v3718
    %v3721 = vsub.f32 %v2539, %v3719
    %v3722 = vmul.f32 %v3401, %v3694
    %v3723 = vmul.f32 %v3402, %v3698
    %v3724 = vmul.f32 %v3403, %v3694
    %v3725 = vmul.f32 %v3404, %v3698
    %v3726 = vmul.f32 %v3405, %v3694
    %v3727 = vmul.f32 %v3406, %v3698
    %v3728 = vmul.f32 %v3407, %v3694
    %v3729 = vmul.f32 %v3408, %v3698
    %v3730 = vmul.f32 %v3409, %v3694
    %v3731 = vmul.f32 %v3410, %v3698
    %v3733 = vlaneseq
    %v3734 = vshrl.u32 %v3733, 7
    %v3735 = vsub.s32 0, %v3734
    %v3736 = vrot.slane %v3721, %v3735
    %v3737 = vlaneseq
    %v3738 = vshrl.u32 %v3737, 7
    %v3739 = vsub.s32 1, %v3738
    %v3740 = vrot.slane %v3721, %v3739
    %v3743 = vadd.f32 %v3722, %v3736
    %v3744 = vadd.f32 %v3723, %v3740
    %v3745 = vadd.f32 %v3724, %v3736
    %v3746 = vadd.f32 %v3725, %v3740
    %v3747 = vadd.f32 %v3726, %v3736
    %v3748 = vadd.f32 %v3727, %v3740
    %v3749 = vadd.f32 %v3728, %v3736
    %v3750 = vadd.f32 %v3729, %v3740
    %v3751 = vadd.f32 %v3730, %v3736
    %v3752 = vadd.f32 %v3731, %v3740
    %v3753 = vmax.f32 %v3743, 0.0
    %v3754 = vmax.f32 %v3744, 0.0
    %v3755 = vmax.f32 %v3745, 0.0
    %v3756 = vmax.f32 %v3746, 0.0
    %v3757 = vmax.f32 %v3747, 0.0
    %v3758 = vmax.f32 %v3748, 0.0
    %v3759 = vmax.f32 %v3749, 0.0
    %v3760 = vmax.f32 %v3750, 0.0
    %v3761 = vmax.f32 %v3751, 0.0
    %v3762 = vmax.f32 %v3752, 0.0
    %s3763 = smul.u32 8, 5
    %s3764 = smul.u32 %s3763, 2
    %s3765 = sshll.u32 %s3764, 4
    %3766 = dma.done %s208, %s3765
    %v3767 = vld [vmem:[#allocation5] sm:$0xff]
    %v3768 = vld [vmem:[#allocation5 + $0x8] sm:$0xff]
    %v3769 = vld [vmem:[#allocation5 + $0x10] sm:$0xff]
    %v3770 = vld [vmem:[#allocation5 + $0x18] sm:$0xff]
    %v3771 = vld [vmem:[#allocation5 + $0x20] sm:$0xff]
    %v3772 = vld [vmem:[#allocation5 + $0x28] sm:$0xff]
    %v3773 = vld [vmem:[#allocation5 + $0x30] sm:$0xff]
    %v3774 = vld [vmem:[#allocation5 + $0x38] sm:$0xff]
    %v3775 = vld [vmem:[#allocation5 + $0x40] sm:$0xf]
    %v3776 = vld [vmem:[#allocation5 + $0x48] sm:$0xf]
    %v3777 = vmul.f32 %v3753, %v3767
    %v3778 = vmul.f32 %v3754, %v3768
    %v3779 = vmul.f32 %v3755, %v3769
    %v3780 = vmul.f32 %v3756, %v3770
    %v3781 = vmul.f32 %v3757, %v3771
    %v3782 = vmul.f32 %v3758, %v3772
    %v3783 = vmul.f32 %v3759, %v3773
    %v3784 = vmul.f32 %v3760, %v3774
    %v3785 = vmul.f32 %v3761, %v3775
    %v3786 = vmul.f32 %v3762, %v3776
    %s3787 = smul.u32 %s2526, 18
    %s3788 = smul.u32 %s3787, 2
    %s3789 = sshll.u32 %s3788, 4
    %3790 = dma.done %s220, %s3789
    %s3791 = smul.u32 8, 20
    %s3792 = smul.u32 %s3791, 2
    %s3793 = sshll.u32 %s3792, 4
    %3794 = dma.done %s549, %s3793
    %v3795 = vld [vmem:[%s33] sm:$0x3]
    %v3796 = vld [vmem:[%s35] sm:$0x3]
    %v3797 = vld [vmem:[#allocation20] sm:$0xff]
    %v3798 = vld [vmem:[#allocation20 + $0x8] sm:$0xff]
    %v3799 = vld [vmem:[#allocation20 + $0x10] sm:$0xff]
    %v3800 = vld [vmem:[#allocation20 + $0x18] sm:$0xff]
    %v3801 = vld [vmem:[#allocation20 + $0x20] sm:$0xff]
    %v3802 = vld [vmem:[#allocation20 + $0x28] sm:$0xff]
    %v3803 = vld [vmem:[#allocation20 + $0x30] sm:$0xff]
    %v3804 = vld [vmem:[#allocation20 + $0x38] sm:$0xff]
    %v3805 = vld [vmem:[#allocation20 + $0x40] sm:$0xff]
    %v3806 = vld [vmem:[#allocation20 + $0x48] sm:$0xff]
    %v3807 = vld [vmem:[#allocation20 + $0x50] sm:$0xff]
    %v3808 = vld [vmem:[#allocation20 + $0x58] sm:$0xff]
    %vm3809 = vcmask 293888
    %v3811 = vsel %vm3809, %v3797, 0
    %v3814 = vsel %vm3809, %v3798, 0
    %v3817 = vsel %vm3809, %v3799, 0
    %v3820 = vsel %vm3809, %v3800, 0
    %v3823 = vsel %vm3809, %v3801, 0
    %v3826 = vsel %vm3809, %v3802, 0
    %v3829 = vsel %vm3809, %v3803, 0
    %v3832 = vsel %vm3809, %v3804, 0
    %v3835 = vsel %vm3809, %v3805, 0
    %v3838 = vsel %vm3809, %v3806, 0
    %v3841 = vsel %vm3809, %v3807, 0
    %v3844 = vsel %vm3809, %v3808, 0
    %v3847 = vsel %vm947, %v3785, 0
    %v3850 = vsel %vm947, %v3786, 0
    %3852 = vmatprep.subr.mxu0 %v3778
    %3853 = vmatpush1.msra.mxu0 %v3777
    %3854 = vmatprep.subr.mxu0 %v3780
    %3855 = vmatpush1.msra.mxu0 %v3779
    %3856 = vmatprep.subr.mxu0 %v3782
    %3857 = vmatpush1.msra.mxu0 %v3781
    %3858 = vmatprep.subr.mxu0 %v3784
    %3859 = vmatpush1.msra.mxu0 %v3783
    %3860 = vmatprep.subr.mxu0 %v3850
    %3861 = vmatpush1.msra.mxu0 %v3847
    %3862 = vmatprep.subr.mxu0 0.0
    %3863 = vmatpush1.msra.mxu0 0.0
    %3864 = vmatprep.subr.mxu0 0.0
    %3865 = vmatpush1.msra.mxu0 0.0
    %3866 = vmatprep.subr.mxu0 0.0
    %3867 = vmatpush1.msra.mxu0 0.0
    %3868 = vmatprep.subr.mxu0 0.0
    %3869 = vmatpush1.msra.mxu0 0.0
    %3870 = vmatprep.subr.mxu0 0.0
    %3871 = vmatpush1.msra.mxu0 0.0
    %3872 = vmatprep.subr.mxu0 0.0
    %3873 = vmatpush1.msra.mxu0 0.0
    %3874 = vmatprep.subr.mxu0 0.0
    %3875 = vmatpush1.msra.mxu0 0.0
    %3876 = vmatprep.subr.mxu0 0.0
    %3877 = vmatpush1.msra.mxu0 0.0
    %3878 = vmatprep.subr.mxu0 0.0
    %3879 = vmatpush1.msra.mxu0 0.0
    %3880 = vmatprep.subr.mxu0 0.0
    %3881 = vmatpush1.msra.mxu0 0.0
    %3882 = vmatprep.subr.mxu0 0.0
    %3883 = vmatpush1.msra.mxu0 0.0
    %3884 = vmatprep.subr.mxu0 0.0
    %3885 = vmatpush1.msra.mxu0 0.0
    %3886 = vmatprep.subr.mxu0 0.0
    %3887 = vmatpush1.msra.mxu0 0.0
    %3888 = vmatprep.subr.mxu0 0.0
    %3889 = vmatpush1.msra.mxu0 0.0
    %3890 = vmatprep.subr.mxu0 0.0
    %3891 = vmatpush1.msra.mxu0 0.0
    %3892 = vmatprep.subr.mxu0 0.0
    %3893 = vmatpush1.msra.mxu0 0.0
    %3894 = vmatprep.subr.mxu0 0.0
    %3895 = vmatpush1.msra.mxu0 0.0
    %3896 = vmatprep.subr.mxu0 0.0
    %3897 = vmatpush1.msra.mxu0 0.0
    %3898 = vmatprep.subr.mxu0 0.0
    %3899 = vmatpush1.msra.mxu0 0.0
    %3900 = vmatprep.subr.mxu0 0.0
    %3901 = vmatpush1.msra.mxu0 0.0
    %3902 = vmatprep.subr.mxu0 0.0
    %3903 = vmatpush1.msra.mxu0 0.0
    %3904 = vmatprep.subr.mxu0 0.0
    %3905 = vmatpush1.msra.mxu0 0.0
    %3906 = vmatprep.subr.mxu0 0.0
    %3907 = vmatpush1.msra.mxu0 0.0
    %3908 = vmatprep.subr.mxu0 0.0
    %3909 = vmatpush1.msra.mxu0 0.0
    %3910 = vmatprep.subr.mxu0 0.0
    %3911 = vmatpush1.msra.mxu0 0.0
    %3912 = vmatprep.subr.mxu0 0.0
    %3913 = vmatpush1.msra.mxu0 0.0
    %3914 = vmatprep.subr.mxu0 0.0
    %3915 = vmatpush1.msra.mxu0 0.0
    %3916 = vmatprep.mubr.f32.mxu0 0.0
    %3917 = vmatmul.mubr.f32.gmra.mrb[0].mxu0 %v3811
    %v3918 = vpop.f32.mrb[0].mxu0
    %v3919 = vadd.f32 0.0, %v3918
    %v3920 = vpop.f32.mrb[0].mxu0
    %v3921 = vadd.f32 0.0, %v3920
    %3922 = vmatprep.mubr.f32.mxu0 0.0
    %3923 = vmatmul.mubr.f32.gmra.mrb[0].mxu0 %v3814
    %v3924 = vpop.f32.mrb[0].mxu0
    %v3925 = vadd.f32 0.0, %v3924
    %v3926 = vpop.f32.mrb[0].mxu0
    %v3927 = vadd.f32 0.0, %v3926
    %3928 = vmatprep.mubr.f32.mxu0 0.0
    %3929 = vmatmul.mubr.f32.gmra.mrb[0].mxu0 %v3817
    %v3930 = vpop.f32.mrb[0].mxu0
    %v3931 = vadd.f32 0.0, %v3930
    %v3932 = vpop.f32.mrb[0].mxu0
    %v3933 = vadd.f32 0.0, %v3932
    %3934 = vmatprep.mubr.f32.mxu0 0.0
    %3935 = vmatmul.mubr.f32.gmra.mrb[0].mxu0 %v3820
    %v3936 = vpop.f32.mrb[0].mxu0
    %v3937 = vadd.f32 0.0, %v3936
    %v3938 = vpop.f32.mrb[0].mxu0
    %v3939 = vadd.f32 0.0, %v3938
    %3940 = vmatprep.mubr.f32.mxu0 0.0
    %3941 = vmatmul.mubr.f32.gmra.mrb[0].mxu0 %v3823
    %v3942 = vpop.f32.mrb[0].mxu0
    %v3943 = vadd.f32 0.0, %v3942
    %v3944 = vpop.f32.mrb[0].mxu0
    %v3945 = vadd.f32 0.0, %v3944
    %3946 = vmatprep.mubr.f32.mxu0 0.0
    %3947 = vmatmul.mubr.f32.gmra.mrb[0].mxu0 %v3826
    %v3948 = vpop.f32.mrb[0].mxu0
    %v3949 = vadd.f32 0.0, %v3948
    %v3950 = vpop.f32.mrb[0].mxu0
    %v3951 = vadd.f32 0.0, %v3950
    %3952 = vmatprep.mubr.f32.mxu0 0.0
    %3953 = vmatmul.mubr.f32.gmra.mrb[0].mxu0 %v3829
    %v3954 = vpop.f32.mrb[0].mxu0
    %v3955 = vadd.f32 0.0, %v3954
    %v3956 = vpop.f32.mrb[0].mxu0
    %v3957 = vadd.f32 0.0, %v3956
    %3958 = vmatprep.mubr.f32.mxu0 0.0
    %3959 = vmatmul.mubr.f32.gmra.mrb[0].mxu0 %v3832
    %v3960 = vpop.f32.mrb[0].mxu0
    %v3961 = vadd.f32 0.0, %v3960
    %v3962 = vpop.f32.mrb[0].mxu0
    %v3963 = vadd.f32 0.0, %v3962
    %3964 = vmatprep.mubr.f32.mxu0 0.0
    %3965 = vmatmul.mubr.f32.gmra.mrb[0].mxu0 %v3835
    %v3966 = vpop.f32.mrb[0].mxu0
    %v3967 = vadd.f32 0.0, %v3966
    %v3968 = vpop.f32.mrb[0].mxu0
    %v3969 = vadd.f32 0.0, %v3968
    %3970 = vmatprep.mubr.f32.mxu0 0.0
    %3971 = vmatmul.mubr.f32.gmra.mrb[0].mxu0 %v3838
    %v3972 = vpop.f32.mrb[0].mxu0
    %v3973 = vadd.f32 0.0, %v3972
    %v3974 = vpop.f32.mrb[0].mxu0
    %v3975 = vadd.f32 0.0, %v3974
    %3976 = vmatprep.mubr.f32.mxu0 0.0
    %3977 = vmatmul.mubr.f32.gmra.mrb[0].mxu0 %v3841
    %v3978 = vpop.f32.mrb[0].mxu0
    %v3979 = vadd.f32 0.0, %v3978
    %v3980 = vpop.f32.mrb[0].mxu0
    %v3981 = vadd.f32 0.0, %v3980
    %3982 = vmatprep.mubr.f32.mxu0 0.0
    %3983 = vmatmul.mubr.f32.gmra.mrb[0].mxu0 %v3844
    %v3984 = vpop.f32.mrb[0].mxu0
    %v3985 = vadd.f32 0.0, %v3984
    %v3986 = vpop.f32.mrb[0].mxu0
    %v3987 = vadd.f32 0.0, %v3986
    %3988 = vdwg.mxu0
    %v3989 = vld [vmem:[#allocation6] sm:$0xff]
    %v3990 = vld [vmem:[#allocation6 + $0x8] sm:$0xff]
    %v3991 = vld [vmem:[#allocation6 + $0x10] sm:$0xff]
    %v3992 = vld [vmem:[#allocation6 + $0x18] sm:$0xff]
    %v3993 = vld [vmem:[#allocation6 + $0x20] sm:$0xff]
    %v3994 = vld [vmem:[#allocation6 + $0x28] sm:$0xff]
    %v3995 = vld [vmem:[#allocation6 + $0x30] sm:$0xff]
    %v3996 = vld [vmem:[#allocation6 + $0x38] sm:$0xff]
    %v3997 = vld [vmem:[#allocation6 + $0x40] sm:$0xff]
    %v3998 = vld [vmem:[#allocation6 + $0x48] sm:$0xff]
    %v3999 = vld [vmem:[#allocation6 + $0x50] sm:$0xff]
    %v4000 = vld [vmem:[#allocation6 + $0x58] sm:$0xff]
    %v4001 = vld [vmem:[#allocation6 + $0x60] sm:$0xff]
    %v4002 = vld [vmem:[#allocation6 + $0x68] sm:$0xff]
    %v4003 = vld [vmem:[#allocation6 + $0x70] sm:$0xff]
    %v4004 = vld [vmem:[#allocation6 + $0x78] sm:$0xff]
    %v4005 = vld [vmem:[#allocation6 + $0x80] sm:$0xff]
    %v4006 = vld [vmem:[#allocation6 + $0x88] sm:$0xff]
    %v4007 = vld [vmem:[#allocation6 + $0x90] sm:$0xff]
    %v4008 = vld [vmem:[#allocation6 + $0x98] sm:$0xff]
    %v4009 = vld [vmem:[#allocation6 + $0xa0] sm:$0xff]
    %v4010 = vld [vmem:[#allocation6 + $0xa8] sm:$0xff]
    %v4011 = vld [vmem:[#allocation6 + $0xb0] sm:$0xff]
    %v4012 = vld [vmem:[#allocation6 + $0xb8] sm:$0xff]
    %v4013 = vld [vmem:[#allocation6 + $0xc0] sm:$0xff]
    %v4014 = vld [vmem:[#allocation6 + $0xc8] sm:$0xff]
    %v4015 = vld [vmem:[#allocation6 + $0xd0] sm:$0xff]
    %v4016 = vld [vmem:[#allocation6 + $0xd8] sm:$0xff]
    %v4017 = vld [vmem:[#allocation6 + $0xe0] sm:$0xff]
    %v4018 = vld [vmem:[#allocation6 + $0xe8] sm:$0xff]
    %v4019 = vld [vmem:[#allocation6 + $0xf0] sm:$0xff]
    %v4020 = vld [vmem:[#allocation6 + $0xf8] sm:$0xff]
    %v4021 = vld [vmem:[#allocation6 + $0x100] sm:$0xff]
    %v4022 = vld [vmem:[#allocation6 + $0x108] sm:$0xff]
    %v4023 = vld [vmem:[#allocation6 + $0x110] sm:$0xff]
    %v4024 = vld [vmem:[#allocation6 + $0x118] sm:$0xff]
    %s4025 = scalar_lea.vmem [#allocation6], 288
    %v4026 = vld [vmem:[%s4025] sm:$0xff]
    %v4027 = vld [vmem:[%s4025 + $0x8] sm:$0xff]
    %v4028 = vld [vmem:[%s4025 + $0x10] sm:$0xff]
    %v4029 = vld [vmem:[%s4025 + $0x18] sm:$0xff]
    %v4030 = vld [vmem:[%s4025 + $0x20] sm:$0xff]
    %v4031 = vld [vmem:[%s4025 + $0x28] sm:$0xff]
    %v4032 = vld [vmem:[%s4025 + $0x30] sm:$0xff]
    %v4033 = vld [vmem:[%s4025 + $0x38] sm:$0xff]
    %v4034 = vld [vmem:[%s4025 + $0x40] sm:$0xff]
    %v4035 = vld [vmem:[%s4025 + $0x48] sm:$0xff]
    %v4036 = vld [vmem:[%s4025 + $0x50] sm:$0xff]
    %v4037 = vld [vmem:[%s4025 + $0x58] sm:$0xff]
    %v4038 = vld [vmem:[%s4025 + $0x60] sm:$0xff]
    %v4039 = vld [vmem:[%s4025 + $0x68] sm:$0xff]
    %v4040 = vld [vmem:[%s4025 + $0x70] sm:$0xff]
    %v4041 = vld [vmem:[%s4025 + $0x78] sm:$0xff]
    %v4042 = vld [vmem:[%s4025 + $0x80] sm:$0xff]
    %v4043 = vld [vmem:[%s4025 + $0x88] sm:$0xff]
    %v4044 = vld [vmem:[%s4025 + $0x90] sm:$0xff]
    %v4045 = vld [vmem:[%s4025 + $0x98] sm:$0xff]
    %v4046 = vld [vmem:[%s4025 + $0xa0] sm:$0xff]
    %v4047 = vld [vmem:[%s4025 + $0xa8] sm:$0xff]
    %v4048 = vld [vmem:[%s4025 + $0xb0] sm:$0xff]
    %v4049 = vld [vmem:[%s4025 + $0xb8] sm:$0xff]
    %v4050 = vld [vmem:[%s4025 + $0xc0] sm:$0xff]
    %v4051 = vld [vmem:[%s4025 + $0xc8] sm:$0xff]
    %v4052 = vld [vmem:[%s4025 + $0xd0] sm:$0xff]
    %v4053 = vld [vmem:[%s4025 + $0xd8] sm:$0xff]
    %v4054 = vld [vmem:[%s4025 + $0xe0] sm:$0xff]
    %v4055 = vld [vmem:[%s4025 + $0xe8] sm:$0xff]
    %v4056 = vld [vmem:[%s4025 + $0xf0] sm:$0xff]
    %v4057 = vld [vmem:[%s4025 + $0xf8] sm:$0xff]
    %v4058 = vld [vmem:[%s4025 + $0x100] sm:$0xff]
    %v4059 = vld [vmem:[%s4025 + $0x108] sm:$0xff]
    %v4060 = vld [vmem:[%s4025 + $0x110] sm:$0xff]
    %v4061 = vld [vmem:[%s4025 + $0x118] sm:$0xff]
    %v4063 = vsel %vm3458, %v3939, 0
    %v4066 = vsel %vm3458, %v3945, 0
    %v4069 = vsel %vm3458, %v3951, 0
    %4071 = vmatprep.subr.mxu0 %v4027
    %4072 = vmatpush1.msra.mxu0 %v4026
    %4073 = vmatprep.subr.mxu0 %v4029
    %4074 = vmatpush1.msra.mxu0 %v4028
    %4075 = vmatprep.subr.mxu0 %v4031
    %4076 = vmatpush1.msra.mxu0 %v4030
    %4077 = vmatprep.subr.mxu0 %v4033
    %4078 = vmatpush1.msra.mxu0 %v4032
    %4079 = vmatprep.subr.mxu0 %v4035
    %4080 = vmatpush1.msra.mxu0 %v4034
    %4081 = vmatprep.subr.mxu0 %v4037
    %4082 = vmatpush1.msra.mxu0 %v4036
    %4083 = vmatprep.subr.mxu0 %v4039
    %4084 = vmatpush1.msra.mxu0 %v4038
    %4085 = vmatprep.subr.mxu0 %v4041
    %4086 = vmatpush1.msra.mxu0 %v4040
    %4087 = vmatprep.subr.mxu0 %v4043
    %4088 = vmatpush1.msra.mxu0 %v4042
    %4089 = vmatprep.subr.mxu0 %v4045
    %4090 = vmatpush1.msra.mxu0 %v4044
    %4091 = vmatprep.subr.mxu0 %v4047
    %4092 = vmatpush1.msra.mxu0 %v4046
    %4093 = vmatprep.subr.mxu0 %v4049
    %4094 = vmatpush1.msra.mxu0 %v4048
    %4095 = vmatprep.subr.mxu0 %v4051
    %4096 = vmatpush1.msra.mxu0 %v4050
    %4097 = vmatprep.subr.mxu0 %v4053
    %4098 = vmatpush1.msra.mxu0 %v4052
    %4099 = vmatprep.subr.mxu0 %v4055
    %4100 = vmatpush1.msra.mxu0 %v4054
    %4101 = vmatprep.subr.mxu0 %v4057
    %4102 = vmatpush1.msra.mxu0 %v4056
    %4103 = vmatprep.subr.mxu0 %v4059
    %4104 = vmatpush1.msra.mxu0 %v4058
    %4105 = vmatprep.subr.mxu0 %v4061
    %4106 = vmatpush1.msra.mxu0 %v4060
    %4107 = vmatprep.subr.mxu0 0.0
    %4108 = vmatpush1.msra.mxu0 0.0
    %4109 = vmatprep.subr.mxu0 0.0
    %4110 = vmatpush1.msra.mxu0 0.0
    %4111 = vmatprep.subr.mxu0 0.0
    %4112 = vmatpush1.msra.mxu0 0.0
    %4113 = vmatprep.subr.mxu0 0.0
    %4114 = vmatpush1.msra.mxu0 0.0
    %4115 = vmatprep.subr.mxu0 0.0
    %4116 = vmatpush1.msra.mxu0 0.0
    %4117 = vmatprep.subr.mxu0 0.0
    %4118 = vmatpush1.msra.mxu0 0.0
    %4119 = vmatprep.subr.mxu0 0.0
    %4120 = vmatpush1.msra.mxu0 0.0
    %4121 = vmatprep.subr.mxu0 0.0
    %4122 = vmatpush1.msra.mxu0 0.0
    %4123 = vmatprep.subr.mxu0 0.0
    %4124 = vmatpush1.msra.mxu0 0.0
    %4125 = vmatprep.subr.mxu0 0.0
    %4126 = vmatpush1.msra.mxu0 0.0
    %4127 = vmatprep.subr.mxu0 0.0
    %4128 = vmatpush1.msra.mxu0 0.0
    %4129 = vmatprep.subr.mxu0 0.0
    %4130 = vmatpush1.msra.mxu0 0.0
    %4131 = vmatprep.subr.mxu0 0.0
    %4132 = vmatpush1.msra.mxu0 0.0
    %4133 = vmatprep.subr.mxu0 0.0
    %4134 = vmatpush1.msra.mxu0 0.0
    %4135 = vmatprep.mubr.f32.mxu0 %v4063
    %4136 = vmatmul.mubr.f32.gmra.mrb[0].mxu0 %v3937
    %v4137 = vpop.f32.mrb[0].mxu0
    %v4138 = vadd.f32 0.0, %v4137
    %v4139 = vpop.f32.mrb[0].mxu0
    %v4140 = vadd.f32 0.0, %v4139
    %4141 = vmatprep.mubr.f32.mxu0 %v4066
    %4142 = vmatmul.mubr.f32.gmra.mrb[0].mxu0 %v3943
    %v4143 = vpop.f32.mrb[0].mxu0
    %v4144 = vadd.f32 0.0, %v4143
    %v4145 = vpop.f32.mrb[0].mxu0
    %v4146 = vadd.f32 0.0, %v4145
    %4147 = vmatprep.mubr.f32.mxu0 %v4069
    %4148 = vmatmul.mubr.f32.gmra.mrb[0].mxu0 %v3949
    %v4149 = vpop.f32.mrb[0].mxu0
    %v4150 = vadd.f32 0.0, %v4149
    %v4151 = vpop.f32.mrb[0].mxu0
    %v4152 = vadd.f32 0.0, %v4151
    %4153 = vdwg.mxu0
    %v4155 = vsel %vm3458, %v3921, 0
    %v4158 = vsel %vm3458, %v3927, 0
    %v4161 = vsel %vm3458, %v3933, 0
    %4163 = vmatprep.subr.mxu0 %v3990
    %4164 = vmatpush1.msra.mxu0 %v3989
    %4165 = vmatprep.subr.mxu0 %v3992
    %4166 = vmatpush1.msra.mxu0 %v3991
    %4167 = vmatprep.subr.mxu0 %v3994
    %4168 = vmatpush1.msra.mxu0 %v3993
    %4169 = vmatprep.subr.mxu0 %v3996
    %4170 = vmatpush1.msra.mxu0 %v3995
    %4171 = vmatprep.subr.mxu0 %v3998
    %4172 = vmatpush1.msra.mxu0 %v3997
    %4173 = vmatprep.subr.mxu0 %v4000
    %4174 = vmatpush1.msra.mxu0 %v3999
    %4175 = vmatprep.subr.mxu0 %v4002
    %4176 = vmatpush1.msra.mxu0 %v4001
    %4177 = vmatprep.subr.mxu0 %v4004
    %4178 = vmatpush1.msra.mxu0 %v4003
    %4179 = vmatprep.subr.mxu0 %v4006
    %4180 = vmatpush1.msra.mxu0 %v4005
    %4181 = vmatprep.subr.mxu0 %v4008
    %4182 = vmatpush1.msra.mxu0 %v4007
    %4183 = vmatprep.subr.mxu0 %v4010
    %4184 = vmatpush1.msra.mxu0 %v4009
    %4185 = vmatprep.subr.mxu0 %v4012
    %4186 = vmatpush1.msra.mxu0 %v4011
    %4187 = vmatprep.subr.mxu0 %v4014
    %4188 = vmatpush1.msra.mxu0 %v4013
    %4189 = vmatprep.subr.mxu0 %v4016
    %4190 = vmatpush1.msra.mxu0 %v4015
    %4191 = vmatprep.subr.mxu0 %v4018
    %4192 = vmatpush1.msra.mxu0 %v4017
    %4193 = vmatprep.subr.mxu0 %v4020
    %4194 = vmatpush1.msra.mxu0 %v4019
    %4195 = vmatprep.subr.mxu0 %v4022
    %4196 = vmatpush1.msra.mxu0 %v4021
    %4197 = vmatprep.subr.mxu0 %v4024
    %4198 = vmatpush1.msra.mxu0 %v4023
    %4199 = vmatprep.subr.mxu0 0.0
    %4200 = vmatpush1.msra.mxu0 0.0
    %4201 = vmatprep.subr.mxu0 0.0
    %4202 = vmatpush1.msra.mxu0 0.0
    %4203 = vmatprep.subr.mxu0 0.0
    %4204 = vmatpush1.msra.mxu0 0.0
    %4205 = vmatprep.subr.mxu0 0.0
    %4206 = vmatpush1.msra.mxu0 0.0
    %4207 = vmatprep.subr.mxu0 0.0
    %4208 = vmatpush1.msra.mxu0 0.0
    %4209 = vmatprep.subr.mxu0 0.0
    %4210 = vmatpush1.msra.mxu0 0.0
    %4211 = vmatprep.subr.mxu0 0.0
    %4212 = vmatpush1.msra.mxu0 0.0
    %4213 = vmatprep.subr.mxu0 0.0
    %4214 = vmatpush1.msra.mxu0 0.0
    %4215 = vmatprep.subr.mxu0 0.0
    %4216 = vmatpush1.msra.mxu0 0.0
    %4217 = vmatprep.subr.mxu0 0.0
    %4218 = vmatpush1.msra.mxu0 0.0
    %4219 = vmatprep.subr.mxu0 0.0
    %4220 = vmatpush1.msra.mxu0 0.0
    %4221 = vmatprep.subr.mxu0 0.0
    %4222 = vmatpush1.msra.mxu0 0.0
    %4223 = vmatprep.subr.mxu0 0.0
    %4224 = vmatpush1.msra.mxu0 0.0
    %4225 = vmatprep.subr.mxu0 0.0
    %4226 = vmatpush1.msra.mxu0 0.0
    %4227 = vmatprep.mubr.f32.mxu0 %v4155
    %4228 = vmatmul.mubr.f32.gmra.mrb[0].mxu0 %v3919
    %v4229 = vpop.f32.mrb[0].mxu0
    %v4230 = vadd.f32 %v4138, %v4229
    %v4231 = vpop.f32.mrb[0].mxu0
    %v4232 = vadd.f32 %v4140, %v4231
    %4233 = vmatprep.mubr.f32.mxu0 %v4158
    %4234 = vmatmul.mubr.f32.gmra.mrb[0].mxu0 %v3925
    %v4235 = vpop.f32.mrb[0].mxu0
    %v4236 = vadd.f32 %v4144, %v4235
    %v4237 = vpop.f32.mrb[0].mxu0
    %v4238 = vadd.f32 %v4146, %v4237
    %4239 = vmatprep.mubr.f32.mxu0 %v4161
    %4240 = vmatmul.mubr.f32.gmra.mrb[0].mxu0 %v3931
    %v4241 = vpop.f32.mrb[0].mxu0
    %v4242 = vadd.f32 %v4150, %v4241
    %v4243 = vpop.f32.mrb[0].mxu0
    %v4244 = vadd.f32 %v4152, %v4243
    %4245 = vdwg.mxu0
    %s4246 = scalar_lea.vmem [#allocation6], 576
    %v4247 = vld [vmem:[%s4246] sm:$0xff]
    %v4248 = vld [vmem:[%s4246 + $0x8] sm:$0xff]
    %v4249 = vld [vmem:[%s4246 + $0x10] sm:$0xff]
    %v4250 = vld [vmem:[%s4246 + $0x18] sm:$0xff]
    %v4251 = vld [vmem:[%s4246 + $0x20] sm:$0xff]
    %v4252 = vld [vmem:[%s4246 + $0x28] sm:$0xff]
    %v4253 = vld [vmem:[%s4246 + $0x30] sm:$0xff]
    %v4254 = vld [vmem:[%s4246 + $0x38] sm:$0xff]
    %v4255 = vld [vmem:[%s4246 + $0x40] sm:$0xff]
    %v4256 = vld [vmem:[%s4246 + $0x48] sm:$0xff]
    %v4257 = vld [vmem:[%s4246 + $0x50] sm:$0xff]
    %v4258 = vld [vmem:[%s4246 + $0x58] sm:$0xff]
    %v4259 = vld [vmem:[%s4246 + $0x60] sm:$0xff]
    %v4260 = vld [vmem:[%s4246 + $0x68] sm:$0xff]
    %v4261 = vld [vmem:[%s4246 + $0x70] sm:$0xff]
    %v4262 = vld [vmem:[%s4246 + $0x78] sm:$0xff]
    %v4263 = vld [vmem:[%s4246 + $0x80] sm:$0xff]
    %v4264 = vld [vmem:[%s4246 + $0x88] sm:$0xff]
    %v4265 = vld [vmem:[%s4246 + $0x90] sm:$0xff]
    %v4266 = vld [vmem:[%s4246 + $0x98] sm:$0xff]
    %v4267 = vld [vmem:[%s4246 + $0xa0] sm:$0xff]
    %v4268 = vld [vmem:[%s4246 + $0xa8] sm:$0xff]
    %v4269 = vld [vmem:[%s4246 + $0xb0] sm:$0xff]
    %v4270 = vld [vmem:[%s4246 + $0xb8] sm:$0xff]
    %v4271 = vld [vmem:[%s4246 + $0xc0] sm:$0xff]
    %v4272 = vld [vmem:[%s4246 + $0xc8] sm:$0xff]
    %v4273 = vld [vmem:[%s4246 + $0xd0] sm:$0xff]
    %v4274 = vld [vmem:[%s4246 + $0xd8] sm:$0xff]
    %v4275 = vld [vmem:[%s4246 + $0xe0] sm:$0xff]
    %v4276 = vld [vmem:[%s4246 + $0xe8] sm:$0xff]
    %v4277 = vld [vmem:[%s4246 + $0xf0] sm:$0xff]
    %v4278 = vld [vmem:[%s4246 + $0xf8] sm:$0xff]
    %v4279 = vld [vmem:[%s4246 + $0x100] sm:$0xff]
    %v4280 = vld [vmem:[%s4246 + $0x108] sm:$0xff]
    %v4281 = vld [vmem:[%s4246 + $0x110] sm:$0xff]
    %v4282 = vld [vmem:[%s4246 + $0x118] sm:$0xff]
    %v4284 = vsel %vm3458, %v3957, 0
    %v4287 = vsel %vm3458, %v3963, 0
    %v4290 = vsel %vm3458, %v3969, 0
    %4292 = vmatprep.subr.mxu0 %v4248
    %4293 = vmatpush1.msra.mxu0 %v4247
    %4294 = vmatprep.subr.mxu0 %v4250
    %4295 = vmatpush1.msra.mxu0 %v4249
    %4296 = vmatprep.subr.mxu0 %v4252
    %4297 = vmatpush1.msra.mxu0 %v4251
    %4298 = vmatprep.subr.mxu0 %v4254
    %4299 = vmatpush1.msra.mxu0 %v4253
    %4300 = vmatprep.subr.mxu0 %v4256
    %4301 = vmatpush1.msra.mxu0 %v4255
    %4302 = vmatprep.subr.mxu0 %v4258
    %4303 = vmatpush1.msra.mxu0 %v4257
    %4304 = vmatprep.subr.mxu0 %v4260
    %4305 = vmatpush1.msra.mxu0 %v4259
    %4306 = vmatprep.subr.mxu0 %v4262
    %4307 = vmatpush1.msra.mxu0 %v4261
    %4308 = vmatprep.subr.mxu0 %v4264
    %4309 = vmatpush1.msra.mxu0 %v4263
    %4310 = vmatprep.subr.mxu0 %v4266
    %4311 = vmatpush1.msra.mxu0 %v4265
    %4312 = vmatprep.subr.mxu0 %v4268
    %4313 = vmatpush1.msra.mxu0 %v4267
    %4314 = vmatprep.subr.mxu0 %v4270
    %4315 = vmatpush1.msra.mxu0 %v4269
    %4316 = vmatprep.subr.mxu0 %v4272
    %4317 = vmatpush1.msra.mxu0 %v4271
    %4318 = vmatprep.subr.mxu0 %v4274
    %4319 = vmatpush1.msra.mxu0 %v4273
    %4320 = vmatprep.subr.mxu0 %v4276
    %4321 = vmatpush1.msra.mxu0 %v4275
    %4322 = vmatprep.subr.mxu0 %v4278
    %4323 = vmatpush1.msra.mxu0 %v4277
    %4324 = vmatprep.subr.mxu0 %v4280
    %4325 = vmatpush1.msra.mxu0 %v4279
    %4326 = vmatprep.subr.mxu0 %v4282
    %4327 = vmatpush1.msra.mxu0 %v4281
    %4328 = vmatprep.subr.mxu0 0.0
    %4329 = vmatpush1.msra.mxu0 0.0
    %4330 = vmatprep.subr.mxu0 0.0
    %4331 = vmatpush1.msra.mxu0 0.0
    %4332 = vmatprep.subr.mxu0 0.0
    %4333 = vmatpush1.msra.mxu0 0.0
    %4334 = vmatprep.subr.mxu0 0.0
    %4335 = vmatpush1.msra.mxu0 0.0
    %4336 = vmatprep.subr.mxu0 0.0
    %4337 = vmatpush1.msra.mxu0 0.0
    %4338 = vmatprep.subr.mxu0 0.0
    %4339 = vmatpush1.msra.mxu0 0.0
    %4340 = vmatprep.subr.mxu0 0.0
    %4341 = vmatpush1.msra.mxu0 0.0
    %4342 = vmatprep.subr.mxu0 0.0
    %4343 = vmatpush1.msra.mxu0 0.0
    %4344 = vmatprep.subr.mxu0 0.0
    %4345 = vmatpush1.msra.mxu0 0.0
    %4346 = vmatprep.subr.mxu0 0.0
    %4347 = vmatpush1.msra.mxu0 0.0
    %4348 = vmatprep.subr.mxu0 0.0
    %4349 = vmatpush1.msra.mxu0 0.0
    %4350 = vmatprep.subr.mxu0 0.0
    %4351 = vmatpush1.msra.mxu0 0.0
    %4352 = vmatprep.subr.mxu0 0.0
    %4353 = vmatpush1.msra.mxu0 0.0
    %4354 = vmatprep.subr.mxu0 0.0
    %4355 = vmatpush1.msra.mxu0 0.0
    %4356 = vmatprep.mubr.f32.mxu0 %v4284
    %4357 = vmatmul.mubr.f32.gmra.mrb[0].mxu0 %v3955
    %v4358 = vpop.f32.mrb[0].mxu0
    %v4359 = vadd.f32 0.0, %v4358
    %v4360 = vpop.f32.mrb[0].mxu0
    %v4361 = vadd.f32 0.0, %v4360
    %4362 = vmatprep.mubr.f32.mxu0 %v4287
    %4363 = vmatmul.mubr.f32.gmra.mrb[0].mxu0 %v3961
    %v4364 = vpop.f32.mrb[0].mxu0
    %v4365 = vadd.f32 0.0, %v4364
    %v4366 = vpop.f32.mrb[0].mxu0
    %v4367 = vadd.f32 0.0, %v4366
    %4368 = vmatprep.mubr.f32.mxu0 %v4290
    %4369 = vmatmul.mubr.f32.gmra.mrb[0].mxu0 %v3967
    %v4370 = vpop.f32.mrb[0].mxu0
    %v4371 = vadd.f32 0.0, %v4370
    %v4372 = vpop.f32.mrb[0].mxu0
    %v4373 = vadd.f32 0.0, %v4372
    %4374 = vdwg.mxu0
    %v4375 = vadd.f32 %v4230, %v4359
    %v4376 = vadd.f32 %v4232, %v4361
    %v4377 = vadd.f32 %v4236, %v4365
    %v4378 = vadd.f32 %v4238, %v4367
    %v4379 = vadd.f32 %v4242, %v4371
    %v4380 = vadd.f32 %v4244, %v4373
    %s4381 = scalar_lea.vmem [#allocation6], 864
    %v4382 = vld [vmem:[%s4381] sm:$0xff]
    %v4383 = vld [vmem:[%s4381 + $0x8] sm:$0xff]
    %v4384 = vld [vmem:[%s4381 + $0x10] sm:$0xff]
    %v4385 = vld [vmem:[%s4381 + $0x18] sm:$0xff]
    %v4386 = vld [vmem:[%s4381 + $0x20] sm:$0xff]
    %v4387 = vld [vmem:[%s4381 + $0x28] sm:$0xff]
    %v4388 = vld [vmem:[%s4381 + $0x30] sm:$0xff]
    %v4389 = vld [vmem:[%s4381 + $0x38] sm:$0xff]
    %v4390 = vld [vmem:[%s4381 + $0x40] sm:$0xff]
    %v4391 = vld [vmem:[%s4381 + $0x48] sm:$0xff]
    %v4392 = vld [vmem:[%s4381 + $0x50] sm:$0xff]
    %v4393 = vld [vmem:[%s4381 + $0x58] sm:$0xff]
    %v4394 = vld [vmem:[%s4381 + $0x60] sm:$0xff]
    %v4395 = vld [vmem:[%s4381 + $0x68] sm:$0xff]
    %v4396 = vld [vmem:[%s4381 + $0x70] sm:$0xff]
    %v4397 = vld [vmem:[%s4381 + $0x78] sm:$0xff]
    %v4398 = vld [vmem:[%s4381 + $0x80] sm:$0xff]
    %v4399 = vld [vmem:[%s4381 + $0x88] sm:$0xff]
    %v4400 = vld [vmem:[%s4381 + $0x90] sm:$0xff]
    %v4401 = vld [vmem:[%s4381 + $0x98] sm:$0xff]
    %v4402 = vld [vmem:[%s4381 + $0xa0] sm:$0xff]
    %v4403 = vld [vmem:[%s4381 + $0xa8] sm:$0xff]
    %v4404 = vld [vmem:[%s4381 + $0xb0] sm:$0xff]
    %v4405 = vld [vmem:[%s4381 + $0xb8] sm:$0xff]
    %v4406 = vld [vmem:[%s4381 + $0xc0] sm:$0xff]
    %v4407 = vld [vmem:[%s4381 + $0xc8] sm:$0xff]
    %v4408 = vld [vmem:[%s4381 + $0xd0] sm:$0xff]
    %v4409 = vld [vmem:[%s4381 + $0xd8] sm:$0xff]
    %v4410 = vld [vmem:[%s4381 + $0xe0] sm:$0xff]
    %v4411 = vld [vmem:[%s4381 + $0xe8] sm:$0xff]
    %v4412 = vld [vmem:[%s4381 + $0xf0] sm:$0xff]
    %v4413 = vld [vmem:[%s4381 + $0xf8] sm:$0xff]
    %v4414 = vld [vmem:[%s4381 + $0x100] sm:$0xff]
    %v4415 = vld [vmem:[%s4381 + $0x108] sm:$0xff]
    %v4416 = vld [vmem:[%s4381 + $0x110] sm:$0xff]
    %v4417 = vld [vmem:[%s4381 + $0x118] sm:$0xff]
    %v4419 = vsel %vm3458, %v3975, 0
    %v4422 = vsel %vm3458, %v3981, 0
    %v4425 = vsel %vm3458, %v3987, 0
    %4427 = vmatprep.subr.mxu0 %v4383
    %4428 = vmatpush1.msra.mxu0 %v4382
    %4429 = vmatprep.subr.mxu0 %v4385
    %4430 = vmatpush1.msra.mxu0 %v4384
    %4431 = vmatprep.subr.mxu0 %v4387
    %4432 = vmatpush1.msra.mxu0 %v4386
    %4433 = vmatprep.subr.mxu0 %v4389
    %4434 = vmatpush1.msra.mxu0 %v4388
    %4435 = vmatprep.subr.mxu0 %v4391
    %4436 = vmatpush1.msra.mxu0 %v4390
    %4437 = vmatprep.subr.mxu0 %v4393
    %4438 = vmatpush1.msra.mxu0 %v4392
    %4439 = vmatprep.subr.mxu0 %v4395
    %4440 = vmatpush1.msra.mxu0 %v4394
    %4441 = vmatprep.subr.mxu0 %v4397
    %4442 = vmatpush1.msra.mxu0 %v4396
    %4443 = vmatprep.subr.mxu0 %v4399
    %4444 = vmatpush1.msra.mxu0 %v4398
    %4445 = vmatprep.subr.mxu0 %v4401
    %4446 = vmatpush1.msra.mxu0 %v4400
    %4447 = vmatprep.subr.mxu0 %v4403
    %4448 = vmatpush1.msra.mxu0 %v4402
    %4449 = vmatprep.subr.mxu0 %v4405
    %4450 = vmatpush1.msra.mxu0 %v4404
    %4451 = vmatprep.subr.mxu0 %v4407
    %4452 = vmatpush1.msra.mxu0 %v4406
    %4453 = vmatprep.subr.mxu0 %v4409
    %4454 = vmatpush1.msra.mxu0 %v4408
    %4455 = vmatprep.subr.mxu0 %v4411
    %4456 = vmatpush1.msra.mxu0 %v4410
    %4457 = vmatprep.subr.mxu0 %v4413
    %4458 = vmatpush1.msra.mxu0 %v4412
    %4459 = vmatprep.subr.mxu0 %v4415
    %4460 = vmatpush1.msra.mxu0 %v4414
    %4461 = vmatprep.subr.mxu0 %v4417
    %4462 = vmatpush1.msra.mxu0 %v4416
    %4463 = vmatprep.subr.mxu0 0.0
    %4464 = vmatpush1.msra.mxu0 0.0
    %4465 = vmatprep.subr.mxu0 0.0
    %4466 = vmatpush1.msra.mxu0 0.0
    %4467 = vmatprep.subr.mxu0 0.0
    %4468 = vmatpush1.msra.mxu0 0.0
    %4469 = vmatprep.subr.mxu0 0.0
    %4470 = vmatpush1.msra.mxu0 0.0
    %4471 = vmatprep.subr.mxu0 0.0
    %4472 = vmatpush1.msra.mxu0 0.0
    %4473 = vmatprep.subr.mxu0 0.0
    %4474 = vmatpush1.msra.mxu0 0.0
    %4475 = vmatprep.subr.mxu0 0.0
    %4476 = vmatpush1.msra.mxu0 0.0
    %4477 = vmatprep.subr.mxu0 0.0
    %4478 = vmatpush1.msra.mxu0 0.0
    %4479 = vmatprep.subr.mxu0 0.0
    %4480 = vmatpush1.msra.mxu0 0.0
    %4481 = vmatprep.subr.mxu0 0.0
    %4482 = vmatpush1.msra.mxu0 0.0
    %4483 = vmatprep.subr.mxu0 0.0
    %4484 = vmatpush1.msra.mxu0 0.0
    %4485 = vmatprep.subr.mxu0 0.0
    %4486 = vmatpush1.msra.mxu0 0.0
    %4487 = vmatprep.subr.mxu0 0.0
    %4488 = vmatpush1.msra.mxu0 0.0
    %4489 = vmatprep.subr.mxu0 0.0
    %4490 = vmatpush1.msra.mxu0 0.0
    %4491 = vmatprep.mubr.f32.mxu0 %v4419
    %4492 = vmatmul.mubr.f32.gmra.mrb[0].mxu0 %v3973
    %v4493 = vpop.f32.mrb[0].mxu0
    %v4494 = vadd.f32 0.0, %v4493
    %v4495 = vpop.f32.mrb[0].mxu0
    %v4496 = vadd.f32 0.0, %v4495
    %4497 = vmatprep.mubr.f32.mxu0 %v4422
    %4498 = vmatmul.mubr.f32.gmra.mrb[0].mxu0 %v3979
    %v4499 = vpop.f32.mrb[0].mxu0
    %v4500 = vadd.f32 0.0, %v4499
    %v4501 = vpop.f32.mrb[0].mxu0
    %v4502 = vadd.f32 0.0, %v4501
    %4503 = vmatprep.mubr.f32.mxu0 %v4425
    %4504 = vmatmul.mubr.f32.gmra.mrb[0].mxu0 %v3985
    %v4505 = vpop.f32.mrb[0].mxu0
    %v4506 = vadd.f32 0.0, %v4505
    %v4507 = vpop.f32.mrb[0].mxu0
    %v4508 = vadd.f32 0.0, %v4507
    %4509 = vdwg.mxu0
    %v4510 = vadd.f32 %v4375, %v4494
    %v4511 = vadd.f32 %v4376, %v4496
    %v4512 = vadd.f32 %v4377, %v4500
    %v4513 = vadd.f32 %v4378, %v4502
    %v4514 = vadd.f32 %v4379, %v4506
    %v4515 = vadd.f32 %v4380, %v4508
    %v4516 = vld [vmem:[#allocation7] sm:$0xff]
    %v4517 = vld [vmem:[#allocation7 + $0x8] sm:$0xff]
    %v4518 = vld [vmem:[#allocation7 + $0x10] sm:$0xff]
    %v4519 = vld [vmem:[#allocation7 + $0x18] sm:$0xff]
    %v4520 = vld [vmem:[#allocation7 + $0x20] sm:$0xff]
    %v4521 = vld [vmem:[#allocation7 + $0x28] sm:$0xff]
    %v4522 = vld [vmem:[#allocation7 + $0x30] sm:$0xff]
    %v4523 = vld [vmem:[#allocation7 + $0x38] sm:$0xff]
    %v4524 = vld [vmem:[#allocation7 + $0x40] sm:$0xff]
    %v4525 = vld [vmem:[#allocation7 + $0x48] sm:$0xff]
    %v4526 = vld [vmem:[#allocation7 + $0x50] sm:$0xff]
    %v4527 = vld [vmem:[#allocation7 + $0x58] sm:$0xff]
    %v4528 = vld [vmem:[#allocation7 + $0x60] sm:$0xff]
    %v4529 = vld [vmem:[#allocation7 + $0x68] sm:$0xff]
    %v4530 = vld [vmem:[#allocation7 + $0x70] sm:$0xff]
    %v4531 = vld [vmem:[#allocation7 + $0x78] sm:$0xff]
    %v4532 = vld [vmem:[#allocation7 + $0x80] sm:$0xff]
    %v4533 = vld [vmem:[#allocation7 + $0x88] sm:$0xff]
    %v4534 = vld [vmem:[#allocation7 + $0x90] sm:$0xff]
    %v4535 = vld [vmem:[#allocation7 + $0x98] sm:$0xff]
    %v4536 = vld [vmem:[#allocation7 + $0xa0] sm:$0xff]
    %v4537 = vld [vmem:[#allocation7 + $0xa8] sm:$0xff]
    %v4538 = vld [vmem:[#allocation7 + $0xb0] sm:$0xff]
    %v4539 = vld [vmem:[#allocation7 + $0xb8] sm:$0xff]
    %v4540 = vld [vmem:[#allocation7 + $0xc0] sm:$0xff]
    %v4541 = vld [vmem:[#allocation7 + $0xc8] sm:$0xff]
    %v4542 = vld [vmem:[#allocation7 + $0xd0] sm:$0xff]
    %v4543 = vld [vmem:[#allocation7 + $0xd8] sm:$0xff]
    %v4544 = vld [vmem:[#allocation7 + $0xe0] sm:$0xff]
    %v4545 = vld [vmem:[#allocation7 + $0xe8] sm:$0xff]
    %v4546 = vld [vmem:[#allocation7 + $0xf0] sm:$0xff]
    %v4547 = vld [vmem:[#allocation7 + $0xf8] sm:$0xff]
    %v4548 = vld [vmem:[#allocation7 + $0x100] sm:$0xff]
    %v4549 = vld [vmem:[#allocation7 + $0x108] sm:$0xff]
    %v4550 = vld [vmem:[#allocation7 + $0x110] sm:$0xff]
    %v4551 = vld [vmem:[#allocation7 + $0x118] sm:$0xff]
    %v4552 = vld [vmem:[#allocation7 + $0x120] sm:$0xff]
    %v4553 = vld [vmem:[#allocation7 + $0x128] sm:$0xff]
    %v4554 = vld [vmem:[#allocation7 + $0x130] sm:$0xff]
    %v4555 = vld [vmem:[#allocation7 + $0x138] sm:$0xff]
    %v4556 = vadd.f32 %v4510, %v4512
    %v4557 = vsel %vm947, %v4514, 0.0
    %v4558 = vadd.f32 %v4556, %v4557
    %v4559 = vrot.slane %v4558, 4
    %v4560 = vadd.f32 %v4558, %v4559
    %v4561 = vrot.slane %v4560, 2
    %v4562 = vadd.f32 %v4560, %v4561
    %v4563 = vrot.slane %v4562, 1
    %v4564 = vadd.f32 %v4562, %v4563
    %vm4565 = vcmask 261120
    %v4566 = vsel %vm4565, %v4511, 0.0
    %v4567 = vsel %vm4565, %v4513, 0.0
    %v4568 = vadd.f32 %v4566, %v4567
    %vm4569 = vcmask 257024
    %v4570 = vsel %vm4569, %v4515, 0.0
    %v4571 = vadd.f32 %v4568, %v4570
    %v4572 = vrot.slane %v4571, 4
    %v4573 = vadd.f32 %v4571, %v4572
    %v4574 = vrot.slane %v4573, 2
    %v4575 = vadd.f32 %v4573, %v4574
    %v4576 = vrot.slane %v4575, 1
    %v4577 = vadd.f32 %v4575, %v4576
    %v4579 = vsel %vm4565, %v4577, 0
    %4581 = vmatprep.subr.mxu0 %v4517
    %4582 = vmatpush1.msra.mxu0 %v4516
    %4583 = vmatprep.subr.mxu0 %v4519
    %4584 = vmatpush1.msra.mxu0 %v4518
    %4585 = vmatprep.subr.mxu0 %v4521
    %4586 = vmatpush1.msra.mxu0 %v4520
    %4587 = vmatprep.subr.mxu0 %v4523
    %4588 = vmatpush1.msra.mxu0 %v4522
    %4589 = vmatprep.subr.mxu0 %v4525
    %4590 = vmatpush1.msra.mxu0 %v4524
    %4591 = vmatprep.subr.mxu0 %v4527
    %4592 = vmatpush1.msra.mxu0 %v4526
    %4593 = vmatprep.subr.mxu0 %v4529
    %4594 = vmatpush1.msra.mxu0 %v4528
    %4595 = vmatprep.subr.mxu0 %v4531
    %4596 = vmatpush1.msra.mxu0 %v4530
    %4597 = vmatprep.subr.mxu0 %v4533
    %4598 = vmatpush1.msra.mxu0 %v4532
    %4599 = vmatprep.subr.mxu0 %v4535
    %4600 = vmatpush1.msra.mxu0 %v4534
    %4601 = vmatprep.subr.mxu0 %v4537
    %4602 = vmatpush1.msra.mxu0 %v4536
    %4603 = vmatprep.subr.mxu0 %v4539
    %4604 = vmatpush1.msra.mxu0 %v4538
    %4605 = vmatprep.subr.mxu0 %v4541
    %4606 = vmatpush1.msra.mxu0 %v4540
    %4607 = vmatprep.subr.mxu0 %v4543
    %4608 = vmatpush1.msra.mxu0 %v4542
    %4609 = vmatprep.subr.mxu0 %v4545
    %4610 = vmatpush1.msra.mxu0 %v4544
    %4611 = vmatprep.subr.mxu0 %v4547
    %4612 = vmatpush1.msra.mxu0 %v4546
    %4613 = vmatprep.subr.mxu0 %v4549
    %4614 = vmatpush1.msra.mxu0 %v4548
    %4615 = vmatprep.subr.mxu0 %v4551
    %4616 = vmatpush1.msra.mxu0 %v4550
    %4617 = vmatprep.subr.mxu0 %v4553
    %4618 = vmatpush1.msra.mxu0 %v4552
    %4619 = vmatprep.subr.mxu0 %v4555
    %4620 = vmatpush1.msra.mxu0 %v4554
    %4621 = vmatprep.subr.mxu0 0.0
    %4622 = vmatpush1.msra.mxu0 0.0
    %4623 = vmatprep.subr.mxu0 0.0
    %4624 = vmatpush1.msra.mxu0 0.0
    %4625 = vmatprep.subr.mxu0 0.0
    %4626 = vmatpush1.msra.mxu0 0.0
    %4627 = vmatprep.subr.mxu0 0.0
    %4628 = vmatpush1.msra.mxu0 0.0
    %4629 = vmatprep.subr.mxu0 0.0
    %4630 = vmatpush1.msra.mxu0 0.0
    %4631 = vmatprep.subr.mxu0 0.0
    %4632 = vmatpush1.msra.mxu0 0.0
    %4633 = vmatprep.subr.mxu0 0.0
    %4634 = vmatpush1.msra.mxu0 0.0
    %4635 = vmatprep.subr.mxu0 0.0
    %4636 = vmatpush1.msra.mxu0 0.0
    %4637 = vmatprep.subr.mxu0 0.0
    %4638 = vmatpush1.msra.mxu0 0.0
    %4639 = vmatprep.subr.mxu0 0.0
    %4640 = vmatpush1.msra.mxu0 0.0
    %4641 = vmatprep.subr.mxu0 0.0
    %4642 = vmatpush1.msra.mxu0 0.0
    %4643 = vmatprep.subr.mxu0 0.0
    %4644 = vmatpush1.msra.mxu0 0.0
    %4645 = vmatprep.mubr.f32.mxu0 %v4579
    %4646 = vmatmul.mubr.f32.gmra.mrb[0].mxu0 %v4564
    %v4647 = vpop.f32.mrb[0].mxu0
    %v4648 = vadd.f32 0.0, %v4647
    %v4649 = vpop.f32.mrb[0].mxu0
    %v4650 = vadd.f32 0.0, %v4649
    %4651 = vdwg.mxu0
    %v4652 = vmul.f32 %v4648, 0.0078125
    %v4653 = vmul.f32 %v4650, 0.0078125
    %v4654 = vmul.f32 %v4510, %v4510
    %v4655 = vmul.f32 %v4511, %v4511
    %v4656 = vmul.f32 %v4512, %v4512
    %v4657 = vmul.f32 %v4513, %v4513
    %v4658 = vmul.f32 %v4514, %v4514
    %v4659 = vmul.f32 %v4515, %v4515
    %v4660 = vadd.f32 %v4654, %v4656
    %v4661 = vsel %vm947, %v4658, 0.0
    %v4662 = vadd.f32 %v4660, %v4661
    %v4663 = vrot.slane %v4662, 4
    %v4664 = vadd.f32 %v4662, %v4663
    %v4665 = vrot.slane %v4664, 2
    %v4666 = vadd.f32 %v4664, %v4665
    %v4667 = vrot.slane %v4666, 1
    %v4668 = vadd.f32 %v4666, %v4667
    %v4669 = vsel %vm4565, %v4655, 0.0
    %v4670 = vsel %vm4565, %v4657, 0.0
    %v4671 = vadd.f32 %v4669, %v4670
    %v4672 = vsel %vm4569, %v4659, 0.0
    %v4673 = vadd.f32 %v4671, %v4672
    %v4674 = vrot.slane %v4673, 4
    %v4675 = vadd.f32 %v4673, %v4674
    %v4676 = vrot.slane %v4675, 2
    %v4677 = vadd.f32 %v4675, %v4676
    %v4678 = vrot.slane %v4677, 1
    %v4679 = vadd.f32 %v4677, %v4678
    %v4681 = vsel %vm4565, %v4679, 0
    %4683 = vmatprep.subr.mxu0 %v4517
    %4684 = vmatpush1.msra.mxu0 %v4516
    %4685 = vmatprep.subr.mxu0 %v4519
    %4686 = vmatpush1.msra.mxu0 %v4518
    %4687 = vmatprep.subr.mxu0 %v4521
    %4688 = vmatpush1.msra.mxu0 %v4520
    %4689 = vmatprep.subr.mxu0 %v4523
    %4690 = vmatpush1.msra.mxu0 %v4522
    %4691 = vmatprep.subr.mxu0 %v4525
    %4692 = vmatpush1.msra.mxu0 %v4524
    %4693 = vmatprep.subr.mxu0 %v4527
    %4694 = vmatpush1.msra.mxu0 %v4526
    %4695 = vmatprep.subr.mxu0 %v4529
    %4696 = vmatpush1.msra.mxu0 %v4528
    %4697 = vmatprep.subr.mxu0 %v4531
    %4698 = vmatpush1.msra.mxu0 %v4530
    %4699 = vmatprep.subr.mxu0 %v4533
    %4700 = vmatpush1.msra.mxu0 %v4532
    %4701 = vmatprep.subr.mxu0 %v4535
    %4702 = vmatpush1.msra.mxu0 %v4534
    %4703 = vmatprep.subr.mxu0 %v4537
    %4704 = vmatpush1.msra.mxu0 %v4536
    %4705 = vmatprep.subr.mxu0 %v4539
    %4706 = vmatpush1.msra.mxu0 %v4538
    %4707 = vmatprep.subr.mxu0 %v4541
    %4708 = vmatpush1.msra.mxu0 %v4540
    %4709 = vmatprep.subr.mxu0 %v4543
    %4710 = vmatpush1.msra.mxu0 %v4542
    %4711 = vmatprep.subr.mxu0 %v4545
    %4712 = vmatpush1.msra.mxu0 %v4544
    %4713 = vmatprep.subr.mxu0 %v4547
    %4714 = vmatpush1.msra.mxu0 %v4546
    %4715 = vmatprep.subr.mxu0 %v4549
    %4716 = vmatpush1.msra.mxu0 %v4548
    %4717 = vmatprep.subr.mxu0 %v4551
    %4718 = vmatpush1.msra.mxu0 %v4550
    %4719 = vmatprep.subr.mxu0 %v4553
    %4720 = vmatpush1.msra.mxu0 %v4552
    %4721 = vmatprep.subr.mxu0 %v4555
    %4722 = vmatpush1.msra.mxu0 %v4554
    %4723 = vmatprep.subr.mxu0 0.0
    %4724 = vmatpush1.msra.mxu0 0.0
    %4725 = vmatprep.subr.mxu0 0.0
    %4726 = vmatpush1.msra.mxu0 0.0
    %4727 = vmatprep.subr.mxu0 0.0
    %4728 = vmatpush1.msra.mxu0 0.0
    %4729 = vmatprep.subr.mxu0 0.0
    %4730 = vmatpush1.msra.mxu0 0.0
    %4731 = vmatprep.subr.mxu0 0.0
    %4732 = vmatpush1.msra.mxu0 0.0
    %4733 = vmatprep.subr.mxu0 0.0
    %4734 = vmatpush1.msra.mxu0 0.0
    %4735 = vmatprep.subr.mxu0 0.0
    %4736 = vmatpush1.msra.mxu0 0.0
    %4737 = vmatprep.subr.mxu0 0.0
    %4738 = vmatpush1.msra.mxu0 0.0
    %4739 = vmatprep.subr.mxu0 0.0
    %4740 = vmatpush1.msra.mxu0 0.0
    %4741 = vmatprep.subr.mxu0 0.0
    %4742 = vmatpush1.msra.mxu0 0.0
    %4743 = vmatprep.subr.mxu0 0.0
    %4744 = vmatpush1.msra.mxu0 0.0
    %4745 = vmatprep.subr.mxu0 0.0
    %4746 = vmatpush1.msra.mxu0 0.0
    %4747 = vmatprep.mubr.f32.mxu0 %v4681
    %4748 = vmatmul.mubr.f32.gmra.mrb[0].mxu0 %v4668
    %v4749 = vpop.f32.mrb[0].mxu0
    %v4750 = vadd.f32 0.0, %v4749
    %v4751 = vpop.f32.mrb[0].mxu0
    %v4752 = vadd.f32 0.0, %v4751
    %4753 = vdwg.mxu0
    %v4754 = vmul.f32 %v4750, 0.0078125
    %v4755 = vmul.f32 %v4752, 0.0078125
    %v4756 = vmul.f32 %v4652, %v4652
    %v4757 = vmul.f32 %v4653, %v4653
    %v4758 = vsub.f32 %v4754, %v4756
    %v4759 = vsub.f32 %v4755, %v4757
    %v4760 = vadd.f32 %v4758, 1e-05
    %v4761 = vadd.f32 %v4759, 1e-05
    %v4762 = vrsqrt.pop %v4760
    %v4763 = vrsqrt.pop %v4761
    %v4766 = vcombine.low %v4762, %v4763
    %v4768 = vunpack.c.l.s4 1966171168
    %v4769 = vunpack.c.0.s8 %v4768
    %v4770 = vlaneseq
    %v4771 = vshrl.u32 %v4770, 7
    %v4772 = vsub.s32 %v4769, %v4771
    %v4773 = vrot.slane %v4766, %v4772
    %v4775 = vunpack.c.l.s4 1966171168
    %v4776 = vunpack.c.0.s8 %v4775
    %v4777 = vlaneseq
    %v4778 = vshrl.u32 %v4777, 7
    %v4779 = vsub.s32 %v4776, %v4778
    %v4780 = vrot.slane %v4773, %v4779
    %v4782 = vmul.f32 %v3795, %v4780
    %v4784 = vlaneseq
    %v4785 = vshrl.u32 %v4784, 7
    %v4786 = vsub.s32 0, %v4785
    %v4787 = vrot.slane %v4782, %v4786
    %v4788 = vlaneseq
    %v4789 = vshrl.u32 %v4788, 7
    %v4790 = vsub.s32 1, %v4789
    %v4791 = vrot.slane %v4782, %v4790
    %v4794 = vmul.f32 %v4652, %v4787
    %v4795 = vmul.f32 %v4653, %v4791
    %v4798 = vcombine.low %v4794, %v4795
    %v4800 = vunpack.c.l.s4 1966171168
    %v4801 = vunpack.c.0.s8 %v4800
    %v4802 = vlaneseq
    %v4803 = vshrl.u32 %v4802, 7
    %v4804 = vsub.s32 %v4801, %v4803
    %v4805 = vrot.slane %v4798, %v4804
    %v4807 = vunpack.c.l.s4 1966171168
    %v4808 = vunpack.c.0.s8 %v4807
    %v4809 = vlaneseq
    %v4810 = vshrl.u32 %v4809, 7
    %v4811 = vsub.s32 %v4808, %v4810
    %v4812 = vrot.slane %v4805, %v4811
    %v4814 = vsub.f32 %v3796, %v4812
    %v4815 = vmul.f32 %v4510, %v4787
    %v4816 = vmul.f32 %v4511, %v4791
    %v4817 = vmul.f32 %v4512, %v4787
    %v4818 = vmul.f32 %v4513, %v4791
    %v4819 = vmul.f32 %v4514, %v4787
    %v4820 = vmul.f32 %v4515, %v4791
    %v4822 = vlaneseq
    %v4823 = vshrl.u32 %v4822, 7
    %v4824 = vsub.s32 0, %v4823
    %v4825 = vrot.slane %v4814, %v4824
    %v4826 = vlaneseq
    %v4827 = vshrl.u32 %v4826, 7
    %v4828 = vsub.s32 1, %v4827
    %v4829 = vrot.slane %v4814, %v4828
    %v4832 = vadd.f32 %v4815, %v4825
    %v4833 = vadd.f32 %v4816, %v4829
    %v4834 = vadd.f32 %v4817, %v4825
    %v4835 = vadd.f32 %v4818, %v4829
    %v4836 = vadd.f32 %v4819, %v4825
    %v4837 = vadd.f32 %v4820, %v4829
    %v4838 = vmax.f32 %v4832, 0.0
    %v4839 = vmax.f32 %v4833, 0.0
    %v4840 = vmax.f32 %v4834, 0.0
    %v4841 = vmax.f32 %v4835, 0.0
    %v4842 = vmax.f32 %v4836, 0.0
    %v4843 = vmax.f32 %v4837, 0.0
    %v4844 = vld [vmem:[%s37] sm:$0xff]
    %v4845 = vld [vmem:[%s37 + $0x8] sm:$0xff]
    %v4846 = vld [vmem:[%s37 + $0x10] sm:$0xff]
    %v4847 = vld [vmem:[%s37 + $0x18] sm:$0xff]
    %v4848 = vld [vmem:[%s37 + $0x20] sm:$0xf]
    %v4849 = vld [vmem:[%s37 + $0x28] sm:$0xf]
    %v4850 = vmul.f32 %v4838, %v4844
    %v4851 = vmul.f32 %v4839, %v4845
    %v4852 = vmul.f32 %v4840, %v4846
    %v4853 = vmul.f32 %v4841, %v4847
    %v4854 = vmul.f32 %v4842, %v4848
    %v4855 = vmul.f32 %v4843, %v4849
    %s4856 = smul.u32 4, 160
    %s4857 = smul.u32 %s4856, 1
    %s4858 = sshll.u32 %s4857, 4
    %4859 = dma.done %s670, %s4858
    %s4860 = smul.u32 128, 1
    %s4861 = sshll.u32 %s4860, 4
    %4862 = dma.done %s682, %s4861
    %v4863 = vld [vmem:[%s45] sm:$0x1]
    %v4864 = vld [vmem:[%s47] sm:$0x1]
    %v4865 = vld [vmem:[#allocation22] sm:$0xff]
    %v4866 = vld [vmem:[#allocation22 + $0x8] sm:$0xff]
    %v4867 = vld [vmem:[#allocation22 + $0x10] sm:$0xff]
    %v4868 = vld [vmem:[#allocation22 + $0x18] sm:$0xff]
    %vm4869 = vcmask 162816
    %v4871 = vsel %vm4869, %v4865, 0
    %v4874 = vsel %vm4869, %v4866, 0
    %v4877 = vsel %vm4869, %v4867, 0
    %v4880 = vsel %vm4869, %v4868, 0
    %v4883 = vsel %vm947, %v4854, 0
    %v4886 = vsel %vm947, %v4855, 0
    %4888 = vmatprep.subr.mxu0 %v4851
    %4889 = vmatpush1.msra.mxu0 %v4850
    %4890 = vmatprep.subr.mxu0 %v4853
    %4891 = vmatpush1.msra.mxu0 %v4852
    %4892 = vmatprep.subr.mxu0 %v4886
    %4893 = vmatpush1.msra.mxu0 %v4883
    %4894 = vmatprep.subr.mxu0 0.0
    %4895 = vmatpush1.msra.mxu0 0.0
    %4896 = vmatprep.subr.mxu0 0.0
    %4897 = vmatpush1.msra.mxu0 0.0
    %4898 = vmatprep.subr.mxu0 0.0
    %4899 = vmatpush1.msra.mxu0 0.0
    %4900 = vmatprep.subr.mxu0 0.0
    %4901 = vmatpush1.msra.mxu0 0.0
    %4902 = vmatprep.subr.mxu0 0.0
    %4903 = vmatpush1.msra.mxu0 0.0
    %4904 = vmatprep.subr.mxu0 0.0
    %4905 = vmatpush1.msra.mxu0 0.0
    %4906 = vmatprep.subr.mxu0 0.0
    %4907 = vmatpush1.msra.mxu0 0.0
    %4908 = vmatprep.subr.mxu0 0.0
    %4909 = vmatpush1.msra.mxu0 0.0
    %4910 = vmatprep.subr.mxu0 0.0
    %4911 = vmatpush1.msra.mxu0 0.0
    %4912 = vmatprep.subr.mxu0 0.0
    %4913 = vmatpush1.msra.mxu0 0.0
    %4914 = vmatprep.subr.mxu0 0.0
    %4915 = vmatpush1.msra.mxu0 0.0
    %4916 = vmatprep.subr.mxu0 0.0
    %4917 = vmatpush1.msra.mxu0 0.0
    %4918 = vmatprep.subr.mxu0 0.0
    %4919 = vmatpush1.msra.mxu0 0.0
    %4920 = vmatprep.subr.mxu0 0.0
    %4921 = vmatpush1.msra.mxu0 0.0
    %4922 = vmatprep.subr.mxu0 0.0
    %4923 = vmatpush1.msra.mxu0 0.0
    %4924 = vmatprep.subr.mxu0 0.0
    %4925 = vmatpush1.msra.mxu0 0.0
    %4926 = vmatprep.subr.mxu0 0.0
    %4927 = vmatpush1.msra.mxu0 0.0
    %4928 = vmatprep.subr.mxu0 0.0
    %4929 = vmatpush1.msra.mxu0 0.0
    %4930 = vmatprep.subr.mxu0 0.0
    %4931 = vmatpush1.msra.mxu0 0.0
    %4932 = vmatprep.subr.mxu0 0.0
    %4933 = vmatpush1.msra.mxu0 0.0
    %4934 = vmatprep.subr.mxu0 0.0
    %4935 = vmatpush1.msra.mxu0 0.0
    %4936 = vmatprep.subr.mxu0 0.0
    %4937 = vmatpush1.msra.mxu0 0.0
    %4938 = vmatprep.subr.mxu0 0.0
    %4939 = vmatpush1.msra.mxu0 0.0
    %4940 = vmatprep.subr.mxu0 0.0
    %4941 = vmatpush1.msra.mxu0 0.0
    %4942 = vmatprep.subr.mxu0 0.0
    %4943 = vmatpush1.msra.mxu0 0.0
    %4944 = vmatprep.subr.mxu0 0.0
    %4945 = vmatpush1.msra.mxu0 0.0
    %4946 = vmatprep.subr.mxu0 0.0
    %4947 = vmatpush1.msra.mxu0 0.0
    %4948 = vmatprep.subr.mxu0 0.0
    %4949 = vmatpush1.msra.mxu0 0.0
    %4950 = vmatprep.subr.mxu0 0.0
    %4951 = vmatpush1.msra.mxu0 0.0
    %4952 = vmatprep.mubr.f32.mxu0 0.0
    %4953 = vmatmul.mubr.f32.gmra.mrb[0].mxu0 %v4871
    %v4954 = vpop.f32.mrb[0].mxu0
    %v4955 = vadd.f32 0.0, %v4954
    %v4956 = vpop.f32.mrb[0].mxu0
    %v4957 = vadd.f32 0.0, %v4956
    %4958 = vmatprep.mubr.f32.mxu0 0.0
    %4959 = vmatmul.mubr.f32.gmra.mrb[0].mxu0 %v4874
    %v4960 = vpop.f32.mrb[0].mxu0
    %v4961 = vadd.f32 0.0, %v4960
    %v4962 = vpop.f32.mrb[0].mxu0
    %v4963 = vadd.f32 0.0, %v4962
    %4964 = vmatprep.mubr.f32.mxu0 0.0
    %4965 = vmatmul.mubr.f32.gmra.mrb[0].mxu0 %v4877
    %v4966 = vpop.f32.mrb[0].mxu0
    %v4967 = vadd.f32 0.0, %v4966
    %v4968 = vpop.f32.mrb[0].mxu0
    %v4969 = vadd.f32 0.0, %v4968
    %4970 = vmatprep.mubr.f32.mxu0 0.0
    %4971 = vmatmul.mubr.f32.gmra.mrb[0].mxu0 %v4880
    %v4972 = vpop.f32.mrb[0].mxu0
    %v4973 = vadd.f32 0.0, %v4972
    %v4974 = vpop.f32.mrb[0].mxu0
    %v4975 = vadd.f32 0.0, %v4974
    %4976 = vdwg.mxu0
    %v4977 = vld [vmem:[#allocation8] sm:$0xff]
    %v4978 = vld [vmem:[#allocation8 + $0x8] sm:$0xff]
    %v4979 = vld [vmem:[#allocation8 + $0x10] sm:$0xff]
    %v4980 = vld [vmem:[#allocation8 + $0x18] sm:$0xff]
    %v4981 = vld [vmem:[#allocation8 + $0x20] sm:$0xff]
    %v4982 = vld [vmem:[#allocation8 + $0x28] sm:$0xff]
    %v4983 = vld [vmem:[#allocation8 + $0x30] sm:$0xff]
    %v4984 = vld [vmem:[#allocation8 + $0x38] sm:$0xff]
    %v4985 = vld [vmem:[#allocation8 + $0x40] sm:$0xff]
    %v4986 = vld [vmem:[#allocation8 + $0x48] sm:$0xff]
    %v4987 = vld [vmem:[#allocation8 + $0x50] sm:$0xff]
    %v4988 = vld [vmem:[#allocation8 + $0x58] sm:$0xff]
    %v4989 = vld [vmem:[#allocation8 + $0x60] sm:$0xff]
    %v4990 = vld [vmem:[#allocation8 + $0x68] sm:$0xff]
    %v4991 = vld [vmem:[#allocation8 + $0x70] sm:$0xff]
    %v4992 = vld [vmem:[#allocation8 + $0x78] sm:$0xff]
    %v4993 = vld [vmem:[#allocation8 + $0x80] sm:$0xff]
    %v4994 = vld [vmem:[#allocation8 + $0x88] sm:$0xff]
    %v4995 = vld [vmem:[#allocation8 + $0x90] sm:$0xff]
    %v4996 = vld [vmem:[#allocation8 + $0x98] sm:$0xff]
    %s4997 = scalar_lea.vmem [#allocation8], 160
    %v4998 = vld [vmem:[%s4997] sm:$0xff]
    %v4999 = vld [vmem:[%s4997 + $0x8] sm:$0xff]
    %v5000 = vld [vmem:[%s4997 + $0x10] sm:$0xff]
    %v5001 = vld [vmem:[%s4997 + $0x18] sm:$0xff]
    %v5002 = vld [vmem:[%s4997 + $0x20] sm:$0xff]
    %v5003 = vld [vmem:[%s4997 + $0x28] sm:$0xff]
    %v5004 = vld [vmem:[%s4997 + $0x30] sm:$0xff]
    %v5005 = vld [vmem:[%s4997 + $0x38] sm:$0xff]
    %v5006 = vld [vmem:[%s4997 + $0x40] sm:$0xff]
    %v5007 = vld [vmem:[%s4997 + $0x48] sm:$0xff]
    %v5008 = vld [vmem:[%s4997 + $0x50] sm:$0xff]
    %v5009 = vld [vmem:[%s4997 + $0x58] sm:$0xff]
    %v5010 = vld [vmem:[%s4997 + $0x60] sm:$0xff]
    %v5011 = vld [vmem:[%s4997 + $0x68] sm:$0xff]
    %v5012 = vld [vmem:[%s4997 + $0x70] sm:$0xff]
    %v5013 = vld [vmem:[%s4997 + $0x78] sm:$0xff]
    %v5014 = vld [vmem:[%s4997 + $0x80] sm:$0xff]
    %v5015 = vld [vmem:[%s4997 + $0x88] sm:$0xff]
    %v5016 = vld [vmem:[%s4997 + $0x90] sm:$0xff]
    %v5017 = vld [vmem:[%s4997 + $0x98] sm:$0xff]
    %v5019 = vsel %vm4565, %v4963, 0
    %5021 = vmatprep.subr.mxu0 0.0
    %5022 = vmatpush1.msra.mxu0 %v4998
    %5023 = vmatprep.subr.mxu0 0.0
    %5024 = vmatpush1.msra.mxu0 %v4999
    %5025 = vmatprep.subr.mxu0 0.0
    %5026 = vmatpush1.msra.mxu0 %v5000
    %5027 = vmatprep.subr.mxu0 0.0
    %5028 = vmatpush1.msra.mxu0 %v5001
    %5029 = vmatprep.subr.mxu0 0.0
    %5030 = vmatpush1.msra.mxu0 %v5002
    %5031 = vmatprep.subr.mxu0 0.0
    %5032 = vmatpush1.msra.mxu0 %v5003
    %5033 = vmatprep.subr.mxu0 0.0
    %5034 = vmatpush1.msra.mxu0 %v5004
    %5035 = vmatprep.subr.mxu0 0.0
    %5036 = vmatpush1.msra.mxu0 %v5005
    %5037 = vmatprep.subr.mxu0 0.0
    %5038 = vmatpush1.msra.mxu0 %v5006
    %5039 = vmatprep.subr.mxu0 0.0
    %5040 = vmatpush1.msra.mxu0 %v5007
    %5041 = vmatprep.subr.mxu0 0.0
    %5042 = vmatpush1.msra.mxu0 %v5008
    %5043 = vmatprep.subr.mxu0 0.0
    %5044 = vmatpush1.msra.mxu0 %v5009
    %5045 = vmatprep.subr.mxu0 0.0
    %5046 = vmatpush1.msra.mxu0 %v5010
    %5047 = vmatprep.subr.mxu0 0.0
    %5048 = vmatpush1.msra.mxu0 %v5011
    %5049 = vmatprep.subr.mxu0 0.0
    %5050 = vmatpush1.msra.mxu0 %v5012
    %5051 = vmatprep.subr.mxu0 0.0
    %5052 = vmatpush1.msra.mxu0 %v5013
    %5053 = vmatprep.subr.mxu0 0.0
    %5054 = vmatpush1.msra.mxu0 %v5014
    %5055 = vmatprep.subr.mxu0 0.0
    %5056 = vmatpush1.msra.mxu0 %v5015
    %5057 = vmatprep.subr.mxu0 0.0
    %5058 = vmatpush1.msra.mxu0 %v5016
    %5059 = vmatprep.subr.mxu0 0.0
    %5060 = vmatpush1.msra.mxu0 %v5017
    %5061 = vmatprep.subr.mxu0 0.0
    %5062 = vmatpush1.msra.mxu0 0.0
    %5063 = vmatprep.subr.mxu0 0.0
    %5064 = vmatpush1.msra.mxu0 0.0
    %5065 = vmatprep.subr.mxu0 0.0
    %5066 = vmatpush1.msra.mxu0 0.0
    %5067 = vmatprep.subr.mxu0 0.0
    %5068 = vmatpush1.msra.mxu0 0.0
    %5069 = vmatprep.subr.mxu0 0.0
    %5070 = vmatpush1.msra.mxu0 0.0
    %5071 = vmatprep.subr.mxu0 0.0
    %5072 = vmatpush1.msra.mxu0 0.0
    %5073 = vmatprep.subr.mxu0 0.0
    %5074 = vmatpush1.msra.mxu0 0.0
    %5075 = vmatprep.subr.mxu0 0.0
    %5076 = vmatpush1.msra.mxu0 0.0
    %5077 = vmatprep.subr.mxu0 0.0
    %5078 = vmatpush1.msra.mxu0 0.0
    %5079 = vmatprep.subr.mxu0 0.0
    %5080 = vmatpush1.msra.mxu0 0.0
    %5081 = vmatprep.subr.mxu0 0.0
    %5082 = vmatpush1.msra.mxu0 0.0
    %5083 = vmatprep.subr.mxu0 0.0
    %5084 = vmatpush1.msra.mxu0 0.0
    %5085 = vmatprep.mubr.f32.mxu0 %v5019
    %5086 = vmatmul.mubr.f32.gmra.mrb[0].mxu0 %v4961
    %v5087 = vpop.f32.mrb[0].mxu0
    %v5088 = vadd.f32 0.0, %v5087
    %v5089 = vpop.f32.mrb[0].mxu0
    %5090 = vdwg.mxu0
    %v5092 = vsel %vm4565, %v4957, 0
    %5094 = vmatprep.subr.mxu0 0.0
    %5095 = vmatpush1.msra.mxu0 %v4977
    %5096 = vmatprep.subr.mxu0 0.0
    %5097 = vmatpush1.msra.mxu0 %v4978
    %5098 = vmatprep.subr.mxu0 0.0
    %5099 = vmatpush1.msra.mxu0 %v4979
    %5100 = vmatprep.subr.mxu0 0.0
    %5101 = vmatpush1.msra.mxu0 %v4980
    %5102 = vmatprep.subr.mxu0 0.0
    %5103 = vmatpush1.msra.mxu0 %v4981
    %5104 = vmatprep.subr.mxu0 0.0
    %5105 = vmatpush1.msra.mxu0 %v4982
    %5106 = vmatprep.subr.mxu0 0.0
    %5107 = vmatpush1.msra.mxu0 %v4983
    %5108 = vmatprep.subr.mxu0 0.0
    %5109 = vmatpush1.msra.mxu0 %v4984
    %5110 = vmatprep.subr.mxu0 0.0
    %5111 = vmatpush1.msra.mxu0 %v4985
    %5112 = vmatprep.subr.mxu0 0.0
    %5113 = vmatpush1.msra.mxu0 %v4986
    %5114 = vmatprep.subr.mxu0 0.0
    %5115 = vmatpush1.msra.mxu0 %v4987
    %5116 = vmatprep.subr.mxu0 0.0
    %5117 = vmatpush1.msra.mxu0 %v4988
    %5118 = vmatprep.subr.mxu0 0.0
    %5119 = vmatpush1.msra.mxu0 %v4989
    %5120 = vmatprep.subr.mxu0 0.0
    %5121 = vmatpush1.msra.mxu0 %v4990
    %5122 = vmatprep.subr.mxu0 0.0
    %5123 = vmatpush1.msra.mxu0 %v4991
    %5124 = vmatprep.subr.mxu0 0.0
    %5125 = vmatpush1.msra.mxu0 %v4992
    %5126 = vmatprep.subr.mxu0 0.0
    %5127 = vmatpush1.msra.mxu0 %v4993
    %5128 = vmatprep.subr.mxu0 0.0
    %5129 = vmatpush1.msra.mxu0 %v4994
    %5130 = vmatprep.subr.mxu0 0.0
    %5131 = vmatpush1.msra.mxu0 %v4995
    %5132 = vmatprep.subr.mxu0 0.0
    %5133 = vmatpush1.msra.mxu0 %v4996
    %5134 = vmatprep.subr.mxu0 0.0
    %5135 = vmatpush1.msra.mxu0 0.0
    %5136 = vmatprep.subr.mxu0 0.0
    %5137 = vmatpush1.msra.mxu0 0.0
    %5138 = vmatprep.subr.mxu0 0.0
    %5139 = vmatpush1.msra.mxu0 0.0
    %5140 = vmatprep.subr.mxu0 0.0
    %5141 = vmatpush1.msra.mxu0 0.0
    %5142 = vmatprep.subr.mxu0 0.0
    %5143 = vmatpush1.msra.mxu0 0.0
    %5144 = vmatprep.subr.mxu0 0.0
    %5145 = vmatpush1.msra.mxu0 0.0
    %5146 = vmatprep.subr.mxu0 0.0
    %5147 = vmatpush1.msra.mxu0 0.0
    %5148 = vmatprep.subr.mxu0 0.0
    %5149 = vmatpush1.msra.mxu0 0.0
    %5150 = vmatprep.subr.mxu0 0.0
    %5151 = vmatpush1.msra.mxu0 0.0
    %5152 = vmatprep.subr.mxu0 0.0
    %5153 = vmatpush1.msra.mxu0 0.0
    %5154 = vmatprep.subr.mxu0 0.0
    %5155 = vmatpush1.msra.mxu0 0.0
    %5156 = vmatprep.subr.mxu0 0.0
    %5157 = vmatpush1.msra.mxu0 0.0
    %5158 = vmatprep.mubr.f32.mxu0 %v5092
    %5159 = vmatmul.mubr.f32.gmra.mrb[0].mxu0 %v4955
    %v5160 = vpop.f32.mrb[0].mxu0
    %v5161 = vadd.f32 %v5088, %v5160
    %v5162 = vpop.f32.mrb[0].mxu0
    %5163 = vdwg.mxu0
    %s5164 = scalar_lea.vmem [#allocation8], 320
    %v5165 = vld [vmem:[%s5164] sm:$0xff]
    %v5166 = vld [vmem:[%s5164 + $0x8] sm:$0xff]
    %v5167 = vld [vmem:[%s5164 + $0x10] sm:$0xff]
    %v5168 = vld [vmem:[%s5164 + $0x18] sm:$0xff]
    %v5169 = vld [vmem:[%s5164 + $0x20] sm:$0xff]
    %v5170 = vld [vmem:[%s5164 + $0x28] sm:$0xff]
    %v5171 = vld [vmem:[%s5164 + $0x30] sm:$0xff]
    %v5172 = vld [vmem:[%s5164 + $0x38] sm:$0xff]
    %v5173 = vld [vmem:[%s5164 + $0x40] sm:$0xff]
    %v5174 = vld [vmem:[%s5164 + $0x48] sm:$0xff]
    %v5175 = vld [vmem:[%s5164 + $0x50] sm:$0xff]
    %v5176 = vld [vmem:[%s5164 + $0x58] sm:$0xff]
    %v5177 = vld [vmem:[%s5164 + $0x60] sm:$0xff]
    %v5178 = vld [vmem:[%s5164 + $0x68] sm:$0xff]
    %v5179 = vld [vmem:[%s5164 + $0x70] sm:$0xff]
    %v5180 = vld [vmem:[%s5164 + $0x78] sm:$0xff]
    %v5181 = vld [vmem:[%s5164 + $0x80] sm:$0xff]
    %v5182 = vld [vmem:[%s5164 + $0x88] sm:$0xff]
    %v5183 = vld [vmem:[%s5164 + $0x90] sm:$0xff]
    %v5184 = vld [vmem:[%s5164 + $0x98] sm:$0xff]
    %v5186 = vsel %vm4565, %v4969, 0
    %5188 = vmatprep.subr.mxu0 0.0
    %5189 = vmatpush1.msra.mxu0 %v5165
    %5190 = vmatprep.subr.mxu0 0.0
    %5191 = vmatpush1.msra.mxu0 %v5166
    %5192 = vmatprep.subr.mxu0 0.0
    %5193 = vmatpush1.msra.mxu0 %v5167
    %5194 = vmatprep.subr.mxu0 0.0
    %5195 = vmatpush1.msra.mxu0 %v5168
    %5196 = vmatprep.subr.mxu0 0.0
    %5197 = vmatpush1.msra.mxu0 %v5169
    %5198 = vmatprep.subr.mxu0 0.0
    %5199 = vmatpush1.msra.mxu0 %v5170
    %5200 = vmatprep.subr.mxu0 0.0
    %5201 = vmatpush1.msra.mxu0 %v5171
    %5202 = vmatprep.subr.mxu0 0.0
    %5203 = vmatpush1.msra.mxu0 %v5172
    %5204 = vmatprep.subr.mxu0 0.0
    %5205 = vmatpush1.msra.mxu0 %v5173
    %5206 = vmatprep.subr.mxu0 0.0
    %5207 = vmatpush1.msra.mxu0 %v5174
    %5208 = vmatprep.subr.mxu0 0.0
    %5209 = vmatpush1.msra.mxu0 %v5175
    %5210 = vmatprep.subr.mxu0 0.0
    %5211 = vmatpush1.msra.mxu0 %v5176
    %5212 = vmatprep.subr.mxu0 0.0
    %5213 = vmatpush1.msra.mxu0 %v5177
    %5214 = vmatprep.subr.mxu0 0.0
    %5215 = vmatpush1.msra.mxu0 %v5178
    %5216 = vmatprep.subr.mxu0 0.0
    %5217 = vmatpush1.msra.mxu0 %v5179
    %5218 = vmatprep.subr.mxu0 0.0
    %5219 = vmatpush1.msra.mxu0 %v5180
    %5220 = vmatprep.subr.mxu0 0.0
    %5221 = vmatpush1.msra.mxu0 %v5181
    %5222 = vmatprep.subr.mxu0 0.0
    %5223 = vmatpush1.msra.mxu0 %v5182
    %5224 = vmatprep.subr.mxu0 0.0
    %5225 = vmatpush1.msra.mxu0 %v5183
    %5226 = vmatprep.subr.mxu0 0.0
    %5227 = vmatpush1.msra.mxu0 %v5184
    %5228 = vmatprep.subr.mxu0 0.0
    %5229 = vmatpush1.msra.mxu0 0.0
    %5230 = vmatprep.subr.mxu0 0.0
    %5231 = vmatpush1.msra.mxu0 0.0
    %5232 = vmatprep.subr.mxu0 0.0
    %5233 = vmatpush1.msra.mxu0 0.0
    %5234 = vmatprep.subr.mxu0 0.0
    %5235 = vmatpush1.msra.mxu0 0.0
    %5236 = vmatprep.subr.mxu0 0.0
    %5237 = vmatpush1.msra.mxu0 0.0
    %5238 = vmatprep.subr.mxu0 0.0
    %5239 = vmatpush1.msra.mxu0 0.0
    %5240 = vmatprep.subr.mxu0 0.0
    %5241 = vmatpush1.msra.mxu0 0.0
    %5242 = vmatprep.subr.mxu0 0.0
    %5243 = vmatpush1.msra.mxu0 0.0
    %5244 = vmatprep.subr.mxu0 0.0
    %5245 = vmatpush1.msra.mxu0 0.0
    %5246 = vmatprep.subr.mxu0 0.0
    %5247 = vmatpush1.msra.mxu0 0.0
    %5248 = vmatprep.subr.mxu0 0.0
    %5249 = vmatpush1.msra.mxu0 0.0
    %5250 = vmatprep.subr.mxu0 0.0
    %5251 = vmatpush1.msra.mxu0 0.0
    %5252 = vmatprep.mubr.f32.mxu0 %v5186
    %5253 = vmatmul.mubr.f32.gmra.mrb[0].mxu0 %v4967
    %v5254 = vpop.f32.mrb[0].mxu0
    %v5255 = vadd.f32 0.0, %v5254
    %v5256 = vpop.f32.mrb[0].mxu0
    %5257 = vdwg.mxu0
    %v5258 = vadd.f32 %v5161, %v5255
    %s5259 = scalar_lea.vmem [#allocation8], 480
    %v5260 = vld [vmem:[%s5259] sm:$0xff]
    %v5261 = vld [vmem:[%s5259 + $0x8] sm:$0xff]
    %v5262 = vld [vmem:[%s5259 + $0x10] sm:$0xff]
    %v5263 = vld [vmem:[%s5259 + $0x18] sm:$0xff]
    %v5264 = vld [vmem:[%s5259 + $0x20] sm:$0xff]
    %v5265 = vld [vmem:[%s5259 + $0x28] sm:$0xff]
    %v5266 = vld [vmem:[%s5259 + $0x30] sm:$0xff]
    %v5267 = vld [vmem:[%s5259 + $0x38] sm:$0xff]
    %v5268 = vld [vmem:[%s5259 + $0x40] sm:$0xff]
    %v5269 = vld [vmem:[%s5259 + $0x48] sm:$0xff]
    %v5270 = vld [vmem:[%s5259 + $0x50] sm:$0xff]
    %v5271 = vld [vmem:[%s5259 + $0x58] sm:$0xff]
    %v5272 = vld [vmem:[%s5259 + $0x60] sm:$0xff]
    %v5273 = vld [vmem:[%s5259 + $0x68] sm:$0xff]
    %v5274 = vld [vmem:[%s5259 + $0x70] sm:$0xff]
    %v5275 = vld [vmem:[%s5259 + $0x78] sm:$0xff]
    %v5276 = vld [vmem:[%s5259 + $0x80] sm:$0xff]
    %v5277 = vld [vmem:[%s5259 + $0x88] sm:$0xff]
    %v5278 = vld [vmem:[%s5259 + $0x90] sm:$0xff]
    %v5279 = vld [vmem:[%s5259 + $0x98] sm:$0xff]
    %v5281 = vsel %vm4565, %v4975, 0
    %5283 = vmatprep.subr.mxu0 0.0
    %5284 = vmatpush1.msra.mxu0 %v5260
    %5285 = vmatprep.subr.mxu0 0.0
    %5286 = vmatpush1.msra.mxu0 %v5261
    %5287 = vmatprep.subr.mxu0 0.0
    %5288 = vmatpush1.msra.mxu0 %v5262
    %5289 = vmatprep.subr.mxu0 0.0
    %5290 = vmatpush1.msra.mxu0 %v5263
    %5291 = vmatprep.subr.mxu0 0.0
    %5292 = vmatpush1.msra.mxu0 %v5264
    %5293 = vmatprep.subr.mxu0 0.0
    %5294 = vmatpush1.msra.mxu0 %v5265
    %5295 = vmatprep.subr.mxu0 0.0
    %5296 = vmatpush1.msra.mxu0 %v5266
    %5297 = vmatprep.subr.mxu0 0.0
    %5298 = vmatpush1.msra.mxu0 %v5267
    %5299 = vmatprep.subr.mxu0 0.0
    %5300 = vmatpush1.msra.mxu0 %v5268
    %5301 = vmatprep.subr.mxu0 0.0
    %5302 = vmatpush1.msra.mxu0 %v5269
    %5303 = vmatprep.subr.mxu0 0.0
    %5304 = vmatpush1.msra.mxu0 %v5270
    %5305 = vmatprep.subr.mxu0 0.0
    %5306 = vmatpush1.msra.mxu0 %v5271
    %5307 = vmatprep.subr.mxu0 0.0
    %5308 = vmatpush1.msra.mxu0 %v5272
    %5309 = vmatprep.subr.mxu0 0.0
    %5310 = vmatpush1.msra.mxu0 %v5273
    %5311 = vmatprep.subr.mxu0 0.0
    %5312 = vmatpush1.msra.mxu0 %v5274
    %5313 = vmatprep.subr.mxu0 0.0
    %5314 = vmatpush1.msra.mxu0 %v5275
    %5315 = vmatprep.subr.mxu0 0.0
    %5316 = vmatpush1.msra.mxu0 %v5276
    %5317 = vmatprep.subr.mxu0 0.0
    %5318 = vmatpush1.msra.mxu0 %v5277
    %5319 = vmatprep.subr.mxu0 0.0
    %5320 = vmatpush1.msra.mxu0 %v5278
    %5321 = vmatprep.subr.mxu0 0.0
    %5322 = vmatpush1.msra.mxu0 %v5279
    %5323 = vmatprep.subr.mxu0 0.0
    %5324 = vmatpush1.msra.mxu0 0.0
    %5325 = vmatprep.subr.mxu0 0.0
    %5326 = vmatpush1.msra.mxu0 0.0
    %5327 = vmatprep.subr.mxu0 0.0
    %5328 = vmatpush1.msra.mxu0 0.0
    %5329 = vmatprep.subr.mxu0 0.0
    %5330 = vmatpush1.msra.mxu0 0.0
    %5331 = vmatprep.subr.mxu0 0.0
    %5332 = vmatpush1.msra.mxu0 0.0
    %5333 = vmatprep.subr.mxu0 0.0
    %5334 = vmatpush1.msra.mxu0 0.0
    %5335 = vmatprep.subr.mxu0 0.0
    %5336 = vmatpush1.msra.mxu0 0.0
    %5337 = vmatprep.subr.mxu0 0.0
    %5338 = vmatpush1.msra.mxu0 0.0
    %5339 = vmatprep.subr.mxu0 0.0
    %5340 = vmatpush1.msra.mxu0 0.0
    %5341 = vmatprep.subr.mxu0 0.0
    %5342 = vmatpush1.msra.mxu0 0.0
    %5343 = vmatprep.subr.mxu0 0.0
    %5344 = vmatpush1.msra.mxu0 0.0
    %5345 = vmatprep.subr.mxu0 0.0
    %5346 = vmatpush1.msra.mxu0 0.0
    %5347 = vmatprep.mubr.f32.mxu0 %v5281
    %5348 = vmatmul.mubr.f32.gmra.mrb[0].mxu0 %v4973
    %v5349 = vpop.f32.mrb[0].mxu0
    %v5350 = vadd.f32 0.0, %v5349
    %v5351 = vpop.f32.mrb[0].mxu0
    %5352 = vdwg.mxu0
    %v5353 = vadd.f32 %v5258, %v5350
    %v5354 = vld [vmem:[#allocation9] sm:$0xff]
    %v5355 = vld [vmem:[#allocation9 + $0x8] sm:$0xff]
    %v5356 = vld [vmem:[#allocation9 + $0x10] sm:$0xff]
    %v5357 = vld [vmem:[#allocation9 + $0x18] sm:$0xff]
    %v5358 = vld [vmem:[#allocation9 + $0x20] sm:$0xff]
    %v5359 = vld [vmem:[#allocation9 + $0x28] sm:$0xff]
    %v5360 = vld [vmem:[#allocation9 + $0x30] sm:$0xff]
    %v5361 = vld [vmem:[#allocation9 + $0x38] sm:$0xff]
    %v5362 = vld [vmem:[#allocation9 + $0x40] sm:$0xff]
    %v5363 = vld [vmem:[#allocation9 + $0x48] sm:$0xff]
    %v5364 = vld [vmem:[#allocation9 + $0x50] sm:$0xff]
    %v5365 = vld [vmem:[#allocation9 + $0x58] sm:$0xff]
    %v5366 = vld [vmem:[#allocation9 + $0x60] sm:$0xff]
    %v5367 = vld [vmem:[#allocation9 + $0x68] sm:$0xff]
    %v5368 = vld [vmem:[#allocation9 + $0x70] sm:$0xff]
    %v5369 = vld [vmem:[#allocation9 + $0x78] sm:$0xff]
    %v5370 = vrot.slane %v5353, 4
    %v5371 = vadd.f32 %v5353, %v5370
    %v5372 = vrot.slane %v5371, 2
    %v5373 = vadd.f32 %v5371, %v5372
    %v5374 = vrot.slane %v5373, 1
    %v5375 = vadd.f32 %v5373, %v5374
    %5376 = vmatprep.subr.mxu0 0.0
    %5377 = vmatpush1.msra.mxu0 %v5354
    %5378 = vmatprep.subr.mxu0 0.0
    %5379 = vmatpush1.msra.mxu0 %v5355
    %5380 = vmatprep.subr.mxu0 0.0
    %5381 = vmatpush1.msra.mxu0 %v5356
    %5382 = vmatprep.subr.mxu0 0.0
    %5383 = vmatpush1.msra.mxu0 %v5357
    %5384 = vmatprep.subr.mxu0 0.0
    %5385 = vmatpush1.msra.mxu0 %v5358
    %5386 = vmatprep.subr.mxu0 0.0
    %5387 = vmatpush1.msra.mxu0 %v5359
    %5388 = vmatprep.subr.mxu0 0.0
    %5389 = vmatpush1.msra.mxu0 %v5360
    %5390 = vmatprep.subr.mxu0 0.0
    %5391 = vmatpush1.msra.mxu0 %v5361
    %5392 = vmatprep.subr.mxu0 0.0
    %5393 = vmatpush1.msra.mxu0 %v5362
    %5394 = vmatprep.subr.mxu0 0.0
    %5395 = vmatpush1.msra.mxu0 %v5363
    %5396 = vmatprep.subr.mxu0 0.0
    %5397 = vmatpush1.msra.mxu0 %v5364
    %5398 = vmatprep.subr.mxu0 0.0
    %5399 = vmatpush1.msra.mxu0 %v5365
    %5400 = vmatprep.subr.mxu0 0.0
    %5401 = vmatpush1.msra.mxu0 %v5366
    %5402 = vmatprep.subr.mxu0 0.0
    %5403 = vmatpush1.msra.mxu0 %v5367
    %5404 = vmatprep.subr.mxu0 0.0
    %5405 = vmatpush1.msra.mxu0 %v5368
    %5406 = vmatprep.subr.mxu0 0.0
    %5407 = vmatpush1.msra.mxu0 %v5369
    %5408 = vmatprep.subr.mxu0 0.0
    %5409 = vmatpush1.msra.mxu0 0.0
    %5410 = vmatprep.subr.mxu0 0.0
    %5411 = vmatpush1.msra.mxu0 0.0
    %5412 = vmatprep.subr.mxu0 0.0
    %5413 = vmatpush1.msra.mxu0 0.0
    %5414 = vmatprep.subr.mxu0 0.0
    %5415 = vmatpush1.msra.mxu0 0.0
    %5416 = vmatprep.subr.mxu0 0.0
    %5417 = vmatpush1.msra.mxu0 0.0
    %5418 = vmatprep.subr.mxu0 0.0
    %5419 = vmatpush1.msra.mxu0 0.0
    %5420 = vmatprep.subr.mxu0 0.0
    %5421 = vmatpush1.msra.mxu0 0.0
    %5422 = vmatprep.subr.mxu0 0.0
    %5423 = vmatpush1.msra.mxu0 0.0
    %5424 = vmatprep.subr.mxu0 0.0
    %5425 = vmatpush1.msra.mxu0 0.0
    %5426 = vmatprep.subr.mxu0 0.0
    %5427 = vmatpush1.msra.mxu0 0.0
    %5428 = vmatprep.subr.mxu0 0.0
    %5429 = vmatpush1.msra.mxu0 0.0
    %5430 = vmatprep.subr.mxu0 0.0
    %5431 = vmatpush1.msra.mxu0 0.0
    %5432 = vmatprep.subr.mxu0 0.0
    %5433 = vmatpush1.msra.mxu0 0.0
    %5434 = vmatprep.subr.mxu0 0.0
    %5435 = vmatpush1.msra.mxu0 0.0
    %5436 = vmatprep.subr.mxu0 0.0
    %5437 = vmatpush1.msra.mxu0 0.0
    %5438 = vmatprep.subr.mxu0 0.0
    %5439 = vmatpush1.msra.mxu0 0.0
    %5440 = vmatprep.mubr.f32.mxu0 0.0
    %5441 = vmatmul.mubr.f32.gmra.mrb[0].mxu0 %v5375
    %v5442 = vpop.f32.mrb[0].mxu0
    %v5443 = vadd.f32 0.0, %v5442
    %v5444 = vpop.f32.mrb[0].mxu0
    %5445 = vdwg.mxu0
    %v5446 = vmul.f32 %v5443, 0.03125
    %v5447 = vmul.f32 %v5353, %v5353
    %v5448 = vrot.slane %v5447, 4
    %v5449 = vadd.f32 %v5447, %v5448
    %v5450 = vrot.slane %v5449, 2
    %v5451 = vadd.f32 %v5449, %v5450
    %v5452 = vrot.slane %v5451, 1
    %v5453 = vadd.f32 %v5451, %v5452
    %5454 = vmatprep.subr.mxu0 0.0
    %5455 = vmatpush1.msra.mxu0 %v5354
    %5456 = vmatprep.subr.mxu0 0.0
    %5457 = vmatpush1.msra.mxu0 %v5355
    %5458 = vmatprep.subr.mxu0 0.0
    %5459 = vmatpush1.msra.mxu0 %v5356
    %5460 = vmatprep.subr.mxu0 0.0
    %5461 = vmatpush1.msra.mxu0 %v5357
    %5462 = vmatprep.subr.mxu0 0.0
    %5463 = vmatpush1.msra.mxu0 %v5358
    %5464 = vmatprep.subr.mxu0 0.0
    %5465 = vmatpush1.msra.mxu0 %v5359
    %5466 = vmatprep.subr.mxu0 0.0
    %5467 = vmatpush1.msra.mxu0 %v5360
    %5468 = vmatprep.subr.mxu0 0.0
    %5469 = vmatpush1.msra.mxu0 %v5361
    %5470 = vmatprep.subr.mxu0 0.0
    %5471 = vmatpush1.msra.mxu0 %v5362
    %5472 = vmatprep.subr.mxu0 0.0
    %5473 = vmatpush1.msra.mxu0 %v5363
    %5474 = vmatprep.subr.mxu0 0.0
    %5475 = vmatpush1.msra.mxu0 %v5364
    %5476 = vmatprep.subr.mxu0 0.0
    %5477 = vmatpush1.msra.mxu0 %v5365
    %5478 = vmatprep.subr.mxu0 0.0
    %5479 = vmatpush1.msra.mxu0 %v5366
    %5480 = vmatprep.subr.mxu0 0.0
    %5481 = vmatpush1.msra.mxu0 %v5367
    %5482 = vmatprep.subr.mxu0 0.0
    %5483 = vmatpush1.msra.mxu0 %v5368
    %5484 = vmatprep.subr.mxu0 0.0
    %5485 = vmatpush1.msra.mxu0 %v5369
    %5486 = vmatprep.subr.mxu0 0.0
    %5487 = vmatpush1.msra.mxu0 0.0
    %5488 = vmatprep.subr.mxu0 0.0
    %5489 = vmatpush1.msra.mxu0 0.0
    %5490 = vmatprep.subr.mxu0 0.0
    %5491 = vmatpush1.msra.mxu0 0.0
    %5492 = vmatprep.subr.mxu0 0.0
    %5493 = vmatpush1.msra.mxu0 0.0
    %5494 = vmatprep.subr.mxu0 0.0
    %5495 = vmatpush1.msra.mxu0 0.0
    %5496 = vmatprep.subr.mxu0 0.0
    %5497 = vmatpush1.msra.mxu0 0.0
    %5498 = vmatprep.subr.mxu0 0.0
    %5499 = vmatpush1.msra.mxu0 0.0
    %5500 = vmatprep.subr.mxu0 0.0
    %5501 = vmatpush1.msra.mxu0 0.0
    %5502 = vmatprep.subr.mxu0 0.0
    %5503 = vmatpush1.msra.mxu0 0.0
    %5504 = vmatprep.subr.mxu0 0.0
    %5505 = vmatpush1.msra.mxu0 0.0
    %5506 = vmatprep.subr.mxu0 0.0
    %5507 = vmatpush1.msra.mxu0 0.0
    %5508 = vmatprep.subr.mxu0 0.0
    %5509 = vmatpush1.msra.mxu0 0.0
    %5510 = vmatprep.subr.mxu0 0.0
    %5511 = vmatpush1.msra.mxu0 0.0
    %5512 = vmatprep.subr.mxu0 0.0
    %5513 = vmatpush1.msra.mxu0 0.0
    %5514 = vmatprep.subr.mxu0 0.0
    %5515 = vmatpush1.msra.mxu0 0.0
    %5516 = vmatprep.subr.mxu0 0.0
    %5517 = vmatpush1.msra.mxu0 0.0
    %5518 = vmatprep.mubr.f32.mxu0 0.0
    %5519 = vmatmul.mubr.f32.gmra.mrb[0].mxu0 %v5453
    %v5520 = vpop.f32.mrb[0].mxu0
    %v5521 = vadd.f32 0.0, %v5520
    %v5522 = vpop.f32.mrb[0].mxu0
    %5523 = vdwg.mxu0
    %v5524 = vmul.f32 %v5521, 0.03125
    %v5525 = vmul.f32 %v5446, %v5446
    %v5526 = vsub.f32 %v5524, %v5525
    %v5527 = vadd.f32 %v5526, 1e-05
    %v5528 = vrsqrt.pop %v5527
    %v5529 = vmul.f32 %v4863, %v5528
    %v5530 = vmul.f32 %v5446, %v5529
    %v5531 = vsub.f32 %v4864, %v5530
    %v5533 = vlaneseq
    %v5534 = vshrl.u32 %v5533, 7
    %v5535 = vsub.s32 0, %v5534
    %v5536 = vrot.slane %v5529, %v5535
    %v5538 = vmul.f32 %v5353, %v5536
    %v5540 = vlaneseq
    %v5541 = vshrl.u32 %v5540, 7
    %v5542 = vsub.s32 0, %v5541
    %v5543 = vrot.slane %v5531, %v5542
    %v5545 = vadd.f32 %v5538, %v5543
    %v5546 = vmax.f32 %v5545, 0.0
    %s5547 = smul.u32 8, 16
    %s5548 = smul.u32 %s5547, 8
    %s5549 = sshll.u32 %s5548, 4
    %5550 = dma.done %s694, %s5549
    %v5551 = vld [vmem:[#allocation10] sm:$0xff]
    %v5552 = vld [vmem:[#allocation10 + $0x8] sm:$0xff]
    %v5553 = vld [vmem:[#allocation10 + $0x10] sm:$0xff]
    %v5554 = vld [vmem:[#allocation10 + $0x18] sm:$0xff]
    %v5555 = vld [vmem:[#allocation10 + $0x20] sm:$0xff]
    %v5556 = vld [vmem:[#allocation10 + $0x28] sm:$0xff]
    %v5557 = vld [vmem:[#allocation10 + $0x30] sm:$0xff]
    %v5558 = vld [vmem:[#allocation10 + $0x38] sm:$0xff]
    %v5559 = vld [vmem:[#allocation10 + $0x40] sm:$0xff]
    %v5560 = vld [vmem:[#allocation10 + $0x48] sm:$0xff]
    %v5561 = vld [vmem:[#allocation10 + $0x50] sm:$0xff]
    %v5562 = vld [vmem:[#allocation10 + $0x58] sm:$0xff]
    %v5563 = vld [vmem:[#allocation10 + $0x60] sm:$0xff]
    %v5564 = vld [vmem:[#allocation10 + $0x68] sm:$0xff]
    %v5565 = vld [vmem:[#allocation10 + $0x70] sm:$0xff]
    %v5566 = vld [vmem:[#allocation10 + $0x78] sm:$0xff]
    %v5567 = vld [vmem:[#allocation10 + $0x80] sm:$0xff]
    %v5568 = vld [vmem:[#allocation10 + $0x88] sm:$0xff]
    %v5569 = vld [vmem:[#allocation10 + $0x90] sm:$0xff]
    %v5570 = vld [vmem:[#allocation10 + $0x98] sm:$0xff]
    %v5571 = vld [vmem:[#allocation10 + $0xa0] sm:$0xff]
    %v5572 = vld [vmem:[#allocation10 + $0xa8] sm:$0xff]
    %v5573 = vld [vmem:[#allocation10 + $0xb0] sm:$0xff]
    %v5574 = vld [vmem:[#allocation10 + $0xb8] sm:$0xff]
    %v5575 = vld [vmem:[#allocation10 + $0xc0] sm:$0xff]
    %v5576 = vld [vmem:[#allocation10 + $0xc8] sm:$0xff]
    %v5577 = vld [vmem:[#allocation10 + $0xd0] sm:$0xff]
    %v5578 = vld [vmem:[#allocation10 + $0xd8] sm:$0xff]
    %v5579 = vld [vmem:[#allocation10 + $0xe0] sm:$0xff]
    %v5580 = vld [vmem:[#allocation10 + $0xe8] sm:$0xff]
    %v5581 = vld [vmem:[#allocation10 + $0xf0] sm:$0xff]
    %v5582 = vld [vmem:[#allocation10 + $0xf8] sm:$0xff]
    %v5583 = vld [vmem:[#allocation10 + $0x100] sm:$0xff]
    %v5584 = vld [vmem:[#allocation10 + $0x108] sm:$0xff]
    %v5585 = vld [vmem:[#allocation10 + $0x110] sm:$0xff]
    %v5586 = vld [vmem:[#allocation10 + $0x118] sm:$0xff]
    %v5587 = vld [vmem:[#allocation10 + $0x120] sm:$0xff]
    %v5588 = vld [vmem:[#allocation10 + $0x128] sm:$0xff]
    %v5589 = vld [vmem:[#allocation10 + $0x130] sm:$0xff]
    %v5590 = vld [vmem:[#allocation10 + $0x138] sm:$0xff]
    %v5591 = vld [vmem:[#allocation10 + $0x140] sm:$0xff]
    %v5592 = vld [vmem:[#allocation10 + $0x148] sm:$0xff]
    %v5593 = vld [vmem:[#allocation10 + $0x150] sm:$0xff]
    %v5594 = vld [vmem:[#allocation10 + $0x158] sm:$0xff]
    %v5595 = vld [vmem:[#allocation10 + $0x160] sm:$0xff]
    %v5596 = vld [vmem:[#allocation10 + $0x168] sm:$0xff]
    %v5597 = vld [vmem:[#allocation10 + $0x170] sm:$0xff]
    %v5598 = vld [vmem:[#allocation10 + $0x178] sm:$0xff]
    %v5599 = vld [vmem:[#allocation10 + $0x180] sm:$0xff]
    %v5600 = vld [vmem:[#allocation10 + $0x188] sm:$0xff]
    %v5601 = vld [vmem:[#allocation10 + $0x190] sm:$0xff]
    %v5602 = vld [vmem:[#allocation10 + $0x198] sm:$0xff]
    %v5603 = vld [vmem:[#allocation10 + $0x1a0] sm:$0xff]
    %v5604 = vld [vmem:[#allocation10 + $0x1a8] sm:$0xff]
    %v5605 = vld [vmem:[#allocation10 + $0x1b0] sm:$0xff]
    %v5606 = vld [vmem:[#allocation10 + $0x1b8] sm:$0xff]
    %v5607 = vld [vmem:[#allocation10 + $0x1c0] sm:$0xff]
    %v5608 = vld [vmem:[#allocation10 + $0x1c8] sm:$0xff]
    %v5609 = vld [vmem:[#allocation10 + $0x1d0] sm:$0xff]
    %v5610 = vld [vmem:[#allocation10 + $0x1d8] sm:$0xff]
    %v5611 = vld [vmem:[#allocation10 + $0x1e0] sm:$0xff]
    %v5612 = vld [vmem:[#allocation10 + $0x1e8] sm:$0xff]
    %v5613 = vld [vmem:[#allocation10 + $0x1f0] sm:$0xff]
    %v5614 = vld [vmem:[#allocation10 + $0x1f8] sm:$0xff]
    %v5615 = vld [vmem:[#allocation10 + $0x200] sm:$0xff]
    %v5616 = vld [vmem:[#allocation10 + $0x208] sm:$0xff]
    %v5617 = vld [vmem:[#allocation10 + $0x210] sm:$0xff]
    %v5618 = vld [vmem:[#allocation10 + $0x218] sm:$0xff]
    %v5619 = vld [vmem:[#allocation10 + $0x220] sm:$0xff]
    %v5620 = vld [vmem:[#allocation10 + $0x228] sm:$0xff]
    %v5621 = vld [vmem:[#allocation10 + $0x230] sm:$0xff]
    %v5622 = vld [vmem:[#allocation10 + $0x238] sm:$0xff]
    %v5623 = vld [vmem:[#allocation10 + $0x240] sm:$0xff]
    %v5624 = vld [vmem:[#allocation10 + $0x248] sm:$0xff]
    %v5625 = vld [vmem:[#allocation10 + $0x250] sm:$0xff]
    %v5626 = vld [vmem:[#allocation10 + $0x258] sm:$0xff]
    %v5627 = vld [vmem:[#allocation10 + $0x260] sm:$0xff]
    %v5628 = vld [vmem:[#allocation10 + $0x268] sm:$0xff]
    %v5629 = vld [vmem:[#allocation10 + $0x270] sm:$0xff]
    %v5630 = vld [vmem:[#allocation10 + $0x278] sm:$0xff]
    %v5631 = vld [vmem:[#allocation10 + $0x280] sm:$0xff]
    %v5632 = vld [vmem:[#allocation10 + $0x288] sm:$0xff]
    %v5633 = vld [vmem:[#allocation10 + $0x290] sm:$0xff]
    %v5634 = vld [vmem:[#allocation10 + $0x298] sm:$0xff]
    %v5635 = vld [vmem:[#allocation10 + $0x2a0] sm:$0xff]
    %v5636 = vld [vmem:[#allocation10 + $0x2a8] sm:$0xff]
    %v5637 = vld [vmem:[#allocation10 + $0x2b0] sm:$0xff]
    %v5638 = vld [vmem:[#allocation10 + $0x2b8] sm:$0xff]
    %v5639 = vld [vmem:[#allocation10 + $0x2c0] sm:$0xff]
    %v5640 = vld [vmem:[#allocation10 + $0x2c8] sm:$0xff]
    %v5641 = vld [vmem:[#allocation10 + $0x2d0] sm:$0xff]
    %v5642 = vld [vmem:[#allocation10 + $0x2d8] sm:$0xff]
    %v5643 = vld [vmem:[#allocation10 + $0x2e0] sm:$0xff]
    %v5644 = vld [vmem:[#allocation10 + $0x2e8] sm:$0xff]
    %v5645 = vld [vmem:[#allocation10 + $0x2f0] sm:$0xff]
    %v5646 = vld [vmem:[#allocation10 + $0x2f8] sm:$0xff]
    %v5647 = vld [vmem:[#allocation10 + $0x300] sm:$0xff]
    %v5648 = vld [vmem:[#allocation10 + $0x308] sm:$0xff]
    %v5649 = vld [vmem:[#allocation10 + $0x310] sm:$0xff]
    %v5650 = vld [vmem:[#allocation10 + $0x318] sm:$0xff]
    %v5651 = vld [vmem:[#allocation10 + $0x320] sm:$0xff]
    %v5652 = vld [vmem:[#allocation10 + $0x328] sm:$0xff]
    %v5653 = vld [vmem:[#allocation10 + $0x330] sm:$0xff]
    %v5654 = vld [vmem:[#allocation10 + $0x338] sm:$0xff]
    %v5655 = vld [vmem:[#allocation10 + $0x340] sm:$0xff]
    %v5656 = vld [vmem:[#allocation10 + $0x348] sm:$0xff]
    %v5657 = vld [vmem:[#allocation10 + $0x350] sm:$0xff]
    %v5658 = vld [vmem:[#allocation10 + $0x358] sm:$0xff]
    %v5659 = vld [vmem:[#allocation10 + $0x360] sm:$0xff]
    %v5660 = vld [vmem:[#allocation10 + $0x368] sm:$0xff]
    %v5661 = vld [vmem:[#allocation10 + $0x370] sm:$0xff]
    %v5662 = vld [vmem:[#allocation10 + $0x378] sm:$0xff]
    %v5663 = vld [vmem:[#allocation10 + $0x380] sm:$0xff]
    %v5664 = vld [vmem:[#allocation10 + $0x388] sm:$0xff]
    %v5665 = vld [vmem:[#allocation10 + $0x390] sm:$0xff]
    %v5666 = vld [vmem:[#allocation10 + $0x398] sm:$0xff]
    %v5667 = vld [vmem:[#allocation10 + $0x3a0] sm:$0xff]
    %v5668 = vld [vmem:[#allocation10 + $0x3a8] sm:$0xff]
    %v5669 = vld [vmem:[#allocation10 + $0x3b0] sm:$0xff]
    %v5670 = vld [vmem:[#allocation10 + $0x3b8] sm:$0xff]
    %v5671 = vld [vmem:[#allocation10 + $0x3c0] sm:$0xff]
    %v5672 = vld [vmem:[#allocation10 + $0x3c8] sm:$0xff]
    %v5673 = vld [vmem:[#allocation10 + $0x3d0] sm:$0xff]
    %v5674 = vld [vmem:[#allocation10 + $0x3d8] sm:$0xff]
    %v5675 = vld [vmem:[#allocation10 + $0x3e0] sm:$0xff]
    %v5676 = vld [vmem:[#allocation10 + $0x3e8] sm:$0xff]
    %v5677 = vld [vmem:[#allocation10 + $0x3f0] sm:$0xff]
    %v5678 = vld [vmem:[#allocation10 + $0x3f8] sm:$0xff]
    %s5679 = smul.u32 8, 1
    %s5680 = smul.u32 %s5679, 8
    %s5681 = sshll.u32 %s5680, 4
    %5682 = dma.done %s706, %s5681
    %v5683 = vld [vmem:[#allocation11] sm:$0xff]
    %v5684 = vld [vmem:[#allocation11 + $0x8] sm:$0xff]
    %v5685 = vld [vmem:[#allocation11 + $0x10] sm:$0xff]
    %v5686 = vld [vmem:[#allocation11 + $0x18] sm:$0xff]
    %v5687 = vld [vmem:[#allocation11 + $0x20] sm:$0xff]
    %v5688 = vld [vmem:[#allocation11 + $0x28] sm:$0xff]
    %v5689 = vld [vmem:[#allocation11 + $0x30] sm:$0xff]
    %v5690 = vld [vmem:[#allocation11 + $0x38] sm:$0xff]
    %s5691 = smul.u32 256, 1
    %s5692 = sshll.u32 %s5691, 4
    %5693 = dma.done %s718, %s5692
    %v5694 = vld [vmem:[#allocation12] sm:$0xff]
    %v5695 = vld [vmem:[#allocation12 + $0x8] sm:$0xff]
    %v5696 = vld [vmem:[#allocation12 + $0x10] sm:$0xff]
    %v5697 = vld [vmem:[#allocation12 + $0x18] sm:$0xff]
    %v5698 = vld [vmem:[#allocation12 + $0x20] sm:$0xff]
    %v5699 = vld [vmem:[#allocation12 + $0x28] sm:$0xff]
    %v5700 = vld [vmem:[#allocation12 + $0x30] sm:$0xff]
    %v5701 = vld [vmem:[#allocation12 + $0x38] sm:$0xff]
    %v5702 = vld [vmem:[#allocation12 + $0x40] sm:$0xff]
    %v5703 = vld [vmem:[#allocation12 + $0x48] sm:$0xff]
    %v5704 = vld [vmem:[#allocation12 + $0x50] sm:$0xff]
    %v5705 = vld [vmem:[#allocation12 + $0x58] sm:$0xff]
    %v5706 = vld [vmem:[#allocation12 + $0x60] sm:$0xff]
    %v5707 = vld [vmem:[#allocation12 + $0x68] sm:$0xff]
    %v5708 = vld [vmem:[#allocation12 + $0x70] sm:$0xff]
    %v5709 = vld [vmem:[#allocation12 + $0x78] sm:$0xff]
    %v5710 = vld [vmem:[#allocation12 + $0x80] sm:$0xff]
    %v5711 = vld [vmem:[#allocation12 + $0x88] sm:$0xff]
    %v5712 = vld [vmem:[#allocation12 + $0x90] sm:$0xff]
    %v5713 = vld [vmem:[#allocation12 + $0x98] sm:$0xff]
    %v5714 = vld [vmem:[#allocation12 + $0xa0] sm:$0xff]
    %v5715 = vld [vmem:[#allocation12 + $0xa8] sm:$0xff]
    %v5716 = vld [vmem:[#allocation12 + $0xb0] sm:$0xff]
    %v5717 = vld [vmem:[#allocation12 + $0xb8] sm:$0xff]
    %v5718 = vld [vmem:[#allocation12 + $0xc0] sm:$0xff]
    %v5719 = vld [vmem:[#allocation12 + $0xc8] sm:$0xff]
    %v5720 = vld [vmem:[#allocation12 + $0xd0] sm:$0xff]
    %v5721 = vld [vmem:[#allocation12 + $0xd8] sm:$0xff]
    %v5722 = vld [vmem:[#allocation12 + $0xe0] sm:$0xff]
    %v5723 = vld [vmem:[#allocation12 + $0xe8] sm:$0xff]
    %v5724 = vld [vmem:[#allocation12 + $0xf0] sm:$0xff]
    %v5725 = vld [vmem:[#allocation12 + $0xf8] sm:$0xff]
    %v5726 = vld [vmem:[%s53] sm:$0x3]
    %v5727 = vld [vmem:[%s55] sm:$0x3]
    %v5728 = vld [vmem:[%s59] sm:$0x1]
    %5729 = vmatprep.subr.mxu0 %v5552
    %5730 = vmatpush1.msra.mxu0 %v5551
    %5731 = vmatprep.subr.mxu0 %v5560
    %5732 = vmatpush1.msra.mxu0 %v5559
    %5733 = vmatprep.subr.mxu0 %v5568
    %5734 = vmatpush1.msra.mxu0 %v5567
    %5735 = vmatprep.subr.mxu0 %v5576
    %5736 = vmatpush1.msra.mxu0 %v5575
    %5737 = vmatprep.subr.mxu0 %v5584
    %5738 = vmatpush1.msra.mxu0 %v5583
    %5739 = vmatprep.subr.mxu0 %v5592
    %5740 = vmatpush1.msra.mxu0 %v5591
    %5741 = vmatprep.subr.mxu0 %v5600
    %5742 = vmatpush1.msra.mxu0 %v5599
    %5743 = vmatprep.subr.mxu0 %v5608
    %5744 = vmatpush1.msra.mxu0 %v5607
    %5745 = vmatprep.subr.mxu0 %v5616
    %5746 = vmatpush1.msra.mxu0 %v5615
    %5747 = vmatprep.subr.mxu0 %v5624
    %5748 = vmatpush1.msra.mxu0 %v5623
    %5749 = vmatprep.subr.mxu0 %v5632
    %5750 = vmatpush1.msra.mxu0 %v5631
    %5751 = vmatprep.subr.mxu0 %v5640
    %5752 = vmatpush1.msra.mxu0 %v5639
    %5753 = vmatprep.subr.mxu0 %v5648
    %5754 = vmatpush1.msra.mxu0 %v5647
    %5755 = vmatprep.subr.mxu0 %v5656
    %5756 = vmatpush1.msra.mxu0 %v5655
    %5757 = vmatprep.subr.mxu0 %v5664
    %5758 = vmatpush1.msra.mxu0 %v5663
    %5759 = vmatprep.subr.mxu0 %v5672
    %5760 = vmatpush1.msra.mxu0 %v5671
    %5761 = vmatprep.subr.mxu0 0.0
    %5762 = vmatpush1.msra.mxu0 0.0
    %5763 = vmatprep.subr.mxu0 0.0
    %5764 = vmatpush1.msra.mxu0 0.0
    %5765 = vmatprep.subr.mxu0 0.0
    %5766 = vmatpush1.msra.mxu0 0.0
    %5767 = vmatprep.subr.mxu0 0.0
    %5768 = vmatpush1.msra.mxu0 0.0
    %5769 = vmatprep.subr.mxu0 0.0
    %5770 = vmatpush1.msra.mxu0 0.0
    %5771 = vmatprep.subr.mxu0 0.0
    %5772 = vmatpush1.msra.mxu0 0.0
    %5773 = vmatprep.subr.mxu0 0.0
    %5774 = vmatpush1.msra.mxu0 0.0
    %5775 = vmatprep.subr.mxu0 0.0
    %5776 = vmatpush1.msra.mxu0 0.0
    %5777 = vmatprep.subr.mxu0 0.0
    %5778 = vmatpush1.msra.mxu0 0.0
    %5779 = vmatprep.subr.mxu0 0.0
    %5780 = vmatpush1.msra.mxu0 0.0
    %5781 = vmatprep.subr.mxu0 0.0
    %5782 = vmatpush1.msra.mxu0 0.0
    %5783 = vmatprep.subr.mxu0 0.0
    %5784 = vmatpush1.msra.mxu0 0.0
    %5785 = vmatprep.subr.mxu0 0.0
    %5786 = vmatpush1.msra.mxu0 0.0
    %5787 = vmatprep.subr.mxu0 0.0
    %5788 = vmatpush1.msra.mxu0 0.0
    %5789 = vmatprep.subr.mxu0 0.0
    %5790 = vmatpush1.msra.mxu0 0.0
    %5791 = vmatprep.subr.mxu0 0.0
    %5792 = vmatpush1.msra.mxu0 0.0
    %5793 = vmatprep.mubr.f32.mxu0 0.0
    %5794 = vmatmul.mubr.f32.gmra.mrb[0].mxu0 %v5546
    %v5795 = vpop.f32.mrb[0].mxu0
    %v5796 = vadd.f32 0.0, %v5795
    %v5797 = vpop.f32.mrb[0].mxu0
    %v5798 = vadd.f32 0.0, %v5797
    %5799 = vdwg.mxu0
    %5800 = vmatprep.subr.mxu0 %v5554
    %5801 = vmatpush1.msra.mxu0 %v5553
    %5802 = vmatprep.subr.mxu0 %v5562
    %5803 = vmatpush1.msra.mxu0 %v5561
    %5804 = vmatprep.subr.mxu0 %v5570
    %5805 = vmatpush1.msra.mxu0 %v5569
    %5806 = vmatprep.subr.mxu0 %v5578
    %5807 = vmatpush1.msra.mxu0 %v5577
    %5808 = vmatprep.subr.mxu0 %v5586
    %5809 = vmatpush1.msra.mxu0 %v5585
    %5810 = vmatprep.subr.mxu0 %v5594
    %5811 = vmatpush1.msra.mxu0 %v5593
    %5812 = vmatprep.subr.mxu0 %v5602
    %5813 = vmatpush1.msra.mxu0 %v5601
    %5814 = vmatprep.subr.mxu0 %v5610
    %5815 = vmatpush1.msra.mxu0 %v5609
    %5816 = vmatprep.subr.mxu0 %v5618
    %5817 = vmatpush1.msra.mxu0 %v5617
    %5818 = vmatprep.subr.mxu0 %v5626
    %5819 = vmatpush1.msra.mxu0 %v5625
    %5820 = vmatprep.subr.mxu0 %v5634
    %5821 = vmatpush1.msra.mxu0 %v5633
    %5822 = vmatprep.subr.mxu0 %v5642
    %5823 = vmatpush1.msra.mxu0 %v5641
    %5824 = vmatprep.subr.mxu0 %v5650
    %5825 = vmatpush1.msra.mxu0 %v5649
    %5826 = vmatprep.subr.mxu0 %v5658
    %5827 = vmatpush1.msra.mxu0 %v5657
    %5828 = vmatprep.subr.mxu0 %v5666
    %5829 = vmatpush1.msra.mxu0 %v5665
    %5830 = vmatprep.subr.mxu0 %v5674
    %5831 = vmatpush1.msra.mxu0 %v5673
    %5832 = vmatprep.subr.mxu0 0.0
    %5833 = vmatpush1.msra.mxu0 0.0
    %5834 = vmatprep.subr.mxu0 0.0
    %5835 = vmatpush1.msra.mxu0 0.0
    %5836 = vmatprep.subr.mxu0 0.0
    %5837 = vmatpush1.msra.mxu0 0.0
    %5838 = vmatprep.subr.mxu0 0.0
    %5839 = vmatpush1.msra.mxu0 0.0
    %5840 = vmatprep.subr.mxu0 0.0
    %5841 = vmatpush1.msra.mxu0 0.0
    %5842 = vmatprep.subr.mxu0 0.0
    %5843 = vmatpush1.msra.mxu0 0.0
    %5844 = vmatprep.subr.mxu0 0.0
    %5845 = vmatpush1.msra.mxu0 0.0
    %5846 = vmatprep.subr.mxu0 0.0
    %5847 = vmatpush1.msra.mxu0 0.0
    %5848 = vmatprep.subr.mxu0 0.0
    %5849 = vmatpush1.msra.mxu0 0.0
    %5850 = vmatprep.subr.mxu0 0.0
    %5851 = vmatpush1.msra.mxu0 0.0
    %5852 = vmatprep.subr.mxu0 0.0
    %5853 = vmatpush1.msra.mxu0 0.0
    %5854 = vmatprep.subr.mxu0 0.0
    %5855 = vmatpush1.msra.mxu0 0.0
    %5856 = vmatprep.subr.mxu0 0.0
    %5857 = vmatpush1.msra.mxu0 0.0
    %5858 = vmatprep.subr.mxu0 0.0
    %5859 = vmatpush1.msra.mxu0 0.0
    %5860 = vmatprep.subr.mxu0 0.0
    %5861 = vmatpush1.msra.mxu0 0.0
    %5862 = vmatprep.subr.mxu0 0.0
    %5863 = vmatpush1.msra.mxu0 0.0
    %5864 = vmatprep.mubr.f32.mxu0 0.0
    %5865 = vmatmul.mubr.f32.gmra.mrb[0].mxu0 %v5546
    %v5866 = vpop.f32.mrb[0].mxu0
    %v5867 = vadd.f32 0.0, %v5866
    %v5868 = vpop.f32.mrb[0].mxu0
    %v5869 = vadd.f32 0.0, %v5868
    %5870 = vdwg.mxu0
    %5871 = vmatprep.subr.mxu0 %v5556
    %5872 = vmatpush1.msra.mxu0 %v5555
    %5873 = vmatprep.subr.mxu0 %v5564
    %5874 = vmatpush1.msra.mxu0 %v5563
    %5875 = vmatprep.subr.mxu0 %v5572
    %5876 = vmatpush1.msra.mxu0 %v5571
    %5877 = vmatprep.subr.mxu0 %v5580
    %5878 = vmatpush1.msra.mxu0 %v5579
    %5879 = vmatprep.subr.mxu0 %v5588
    %5880 = vmatpush1.msra.mxu0 %v5587
    %5881 = vmatprep.subr.mxu0 %v5596
    %5882 = vmatpush1.msra.mxu0 %v5595
    %5883 = vmatprep.subr.mxu0 %v5604
    %5884 = vmatpush1.msra.mxu0 %v5603
    %5885 = vmatprep.subr.mxu0 %v5612
    %5886 = vmatpush1.msra.mxu0 %v5611
    %5887 = vmatprep.subr.mxu0 %v5620
    %5888 = vmatpush1.msra.mxu0 %v5619
    %5889 = vmatprep.subr.mxu0 %v5628
    %5890 = vmatpush1.msra.mxu0 %v5627
    %5891 = vmatprep.subr.mxu0 %v5636
    %5892 = vmatpush1.msra.mxu0 %v5635
    %5893 = vmatprep.subr.mxu0 %v5644
    %5894 = vmatpush1.msra.mxu0 %v5643
    %5895 = vmatprep.subr.mxu0 %v5652
    %5896 = vmatpush1.msra.mxu0 %v5651
    %5897 = vmatprep.subr.mxu0 %v5660
    %5898 = vmatpush1.msra.mxu0 %v5659
    %5899 = vmatprep.subr.mxu0 %v5668
    %5900 = vmatpush1.msra.mxu0 %v5667
    %5901 = vmatprep.subr.mxu0 %v5676
    %5902 = vmatpush1.msra.mxu0 %v5675
    %5903 = vmatprep.subr.mxu0 0.0
    %5904 = vmatpush1.msra.mxu0 0.0
    %5905 = vmatprep.subr.mxu0 0.0
    %5906 = vmatpush1.msra.mxu0 0.0
    %5907 = vmatprep.subr.mxu0 0.0
    %5908 = vmatpush1.msra.mxu0 0.0
    %5909 = vmatprep.subr.mxu0 0.0
    %5910 = vmatpush1.msra.mxu0 0.0
    %5911 = vmatprep.subr.mxu0 0.0
    %5912 = vmatpush1.msra.mxu0 0.0
    %5913 = vmatprep.subr.mxu0 0.0
    %5914 = vmatpush1.msra.mxu0 0.0
    %5915 = vmatprep.subr.mxu0 0.0
    %5916 = vmatpush1.msra.mxu0 0.0
    %5917 = vmatprep.subr.mxu0 0.0
    %5918 = vmatpush1.msra.mxu0 0.0
    %5919 = vmatprep.subr.mxu0 0.0
    %5920 = vmatpush1.msra.mxu0 0.0
    %5921 = vmatprep.subr.mxu0 0.0
    %5922 = vmatpush1.msra.mxu0 0.0
    %5923 = vmatprep.subr.mxu0 0.0
    %5924 = vmatpush1.msra.mxu0 0.0
    %5925 = vmatprep.subr.mxu0 0.0
    %5926 = vmatpush1.msra.mxu0 0.0
    %5927 = vmatprep.subr.mxu0 0.0
    %5928 = vmatpush1.msra.mxu0 0.0
    %5929 = vmatprep.subr.mxu0 0.0
    %5930 = vmatpush1.msra.mxu0 0.0
    %5931 = vmatprep.subr.mxu0 0.0
    %5932 = vmatpush1.msra.mxu0 0.0
    %5933 = vmatprep.subr.mxu0 0.0
    %5934 = vmatpush1.msra.mxu0 0.0
    %5935 = vmatprep.mubr.f32.mxu0 0.0
    %5936 = vmatmul.mubr.f32.gmra.mrb[0].mxu0 %v5546
    %v5937 = vpop.f32.mrb[0].mxu0
    %v5938 = vadd.f32 0.0, %v5937
    %v5939 = vpop.f32.mrb[0].mxu0
    %v5940 = vadd.f32 0.0, %v5939
    %5941 = vdwg.mxu0
    %5942 = vmatprep.subr.mxu0 %v5558
    %5943 = vmatpush1.msra.mxu0 %v5557
    %5944 = vmatprep.subr.mxu0 %v5566
    %5945 = vmatpush1.msra.mxu0 %v5565
    %5946 = vmatprep.subr.mxu0 %v5574
    %5947 = vmatpush1.msra.mxu0 %v5573
    %5948 = vmatprep.subr.mxu0 %v5582
    %5949 = vmatpush1.msra.mxu0 %v5581
    %5950 = vmatprep.subr.mxu0 %v5590
    %5951 = vmatpush1.msra.mxu0 %v5589
    %5952 = vmatprep.subr.mxu0 %v5598
    %5953 = vmatpush1.msra.mxu0 %v5597
    %5954 = vmatprep.subr.mxu0 %v5606
    %5955 = vmatpush1.msra.mxu0 %v5605
    %5956 = vmatprep.subr.mxu0 %v5614
    %5957 = vmatpush1.msra.mxu0 %v5613
    %5958 = vmatprep.subr.mxu0 %v5622
    %5959 = vmatpush1.msra.mxu0 %v5621
    %5960 = vmatprep.subr.mxu0 %v5630
    %5961 = vmatpush1.msra.mxu0 %v5629
    %5962 = vmatprep.subr.mxu0 %v5638
    %5963 = vmatpush1.msra.mxu0 %v5637
    %5964 = vmatprep.subr.mxu0 %v5646
    %5965 = vmatpush1.msra.mxu0 %v5645
    %5966 = vmatprep.subr.mxu0 %v5654
    %5967 = vmatpush1.msra.mxu0 %v5653
    %5968 = vmatprep.subr.mxu0 %v5662
    %5969 = vmatpush1.msra.mxu0 %v5661
    %5970 = vmatprep.subr.mxu0 %v5670
    %5971 = vmatpush1.msra.mxu0 %v5669
    %5972 = vmatprep.subr.mxu0 %v5678
    %5973 = vmatpush1.msra.mxu0 %v5677
    %5974 = vmatprep.subr.mxu0 0.0
    %5975 = vmatpush1.msra.mxu0 0.0
    %5976 = vmatprep.subr.mxu0 0.0
    %5977 = vmatpush1.msra.mxu0 0.0
    %5978 = vmatprep.subr.mxu0 0.0
    %5979 = vmatpush1.msra.mxu0 0.0
    %5980 = vmatprep.subr.mxu0 0.0
    %5981 = vmatpush1.msra.mxu0 0.0
    %5982 = vmatprep.subr.mxu0 0.0
    %5983 = vmatpush1.msra.mxu0 0.0
    %5984 = vmatprep.subr.mxu0 0.0
    %5985 = vmatpush1.msra.mxu0 0.0
    %5986 = vmatprep.subr.mxu0 0.0
    %5987 = vmatpush1.msra.mxu0 0.0
    %5988 = vmatprep.subr.mxu0 0.0
    %5989 = vmatpush1.msra.mxu0 0.0
    %5990 = vmatprep.subr.mxu0 0.0
    %5991 = vmatpush1.msra.mxu0 0.0
    %5992 = vmatprep.subr.mxu0 0.0
    %5993 = vmatpush1.msra.mxu0 0.0
    %5994 = vmatprep.subr.mxu0 0.0
    %5995 = vmatpush1.msra.mxu0 0.0
    %5996 = vmatprep.subr.mxu0 0.0
    %5997 = vmatpush1.msra.mxu0 0.0
    %5998 = vmatprep.subr.mxu0 0.0
    %5999 = vmatpush1.msra.mxu0 0.0
    %6000 = vmatprep.subr.mxu0 0.0
    %6001 = vmatpush1.msra.mxu0 0.0
    %6002 = vmatprep.subr.mxu0 0.0
    %6003 = vmatpush1.msra.mxu0 0.0
    %6004 = vmatprep.subr.mxu0 0.0
    %6005 = vmatpush1.msra.mxu0 0.0
    %6006 = vmatprep.mubr.f32.mxu0 0.0
    %6007 = vmatmul.mubr.f32.gmra.mrb[0].mxu0 %v5546
    %v6008 = vpop.f32.mrb[0].mxu0
    %v6009 = vadd.f32 0.0, %v6008
    %v6010 = vpop.f32.mrb[0].mxu0
    %v6011 = vadd.f32 0.0, %v6010
    %6012 = vdwg.mxu0
    %v6013 = vmul.f32 %v5796, %v5683
    %v6014 = vmul.f32 %v5798, %v5684
    %v6015 = vmul.f32 %v5867, %v5685
    %v6016 = vmul.f32 %v5869, %v5686
    %v6017 = vmul.f32 %v5938, %v5687
    %v6018 = vmul.f32 %v5940, %v5688
    %v6019 = vmul.f32 %v6009, %v5689
    %v6020 = vmul.f32 %v6011, %v5690
    %v6022 = vsel %vm2133, %v5726, 0
    %6024 = vmatprep.subr.mxu0 %v6014
    %6025 = vmatpush1.msra.mxu0 %v6013
    %6026 = vmatprep.subr.mxu0 0.0
    %6027 = vmatpush1.msra.mxu0 0.0
    %6028 = vmatprep.subr.mxu0 0.0
    %6029 = vmatpush1.msra.mxu0 0.0
    %6030 = vmatprep.subr.mxu0 0.0
    %6031 = vmatpush1.msra.mxu0 0.0
    %6032 = vmatprep.subr.mxu0 0.0
    %6033 = vmatpush1.msra.mxu0 0.0
    %6034 = vmatprep.subr.mxu0 0.0
    %6035 = vmatpush1.msra.mxu0 0.0
    %6036 = vmatprep.subr.mxu0 0.0
    %6037 = vmatpush1.msra.mxu0 0.0
    %6038 = vmatprep.subr.mxu0 0.0
    %6039 = vmatpush1.msra.mxu0 0.0
    %6040 = vmatprep.subr.mxu0 0.0
    %6041 = vmatpush1.msra.mxu0 0.0
    %6042 = vmatprep.subr.mxu0 0.0
    %6043 = vmatpush1.msra.mxu0 0.0
    %6044 = vmatprep.subr.mxu0 0.0
    %6045 = vmatpush1.msra.mxu0 0.0
    %6046 = vmatprep.subr.mxu0 0.0
    %6047 = vmatpush1.msra.mxu0 0.0
    %6048 = vmatprep.subr.mxu0 0.0
    %6049 = vmatpush1.msra.mxu0 0.0
    %6050 = vmatprep.subr.mxu0 0.0
    %6051 = vmatpush1.msra.mxu0 0.0
    %6052 = vmatprep.subr.mxu0 0.0
    %6053 = vmatpush1.msra.mxu0 0.0
    %6054 = vmatprep.subr.mxu0 0.0
    %6055 = vmatpush1.msra.mxu0 0.0
    %6056 = vmatprep.subr.mxu0 0.0
    %6057 = vmatpush1.msra.mxu0 0.0
    %6058 = vmatprep.subr.mxu0 0.0
    %6059 = vmatpush1.msra.mxu0 0.0
    %6060 = vmatprep.subr.mxu0 0.0
    %6061 = vmatpush1.msra.mxu0 0.0
    %6062 = vmatprep.subr.mxu0 0.0
    %6063 = vmatpush1.msra.mxu0 0.0
    %6064 = vmatprep.subr.mxu0 0.0
    %6065 = vmatpush1.msra.mxu0 0.0
    %6066 = vmatprep.subr.mxu0 0.0
    %6067 = vmatpush1.msra.mxu0 0.0
    %6068 = vmatprep.subr.mxu0 0.0
    %6069 = vmatpush1.msra.mxu0 0.0
    %6070 = vmatprep.subr.mxu0 0.0
    %6071 = vmatpush1.msra.mxu0 0.0
    %6072 = vmatprep.subr.mxu0 0.0
    %6073 = vmatpush1.msra.mxu0 0.0
    %6074 = vmatprep.subr.mxu0 0.0
    %6075 = vmatpush1.msra.mxu0 0.0
    %6076 = vmatprep.subr.mxu0 0.0
    %6077 = vmatpush1.msra.mxu0 0.0
    %6078 = vmatprep.subr.mxu0 0.0
    %6079 = vmatpush1.msra.mxu0 0.0
    %6080 = vmatprep.subr.mxu0 0.0
    %6081 = vmatpush1.msra.mxu0 0.0
    %6082 = vmatprep.subr.mxu0 0.0
    %6083 = vmatpush1.msra.mxu0 0.0
    %6084 = vmatprep.subr.mxu0 0.0
    %6085 = vmatpush1.msra.mxu0 0.0
    %6086 = vmatprep.subr.mxu0 0.0
    %6087 = vmatpush1.msra.mxu0 0.0
    %6088 = vmatprep.mubr.f32.mxu0 0.0
    %6089 = vmatmul.mubr.f32.gmra.mrb[0].mxu0 %v6022
    %v6090 = vpop.f32.mrb[0].mxu0
    %v6091 = vadd.f32 0.0, %v6090
    %v6092 = vpop.f32.mrb[0].mxu0
    %v6093 = vadd.f32 0.0, %v6092
    %6094 = vdwg.mxu0
    %6095 = vmatprep.subr.mxu0 %v6016
    %6096 = vmatpush1.msra.mxu0 %v6015
    %6097 = vmatprep.subr.mxu0 0.0
    %6098 = vmatpush1.msra.mxu0 0.0
    %6099 = vmatprep.subr.mxu0 0.0
    %6100 = vmatpush1.msra.mxu0 0.0
    %6101 = vmatprep.subr.mxu0 0.0
    %6102 = vmatpush1.msra.mxu0 0.0
    %6103 = vmatprep.subr.mxu0 0.0
    %6104 = vmatpush1.msra.mxu0 0.0
    %6105 = vmatprep.subr.mxu0 0.0
    %6106 = vmatpush1.msra.mxu0 0.0
    %6107 = vmatprep.subr.mxu0 0.0
    %6108 = vmatpush1.msra.mxu0 0.0
    %6109 = vmatprep.subr.mxu0 0.0
    %6110 = vmatpush1.msra.mxu0 0.0
    %6111 = vmatprep.subr.mxu0 0.0
    %6112 = vmatpush1.msra.mxu0 0.0
    %6113 = vmatprep.subr.mxu0 0.0
    %6114 = vmatpush1.msra.mxu0 0.0
    %6115 = vmatprep.subr.mxu0 0.0
    %6116 = vmatpush1.msra.mxu0 0.0
    %6117 = vmatprep.subr.mxu0 0.0
    %6118 = vmatpush1.msra.mxu0 0.0
    %6119 = vmatprep.subr.mxu0 0.0
    %6120 = vmatpush1.msra.mxu0 0.0
    %6121 = vmatprep.subr.mxu0 0.0
    %6122 = vmatpush1.msra.mxu0 0.0
    %6123 = vmatprep.subr.mxu0 0.0
    %6124 = vmatpush1.msra.mxu0 0.0
    %6125 = vmatprep.subr.mxu0 0.0
    %6126 = vmatpush1.msra.mxu0 0.0
    %6127 = vmatprep.subr.mxu0 0.0
    %6128 = vmatpush1.msra.mxu0 0.0
    %6129 = vmatprep.subr.mxu0 0.0
    %6130 = vmatpush1.msra.mxu0 0.0
    %6131 = vmatprep.subr.mxu0 0.0
    %6132 = vmatpush1.msra.mxu0 0.0
    %6133 = vmatprep.subr.mxu0 0.0
    %6134 = vmatpush1.msra.mxu0 0.0
    %6135 = vmatprep.subr.mxu0 0.0
    %6136 = vmatpush1.msra.mxu0 0.0
    %6137 = vmatprep.subr.mxu0 0.0
    %6138 = vmatpush1.msra.mxu0 0.0
    %6139 = vmatprep.subr.mxu0 0.0
    %6140 = vmatpush1.msra.mxu0 0.0
    %6141 = vmatprep.subr.mxu0 0.0
    %6142 = vmatpush1.msra.mxu0 0.0
    %6143 = vmatprep.subr.mxu0 0.0
    %6144 = vmatpush1.msra.mxu0 0.0
    %6145 = vmatprep.subr.mxu0 0.0
    %6146 = vmatpush1.msra.mxu0 0.0
    %6147 = vmatprep.subr.mxu0 0.0
    %6148 = vmatpush1.msra.mxu0 0.0
    %6149 = vmatprep.subr.mxu0 0.0
    %6150 = vmatpush1.msra.mxu0 0.0
    %6151 = vmatprep.subr.mxu0 0.0
    %6152 = vmatpush1.msra.mxu0 0.0
    %6153 = vmatprep.subr.mxu0 0.0
    %6154 = vmatpush1.msra.mxu0 0.0
    %6155 = vmatprep.subr.mxu0 0.0
    %6156 = vmatpush1.msra.mxu0 0.0
    %6157 = vmatprep.subr.mxu0 0.0
    %6158 = vmatpush1.msra.mxu0 0.0
    %6159 = vmatprep.mubr.f32.mxu0 0.0
    %6160 = vmatmul.mubr.f32.gmra.mrb[0].mxu0 %v6022
    %v6161 = vpop.f32.mrb[0].mxu0
    %v6162 = vadd.f32 0.0, %v6161
    %v6163 = vpop.f32.mrb[0].mxu0
    %v6164 = vadd.f32 0.0, %v6163
    %6165 = vdwg.mxu0
    %6166 = vmatprep.subr.mxu0 %v6018
    %6167 = vmatpush1.msra.mxu0 %v6017
    %6168 = vmatprep.subr.mxu0 0.0
    %6169 = vmatpush1.msra.mxu0 0.0
    %6170 = vmatprep.subr.mxu0 0.0
    %6171 = vmatpush1.msra.mxu0 0.0
    %6172 = vmatprep.subr.mxu0 0.0
    %6173 = vmatpush1.msra.mxu0 0.0
    %6174 = vmatprep.subr.mxu0 0.0
    %6175 = vmatpush1.msra.mxu0 0.0
    %6176 = vmatprep.subr.mxu0 0.0
    %6177 = vmatpush1.msra.mxu0 0.0
    %6178 = vmatprep.subr.mxu0 0.0
    %6179 = vmatpush1.msra.mxu0 0.0
    %6180 = vmatprep.subr.mxu0 0.0
    %6181 = vmatpush1.msra.mxu0 0.0
    %6182 = vmatprep.subr.mxu0 0.0
    %6183 = vmatpush1.msra.mxu0 0.0
    %6184 = vmatprep.subr.mxu0 0.0
    %6185 = vmatpush1.msra.mxu0 0.0
    %6186 = vmatprep.subr.mxu0 0.0
    %6187 = vmatpush1.msra.mxu0 0.0
    %6188 = vmatprep.subr.mxu0 0.0
    %6189 = vmatpush1.msra.mxu0 0.0
    %6190 = vmatprep.subr.mxu0 0.0
    %6191 = vmatpush1.msra.mxu0 0.0
    %6192 = vmatprep.subr.mxu0 0.0
    %6193 = vmatpush1.msra.mxu0 0.0
    %6194 = vmatprep.subr.mxu0 0.0
    %6195 = vmatpush1.msra.mxu0 0.0
    %6196 = vmatprep.subr.mxu0 0.0
    %6197 = vmatpush1.msra.mxu0 0.0
    %6198 = vmatprep.subr.mxu0 0.0
    %6199 = vmatpush1.msra.mxu0 0.0
    %6200 = vmatprep.subr.mxu0 0.0
    %6201 = vmatpush1.msra.mxu0 0.0
    %6202 = vmatprep.subr.mxu0 0.0
    %6203 = vmatpush1.msra.mxu0 0.0
    %6204 = vmatprep.subr.mxu0 0.0
    %6205 = vmatpush1.msra.mxu0 0.0
    %6206 = vmatprep.subr.mxu0 0.0
    %6207 = vmatpush1.msra.mxu0 0.0
    %6208 = vmatprep.subr.mxu0 0.0
    %6209 = vmatpush1.msra.mxu0 0.0
    %6210 = vmatprep.subr.mxu0 0.0
    %6211 = vmatpush1.msra.mxu0 0.0
    %6212 = vmatprep.subr.mxu0 0.0
    %6213 = vmatpush1.msra.mxu0 0.0
    %6214 = vmatprep.subr.mxu0 0.0
    %6215 = vmatpush1.msra.mxu0 0.0
    %6216 = vmatprep.subr.mxu0 0.0
    %6217 = vmatpush1.msra.mxu0 0.0
    %6218 = vmatprep.subr.mxu0 0.0
    %6219 = vmatpush1.msra.mxu0 0.0
    %6220 = vmatprep.subr.mxu0 0.0
    %6221 = vmatpush1.msra.mxu0 0.0
    %6222 = vmatprep.subr.mxu0 0.0
    %6223 = vmatpush1.msra.mxu0 0.0
    %6224 = vmatprep.subr.mxu0 0.0
    %6225 = vmatpush1.msra.mxu0 0.0
    %6226 = vmatprep.subr.mxu0 0.0
    %6227 = vmatpush1.msra.mxu0 0.0
    %6228 = vmatprep.subr.mxu0 0.0
    %6229 = vmatpush1.msra.mxu0 0.0
    %6230 = vmatprep.mubr.f32.mxu0 0.0
    %6231 = vmatmul.mubr.f32.gmra.mrb[0].mxu0 %v6022
    %v6232 = vpop.f32.mrb[0].mxu0
    %v6233 = vadd.f32 0.0, %v6232
    %v6234 = vpop.f32.mrb[0].mxu0
    %v6235 = vadd.f32 0.0, %v6234
    %6236 = vdwg.mxu0
    %6237 = vmatprep.subr.mxu0 %v6020
    %6238 = vmatpush1.msra.mxu0 %v6019
    %6239 = vmatprep.subr.mxu0 0.0
    %6240 = vmatpush1.msra.mxu0 0.0
    %6241 = vmatprep.subr.mxu0 0.0
    %6242 = vmatpush1.msra.mxu0 0.0
    %6243 = vmatprep.subr.mxu0 0.0
    %6244 = vmatpush1.msra.mxu0 0.0
    %6245 = vmatprep.subr.mxu0 0.0
    %6246 = vmatpush1.msra.mxu0 0.0
    %6247 = vmatprep.subr.mxu0 0.0
    %6248 = vmatpush1.msra.mxu0 0.0
    %6249 = vmatprep.subr.mxu0 0.0
    %6250 = vmatpush1.msra.mxu0 0.0
    %6251 = vmatprep.subr.mxu0 0.0
    %6252 = vmatpush1.msra.mxu0 0.0
    %6253 = vmatprep.subr.mxu0 0.0
    %6254 = vmatpush1.msra.mxu0 0.0
    %6255 = vmatprep.subr.mxu0 0.0
    %6256 = vmatpush1.msra.mxu0 0.0
    %6257 = vmatprep.subr.mxu0 0.0
    %6258 = vmatpush1.msra.mxu0 0.0
    %6259 = vmatprep.subr.mxu0 0.0
    %6260 = vmatpush1.msra.mxu0 0.0
    %6261 = vmatprep.subr.mxu0 0.0
    %6262 = vmatpush1.msra.mxu0 0.0
    %6263 = vmatprep.subr.mxu0 0.0
    %6264 = vmatpush1.msra.mxu0 0.0
    %6265 = vmatprep.subr.mxu0 0.0
    %6266 = vmatpush1.msra.mxu0 0.0
    %6267 = vmatprep.subr.mxu0 0.0
    %6268 = vmatpush1.msra.mxu0 0.0
    %6269 = vmatprep.subr.mxu0 0.0
    %6270 = vmatpush1.msra.mxu0 0.0
    %6271 = vmatprep.subr.mxu0 0.0
    %6272 = vmatpush1.msra.mxu0 0.0
    %6273 = vmatprep.subr.mxu0 0.0
    %6274 = vmatpush1.msra.mxu0 0.0
    %6275 = vmatprep.subr.mxu0 0.0
    %6276 = vmatpush1.msra.mxu0 0.0
    %6277 = vmatprep.subr.mxu0 0.0
    %6278 = vmatpush1.msra.mxu0 0.0
    %6279 = vmatprep.subr.mxu0 0.0
    %6280 = vmatpush1.msra.mxu0 0.0
    %6281 = vmatprep.subr.mxu0 0.0
    %6282 = vmatpush1.msra.mxu0 0.0
    %6283 = vmatprep.subr.mxu0 0.0
    %6284 = vmatpush1.msra.mxu0 0.0
    %6285 = vmatprep.subr.mxu0 0.0
    %6286 = vmatpush1.msra.mxu0 0.0
    %6287 = vmatprep.subr.mxu0 0.0
    %6288 = vmatpush1.msra.mxu0 0.0
    %6289 = vmatprep.subr.mxu0 0.0
    %6290 = vmatpush1.msra.mxu0 0.0
    %6291 = vmatprep.subr.mxu0 0.0
    %6292 = vmatpush1.msra.mxu0 0.0
    %6293 = vmatprep.subr.mxu0 0.0
    %6294 = vmatpush1.msra.mxu0 0.0
    %6295 = vmatprep.subr.mxu0 0.0
    %6296 = vmatpush1.msra.mxu0 0.0
    %6297 = vmatprep.subr.mxu0 0.0
    %6298 = vmatpush1.msra.mxu0 0.0
    %6299 = vmatprep.subr.mxu0 0.0
    %6300 = vmatpush1.msra.mxu0 0.0
    %6301 = vmatprep.mubr.f32.mxu0 0.0
    %6302 = vmatmul.mubr.f32.gmra.mrb[0].mxu0 %v6022
    %v6303 = vpop.f32.mrb[0].mxu0
    %v6304 = vadd.f32 0.0, %v6303
    %v6305 = vpop.f32.mrb[0].mxu0
    %v6306 = vadd.f32 0.0, %v6305
    %6307 = vdwg.mxu0
    %v6308 = vadd.f32 %v6091, %v6162
    %v6309 = vadd.f32 %v6093, %v6164
    %v6310 = vadd.f32 %v6308, %v6233
    %v6311 = vadd.f32 %v6309, %v6235
    %v6312 = vadd.f32 %v6310, %v6304
    %v6313 = vadd.f32 %v6311, %v6306
    %v6315 = vlaneseq
    %v6316 = vshrl.u32 %v6315, 7
    %v6317 = vsub.s32 0, %v6316
    %v6318 = vrot.slane %v5727, %v6317
    %v6319 = vlaneseq
    %v6320 = vshrl.u32 %v6319, 7
    %v6321 = vsub.s32 1, %v6320
    %v6322 = vrot.slane %v5727, %v6321
    %v6325 = vadd.f32 %v6312, %v6318
    %v6326 = vadd.f32 %v6313, %v6322
    %v6327 = vmax.f32 %v6325, 0.0
    %v6328 = vmax.f32 %v6326, 0.0
    %v6330 = vlaneseq
    %v6331 = vshrl.u32 %v6330, 7
    %v6332 = vsub.s32 0, %v6331
    %v6333 = vrot.slane %v5728, %v6332
    %6335 = vmatprep.subr.mxu0 0.0
    %6336 = vmatpush1.msra.mxu0 %v5694
    %6337 = vmatprep.subr.mxu0 0.0
    %6338 = vmatpush1.msra.mxu0 %v5695
    %6339 = vmatprep.subr.mxu0 0.0
    %6340 = vmatpush1.msra.mxu0 %v5696
    %6341 = vmatprep.subr.mxu0 0.0
    %6342 = vmatpush1.msra.mxu0 %v5697
    %6343 = vmatprep.subr.mxu0 0.0
    %6344 = vmatpush1.msra.mxu0 %v5698
    %6345 = vmatprep.subr.mxu0 0.0
    %6346 = vmatpush1.msra.mxu0 %v5699
    %6347 = vmatprep.subr.mxu0 0.0
    %6348 = vmatpush1.msra.mxu0 %v5700
    %6349 = vmatprep.subr.mxu0 0.0
    %6350 = vmatpush1.msra.mxu0 %v5701
    %6351 = vmatprep.subr.mxu0 0.0
    %6352 = vmatpush1.msra.mxu0 %v5702
    %6353 = vmatprep.subr.mxu0 0.0
    %6354 = vmatpush1.msra.mxu0 %v5703
    %6355 = vmatprep.subr.mxu0 0.0
    %6356 = vmatpush1.msra.mxu0 %v5704
    %6357 = vmatprep.subr.mxu0 0.0
    %6358 = vmatpush1.msra.mxu0 %v5705
    %6359 = vmatprep.subr.mxu0 0.0
    %6360 = vmatpush1.msra.mxu0 %v5706
    %6361 = vmatprep.subr.mxu0 0.0
    %6362 = vmatpush1.msra.mxu0 %v5707
    %6363 = vmatprep.subr.mxu0 0.0
    %6364 = vmatpush1.msra.mxu0 %v5708
    %6365 = vmatprep.subr.mxu0 0.0
    %6366 = vmatpush1.msra.mxu0 %v5709
    %6367 = vmatprep.subr.mxu0 0.0
    %6368 = vmatpush1.msra.mxu0 %v5710
    %6369 = vmatprep.subr.mxu0 0.0
    %6370 = vmatpush1.msra.mxu0 %v5711
    %6371 = vmatprep.subr.mxu0 0.0
    %6372 = vmatpush1.msra.mxu0 %v5712
    %6373 = vmatprep.subr.mxu0 0.0
    %6374 = vmatpush1.msra.mxu0 %v5713
    %6375 = vmatprep.subr.mxu0 0.0
    %6376 = vmatpush1.msra.mxu0 %v5714
    %6377 = vmatprep.subr.mxu0 0.0
    %6378 = vmatpush1.msra.mxu0 %v5715
    %6379 = vmatprep.subr.mxu0 0.0
    %6380 = vmatpush1.msra.mxu0 %v5716
    %6381 = vmatprep.subr.mxu0 0.0
    %6382 = vmatpush1.msra.mxu0 %v5717
    %6383 = vmatprep.subr.mxu0 0.0
    %6384 = vmatpush1.msra.mxu0 %v5718
    %6385 = vmatprep.subr.mxu0 0.0
    %6386 = vmatpush1.msra.mxu0 %v5719
    %6387 = vmatprep.subr.mxu0 0.0
    %6388 = vmatpush1.msra.mxu0 %v5720
    %6389 = vmatprep.subr.mxu0 0.0
    %6390 = vmatpush1.msra.mxu0 %v5721
    %6391 = vmatprep.subr.mxu0 0.0
    %6392 = vmatpush1.msra.mxu0 %v5722
    %6393 = vmatprep.subr.mxu0 0.0
    %6394 = vmatpush1.msra.mxu0 %v5723
    %6395 = vmatprep.subr.mxu0 0.0
    %6396 = vmatpush1.msra.mxu0 %v5724
    %6397 = vmatprep.subr.mxu0 0.0
    %6398 = vmatpush1.msra.mxu0 %v5725
    %6399 = vmatprep.mubr.f32.mxu0 %v6328
    %6400 = vmatmul.mubr.f32.gmra.mrb[0].mxu0 %v6327
    %v6401 = vpop.f32.mrb[0].mxu0
    %v6402 = vadd.f32 %v6333, %v6401
    %v6403 = vpop.f32.mrb[0].mxu0
    %6404 = vdwg.mxu0
    %6405 = vst [vmem:[#allocation23] sm:$0x3] %v6402
    // Predicated region
    $region202: #{forward.1} parent=1 // pred_check
      _
    $region203: #{forward.1} parent=1 // pred_check_branch
      %6407 = sbr.rel (0) target = $region205
    $region204: #{forward.1} parent=1 // pred_region
      %s6409 = ssub.s32 32, 32
      %6410 = vsyncadd [#allocation16], %s6409
      %s6412 = sshll.u32 [#allocation23], 4
      %s6413 = int_to_ptr.vmem [resolvable:$true] %s6412
      %6415 = dma.vmem_to_hbm [thread:$0]  %s6413, 32, %s61, [#allocation16]
    $region205: #{forward.1} parent=1 // pred_fallthru
      _
    // Predicated region
    $region206: #{forward.1} parent=1 // pred_check
      _
    $region207: #{forward.1} parent=1 // pred_check_branch
      %6417 = sbr.rel (0) target = $region209
    $region208: #{forward.1} parent=1 // pred_region
      %6418 = dma.done [#allocation16], 32
    $region209: #{forward.1} parent=1 // pred_fallthru
      _
    %6419 = vsyncpa [#allocation15], 1
    %6420 = vsyncpa [#allocation18], 1
    %6421 = vsyncpa [#allocation21], 1
    %6422 = vsyncpa [#allocation16], 1
  %6423 = vsyncmov [#allocation13]
  %s6424 = vpop.sfrf %6423
  %p6425 = scmp.eq.s32.totalorder %s6424, 0
  %p6426 = pneg %p6425
  %6428 = shalt.err (%p6426)
  %s6429 = scalar_lea.sflag [#allocation13], 1
  %6430 = vsyncmov %s6429
  %s6431 = vpop.sfrf %6430
  %p6432 = scmp.eq.s32.totalorder %s6431, 0
  %p6433 = pneg %p6432
  %6435 = shalt.err (%p6433)
  %s6436 = scalar_lea.sflag [#allocation13], 2
  %6437 = vsyncmov %s6436
  %s6438 = vpop.sfrf %6437
  %p6439 = scmp.eq.s32.totalorder %s6438, 0
  %p6440 = pneg %p6439
  %6442 = shalt.err (%p6440)
  %s6443 = scalar_lea.sflag [#allocation13], 3
  %6444 = vsyncmov %s6443
  %s6445 = vpop.sfrf %6444
  %p6446 = scmp.eq.s32.totalorder %s6445, 0
  %p6447 = pneg %p6446
  %6449 = shalt.err (%p6447)
  %s6450 = scalar_lea.sflag [#allocation13], 4
  %6451 = vsyncmov %s6450
  %s6452 = vpop.sfrf %6451
  %p6453 = scmp.eq.s32.totalorder %s6452, 0
  %p6454 = pneg %p6453
  %6456 = shalt.err (%p6454)
  %s6457 = scalar_lea.sflag [#allocation13], 5
  %6458 = vsyncmov %s6457
  %s6459 = vpop.sfrf %6458
  %p6460 = scmp.eq.s32.totalorder %s6459, 0
  %p6461 = pneg %p6460
  %6463 = shalt.err (%p6461)
  %s6464 = scalar_lea.sflag [#allocation13], 6
  %6465 = vsyncmov %s6464
  %s6466 = vpop.sfrf %6465
  %p6467 = scmp.eq.s32.totalorder %s6466, 0
  %p6468 = pneg %p6467
  %6470 = shalt.err (%p6468)
  %s6471 = scalar_lea.sflag [#allocation13], 7
  %6472 = vsyncmov %s6471
  %s6473 = vpop.sfrf %6472
  %p6474 = scmp.eq.s32.totalorder %s6473, 0
  %p6475 = pneg %p6474
  %6477 = shalt.err (%p6475)
  %s6478 = scalar_lea.sflag [#allocation13], 8
  %6479 = vsyncmov %s6478
  %s6480 = vpop.sfrf %6479
  %p6481 = scmp.eq.s32.totalorder %s6480, 0
  %p6482 = pneg %p6481
  %6484 = shalt.err (%p6482)
  %s6485 = scalar_lea.sflag [#allocation13], 9
  %6486 = vsyncmov %s6485
  %s6487 = vpop.sfrf %6486
  %p6488 = scmp.eq.s32.totalorder %s6487, 0
  %p6489 = pneg %p6488
  %6491 = shalt.err (%p6489)
  %s6492 = scalar_lea.sflag [#allocation13], 10
  %6493 = vsyncmov %s6492
  %s6494 = vpop.sfrf %6493
  %p6495 = scmp.eq.s32.totalorder %s6494, 0
  %p6496 = pneg %p6495
  %6498 = shalt.err (%p6496)

</llo_original>
